<compile_context>
chip_gen: v5e
topology: v5e:2x2
jax: 0.10.0
libtpu: 0.0.40
codegen_flags: <defaults>
</compile_context>

<pallas_src>
import math
from collections import namedtuple

import jax
import jax.numpy as jnp
import numpy as np
from jax import lax
from jax.experimental import pallas as pl
from jax.experimental.pallas import tpu as pltpu

LANE = 128
_BN_EPS = 1e-5

# Static per-conv-layer geometry used to generate the fused kernel.
#   cin/cout : real (unpadded) channel counts
#   h, w     : input spatial size of the layer
#   pool     : MaxPool2d(2,2) fused after this conv
#   rs       : row stride of the conv-output flat layout
#              (= w for the stem's dense im2col layout, = Wp for halo layouts)
#   lpad     : flat length of the halo-padded input buffer ((h+3)*Wp), 0 for stem
#   m        : number of flat rows fed to the matmul (h*rs)
#   ho, wo   : output spatial size after the optional pool
LayerDesc = namedtuple(
    "LayerDesc", ["cin", "cout", "h", "w", "pool", "rs", "lpad", "m", "ho", "wo"])


def _round_up(x, m):
    return (x + m - 1) // m * m


def make_plan(cfg, input_size):
    """Static layer descriptors mirroring VGG.make_layers(cfg)."""
    assert cfg and cfg[0] != "M", "leading 'M' is unsupported"
    descs = []
    in_c, h, w = 3, input_size, input_size
    i = 0
    while i < len(cfg):
        c = cfg[i]
        assert c != "M", "consecutive 'M' entries are unsupported"
        pool = (i + 1 < len(cfg)) and cfg[i + 1] == "M"
        if not descs:                         # stem: dense wrapper-built im2col
            rs, lpad, m = w, 0, h * w
        else:                                 # halo-padded flat layout
            rs = _round_up(w + 2, 8)
            lpad = (h + 3) * rs
            m = h * rs
        ho, wo = (h // 2, w // 2) if pool else (h, w)
        descs.append(LayerDesc(in_c, c, h, w, pool, rs, lpad, m, ho, wo))
        in_c = c
        if pool:
            assert h % 2 == 0 and w % 2 == 0
            h, w = h // 2, w // 2
            i += 2
        else:
            i += 1
    assert h == 2 and w == 2, \
        "head (AvgPool2d(2) -> flatten -> Linear(cfg[-1])) needs a 2x2 final map"
    return tuple(descs)


# ----------------------------- fused Pallas kernel ---------------------------


def make_vgg_kernel(descs, act_dtype):
    n_layers = len(descs)
    n_pool = sum(1 for d in descs if d.pool)

    def kernel(*refs):
        pos = 0
        x_ref = refs[pos]; pos += 1                       # stem im2col LHS
        w_refs, b_refs = [], []
        for _ in range(n_layers):
            w_refs.append(refs[pos]); b_refs.append(refs[pos + 1]); pos += 2
        wc_ref, bc_ref = refs[pos], refs[pos + 1]; pos += 2
        o_ref = refs[pos]; pos += 1
        pad_refs = [None] + list(refs[pos:pos + n_layers - 1]); pos += n_layers - 1
        vbuf_refs = list(refs[pos:pos + n_pool]); pos += n_pool

        # Zero the halo-padded activation buffers (halo stays zero; interiors
        # are fully rewritten below).  A few KiB of VMEM memset per image.
        for p in pad_refs[1:]:
            p[...] = jnp.zeros(p.shape, p.dtype)

        head_rows = None
        vb = 0
        for l, d in enumerate(descs):
            last = (l == n_layers - 1)

            # ---- 3x3 conv (stride 1, pad 1) + folded BN + ReLU --------------
            if l == 0:
                # Stem: single matmul with the 9 taps folded into K = 9*Cin.
                acc = jnp.dot(x_ref[0], w_refs[0][...],
                              preferred_element_type=jnp.float32)
            else:
                # Implicit im2col on real channels: 9 shifted matmuls,
                # f32 accumulation on the MXU.
                pad = pad_refs[l]
                acc = jnp.dot(pad[pl.ds(0, d.m), :], w_refs[l][0],
                              preferred_element_type=jnp.float32)
                for k in range(1, 9):
                    dy, dx = divmod(k, 3)
                    acc += jnp.dot(pad[pl.ds(dy * d.rs + dx, d.m), :],
                                   w_refs[l][k],
                                   preferred_element_type=jnp.float32)
            out = jnp.maximum(acc + b_refs[l][...], 0.0)      # (m, cout) f32

            # ---- fused MaxPool2d(2,2) / handoff to the next layer -----------
            if d.pool:
                vbuf = vbuf_refs[vb]; vb += 1
                rows = []
                for i in range(d.ho):
                    top = out[(2 * i) * d.rs:(2 * i) * d.rs + d.rs, :]
                    bot = out[(2 * i + 1) * d.rs:(2 * i + 1) * d.rs + d.rs, :]
                    vbuf[...] = jnp.maximum(top, bot)          # row-pair max
                    pooled = jnp.maximum(                      # column-pair max
                        vbuf[pl.ds(0, d.wo, stride=2), :],
                        vbuf[pl.ds(1, d.wo, stride=2), :])     # (wo, cout) f32
                    if last:
                        rows.append(pooled)
                    else:
                        nrs = descs[l + 1].rs
                        pad_refs[l + 1][pl.ds((i + 1) * nrs + 1, d.wo), :] = (
                            pooled.astype(act_dtype))
                if last:
                    head_rows = rows
            else:
                if last:
                    head_rows = [out[r * d.rs:r * d.rs + d.w, :]
                                 for r in range(d.h)]
                else:
                    nrs = descs[l + 1].rs
                    for r in range(d.h):
                        pad_refs[l + 1][pl.ds((r + 1) * nrs + 1, d.w), :] = (
                            out[r * d.rs:r * d.rs + d.w, :].astype(act_dtype))

        # ---- head: AvgPool2d(2) on the 2x2 map -> flatten -> Linear ---------
        feat = sum(jnp.sum(r, axis=0, keepdims=True) for r in head_rows) * 0.25
        logits = jnp.dot(feat.astype(act_dtype), wc_ref[...],
                         preferred_element_type=jnp.float32) + bc_ref[...]
        o_ref[0] = logits                                   # lane-dense (1, 128)

    return kernel


# --------------------------------- wrapper -----------------------------------


def _stem_im2col(x_nhwc, act_dtype):
    """Tiny im2col for the 3-channel stem only: (N, H, W, 3) -> (N, H*W, 27)."""
    n, h, w, c = x_nhwc.shape
    xp = jnp.pad(x_nhwc, ((0, 0), (1, 1), (1, 1), (0, 0)))
    taps = [xp[:, dy:dy + h, dx:dx + w, :] for dy in range(3) for dx in range(3)]
    return jnp.concatenate(taps, axis=-1).reshape(n, h * w, 9 * c).astype(act_dtype)


def vgg_forward(x_nchw, packed, descs):
    act_dtype = packed["act_dtype"]
    n = x_nchw.shape[0]
    x_nhwc = jnp.transpose(x_nchw, (0, 2, 3, 1)).astype(jnp.float32)
    lhs0 = _stem_im2col(x_nhwc, act_dtype)

    n_layers = len(descs)
    ncp = packed["wc"].shape[1]
    c_last = packed["wc"].shape[0]

    inputs = [lhs0]
    in_specs = [pl.BlockSpec((1, lhs0.shape[1], lhs0.shape[2]),
                             lambda i: (i, 0, 0))]
    for l in range(n_layers):
        wl, bl = packed["conv_w"][l], packed["conv_b"][l]
        inputs += [wl, bl]
        wmap = (lambda i: (0, 0)) if wl.ndim == 2 else (lambda i: (0, 0, 0))
        in_specs.append(pl.BlockSpec(tuple(wl.shape), wmap))
        in_specs.append(pl.BlockSpec(tuple(bl.shape), lambda i: (0, 0)))
    inputs += [packed["wc"], packed["bc"]]
    in_specs += [pl.BlockSpec(tuple(packed["wc"].shape), lambda i: (0, 0)),
                 pl.BlockSpec(tuple(packed["bc"].shape), lambda i: (0, 0))]

    out_shape = jax.ShapeDtypeStruct((n, 1, ncp), jnp.float32)
    out_specs = pl.BlockSpec((1, 1, ncp), lambda i: (i, 0, 0))

    scratch = [pltpu.VMEM((d.lpad, d.cin), act_dtype) for d in descs[1:]]
    scratch += [pltpu.VMEM((d.rs, d.cout), jnp.float32) for d in descs if d.pool]

    flops = sum(2 * d.m * 9 * d.cin * d.cout for d in descs) + 2 * c_last * ncp
    flops = int(n * flops)
    bytes_accessed = int(sum(int(a.size) * a.dtype.itemsize for a in inputs)
                         + n * ncp * 4)

    out = pl.pallas_call(
        make_vgg_kernel(descs, act_dtype),
        out_shape=out_shape,
        grid_spec=pltpu.PrefetchScalarGridSpec(
            num_scalar_prefetch=0,
            grid=(n,),
            in_specs=in_specs,
            out_specs=out_specs,
            scratch_shapes=scratch),
        compiler_params=pltpu.CompilerParams(
            dimension_semantics=("parallel",),
            vmem_limit_bytes=8 * 1024 * 1024),
        cost_estimate=pl.CostEstimate(flops=flops, transcendentals=0,
                                      bytes_accessed=bytes_accessed),
    )(*inputs)
    return out[:, 0, :packed["n_class"]]                 # drop class padding


# ----------------------------- parameter handling ----------------------------


def init_raw_params(key, cfg, n_class):
    """Mirror VGG._initial_weights: conv N(0, sqrt(2/(3*3*out))), BN gamma=1 /
    beta=0 (running mean=0, var=1), Linear N(0, 0.01), biases zero."""
    feats = []
    in_c = 3
    for c in cfg:
        if c == "M":
            feats.append("M")
            continue
        key, k1 = jax.random.split(key)
        std = math.sqrt(2.0 / (3 * 3 * c))
        feats.append({
            "w": jax.random.normal(k1, (c, in_c, 3, 3), jnp.float32) * std,  # OIHW
            "gamma": jnp.ones((c,), jnp.float32),
            "beta": jnp.zeros((c,), jnp.float32),
            "mean": jnp.zeros((c,), jnp.float32),
            "var": jnp.ones((c,), jnp.float32),
        })
        in_c = c
    key, k2 = jax.random.split(key)
    w_cls = jax.random.normal(k2, (n_class, in_c), jnp.float32) * 0.01
    return {"feature": feats,
            "classifier": {"w": w_cls, "b": jnp.zeros((n_class,), jnp.float32)},
            "n_class": n_class}


def pack_params(raw, act_dtype):
    """Fold eval-mode BN into the conv weights/bias; stem weight is repacked
    with the 9 taps folded into K (K = 9*Cin), inner layers as (9, Cin, Cout);
    classifier output is lane-padded to 128."""
    conv_w, conv_b = [], []
    first = True
    for layer in raw["feature"]:
        if layer == "M":
            continue
        w = layer["w"]                                    # (Cout, Cin, 3, 3)
        cout, cin = w.shape[0], w.shape[1]
        scale = layer["gamma"] / jnp.sqrt(layer["var"] + _BN_EPS)
        bias = layer["beta"] - layer["mean"] * scale
        wk = jnp.transpose(w, (2, 3, 1, 0)).reshape(9 * cin, cout) * scale[None, :]
        if first:
            conv_w.append(wk.astype(act_dtype))           # stem: (27, Cout)
            first = False
        else:
            conv_w.append(wk.reshape(9, cin, cout).astype(act_dtype))
        conv_b.append(bias.reshape(1, cout).astype(jnp.float32))

    w_cls, b_cls = raw["classifier"]["w"], raw["classifier"]["b"]
    n_class, c_last = w_cls.shape
    ncp = _round_up(n_class, LANE)
    wc = jnp.pad(jnp.transpose(w_cls), ((0, 0), (0, ncp - n_class))).astype(act_dtype)
    bc = jnp.pad(b_cls, (0, ncp - n_class)).reshape(1, ncp).astype(jnp.float32)
    return {"conv_w": conv_w, "conv_b": conv_b, "wc": wc, "bc": bc,
            "act_dtype": act_dtype, "n_class": n_class}


# --------------------------------- reference ----------------------------------


def vgg_reference(x_nchw, raw):
    """Pure-JAX NCHW reference mirroring the PyTorch forward (eval-mode BN)."""
    x = x_nchw.astype(jnp.float32)
    for layer in raw["feature"]:
        if layer == "M":
            n, c, h, w = x.shape
            x = jnp.max(x.reshape(n, c, h // 2, 2, w // 2, 2), axis=(3, 5))
        else:
            x = lax.conv_general_dilated(
                x, layer["w"], window_strides=(1, 1),
                padding=((1, 1), (1, 1)),
                dimension_numbers=("NCHW", "OIHW", "NCHW"),
                precision=lax.Precision.HIGHEST)
            scale = layer["gamma"] / jnp.sqrt(layer["var"] + _BN_EPS)
            bias = layer["beta"] - layer["mean"] * scale
            x = jnp.maximum(x * scale[None, :, None, None]
                            + bias[None, :, None, None], 0.0)
    pooled = jnp.mean(x, axis=(2, 3))                     # AvgPool2d(2) on 2x2
    return pooled @ raw["classifier"]["w"].T + raw["classifier"]["b"][None, :]


# ------------------------------------ main ------------------------------------

if __name__ == "__main__":
    # Small VGG-style config (same make_layers semantics, scaled-down channels):
    # 16x16 input -> 16 -> 8 -> 4 -> 2 -> AvgPool2d(2) -> 1x1 -> flatten -> FC.
    cfg = [8, 8, "M", 16, "M", 32, "M", 64]
    n_class = 10
    input_size = 16

    key = jax.random.PRNGKey(0)
    kx, kp = jax.random.split(key)
    x = jax.random.normal(kx, (2, 3, input_size, input_size), jnp.float32)  # NCHW
    raw = init_raw_params(kp, cfg, n_class)
    descs = make_plan(cfg, input_size)
    ref = jax.block_until_ready(vgg_reference(x, raw))

    # Correctness check of the fused kernel with f32 activations.
    packed_f32 = pack_params(raw, jnp.float32)
    out_f32 = jax.block_until_ready(
        jax.jit(lambda v: vgg_forward(v, packed_f32, descs))(x))
    np.testing.assert_allclose(np.asarray(out_f32), np.asarray(ref),
                               atol=5e-3, rtol=5e-2)

    # Production path: bf16 MXU operands, f32 accumulation / epilogue.
    packed_bf16 = pack_params(raw, jnp.bfloat16)
    out_bf16 = jax.block_until_ready(
        jax.jit(lambda v: vgg_forward(v, packed_bf16, descs))(x))
    assert out_bf16.shape == (2, n_class) and out_bf16.dtype == jnp.float32
    np.testing.assert_allclose(np.asarray(out_bf16), np.asarray(ref),
                               atol=3e-2, rtol=2e-1)
    assert bool(jnp.all(jnp.isfinite(out_bf16)))
    print("KERNEL_OK")
</pallas_src>

<mosaic_0001>
module attributes {stable_mosaic.version = 11 : i64} {
  func.func @kernel(%arg0: i32, %arg1: memref<1x256x27xf32, #tpu.memory_space<vmem>>, %arg2: memref<27x8xf32, #tpu.memory_space<vmem>>, %arg3: memref<1x8xf32, #tpu.memory_space<vmem>>, %arg4: memref<9x8x8xf32, #tpu.memory_space<vmem>>, %arg5: memref<1x8xf32, #tpu.memory_space<vmem>>, %arg6: memref<9x8x16xf32, #tpu.memory_space<vmem>>, %arg7: memref<1x16xf32, #tpu.memory_space<vmem>>, %arg8: memref<9x16x32xf32, #tpu.memory_space<vmem>>, %arg9: memref<1x32xf32, #tpu.memory_space<vmem>>, %arg10: memref<9x32x64xf32, #tpu.memory_space<vmem>>, %arg11: memref<1x64xf32, #tpu.memory_space<vmem>>, %arg12: memref<64x128xf32, #tpu.memory_space<vmem>>, %arg13: memref<1x128xf32, #tpu.memory_space<vmem>>, %arg14: memref<1x1x128xf32, #tpu.memory_space<vmem>>, %arg15: memref<456x8xf32, #tpu.memory_space<vmem>>, %arg16: memref<176x8xf32, #tpu.memory_space<vmem>>, %arg17: memref<56x16xf32, #tpu.memory_space<vmem>>, %arg18: memref<40x32xf32, #tpu.memory_space<vmem>>, %arg19: memref<24x8xf32, #tpu.memory_space<vmem>>, %arg20: memref<16x16xf32, #tpu.memory_space<vmem>>, %arg21: memref<8x32xf32, #tpu.memory_space<vmem>>) attributes {dimension_semantics = [#tpu.dimension_semantics<parallel>], iteration_bounds = array<i64: 2>, scalar_prefetch = 0 : i64, scratch_operands = 7 : i64, tpu.core_type = #tpu.core_type<tc>, window_params = [{transform_indices = @transform_0, window_bounds = array<i64: 1, 256, 27>}, {pipeline_mode = #tpu.pipeline_mode<synchronous>, transform_indices = @transform_1, window_bounds = array<i64: 27, 8>}, {pipeline_mode = #tpu.pipeline_mode<synchronous>, transform_indices = @transform_2, window_bounds = array<i64: 1, 8>}, {pipeline_mode = #tpu.pipeline_mode<synchronous>, transform_indices = @transform_3, window_bounds = array<i64: 9, 8, 8>}, {pipeline_mode = #tpu.pipeline_mode<synchronous>, transform_indices = @transform_4, window_bounds = array<i64: 1, 8>}, {pipeline_mode = #tpu.pipeline_mode<synchronous>, transform_indices = @transform_5, window_bounds = array<i64: 9, 8, 16>}, {pipeline_mode = #tpu.pipeline_mode<synchronous>, transform_indices = @transform_6, window_bounds = array<i64: 1, 16>}, {pipeline_mode = #tpu.pipeline_mode<synchronous>, transform_indices = @transform_7, window_bounds = array<i64: 9, 16, 32>}, {pipeline_mode = #tpu.pipeline_mode<synchronous>, transform_indices = @transform_8, window_bounds = array<i64: 1, 32>}, {pipeline_mode = #tpu.pipeline_mode<synchronous>, transform_indices = @transform_9, window_bounds = array<i64: 9, 32, 64>}, {pipeline_mode = #tpu.pipeline_mode<synchronous>, transform_indices = @transform_10, window_bounds = array<i64: 1, 64>}, {pipeline_mode = #tpu.pipeline_mode<synchronous>, transform_indices = @transform_11, window_bounds = array<i64: 64, 128>}, {pipeline_mode = #tpu.pipeline_mode<synchronous>, transform_indices = @transform_12, window_bounds = array<i64: 1, 128>}, {transform_indices = @transform_13, window_bounds = array<i64: 1, 1, 128>}]} {
    %cst = arith.constant 0.000000e+00 : f32
    %0 = vector.broadcast %cst : f32 to vector<456x8xf32>
    %c0 = arith.constant 0 : index
    %c0_0 = arith.constant 0 : index
    %1 = vector.load %arg15[%c0, %c0_0] : memref<456x8xf32, #tpu.memory_space<vmem>>, vector<456x8xf32>
    tpu.vector_store %arg15[%c0, %c0_0], %0 {strides = array<i32>} : memref<456x8xf32, #tpu.memory_space<vmem>>, vector<456x8xf32>,
    %cst_1 = arith.constant 0.000000e+00 : f32
    %2 = vector.broadcast %cst_1 : f32 to vector<176x8xf32>
    %c0_2 = arith.constant 0 : index
    %c0_3 = arith.constant 0 : index
    %3 = vector.load %arg16[%c0_2, %c0_3] : memref<176x8xf32, #tpu.memory_space<vmem>>, vector<176x8xf32>
    tpu.vector_store %arg16[%c0_2, %c0_3], %2 {strides = array<i32>} : memref<176x8xf32, #tpu.memory_space<vmem>>, vector<176x8xf32>,
    %cst_4 = arith.constant 0.000000e+00 : f32
    %4 = vector.broadcast %cst_4 : f32 to vector<56x16xf32>
    %c0_5 = arith.constant 0 : index
    %c0_6 = arith.constant 0 : index
    %5 = vector.load %arg17[%c0_5, %c0_6] : memref<56x16xf32, #tpu.memory_space<vmem>>, vector<56x16xf32>
    tpu.vector_store %arg17[%c0_5, %c0_6], %4 {strides = array<i32>} : memref<56x16xf32, #tpu.memory_space<vmem>>, vector<56x16xf32>,
    %cst_7 = arith.constant 0.000000e+00 : f32
    %6 = vector.broadcast %cst_7 : f32 to vector<40x32xf32>
    %c0_8 = arith.constant 0 : index
    %c0_9 = arith.constant 0 : index
    %7 = vector.load %arg18[%c0_8, %c0_9] : memref<40x32xf32, #tpu.memory_space<vmem>>, vector<40x32xf32>
    tpu.vector_store %arg18[%c0_8, %c0_9], %6 {strides = array<i32>} : memref<40x32xf32, #tpu.memory_space<vmem>>, vector<40x32xf32>,
    %c0_10 = arith.constant 0 : index
    %c0_11 = arith.constant 0 : index
    %c0_12 = arith.constant 0 : index
    %8 = vector.load %arg1[%c0_10, %c0_11, %c0_12] : memref<1x256x27xf32, #tpu.memory_space<vmem>>, vector<1x256x27xf32>
    %9 = vector.shape_cast %8 : vector<1x256x27xf32> to vector<256x27xf32>
    %c0_13 = arith.constant 0 : index
    %c0_14 = arith.constant 0 : index
    %10 = vector.load %arg2[%c0_13, %c0_14] : memref<27x8xf32, #tpu.memory_space<vmem>>, vector<27x8xf32>
    %cst_15 = arith.constant dense<0.000000e+00> : vector<256x8xf32>
    %11 = tpu.matmul %9, %10, %cst_15 {dimension_numbers = #tpu.dot_dimension_numbers<[1], [0], [0], [1], [0, 0, 1, 1], [], []>} : vector<256x27xf32>, vector<27x8xf32>, vector<256x8xf32> -> vector<256x8xf32>
    %c0_16 = arith.constant 0 : index
    %c0_17 = arith.constant 0 : index
    %12 = vector.load %arg3[%c0_16, %c0_17] : memref<1x8xf32, #tpu.memory_space<vmem>>, vector<1x8xf32>
    %13 = vector.broadcast %12 : vector<1x8xf32> to vector<256x8xf32>
    %14 = arith.addf %11, %13 : vector<256x8xf32>
    %cst_18 = arith.constant 0.000000e+00 : f32
    %15 = vector.broadcast %cst_18 : f32 to vector<256x8xf32>
    %16 = arith.maximumf %14, %15 : vector<256x8xf32>
    %17 = vector.extract_strided_slice %16 {offsets = [0, 0], sizes = [16, 8], strides = [1, 1]} : vector<256x8xf32> to vector<16x8xf32>
    %c25 = arith.constant 25 : index
    %c0_19 = arith.constant 0 : index
    %18 = vector.load %arg15[%c25, %c0_19] : memref<456x8xf32, #tpu.memory_space<vmem>>, vector<16x8xf32>
    tpu.vector_store %arg15[%c25, %c0_19], %17 {strides = array<i32>} : memref<456x8xf32, #tpu.memory_space<vmem>>, vector<16x8xf32>,
    %19 = vector.extract_strided_slice %16 {offsets = [16, 0], sizes = [16, 8], strides = [1, 1]} : vector<256x8xf32> to vector<16x8xf32>
    %c49 = arith.constant 49 : index
    %c0_20 = arith.constant 0 : index
    %20 = vector.load %arg15[%c49, %c0_20] : memref<456x8xf32, #tpu.memory_space<vmem>>, vector<16x8xf32>
    tpu.vector_store %arg15[%c49, %c0_20], %19 {strides = array<i32>} : memref<456x8xf32, #tpu.memory_space<vmem>>, vector<16x8xf32>,
    %21 = vector.extract_strided_slice %16 {offsets = [32, 0], sizes = [16, 8], strides = [1, 1]} : vector<256x8xf32> to vector<16x8xf32>
    %c73 = arith.constant 73 : index
    %c0_21 = arith.constant 0 : index
    %22 = vector.load %arg15[%c73, %c0_21] : memref<456x8xf32, #tpu.memory_space<vmem>>, vector<16x8xf32>
    tpu.vector_store %arg15[%c73, %c0_21], %21 {strides = array<i32>} : memref<456x8xf32, #tpu.memory_space<vmem>>, vector<16x8xf32>,
    %23 = vector.extract_strided_slice %16 {offsets = [48, 0], sizes = [16, 8], strides = [1, 1]} : vector<256x8xf32> to vector<16x8xf32>
    %c97 = arith.constant 97 : index
    %c0_22 = arith.constant 0 : index
    %24 = vector.load %arg15[%c97, %c0_22] : memref<456x8xf32, #tpu.memory_space<vmem>>, vector<16x8xf32>
    tpu.vector_store %arg15[%c97, %c0_22], %23 {strides = array<i32>} : memref<456x8xf32, #tpu.memory_space<vmem>>, vector<16x8xf32>,
    %25 = vector.extract_strided_slice %16 {offsets = [64, 0], sizes = [16, 8], strides = [1, 1]} : vector<256x8xf32> to vector<16x8xf32>
    %c121 = arith.constant 121 : index
    %c0_23 = arith.constant 0 : index
    %26 = vector.load %arg15[%c121, %c0_23] : memref<456x8xf32, #tpu.memory_space<vmem>>, vector<16x8xf32>
    tpu.vector_store %arg15[%c121, %c0_23], %25 {strides = array<i32>} : memref<456x8xf32, #tpu.memory_space<vmem>>, vector<16x8xf32>,
    %27 = vector.extract_strided_slice %16 {offsets = [80, 0], sizes = [16, 8], strides = [1, 1]} : vector<256x8xf32> to vector<16x8xf32>
    %c145 = arith.constant 145 : index
    %c0_24 = arith.constant 0 : index
    %28 = vector.load %arg15[%c145, %c0_24] : memref<456x8xf32, #tpu.memory_space<vmem>>, vector<16x8xf32>
    tpu.vector_store %arg15[%c145, %c0_24], %27 {strides = array<i32>} : memref<456x8xf32, #tpu.memory_space<vmem>>, vector<16x8xf32>,
    %29 = vector.extract_strided_slice %16 {offsets = [96, 0], sizes = [16, 8], strides = [1, 1]} : vector<256x8xf32> to vector<16x8xf32>
    %c169 = arith.constant 169 : index
    %c0_25 = arith.constant 0 : index
    %30 = vector.load %arg15[%c169, %c0_25] : memref<456x8xf32, #tpu.memory_space<vmem>>, vector<16x8xf32>
    tpu.vector_store %arg15[%c169, %c0_25], %29 {strides = array<i32>} : memref<456x8xf32, #tpu.memory_space<vmem>>, vector<16x8xf32>,
    %31 = vector.extract_strided_slice %16 {offsets = [112, 0], sizes = [16, 8], strides = [1, 1]} : vector<256x8xf32> to vector<16x8xf32>
    %c193 = arith.constant 193 : index
    %c0_26 = arith.constant 0 : index
    %32 = vector.load %arg15[%c193, %c0_26] : memref<456x8xf32, #tpu.memory_space<vmem>>, vector<16x8xf32>
    tpu.vector_store %arg15[%c193, %c0_26], %31 {strides = array<i32>} : memref<456x8xf32, #tpu.memory_space<vmem>>, vector<16x8xf32>,
    %33 = vector.extract_strided_slice %16 {offsets = [128, 0], sizes = [16, 8], strides = [1, 1]} : vector<256x8xf32> to vector<16x8xf32>
    %c217 = arith.constant 217 : index
    %c0_27 = arith.constant 0 : index
    %34 = vector.load %arg15[%c217, %c0_27] : memref<456x8xf32, #tpu.memory_space<vmem>>, vector<16x8xf32>
    tpu.vector_store %arg15[%c217, %c0_27], %33 {strides = array<i32>} : memref<456x8xf32, #tpu.memory_space<vmem>>, vector<16x8xf32>,
    %35 = vector.extract_strided_slice %16 {offsets = [144, 0], sizes = [16, 8], strides = [1, 1]} : vector<256x8xf32> to vector<16x8xf32>
    %c241 = arith.constant 241 : index
    %c0_28 = arith.constant 0 : index
    %36 = vector.load %arg15[%c241, %c0_28] : memref<456x8xf32, #tpu.memory_space<vmem>>, vector<16x8xf32>
    tpu.vector_store %arg15[%c241, %c0_28], %35 {strides = array<i32>} : memref<456x8xf32, #tpu.memory_space<vmem>>, vector<16x8xf32>,
    %37 = vector.extract_strided_slice %16 {offsets = [160, 0], sizes = [16, 8], strides = [1, 1]} : vector<256x8xf32> to vector<16x8xf32>
    %c265 = arith.constant 265 : index
    %c0_29 = arith.constant 0 : index
    %38 = vector.load %arg15[%c265, %c0_29] : memref<456x8xf32, #tpu.memory_space<vmem>>, vector<16x8xf32>
    tpu.vector_store %arg15[%c265, %c0_29], %37 {strides = array<i32>} : memref<456x8xf32, #tpu.memory_space<vmem>>, vector<16x8xf32>,
    %39 = vector.extract_strided_slice %16 {offsets = [176, 0], sizes = [16, 8], strides = [1, 1]} : vector<256x8xf32> to vector<16x8xf32>
    %c289 = arith.constant 289 : index
    %c0_30 = arith.constant 0 : index
    %40 = vector.load %arg15[%c289, %c0_30] : memref<456x8xf32, #tpu.memory_space<vmem>>, vector<16x8xf32>
    tpu.vector_store %arg15[%c289, %c0_30], %39 {strides = array<i32>} : memref<456x8xf32, #tpu.memory_space<vmem>>, vector<16x8xf32>,
    %41 = vector.extract_strided_slice %16 {offsets = [192, 0], sizes = [16, 8], strides = [1, 1]} : vector<256x8xf32> to vector<16x8xf32>
    %c313 = arith.constant 313 : index
    %c0_31 = arith.constant 0 : index
    %42 = vector.load %arg15[%c313, %c0_31] : memref<456x8xf32, #tpu.memory_space<vmem>>, vector<16x8xf32>
    tpu.vector_store %arg15[%c313, %c0_31], %41 {strides = array<i32>} : memref<456x8xf32, #tpu.memory_space<vmem>>, vector<16x8xf32>,
    %43 = vector.extract_strided_slice %16 {offsets = [208, 0], sizes = [16, 8], strides = [1, 1]} : vector<256x8xf32> to vector<16x8xf32>
    %c337 = arith.constant 337 : index
    %c0_32 = arith.constant 0 : index
    %44 = vector.load %arg15[%c337, %c0_32] : memref<456x8xf32, #tpu.memory_space<vmem>>, vector<16x8xf32>
    tpu.vector_store %arg15[%c337, %c0_32], %43 {strides = array<i32>} : memref<456x8xf32, #tpu.memory_space<vmem>>, vector<16x8xf32>,
    %45 = vector.extract_strided_slice %16 {offsets = [224, 0], sizes = [16, 8], strides = [1, 1]} : vector<256x8xf32> to vector<16x8xf32>
    %c361 = arith.constant 361 : index
    %c0_33 = arith.constant 0 : index
    %46 = vector.load %arg15[%c361, %c0_33] : memref<456x8xf32, #tpu.memory_space<vmem>>, vector<16x8xf32>
    tpu.vector_store %arg15[%c361, %c0_33], %45 {strides = array<i32>} : memref<456x8xf32, #tpu.memory_space<vmem>>, vector<16x8xf32>,
    %47 = vector.extract_strided_slice %16 {offsets = [240, 0], sizes = [16, 8], strides = [1, 1]} : vector<256x8xf32> to vector<16x8xf32>
    %c385 = arith.constant 385 : index
    %c0_34 = arith.constant 0 : index
    %48 = vector.load %arg15[%c385, %c0_34] : memref<456x8xf32, #tpu.memory_space<vmem>>, vector<16x8xf32>
    tpu.vector_store %arg15[%c385, %c0_34], %47 {strides = array<i32>} : memref<456x8xf32, #tpu.memory_space<vmem>>, vector<16x8xf32>,
    %c0_35 = arith.constant 0 : index
    %c0_36 = arith.constant 0 : index
    %49 = vector.load %arg15[%c0_35, %c0_36] : memref<456x8xf32, #tpu.memory_space<vmem>>, vector<384x8xf32>
    %c0_37 = arith.constant 0 : index
    %c0_38 = arith.constant 0 : index
    %c0_39 = arith.constant 0 : index
    %50 = vector.load %arg4[%c0_37, %c0_38, %c0_39] : memref<9x8x8xf32, #tpu.memory_space<vmem>>, vector<1x8x8xf32>
    %51 = vector.shape_cast %50 : vector<1x8x8xf32> to vector<8x8xf32>
    %cst_40 = arith.constant dense<0.000000e+00> : vector<384x8xf32>
    %52 = tpu.matmul %49, %51, %cst_40 {dimension_numbers = #tpu.dot_dimension_numbers<[1], [0], [0], [1], [0, 0, 1, 1], [], []>} : vector<384x8xf32>, vector<8x8xf32>, vector<384x8xf32> -> vector<384x8xf32>
    %c1 = arith.constant 1 : index
    %c0_41 = arith.constant 0 : index
    %53 = vector.load %arg15[%c1, %c0_41] : memref<456x8xf32, #tpu.memory_space<vmem>>, vector<384x8xf32>
    %c1_42 = arith.constant 1 : index
    %c0_43 = arith.constant 0 : index
    %c0_44 = arith.constant 0 : index
    %54 = vector.load %arg4[%c1_42, %c0_43, %c0_44] : memref<9x8x8xf32, #tpu.memory_space<vmem>>, vector<1x8x8xf32>
    %55 = vector.shape_cast %54 : vector<1x8x8xf32> to vector<8x8xf32>
    %cst_45 = arith.constant dense<0.000000e+00> : vector<384x8xf32>
    %56 = tpu.matmul %53, %55, %cst_45 {dimension_numbers = #tpu.dot_dimension_numbers<[1], [0], [0], [1], [0, 0, 1, 1], [], []>} : vector<384x8xf32>, vector<8x8xf32>, vector<384x8xf32> -> vector<384x8xf32>
    %57 = arith.addf %52, %56 : vector<384x8xf32>
    %c2 = arith.constant 2 : index
    %c0_46 = arith.constant 0 : index
    %58 = vector.load %arg15[%c2, %c0_46] : memref<456x8xf32, #tpu.memory_space<vmem>>, vector<384x8xf32>
    %c2_47 = arith.constant 2 : index
    %c0_48 = arith.constant 0 : index
    %c0_49 = arith.constant 0 : index
    %59 = vector.load %arg4[%c2_47, %c0_48, %c0_49] : memref<9x8x8xf32, #tpu.memory_space<vmem>>, vector<1x8x8xf32>
    %60 = vector.shape_cast %59 : vector<1x8x8xf32> to vector<8x8xf32>
    %cst_50 = arith.constant dense<0.000000e+00> : vector<384x8xf32>
    %61 = tpu.matmul %58, %60, %cst_50 {dimension_numbers = #tpu.dot_dimension_numbers<[1], [0], [0], [1], [0, 0, 1, 1], [], []>} : vector<384x8xf32>, vector<8x8xf32>, vector<384x8xf32> -> vector<384x8xf32>
    %62 = arith.addf %57, %61 : vector<384x8xf32>
    %c24 = arith.constant 24 : index
    %c0_51 = arith.constant 0 : index
    %63 = vector.load %arg15[%c24, %c0_51] : memref<456x8xf32, #tpu.memory_space<vmem>>, vector<384x8xf32>
    %c3 = arith.constant 3 : index
    %c0_52 = arith.constant 0 : index
    %c0_53 = arith.constant 0 : index
    %64 = vector.load %arg4[%c3, %c0_52, %c0_53] : memref<9x8x8xf32, #tpu.memory_space<vmem>>, vector<1x8x8xf32>
    %65 = vector.shape_cast %64 : vector<1x8x8xf32> to vector<8x8xf32>
    %cst_54 = arith.constant dense<0.000000e+00> : vector<384x8xf32>
    %66 = tpu.matmul %63, %65, %cst_54 {dimension_numbers = #tpu.dot_dimension_numbers<[1], [0], [0], [1], [0, 0, 1, 1], [], []>} : vector<384x8xf32>, vector<8x8xf32>, vector<384x8xf32> -> vector<384x8xf32>
    %67 = arith.addf %62, %66 : vector<384x8xf32>
    %c25_55 = arith.constant 25 : index
    %c0_56 = arith.constant 0 : index
    %68 = vector.load %arg15[%c25_55, %c0_56] : memref<456x8xf32, #tpu.memory_space<vmem>>, vector<384x8xf32>
    %c4 = arith.constant 4 : index
    %c0_57 = arith.constant 0 : index
    %c0_58 = arith.constant 0 : index
    %69 = vector.load %arg4[%c4, %c0_57, %c0_58] : memref<9x8x8xf32, #tpu.memory_space<vmem>>, vector<1x8x8xf32>
    %70 = vector.shape_cast %69 : vector<1x8x8xf32> to vector<8x8xf32>
    %cst_59 = arith.constant dense<0.000000e+00> : vector<384x8xf32>
    %71 = tpu.matmul %68, %70, %cst_59 {dimension_numbers = #tpu.dot_dimension_numbers<[1], [0], [0], [1], [0, 0, 1, 1], [], []>} : vector<384x8xf32>, vector<8x8xf32>, vector<384x8xf32> -> vector<384x8xf32>
    %72 = arith.addf %67, %71 : vector<384x8xf32>
    %c26 = arith.constant 26 : index
    %c0_60 = arith.constant 0 : index
    %73 = vector.load %arg15[%c26, %c0_60] : memref<456x8xf32, #tpu.memory_space<vmem>>, vector<384x8xf32>
    %c5 = arith.constant 5 : index
    %c0_61 = arith.constant 0 : index
    %c0_62 = arith.constant 0 : index
    %74 = vector.load %arg4[%c5, %c0_61, %c0_62] : memref<9x8x8xf32, #tpu.memory_space<vmem>>, vector<1x8x8xf32>
    %75 = vector.shape_cast %74 : vector<1x8x8xf32> to vector<8x8xf32>
    %cst_63 = arith.constant dense<0.000000e+00> : vector<384x8xf32>
    %76 = tpu.matmul %73, %75, %cst_63 {dimension_numbers = #tpu.dot_dimension_numbers<[1], [0], [0], [1], [0, 0, 1, 1], [], []>} : vector<384x8xf32>, vector<8x8xf32>, vector<384x8xf32> -> vector<384x8xf32>
    %77 = arith.addf %72, %76 : vector<384x8xf32>
    %c48 = arith.constant 48 : index
    %c0_64 = arith.constant 0 : index
    %78 = vector.load %arg15[%c48, %c0_64] : memref<456x8xf32, #tpu.memory_space<vmem>>, vector<384x8xf32>
    %c6 = arith.constant 6 : index
    %c0_65 = arith.constant 0 : index
    %c0_66 = arith.constant 0 : index
    %79 = vector.load %arg4[%c6, %c0_65, %c0_66] : memref<9x8x8xf32, #tpu.memory_space<vmem>>, vector<1x8x8xf32>
    %80 = vector.shape_cast %79 : vector<1x8x8xf32> to vector<8x8xf32>
    %cst_67 = arith.constant dense<0.000000e+00> : vector<384x8xf32>
    %81 = tpu.matmul %78, %80, %cst_67 {dimension_numbers = #tpu.dot_dimension_numbers<[1], [0], [0], [1], [0, 0, 1, 1], [], []>} : vector<384x8xf32>, vector<8x8xf32>, vector<384x8xf32> -> vector<384x8xf32>
    %82 = arith.addf %77, %81 : vector<384x8xf32>
    %c49_68 = arith.constant 49 : index
    %c0_69 = arith.constant 0 : index
    %83 = vector.load %arg15[%c49_68, %c0_69] : memref<456x8xf32, #tpu.memory_space<vmem>>, vector<384x8xf32>
    %c7 = arith.constant 7 : index
    %c0_70 = arith.constant 0 : index
    %c0_71 = arith.constant 0 : index
    %84 = vector.load %arg4[%c7, %c0_70, %c0_71] : memref<9x8x8xf32, #tpu.memory_space<vmem>>, vector<1x8x8xf32>
    %85 = vector.shape_cast %84 : vector<1x8x8xf32> to vector<8x8xf32>
    %cst_72 = arith.constant dense<0.000000e+00> : vector<384x8xf32>
    %86 = tpu.matmul %83, %85, %cst_72 {dimension_numbers = #tpu.dot_dimension_numbers<[1], [0], [0], [1], [0, 0, 1, 1], [], []>} : vector<384x8xf32>, vector<8x8xf32>, vector<384x8xf32> -> vector<384x8xf32>
    %87 = arith.addf %82, %86 : vector<384x8xf32>
    %c50 = arith.constant 50 : index
    %c0_73 = arith.constant 0 : index
    %88 = vector.load %arg15[%c50, %c0_73] : memref<456x8xf32, #tpu.memory_space<vmem>>, vector<384x8xf32>
    %c8 = arith.constant 8 : index
    %c0_74 = arith.constant 0 : index
    %c0_75 = arith.constant 0 : index
    %89 = vector.load %arg4[%c8, %c0_74, %c0_75] : memref<9x8x8xf32, #tpu.memory_space<vmem>>, vector<1x8x8xf32>
    %90 = vector.shape_cast %89 : vector<1x8x8xf32> to vector<8x8xf32>
    %cst_76 = arith.constant dense<0.000000e+00> : vector<384x8xf32>
    %91 = tpu.matmul %88, %90, %cst_76 {dimension_numbers = #tpu.dot_dimension_numbers<[1], [0], [0], [1], [0, 0, 1, 1], [], []>} : vector<384x8xf32>, vector<8x8xf32>, vector<384x8xf32> -> vector<384x8xf32>
    %92 = arith.addf %87, %91 : vector<384x8xf32>
    %c0_77 = arith.constant 0 : index
    %c0_78 = arith.constant 0 : index
    %93 = vector.load %arg5[%c0_77, %c0_78] : memref<1x8xf32, #tpu.memory_space<vmem>>, vector<1x8xf32>
    %94 = vector.broadcast %93 : vector<1x8xf32> to vector<384x8xf32>
    %95 = arith.addf %92, %94 : vector<384x8xf32>
    %cst_79 = arith.constant 0.000000e+00 : f32
    %96 = vector.broadcast %cst_79 : f32 to vector<384x8xf32>
    %97 = arith.maximumf %95, %96 : vector<384x8xf32>
    %98 = vector.extract_strided_slice %97 {offsets = [0, 0], sizes = [24, 8], strides = [1, 1]} : vector<384x8xf32> to vector<24x8xf32>
    %99 = vector.extract_strided_slice %97 {offsets = [24, 0], sizes = [24, 8], strides = [1, 1]} : vector<384x8xf32> to vector<24x8xf32>
    %100 = arith.maximumf %98, %99 : vector<24x8xf32>
    %c0_80 = arith.constant 0 : index
    %c0_81 = arith.constant 0 : index
    %101 = vector.load %arg19[%c0_80, %c0_81] : memref<24x8xf32, #tpu.memory_space<vmem>>, vector<24x8xf32>
    tpu.vector_store %arg19[%c0_80, %c0_81], %100 {strides = array<i32>} : memref<24x8xf32, #tpu.memory_space<vmem>>, vector<24x8xf32>,
    %c0_82 = arith.constant 0 : index
    %c0_83 = arith.constant 0 : index
    %102 = tpu.strided_load %arg19[%c0_82, %c0_83] {strides = array<i32: 2, 1>} : memref<24x8xf32, #tpu.memory_space<vmem>>, vector<8x8xf32>
    %c1_84 = arith.constant 1 : index
    %c0_85 = arith.constant 0 : index
    %103 = tpu.strided_load %arg19[%c1_84, %c0_85] {strides = array<i32: 2, 1>} : memref<24x8xf32, #tpu.memory_space<vmem>>, vector<8x8xf32>
    %104 = arith.maximumf %102, %103 : vector<8x8xf32>
    %c17 = arith.constant 17 : index
    %c0_86 = arith.constant 0 : index
    %105 = vector.load %arg16[%c17, %c0_86] : memref<176x8xf32, #tpu.memory_space<vmem>>, vector<8x8xf32>
    tpu.vector_store %arg16[%c17, %c0_86], %104 {strides = array<i32>} : memref<176x8xf32, #tpu.memory_space<vmem>>, vector<8x8xf32>,
    %106 = vector.extract_strided_slice %97 {offsets = [48, 0], sizes = [24, 8], strides = [1, 1]} : vector<384x8xf32> to vector<24x8xf32>
    %107 = vector.extract_strided_slice %97 {offsets = [72, 0], sizes = [24, 8], strides = [1, 1]} : vector<384x8xf32> to vector<24x8xf32>
    %108 = arith.maximumf %106, %107 : vector<24x8xf32>
    %c0_87 = arith.constant 0 : index
    %c0_88 = arith.constant 0 : index
    %109 = vector.load %arg19[%c0_87, %c0_88] : memref<24x8xf32, #tpu.memory_space<vmem>>, vector<24x8xf32>
    tpu.vector_store %arg19[%c0_87, %c0_88], %108 {strides = array<i32>} : memref<24x8xf32, #tpu.memory_space<vmem>>, vector<24x8xf32>,
    %c0_89 = arith.constant 0 : index
    %c0_90 = arith.constant 0 : index
    %110 = tpu.strided_load %arg19[%c0_89, %c0_90] {strides = array<i32: 2, 1>} : memref<24x8xf32, #tpu.memory_space<vmem>>, vector<8x8xf32>
    %c1_91 = arith.constant 1 : index
    %c0_92 = arith.constant 0 : index
    %111 = tpu.strided_load %arg19[%c1_91, %c0_92] {strides = array<i32: 2, 1>} : memref<24x8xf32, #tpu.memory_space<vmem>>, vector<8x8xf32>
    %112 = arith.maximumf %110, %111 : vector<8x8xf32>
    %c33 = arith.constant 33 : index
    %c0_93 = arith.constant 0 : index
    %113 = vector.load %arg16[%c33, %c0_93] : memref<176x8xf32, #tpu.memory_space<vmem>>, vector<8x8xf32>
    tpu.vector_store %arg16[%c33, %c0_93], %112 {strides = array<i32>} : memref<176x8xf32, #tpu.memory_space<vmem>>, vector<8x8xf32>,
    %114 = vector.extract_strided_slice %97 {offsets = [96, 0], sizes = [24, 8], strides = [1, 1]} : vector<384x8xf32> to vector<24x8xf32>
    %115 = vector.extract_strided_slice %97 {offsets = [120, 0], sizes = [24, 8], strides = [1, 1]} : vector<384x8xf32> to vector<24x8xf32>
    %116 = arith.maximumf %114, %115 : vector<24x8xf32>
    %c0_94 = arith.constant 0 : index
    %c0_95 = arith.constant 0 : index
    %117 = vector.load %arg19[%c0_94, %c0_95] : memref<24x8xf32, #tpu.memory_space<vmem>>, vector<24x8xf32>
    tpu.vector_store %arg19[%c0_94, %c0_95], %116 {strides = array<i32>} : memref<24x8xf32, #tpu.memory_space<vmem>>, vector<24x8xf32>,
    %c0_96 = arith.constant 0 : index
    %c0_97 = arith.constant 0 : index
    %118 = tpu.strided_load %arg19[%c0_96, %c0_97] {strides = array<i32: 2, 1>} : memref<24x8xf32, #tpu.memory_space<vmem>>, vector<8x8xf32>
    %c1_98 = arith.constant 1 : index
    %c0_99 = arith.constant 0 : index
    %119 = tpu.strided_load %arg19[%c1_98, %c0_99] {strides = array<i32: 2, 1>} : memref<24x8xf32, #tpu.memory_space<vmem>>, vector<8x8xf32>
    %120 = arith.maximumf %118, %119 : vector<8x8xf32>
    %c49_100 = arith.constant 49 : index
    %c0_101 = arith.constant 0 : index
    %121 = vector.load %arg16[%c49_100, %c0_101] : memref<176x8xf32, #tpu.memory_space<vmem>>, vector<8x8xf32>
    tpu.vector_store %arg16[%c49_100, %c0_101], %120 {strides = array<i32>} : memref<176x8xf32, #tpu.memory_space<vmem>>, vector<8x8xf32>,
    %122 = vector.extract_strided_slice %97 {offsets = [144, 0], sizes = [24, 8], strides = [1, 1]} : vector<384x8xf32> to vector<24x8xf32>
    %123 = vector.extract_strided_slice %97 {offsets = [168, 0], sizes = [24, 8], strides = [1, 1]} : vector<384x8xf32> to vector<24x8xf32>
    %124 = arith.maximumf %122, %123 : vector<24x8xf32>
    %c0_102 = arith.constant 0 : index
    %c0_103 = arith.constant 0 : index
    %125 = vector.load %arg19[%c0_102, %c0_103] : memref<24x8xf32, #tpu.memory_space<vmem>>, vector<24x8xf32>
    tpu.vector_store %arg19[%c0_102, %c0_103], %124 {strides = array<i32>} : memref<24x8xf32, #tpu.memory_space<vmem>>, vector<24x8xf32>,
    %c0_104 = arith.constant 0 : index
    %c0_105 = arith.constant 0 : index
    %126 = tpu.strided_load %arg19[%c0_104, %c0_105] {strides = array<i32: 2, 1>} : memref<24x8xf32, #tpu.memory_space<vmem>>, vector<8x8xf32>
    %c1_106 = arith.constant 1 : index
    %c0_107 = arith.constant 0 : index
    %127 = tpu.strided_load %arg19[%c1_106, %c0_107] {strides = array<i32: 2, 1>} : memref<24x8xf32, #tpu.memory_space<vmem>>, vector<8x8xf32>
    %128 = arith.maximumf %126, %127 : vector<8x8xf32>
    %c65 = arith.constant 65 : index
    %c0_108 = arith.constant 0 : index
    %129 = vector.load %arg16[%c65, %c0_108] : memref<176x8xf32, #tpu.memory_space<vmem>>, vector<8x8xf32>
    tpu.vector_store %arg16[%c65, %c0_108], %128 {strides = array<i32>} : memref<176x8xf32, #tpu.memory_space<vmem>>, vector<8x8xf32>,
    %130 = vector.extract_strided_slice %97 {offsets = [192, 0], sizes = [24, 8], strides = [1, 1]} : vector<384x8xf32> to vector<24x8xf32>
    %131 = vector.extract_strided_slice %97 {offsets = [216, 0], sizes = [24, 8], strides = [1, 1]} : vector<384x8xf32> to vector<24x8xf32>
    %132 = arith.maximumf %130, %131 : vector<24x8xf32>
    %c0_109 = arith.constant 0 : index
    %c0_110 = arith.constant 0 : index
    %133 = vector.load %arg19[%c0_109, %c0_110] : memref<24x8xf32, #tpu.memory_space<vmem>>, vector<24x8xf32>
    tpu.vector_store %arg19[%c0_109, %c0_110], %132 {strides = array<i32>} : memref<24x8xf32, #tpu.memory_space<vmem>>, vector<24x8xf32>,
    %c0_111 = arith.constant 0 : index
    %c0_112 = arith.constant 0 : index
    %134 = tpu.strided_load %arg19[%c0_111, %c0_112] {strides = array<i32: 2, 1>} : memref<24x8xf32, #tpu.memory_space<vmem>>, vector<8x8xf32>
    %c1_113 = arith.constant 1 : index
    %c0_114 = arith.constant 0 : index
    %135 = tpu.strided_load %arg19[%c1_113, %c0_114] {strides = array<i32: 2, 1>} : memref<24x8xf32, #tpu.memory_space<vmem>>, vector<8x8xf32>
    %136 = arith.maximumf %134, %135 : vector<8x8xf32>
    %c81 = arith.constant 81 : index
    %c0_115 = arith.constant 0 : index
    %137 = vector.load %arg16[%c81, %c0_115] : memref<176x8xf32, #tpu.memory_space<vmem>>, vector<8x8xf32>
    tpu.vector_store %arg16[%c81, %c0_115], %136 {strides = array<i32>} : memref<176x8xf32, #tpu.memory_space<vmem>>, vector<8x8xf32>,
    %138 = vector.extract_strided_slice %97 {offsets = [240, 0], sizes = [24, 8], strides = [1, 1]} : vector<384x8xf32> to vector<24x8xf32>
    %139 = vector.extract_strided_slice %97 {offsets = [264, 0], sizes = [24, 8], strides = [1, 1]} : vector<384x8xf32> to vector<24x8xf32>
    %140 = arith.maximumf %138, %139 : vector<24x8xf32>
    %c0_116 = arith.constant 0 : index
    %c0_117 = arith.constant 0 : index
    %141 = vector.load %arg19[%c0_116, %c0_117] : memref<24x8xf32, #tpu.memory_space<vmem>>, vector<24x8xf32>
    tpu.vector_store %arg19[%c0_116, %c0_117], %140 {strides = array<i32>} : memref<24x8xf32, #tpu.memory_space<vmem>>, vector<24x8xf32>,
    %c0_118 = arith.constant 0 : index
    %c0_119 = arith.constant 0 : index
    %142 = tpu.strided_load %arg19[%c0_118, %c0_119] {strides = array<i32: 2, 1>} : memref<24x8xf32, #tpu.memory_space<vmem>>, vector<8x8xf32>
    %c1_120 = arith.constant 1 : index
    %c0_121 = arith.constant 0 : index
    %143 = tpu.strided_load %arg19[%c1_120, %c0_121] {strides = array<i32: 2, 1>} : memref<24x8xf32, #tpu.memory_space<vmem>>, vector<8x8xf32>
    %144 = arith.maximumf %142, %143 : vector<8x8xf32>
    %c97_122 = arith.constant 97 : index
    %c0_123 = arith.constant 0 : index
    %145 = vector.load %arg16[%c97_122, %c0_123] : memref<176x8xf32, #tpu.memory_space<vmem>>, vector<8x8xf32>
    tpu.vector_store %arg16[%c97_122, %c0_123], %144 {strides = array<i32>} : memref<176x8xf32, #tpu.memory_space<vmem>>, vector<8x8xf32>,
    %146 = vector.extract_strided_slice %97 {offsets = [288, 0], sizes = [24, 8], strides = [1, 1]} : vector<384x8xf32> to vector<24x8xf32>
    %147 = vector.extract_strided_slice %97 {offsets = [312, 0], sizes = [24, 8], strides = [1, 1]} : vector<384x8xf32> to vector<24x8xf32>
    %148 = arith.maximumf %146, %147 : vector<24x8xf32>
    %c0_124 = arith.constant 0 : index
    %c0_125 = arith.constant 0 : index
    %149 = vector.load %arg19[%c0_124, %c0_125] : memref<24x8xf32, #tpu.memory_space<vmem>>, vector<24x8xf32>
    tpu.vector_store %arg19[%c0_124, %c0_125], %148 {strides = array<i32>} : memref<24x8xf32, #tpu.memory_space<vmem>>, vector<24x8xf32>,
    %c0_126 = arith.constant 0 : index
    %c0_127 = arith.constant 0 : index
    %150 = tpu.strided_load %arg19[%c0_126, %c0_127] {strides = array<i32: 2, 1>} : memref<24x8xf32, #tpu.memory_space<vmem>>, vector<8x8xf32>
    %c1_128 = arith.constant 1 : index
    %c0_129 = arith.constant 0 : index
    %151 = tpu.strided_load %arg19[%c1_128, %c0_129] {strides = array<i32: 2, 1>} : memref<24x8xf32, #tpu.memory_space<vmem>>, vector<8x8xf32>
    %152 = arith.maximumf %150, %151 : vector<8x8xf32>
    %c113 = arith.constant 113 : index
    %c0_130 = arith.constant 0 : index
    %153 = vector.load %arg16[%c113, %c0_130] : memref<176x8xf32, #tpu.memory_space<vmem>>, vector<8x8xf32>
    tpu.vector_store %arg16[%c113, %c0_130], %152 {strides = array<i32>} : memref<176x8xf32, #tpu.memory_space<vmem>>, vector<8x8xf32>,
    %154 = vector.extract_strided_slice %97 {offsets = [336, 0], sizes = [24, 8], strides = [1, 1]} : vector<384x8xf32> to vector<24x8xf32>
    %155 = vector.extract_strided_slice %97 {offsets = [360, 0], sizes = [24, 8], strides = [1, 1]} : vector<384x8xf32> to vector<24x8xf32>
    %156 = arith.maximumf %154, %155 : vector<24x8xf32>
    %c0_131 = arith.constant 0 : index
    %c0_132 = arith.constant 0 : index
    %157 = vector.load %arg19[%c0_131, %c0_132] : memref<24x8xf32, #tpu.memory_space<vmem>>, vector<24x8xf32>
    tpu.vector_store %arg19[%c0_131, %c0_132], %156 {strides = array<i32>} : memref<24x8xf32, #tpu.memory_space<vmem>>, vector<24x8xf32>,
    %c0_133 = arith.constant 0 : index
    %c0_134 = arith.constant 0 : index
    %158 = tpu.strided_load %arg19[%c0_133, %c0_134] {strides = array<i32: 2, 1>} : memref<24x8xf32, #tpu.memory_space<vmem>>, vector<8x8xf32>
    %c1_135 = arith.constant 1 : index
    %c0_136 = arith.constant 0 : index
    %159 = tpu.strided_load %arg19[%c1_135, %c0_136] {strides = array<i32: 2, 1>} : memref<24x8xf32, #tpu.memory_space<vmem>>, vector<8x8xf32>
    %160 = arith.maximumf %158, %159 : vector<8x8xf32>
    %c129 = arith.constant 129 : index
    %c0_137 = arith.constant 0 : index
    %161 = vector.load %arg16[%c129, %c0_137] : memref<176x8xf32, #tpu.memory_space<vmem>>, vector<8x8xf32>
    tpu.vector_store %arg16[%c129, %c0_137], %160 {strides = array<i32>} : memref<176x8xf32, #tpu.memory_space<vmem>>, vector<8x8xf32>,
    %c0_138 = arith.constant 0 : index
    %c0_139 = arith.constant 0 : index
    %162 = vector.load %arg16[%c0_138, %c0_139] : memref<176x8xf32, #tpu.memory_space<vmem>>, vector<128x8xf32>
    %c0_140 = arith.constant 0 : index
    %c0_141 = arith.constant 0 : index
    %c0_142 = arith.constant 0 : index
    %163 = vector.load %arg6[%c0_140, %c0_141, %c0_142] : memref<9x8x16xf32, #tpu.memory_space<vmem>>, vector<1x8x16xf32>
    %164 = vector.shape_cast %163 : vector<1x8x16xf32> to vector<8x16xf32>
    %cst_143 = arith.constant dense<0.000000e+00> : vector<128x16xf32>
    %165 = tpu.matmul %162, %164, %cst_143 {dimension_numbers = #tpu.dot_dimension_numbers<[1], [0], [0], [1], [0, 0, 1, 1], [], []>} : vector<128x8xf32>, vector<8x16xf32>, vector<128x16xf32> -> vector<128x16xf32>
    %c1_144 = arith.constant 1 : index
    %c0_145 = arith.constant 0 : index
    %166 = vector.load %arg16[%c1_144, %c0_145] : memref<176x8xf32, #tpu.memory_space<vmem>>, vector<128x8xf32>
    %c1_146 = arith.constant 1 : index
    %c0_147 = arith.constant 0 : index
    %c0_148 = arith.constant 0 : index
    %167 = vector.load %arg6[%c1_146, %c0_147, %c0_148] : memref<9x8x16xf32, #tpu.memory_space<vmem>>, vector<1x8x16xf32>
    %168 = vector.shape_cast %167 : vector<1x8x16xf32> to vector<8x16xf32>
    %cst_149 = arith.constant dense<0.000000e+00> : vector<128x16xf32>
    %169 = tpu.matmul %166, %168, %cst_149 {dimension_numbers = #tpu.dot_dimension_numbers<[1], [0], [0], [1], [0, 0, 1, 1], [], []>} : vector<128x8xf32>, vector<8x16xf32>, vector<128x16xf32> -> vector<128x16xf32>
    %170 = arith.addf %165, %169 : vector<128x16xf32>
    %c2_150 = arith.constant 2 : index
    %c0_151 = arith.constant 0 : index
    %171 = vector.load %arg16[%c2_150, %c0_151] : memref<176x8xf32, #tpu.memory_space<vmem>>, vector<128x8xf32>
    %c2_152 = arith.constant 2 : index
    %c0_153 = arith.constant 0 : index
    %c0_154 = arith.constant 0 : index
    %172 = vector.load %arg6[%c2_152, %c0_153, %c0_154] : memref<9x8x16xf32, #tpu.memory_space<vmem>>, vector<1x8x16xf32>
    %173 = vector.shape_cast %172 : vector<1x8x16xf32> to vector<8x16xf32>
    %cst_155 = arith.constant dense<0.000000e+00> : vector<128x16xf32>
    %174 = tpu.matmul %171, %173, %cst_155 {dimension_numbers = #tpu.dot_dimension_numbers<[1], [0], [0], [1], [0, 0, 1, 1], [], []>} : vector<128x8xf32>, vector<8x16xf32>, vector<128x16xf32> -> vector<128x16xf32>
    %175 = arith.addf %170, %174 : vector<128x16xf32>
    %c16 = arith.constant 16 : index
    %c0_156 = arith.constant 0 : index
    %176 = vector.load %arg16[%c16, %c0_156] : memref<176x8xf32, #tpu.memory_space<vmem>>, vector<128x8xf32>
    %c3_157 = arith.constant 3 : index
    %c0_158 = arith.constant 0 : index
    %c0_159 = arith.constant 0 : index
    %177 = vector.load %arg6[%c3_157, %c0_158, %c0_159] : memref<9x8x16xf32, #tpu.memory_space<vmem>>, vector<1x8x16xf32>
    %178 = vector.shape_cast %177 : vector<1x8x16xf32> to vector<8x16xf32>
    %cst_160 = arith.constant dense<0.000000e+00> : vector<128x16xf32>
    %179 = tpu.matmul %176, %178, %cst_160 {dimension_numbers = #tpu.dot_dimension_numbers<[1], [0], [0], [1], [0, 0, 1, 1], [], []>} : vector<128x8xf32>, vector<8x16xf32>, vector<128x16xf32> -> vector<128x16xf32>
    %180 = arith.addf %175, %179 : vector<128x16xf32>
    %c17_161 = arith.constant 17 : index
    %c0_162 = arith.constant 0 : index
    %181 = vector.load %arg16[%c17_161, %c0_162] : memref<176x8xf32, #tpu.memory_space<vmem>>, vector<128x8xf32>
    %c4_163 = arith.constant 4 : index
    %c0_164 = arith.constant 0 : index
    %c0_165 = arith.constant 0 : index
    %182 = vector.load %arg6[%c4_163, %c0_164, %c0_165] : memref<9x8x16xf32, #tpu.memory_space<vmem>>, vector<1x8x16xf32>
    %183 = vector.shape_cast %182 : vector<1x8x16xf32> to vector<8x16xf32>
    %cst_166 = arith.constant dense<0.000000e+00> : vector<128x16xf32>
    %184 = tpu.matmul %181, %183, %cst_166 {dimension_numbers = #tpu.dot_dimension_numbers<[1], [0], [0], [1], [0, 0, 1, 1], [], []>} : vector<128x8xf32>, vector<8x16xf32>, vector<128x16xf32> -> vector<128x16xf32>
    %185 = arith.addf %180, %184 : vector<128x16xf32>
    %c18 = arith.constant 18 : index
    %c0_167 = arith.constant 0 : index
    %186 = vector.load %arg16[%c18, %c0_167] : memref<176x8xf32, #tpu.memory_space<vmem>>, vector<128x8xf32>
    %c5_168 = arith.constant 5 : index
    %c0_169 = arith.constant 0 : index
    %c0_170 = arith.constant 0 : index
    %187 = vector.load %arg6[%c5_168, %c0_169, %c0_170] : memref<9x8x16xf32, #tpu.memory_space<vmem>>, vector<1x8x16xf32>
    %188 = vector.shape_cast %187 : vector<1x8x16xf32> to vector<8x16xf32>
    %cst_171 = arith.constant dense<0.000000e+00> : vector<128x16xf32>
    %189 = tpu.matmul %186, %188, %cst_171 {dimension_numbers = #tpu.dot_dimension_numbers<[1], [0], [0], [1], [0, 0, 1, 1], [], []>} : vector<128x8xf32>, vector<8x16xf32>, vector<128x16xf32> -> vector<128x16xf32>
    %190 = arith.addf %185, %189 : vector<128x16xf32>
    %c32 = arith.constant 32 : index
    %c0_172 = arith.constant 0 : index
    %191 = vector.load %arg16[%c32, %c0_172] : memref<176x8xf32, #tpu.memory_space<vmem>>, vector<128x8xf32>
    %c6_173 = arith.constant 6 : index
    %c0_174 = arith.constant 0 : index
    %c0_175 = arith.constant 0 : index
    %192 = vector.load %arg6[%c6_173, %c0_174, %c0_175] : memref<9x8x16xf32, #tpu.memory_space<vmem>>, vector<1x8x16xf32>
    %193 = vector.shape_cast %192 : vector<1x8x16xf32> to vector<8x16xf32>
    %cst_176 = arith.constant dense<0.000000e+00> : vector<128x16xf32>
    %194 = tpu.matmul %191, %193, %cst_176 {dimension_numbers = #tpu.dot_dimension_numbers<[1], [0], [0], [1], [0, 0, 1, 1], [], []>} : vector<128x8xf32>, vector<8x16xf32>, vector<128x16xf32> -> vector<128x16xf32>
    %195 = arith.addf %190, %194 : vector<128x16xf32>
    %c33_177 = arith.constant 33 : index
    %c0_178 = arith.constant 0 : index
    %196 = vector.load %arg16[%c33_177, %c0_178] : memref<176x8xf32, #tpu.memory_space<vmem>>, vector<128x8xf32>
    %c7_179 = arith.constant 7 : index
    %c0_180 = arith.constant 0 : index
    %c0_181 = arith.constant 0 : index
    %197 = vector.load %arg6[%c7_179, %c0_180, %c0_181] : memref<9x8x16xf32, #tpu.memory_space<vmem>>, vector<1x8x16xf32>
    %198 = vector.shape_cast %197 : vector<1x8x16xf32> to vector<8x16xf32>
    %cst_182 = arith.constant dense<0.000000e+00> : vector<128x16xf32>
    %199 = tpu.matmul %196, %198, %cst_182 {dimension_numbers = #tpu.dot_dimension_numbers<[1], [0], [0], [1], [0, 0, 1, 1], [], []>} : vector<128x8xf32>, vector<8x16xf32>, vector<128x16xf32> -> vector<128x16xf32>
    %200 = arith.addf %195, %199 : vector<128x16xf32>
    %c34 = arith.constant 34 : index
    %c0_183 = arith.constant 0 : index
    %201 = vector.load %arg16[%c34, %c0_183] : memref<176x8xf32, #tpu.memory_space<vmem>>, vector<128x8xf32>
    %c8_184 = arith.constant 8 : index
    %c0_185 = arith.constant 0 : index
    %c0_186 = arith.constant 0 : index
    %202 = vector.load %arg6[%c8_184, %c0_185, %c0_186] : memref<9x8x16xf32, #tpu.memory_space<vmem>>, vector<1x8x16xf32>
    %203 = vector.shape_cast %202 : vector<1x8x16xf32> to vector<8x16xf32>
    %cst_187 = arith.constant dense<0.000000e+00> : vector<128x16xf32>
    %204 = tpu.matmul %201, %203, %cst_187 {dimension_numbers = #tpu.dot_dimension_numbers<[1], [0], [0], [1], [0, 0, 1, 1], [], []>} : vector<128x8xf32>, vector<8x16xf32>, vector<128x16xf32> -> vector<128x16xf32>
    %205 = arith.addf %200, %204 : vector<128x16xf32>
    %c0_188 = arith.constant 0 : index
    %c0_189 = arith.constant 0 : index
    %206 = vector.load %arg7[%c0_188, %c0_189] : memref<1x16xf32, #tpu.memory_space<vmem>>, vector<1x16xf32>
    %207 = vector.broadcast %206 : vector<1x16xf32> to vector<128x16xf32>
    %208 = arith.addf %205, %207 : vector<128x16xf32>
    %cst_190 = arith.constant 0.000000e+00 : f32
    %209 = vector.broadcast %cst_190 : f32 to vector<128x16xf32>
    %210 = arith.maximumf %208, %209 : vector<128x16xf32>
    %211 = vector.extract_strided_slice %210 {offsets = [0, 0], sizes = [16, 16], strides = [1, 1]} : vector<128x16xf32> to vector<16x16xf32>
    %212 = vector.extract_strided_slice %210 {offsets = [16, 0], sizes = [16, 16], strides = [1, 1]} : vector<128x16xf32> to vector<16x16xf32>
    %213 = arith.maximumf %211, %212 : vector<16x16xf32>
    %c0_191 = arith.constant 0 : index
    %c0_192 = arith.constant 0 : index
    %214 = vector.load %arg20[%c0_191, %c0_192] : memref<16x16xf32, #tpu.memory_space<vmem>>, vector<16x16xf32>
    tpu.vector_store %arg20[%c0_191, %c0_192], %213 {strides = array<i32>} : memref<16x16xf32, #tpu.memory_space<vmem>>, vector<16x16xf32>,
    %c0_193 = arith.constant 0 : index
    %c0_194 = arith.constant 0 : index
    %215 = tpu.strided_load %arg20[%c0_193, %c0_194] {strides = array<i32: 2, 1>} : memref<16x16xf32, #tpu.memory_space<vmem>>, vector<4x16xf32>
    %c1_195 = arith.constant 1 : index
    %c0_196 = arith.constant 0 : index
    %216 = tpu.strided_load %arg20[%c1_195, %c0_196] {strides = array<i32: 2, 1>} : memref<16x16xf32, #tpu.memory_space<vmem>>, vector<4x16xf32>
    %217 = arith.maximumf %215, %216 : vector<4x16xf32>
    %c9 = arith.constant 9 : index
    %c0_197 = arith.constant 0 : index
    %218 = vector.load %arg17[%c9, %c0_197] : memref<56x16xf32, #tpu.memory_space<vmem>>, vector<4x16xf32>
    tpu.vector_store %arg17[%c9, %c0_197], %217 {strides = array<i32>} : memref<56x16xf32, #tpu.memory_space<vmem>>, vector<4x16xf32>,
    %219 = vector.extract_strided_slice %210 {offsets = [32, 0], sizes = [16, 16], strides = [1, 1]} : vector<128x16xf32> to vector<16x16xf32>
    %220 = vector.extract_strided_slice %210 {offsets = [48, 0], sizes = [16, 16], strides = [1, 1]} : vector<128x16xf32> to vector<16x16xf32>
    %221 = arith.maximumf %219, %220 : vector<16x16xf32>
    %c0_198 = arith.constant 0 : index
    %c0_199 = arith.constant 0 : index
    %222 = vector.load %arg20[%c0_198, %c0_199] : memref<16x16xf32, #tpu.memory_space<vmem>>, vector<16x16xf32>
    tpu.vector_store %arg20[%c0_198, %c0_199], %221 {strides = array<i32>} : memref<16x16xf32, #tpu.memory_space<vmem>>, vector<16x16xf32>,
    %c0_200 = arith.constant 0 : index
    %c0_201 = arith.constant 0 : index
    %223 = tpu.strided_load %arg20[%c0_200, %c0_201] {strides = array<i32: 2, 1>} : memref<16x16xf32, #tpu.memory_space<vmem>>, vector<4x16xf32>
    %c1_202 = arith.constant 1 : index
    %c0_203 = arith.constant 0 : index
    %224 = tpu.strided_load %arg20[%c1_202, %c0_203] {strides = array<i32: 2, 1>} : memref<16x16xf32, #tpu.memory_space<vmem>>, vector<4x16xf32>
    %225 = arith.maximumf %223, %224 : vector<4x16xf32>
    %c17_204 = arith.constant 17 : index
    %c0_205 = arith.constant 0 : index
    %226 = vector.load %arg17[%c17_204, %c0_205] : memref<56x16xf32, #tpu.memory_space<vmem>>, vector<4x16xf32>
    tpu.vector_store %arg17[%c17_204, %c0_205], %225 {strides = array<i32>} : memref<56x16xf32, #tpu.memory_space<vmem>>, vector<4x16xf32>,
    %227 = vector.extract_strided_slice %210 {offsets = [64, 0], sizes = [16, 16], strides = [1, 1]} : vector<128x16xf32> to vector<16x16xf32>
    %228 = vector.extract_strided_slice %210 {offsets = [80, 0], sizes = [16, 16], strides = [1, 1]} : vector<128x16xf32> to vector<16x16xf32>
    %229 = arith.maximumf %227, %228 : vector<16x16xf32>
    %c0_206 = arith.constant 0 : index
    %c0_207 = arith.constant 0 : index
    %230 = vector.load %arg20[%c0_206, %c0_207] : memref<16x16xf32, #tpu.memory_space<vmem>>, vector<16x16xf32>
    tpu.vector_store %arg20[%c0_206, %c0_207], %229 {strides = array<i32>} : memref<16x16xf32, #tpu.memory_space<vmem>>, vector<16x16xf32>,
    %c0_208 = arith.constant 0 : index
    %c0_209 = arith.constant 0 : index
    %231 = tpu.strided_load %arg20[%c0_208, %c0_209] {strides = array<i32: 2, 1>} : memref<16x16xf32, #tpu.memory_space<vmem>>, vector<4x16xf32>
    %c1_210 = arith.constant 1 : index
    %c0_211 = arith.constant 0 : index
    %232 = tpu.strided_load %arg20[%c1_210, %c0_211] {strides = array<i32: 2, 1>} : memref<16x16xf32, #tpu.memory_space<vmem>>, vector<4x16xf32>
    %233 = arith.maximumf %231, %232 : vector<4x16xf32>
    %c25_212 = arith.constant 25 : index
    %c0_213 = arith.constant 0 : index
    %234 = vector.load %arg17[%c25_212, %c0_213] : memref<56x16xf32, #tpu.memory_space<vmem>>, vector<4x16xf32>
    tpu.vector_store %arg17[%c25_212, %c0_213], %233 {strides = array<i32>} : memref<56x16xf32, #tpu.memory_space<vmem>>, vector<4x16xf32>,
    %235 = vector.extract_strided_slice %210 {offsets = [96, 0], sizes = [16, 16], strides = [1, 1]} : vector<128x16xf32> to vector<16x16xf32>
    %236 = vector.extract_strided_slice %210 {offsets = [112, 0], sizes = [16, 16], strides = [1, 1]} : vector<128x16xf32> to vector<16x16xf32>
    %237 = arith.maximumf %235, %236 : vector<16x16xf32>
    %c0_214 = arith.constant 0 : index
    %c0_215 = arith.constant 0 : index
    %238 = vector.load %arg20[%c0_214, %c0_215] : memref<16x16xf32, #tpu.memory_space<vmem>>, vector<16x16xf32>
    tpu.vector_store %arg20[%c0_214, %c0_215], %237 {strides = array<i32>} : memref<16x16xf32, #tpu.memory_space<vmem>>, vector<16x16xf32>,
    %c0_216 = arith.constant 0 : index
    %c0_217 = arith.constant 0 : index
    %239 = tpu.strided_load %arg20[%c0_216, %c0_217] {strides = array<i32: 2, 1>} : memref<16x16xf32, #tpu.memory_space<vmem>>, vector<4x16xf32>
    %c1_218 = arith.constant 1 : index
    %c0_219 = arith.constant 0 : index
    %240 = tpu.strided_load %arg20[%c1_218, %c0_219] {strides = array<i32: 2, 1>} : memref<16x16xf32, #tpu.memory_space<vmem>>, vector<4x16xf32>
    %241 = arith.maximumf %239, %240 : vector<4x16xf32>
    %c33_220 = arith.constant 33 : index
    %c0_221 = arith.constant 0 : index
    %242 = vector.load %arg17[%c33_220, %c0_221] : memref<56x16xf32, #tpu.memory_space<vmem>>, vector<4x16xf32>
    tpu.vector_store %arg17[%c33_220, %c0_221], %241 {strides = array<i32>} : memref<56x16xf32, #tpu.memory_space<vmem>>, vector<4x16xf32>,
    %c0_222 = arith.constant 0 : index
    %c0_223 = arith.constant 0 : index
    %243 = vector.load %arg17[%c0_222, %c0_223] : memref<56x16xf32, #tpu.memory_space<vmem>>, vector<32x16xf32>
    %c0_224 = arith.constant 0 : index
    %c0_225 = arith.constant 0 : index
    %c0_226 = arith.constant 0 : index
    %244 = vector.load %arg8[%c0_224, %c0_225, %c0_226] : memref<9x16x32xf32, #tpu.memory_space<vmem>>, vector<1x16x32xf32>
    %245 = vector.shape_cast %244 : vector<1x16x32xf32> to vector<16x32xf32>
    %cst_227 = arith.constant dense<0.000000e+00> : vector<32x32xf32>
    %246 = tpu.matmul %243, %245, %cst_227 {dimension_numbers = #tpu.dot_dimension_numbers<[1], [0], [0], [1], [0, 0, 1, 1], [], []>} : vector<32x16xf32>, vector<16x32xf32>, vector<32x32xf32> -> vector<32x32xf32>
    %c1_228 = arith.constant 1 : index
    %c0_229 = arith.constant 0 : index
    %247 = vector.load %arg17[%c1_228, %c0_229] : memref<56x16xf32, #tpu.memory_space<vmem>>, vector<32x16xf32>
    %c1_230 = arith.constant 1 : index
    %c0_231 = arith.constant 0 : index
    %c0_232 = arith.constant 0 : index
    %248 = vector.load %arg8[%c1_230, %c0_231, %c0_232] : memref<9x16x32xf32, #tpu.memory_space<vmem>>, vector<1x16x32xf32>
    %249 = vector.shape_cast %248 : vector<1x16x32xf32> to vector<16x32xf32>
    %cst_233 = arith.constant dense<0.000000e+00> : vector<32x32xf32>
    %250 = tpu.matmul %247, %249, %cst_233 {dimension_numbers = #tpu.dot_dimension_numbers<[1], [0], [0], [1], [0, 0, 1, 1], [], []>} : vector<32x16xf32>, vector<16x32xf32>, vector<32x32xf32> -> vector<32x32xf32>
    %251 = arith.addf %246, %250 : vector<32x32xf32>
    %c2_234 = arith.constant 2 : index
    %c0_235 = arith.constant 0 : index
    %252 = vector.load %arg17[%c2_234, %c0_235] : memref<56x16xf32, #tpu.memory_space<vmem>>, vector<32x16xf32>
    %c2_236 = arith.constant 2 : index
    %c0_237 = arith.constant 0 : index
    %c0_238 = arith.constant 0 : index
    %253 = vector.load %arg8[%c2_236, %c0_237, %c0_238] : memref<9x16x32xf32, #tpu.memory_space<vmem>>, vector<1x16x32xf32>
    %254 = vector.shape_cast %253 : vector<1x16x32xf32> to vector<16x32xf32>
    %cst_239 = arith.constant dense<0.000000e+00> : vector<32x32xf32>
    %255 = tpu.matmul %252, %254, %cst_239 {dimension_numbers = #tpu.dot_dimension_numbers<[1], [0], [0], [1], [0, 0, 1, 1], [], []>} : vector<32x16xf32>, vector<16x32xf32>, vector<32x32xf32> -> vector<32x32xf32>
    %256 = arith.addf %251, %255 : vector<32x32xf32>
    %c8_240 = arith.constant 8 : index
    %c0_241 = arith.constant 0 : index
    %257 = vector.load %arg17[%c8_240, %c0_241] : memref<56x16xf32, #tpu.memory_space<vmem>>, vector<32x16xf32>
    %c3_242 = arith.constant 3 : index
    %c0_243 = arith.constant 0 : index
    %c0_244 = arith.constant 0 : index
    %258 = vector.load %arg8[%c3_242, %c0_243, %c0_244] : memref<9x16x32xf32, #tpu.memory_space<vmem>>, vector<1x16x32xf32>
    %259 = vector.shape_cast %258 : vector<1x16x32xf32> to vector<16x32xf32>
    %cst_245 = arith.constant dense<0.000000e+00> : vector<32x32xf32>
    %260 = tpu.matmul %257, %259, %cst_245 {dimension_numbers = #tpu.dot_dimension_numbers<[1], [0], [0], [1], [0, 0, 1, 1], [], []>} : vector<32x16xf32>, vector<16x32xf32>, vector<32x32xf32> -> vector<32x32xf32>
    %261 = arith.addf %256, %260 : vector<32x32xf32>
    %c9_246 = arith.constant 9 : index
    %c0_247 = arith.constant 0 : index
    %262 = vector.load %arg17[%c9_246, %c0_247] : memref<56x16xf32, #tpu.memory_space<vmem>>, vector<32x16xf32>
    %c4_248 = arith.constant 4 : index
    %c0_249 = arith.constant 0 : index
    %c0_250 = arith.constant 0 : index
    %263 = vector.load %arg8[%c4_248, %c0_249, %c0_250] : memref<9x16x32xf32, #tpu.memory_space<vmem>>, vector<1x16x32xf32>
    %264 = vector.shape_cast %263 : vector<1x16x32xf32> to vector<16x32xf32>
    %cst_251 = arith.constant dense<0.000000e+00> : vector<32x32xf32>
    %265 = tpu.matmul %262, %264, %cst_251 {dimension_numbers = #tpu.dot_dimension_numbers<[1], [0], [0], [1], [0, 0, 1, 1], [], []>} : vector<32x16xf32>, vector<16x32xf32>, vector<32x32xf32> -> vector<32x32xf32>
    %266 = arith.addf %261, %265 : vector<32x32xf32>
    %c10 = arith.constant 10 : index
    %c0_252 = arith.constant 0 : index
    %267 = vector.load %arg17[%c10, %c0_252] : memref<56x16xf32, #tpu.memory_space<vmem>>, vector<32x16xf32>
    %c5_253 = arith.constant 5 : index
    %c0_254 = arith.constant 0 : index
    %c0_255 = arith.constant 0 : index
    %268 = vector.load %arg8[%c5_253, %c0_254, %c0_255] : memref<9x16x32xf32, #tpu.memory_space<vmem>>, vector<1x16x32xf32>
    %269 = vector.shape_cast %268 : vector<1x16x32xf32> to vector<16x32xf32>
    %cst_256 = arith.constant dense<0.000000e+00> : vector<32x32xf32>
    %270 = tpu.matmul %267, %269, %cst_256 {dimension_numbers = #tpu.dot_dimension_numbers<[1], [0], [0], [1], [0, 0, 1, 1], [], []>} : vector<32x16xf32>, vector<16x32xf32>, vector<32x32xf32> -> vector<32x32xf32>
    %271 = arith.addf %266, %270 : vector<32x32xf32>
    %c16_257 = arith.constant 16 : index
    %c0_258 = arith.constant 0 : index
    %272 = vector.load %arg17[%c16_257, %c0_258] : memref<56x16xf32, #tpu.memory_space<vmem>>, vector<32x16xf32>
    %c6_259 = arith.constant 6 : index
    %c0_260 = arith.constant 0 : index
    %c0_261 = arith.constant 0 : index
    %273 = vector.load %arg8[%c6_259, %c0_260, %c0_261] : memref<9x16x32xf32, #tpu.memory_space<vmem>>, vector<1x16x32xf32>
    %274 = vector.shape_cast %273 : vector<1x16x32xf32> to vector<16x32xf32>
    %cst_262 = arith.constant dense<0.000000e+00> : vector<32x32xf32>
    %275 = tpu.matmul %272, %274, %cst_262 {dimension_numbers = #tpu.dot_dimension_numbers<[1], [0], [0], [1], [0, 0, 1, 1], [], []>} : vector<32x16xf32>, vector<16x32xf32>, vector<32x32xf32> -> vector<32x32xf32>
    %276 = arith.addf %271, %275 : vector<32x32xf32>
    %c17_263 = arith.constant 17 : index
    %c0_264 = arith.constant 0 : index
    %277 = vector.load %arg17[%c17_263, %c0_264] : memref<56x16xf32, #tpu.memory_space<vmem>>, vector<32x16xf32>
    %c7_265 = arith.constant 7 : index
    %c0_266 = arith.constant 0 : index
    %c0_267 = arith.constant 0 : index
    %278 = vector.load %arg8[%c7_265, %c0_266, %c0_267] : memref<9x16x32xf32, #tpu.memory_space<vmem>>, vector<1x16x32xf32>
    %279 = vector.shape_cast %278 : vector<1x16x32xf32> to vector<16x32xf32>
    %cst_268 = arith.constant dense<0.000000e+00> : vector<32x32xf32>
    %280 = tpu.matmul %277, %279, %cst_268 {dimension_numbers = #tpu.dot_dimension_numbers<[1], [0], [0], [1], [0, 0, 1, 1], [], []>} : vector<32x16xf32>, vector<16x32xf32>, vector<32x32xf32> -> vector<32x32xf32>
    %281 = arith.addf %276, %280 : vector<32x32xf32>
    %c18_269 = arith.constant 18 : index
    %c0_270 = arith.constant 0 : index
    %282 = vector.load %arg17[%c18_269, %c0_270] : memref<56x16xf32, #tpu.memory_space<vmem>>, vector<32x16xf32>
    %c8_271 = arith.constant 8 : index
    %c0_272 = arith.constant 0 : index
    %c0_273 = arith.constant 0 : index
    %283 = vector.load %arg8[%c8_271, %c0_272, %c0_273] : memref<9x16x32xf32, #tpu.memory_space<vmem>>, vector<1x16x32xf32>
    %284 = vector.shape_cast %283 : vector<1x16x32xf32> to vector<16x32xf32>
    %cst_274 = arith.constant dense<0.000000e+00> : vector<32x32xf32>
    %285 = tpu.matmul %282, %284, %cst_274 {dimension_numbers = #tpu.dot_dimension_numbers<[1], [0], [0], [1], [0, 0, 1, 1], [], []>} : vector<32x16xf32>, vector<16x32xf32>, vector<32x32xf32> -> vector<32x32xf32>
    %286 = arith.addf %281, %285 : vector<32x32xf32>
    %c0_275 = arith.constant 0 : index
    %c0_276 = arith.constant 0 : index
    %287 = vector.load %arg9[%c0_275, %c0_276] : memref<1x32xf32, #tpu.memory_space<vmem>>, vector<1x32xf32>
    %288 = vector.broadcast %287 : vector<1x32xf32> to vector<32x32xf32>
    %289 = arith.addf %286, %288 : vector<32x32xf32>
    %cst_277 = arith.constant 0.000000e+00 : f32
    %290 = vector.broadcast %cst_277 : f32 to vector<32x32xf32>
    %291 = arith.maximumf %289, %290 : vector<32x32xf32>
    %292 = vector.extract_strided_slice %291 {offsets = [0, 0], sizes = [8, 32], strides = [1, 1]} : vector<32x32xf32> to vector<8x32xf32>
    %293 = vector.extract_strided_slice %291 {offsets = [8, 0], sizes = [8, 32], strides = [1, 1]} : vector<32x32xf32> to vector<8x32xf32>
    %294 = arith.maximumf %292, %293 : vector<8x32xf32>
    %c0_278 = arith.constant 0 : index
    %c0_279 = arith.constant 0 : index
    %295 = vector.load %arg21[%c0_278, %c0_279] : memref<8x32xf32, #tpu.memory_space<vmem>>, vector<8x32xf32>
    tpu.vector_store %arg21[%c0_278, %c0_279], %294 {strides = array<i32>} : memref<8x32xf32, #tpu.memory_space<vmem>>, vector<8x32xf32>,
    %c0_280 = arith.constant 0 : index
    %c0_281 = arith.constant 0 : index
    %296 = tpu.strided_load %arg21[%c0_280, %c0_281] {strides = array<i32: 2, 1>} : memref<8x32xf32, #tpu.memory_space<vmem>>, vector<2x32xf32>
    %c1_282 = arith.constant 1 : index
    %c0_283 = arith.constant 0 : index
    %297 = tpu.strided_load %arg21[%c1_282, %c0_283] {strides = array<i32: 2, 1>} : memref<8x32xf32, #tpu.memory_space<vmem>>, vector<2x32xf32>
    %298 = arith.maximumf %296, %297 : vector<2x32xf32>
    %c9_284 = arith.constant 9 : index
    %c0_285 = arith.constant 0 : index
    %299 = vector.load %arg18[%c9_284, %c0_285] : memref<40x32xf32, #tpu.memory_space<vmem>>, vector<2x32xf32>
    tpu.vector_store %arg18[%c9_284, %c0_285], %298 {strides = array<i32>} : memref<40x32xf32, #tpu.memory_space<vmem>>, vector<2x32xf32>,
    %300 = vector.extract_strided_slice %291 {offsets = [16, 0], sizes = [8, 32], strides = [1, 1]} : vector<32x32xf32> to vector<8x32xf32>
    %301 = vector.extract_strided_slice %291 {offsets = [24, 0], sizes = [8, 32], strides = [1, 1]} : vector<32x32xf32> to vector<8x32xf32>
    %302 = arith.maximumf %300, %301 : vector<8x32xf32>
    %c0_286 = arith.constant 0 : index
    %c0_287 = arith.constant 0 : index
    %303 = vector.load %arg21[%c0_286, %c0_287] : memref<8x32xf32, #tpu.memory_space<vmem>>, vector<8x32xf32>
    tpu.vector_store %arg21[%c0_286, %c0_287], %302 {strides = array<i32>} : memref<8x32xf32, #tpu.memory_space<vmem>>, vector<8x32xf32>,
    %c0_288 = arith.constant 0 : index
    %c0_289 = arith.constant 0 : index
    %304 = tpu.strided_load %arg21[%c0_288, %c0_289] {strides = array<i32: 2, 1>} : memref<8x32xf32, #tpu.memory_space<vmem>>, vector<2x32xf32>
    %c1_290 = arith.constant 1 : index
    %c0_291 = arith.constant 0 : index
    %305 = tpu.strided_load %arg21[%c1_290, %c0_291] {strides = array<i32: 2, 1>} : memref<8x32xf32, #tpu.memory_space<vmem>>, vector<2x32xf32>
    %306 = arith.maximumf %304, %305 : vector<2x32xf32>
    %c17_292 = arith.constant 17 : index
    %c0_293 = arith.constant 0 : index
    %307 = vector.load %arg18[%c17_292, %c0_293] : memref<40x32xf32, #tpu.memory_space<vmem>>, vector<2x32xf32>
    tpu.vector_store %arg18[%c17_292, %c0_293], %306 {strides = array<i32>} : memref<40x32xf32, #tpu.memory_space<vmem>>, vector<2x32xf32>,
    %c0_294 = arith.constant 0 : index
    %c0_295 = arith.constant 0 : index
    %308 = vector.load %arg18[%c0_294, %c0_295] : memref<40x32xf32, #tpu.memory_space<vmem>>, vector<16x32xf32>
    %c0_296 = arith.constant 0 : index
    %c0_297 = arith.constant 0 : index
    %c0_298 = arith.constant 0 : index
    %309 = vector.load %arg10[%c0_296, %c0_297, %c0_298] : memref<9x32x64xf32, #tpu.memory_space<vmem>>, vector<1x32x64xf32>
    %310 = vector.shape_cast %309 : vector<1x32x64xf32> to vector<32x64xf32>
    %cst_299 = arith.constant dense<0.000000e+00> : vector<16x64xf32>
    %311 = tpu.matmul %308, %310, %cst_299 {dimension_numbers = #tpu.dot_dimension_numbers<[1], [0], [0], [1], [0, 0, 1, 1], [], []>} : vector<16x32xf32>, vector<32x64xf32>, vector<16x64xf32> -> vector<16x64xf32>
    %c1_300 = arith.constant 1 : index
    %c0_301 = arith.constant 0 : index
    %312 = vector.load %arg18[%c1_300, %c0_301] : memref<40x32xf32, #tpu.memory_space<vmem>>, vector<16x32xf32>
    %c1_302 = arith.constant 1 : index
    %c0_303 = arith.constant 0 : index
    %c0_304 = arith.constant 0 : index
    %313 = vector.load %arg10[%c1_302, %c0_303, %c0_304] : memref<9x32x64xf32, #tpu.memory_space<vmem>>, vector<1x32x64xf32>
    %314 = vector.shape_cast %313 : vector<1x32x64xf32> to vector<32x64xf32>
    %cst_305 = arith.constant dense<0.000000e+00> : vector<16x64xf32>
    %315 = tpu.matmul %312, %314, %cst_305 {dimension_numbers = #tpu.dot_dimension_numbers<[1], [0], [0], [1], [0, 0, 1, 1], [], []>} : vector<16x32xf32>, vector<32x64xf32>, vector<16x64xf32> -> vector<16x64xf32>
    %316 = arith.addf %311, %315 : vector<16x64xf32>
    %c2_306 = arith.constant 2 : index
    %c0_307 = arith.constant 0 : index
    %317 = vector.load %arg18[%c2_306, %c0_307] : memref<40x32xf32, #tpu.memory_space<vmem>>, vector<16x32xf32>
    %c2_308 = arith.constant 2 : index
    %c0_309 = arith.constant 0 : index
    %c0_310 = arith.constant 0 : index
    %318 = vector.load %arg10[%c2_308, %c0_309, %c0_310] : memref<9x32x64xf32, #tpu.memory_space<vmem>>, vector<1x32x64xf32>
    %319 = vector.shape_cast %318 : vector<1x32x64xf32> to vector<32x64xf32>
    %cst_311 = arith.constant dense<0.000000e+00> : vector<16x64xf32>
    %320 = tpu.matmul %317, %319, %cst_311 {dimension_numbers = #tpu.dot_dimension_numbers<[1], [0], [0], [1], [0, 0, 1, 1], [], []>} : vector<16x32xf32>, vector<32x64xf32>, vector<16x64xf32> -> vector<16x64xf32>
    %321 = arith.addf %316, %320 : vector<16x64xf32>
    %c8_312 = arith.constant 8 : index
    %c0_313 = arith.constant 0 : index
    %322 = vector.load %arg18[%c8_312, %c0_313] : memref<40x32xf32, #tpu.memory_space<vmem>>, vector<16x32xf32>
    %c3_314 = arith.constant 3 : index
    %c0_315 = arith.constant 0 : index
    %c0_316 = arith.constant 0 : index
    %323 = vector.load %arg10[%c3_314, %c0_315, %c0_316] : memref<9x32x64xf32, #tpu.memory_space<vmem>>, vector<1x32x64xf32>
    %324 = vector.shape_cast %323 : vector<1x32x64xf32> to vector<32x64xf32>
    %cst_317 = arith.constant dense<0.000000e+00> : vector<16x64xf32>
    %325 = tpu.matmul %322, %324, %cst_317 {dimension_numbers = #tpu.dot_dimension_numbers<[1], [0], [0], [1], [0, 0, 1, 1], [], []>} : vector<16x32xf32>, vector<32x64xf32>, vector<16x64xf32> -> vector<16x64xf32>
    %326 = arith.addf %321, %325 : vector<16x64xf32>
    %c9_318 = arith.constant 9 : index
    %c0_319 = arith.constant 0 : index
    %327 = vector.load %arg18[%c9_318, %c0_319] : memref<40x32xf32, #tpu.memory_space<vmem>>, vector<16x32xf32>
    %c4_320 = arith.constant 4 : index
    %c0_321 = arith.constant 0 : index
    %c0_322 = arith.constant 0 : index
    %328 = vector.load %arg10[%c4_320, %c0_321, %c0_322] : memref<9x32x64xf32, #tpu.memory_space<vmem>>, vector<1x32x64xf32>
    %329 = vector.shape_cast %328 : vector<1x32x64xf32> to vector<32x64xf32>
    %cst_323 = arith.constant dense<0.000000e+00> : vector<16x64xf32>
    %330 = tpu.matmul %327, %329, %cst_323 {dimension_numbers = #tpu.dot_dimension_numbers<[1], [0], [0], [1], [0, 0, 1, 1], [], []>} : vector<16x32xf32>, vector<32x64xf32>, vector<16x64xf32> -> vector<16x64xf32>
    %331 = arith.addf %326, %330 : vector<16x64xf32>
    %c10_324 = arith.constant 10 : index
    %c0_325 = arith.constant 0 : index
    %332 = vector.load %arg18[%c10_324, %c0_325] : memref<40x32xf32, #tpu.memory_space<vmem>>, vector<16x32xf32>
    %c5_326 = arith.constant 5 : index
    %c0_327 = arith.constant 0 : index
    %c0_328 = arith.constant 0 : index
    %333 = vector.load %arg10[%c5_326, %c0_327, %c0_328] : memref<9x32x64xf32, #tpu.memory_space<vmem>>, vector<1x32x64xf32>
    %334 = vector.shape_cast %333 : vector<1x32x64xf32> to vector<32x64xf32>
    %cst_329 = arith.constant dense<0.000000e+00> : vector<16x64xf32>
    %335 = tpu.matmul %332, %334, %cst_329 {dimension_numbers = #tpu.dot_dimension_numbers<[1], [0], [0], [1], [0, 0, 1, 1], [], []>} : vector<16x32xf32>, vector<32x64xf32>, vector<16x64xf32> -> vector<16x64xf32>
    %336 = arith.addf %331, %335 : vector<16x64xf32>
    %c16_330 = arith.constant 16 : index
    %c0_331 = arith.constant 0 : index
    %337 = vector.load %arg18[%c16_330, %c0_331] : memref<40x32xf32, #tpu.memory_space<vmem>>, vector<16x32xf32>
    %c6_332 = arith.constant 6 : index
    %c0_333 = arith.constant 0 : index
    %c0_334 = arith.constant 0 : index
    %338 = vector.load %arg10[%c6_332, %c0_333, %c0_334] : memref<9x32x64xf32, #tpu.memory_space<vmem>>, vector<1x32x64xf32>
    %339 = vector.shape_cast %338 : vector<1x32x64xf32> to vector<32x64xf32>
    %cst_335 = arith.constant dense<0.000000e+00> : vector<16x64xf32>
    %340 = tpu.matmul %337, %339, %cst_335 {dimension_numbers = #tpu.dot_dimension_numbers<[1], [0], [0], [1], [0, 0, 1, 1], [], []>} : vector<16x32xf32>, vector<32x64xf32>, vector<16x64xf32> -> vector<16x64xf32>
    %341 = arith.addf %336, %340 : vector<16x64xf32>
    %c17_336 = arith.constant 17 : index
    %c0_337 = arith.constant 0 : index
    %342 = vector.load %arg18[%c17_336, %c0_337] : memref<40x32xf32, #tpu.memory_space<vmem>>, vector<16x32xf32>
    %c7_338 = arith.constant 7 : index
    %c0_339 = arith.constant 0 : index
    %c0_340 = arith.constant 0 : index
    %343 = vector.load %arg10[%c7_338, %c0_339, %c0_340] : memref<9x32x64xf32, #tpu.memory_space<vmem>>, vector<1x32x64xf32>
    %344 = vector.shape_cast %343 : vector<1x32x64xf32> to vector<32x64xf32>
    %cst_341 = arith.constant dense<0.000000e+00> : vector<16x64xf32>
    %345 = tpu.matmul %342, %344, %cst_341 {dimension_numbers = #tpu.dot_dimension_numbers<[1], [0], [0], [1], [0, 0, 1, 1], [], []>} : vector<16x32xf32>, vector<32x64xf32>, vector<16x64xf32> -> vector<16x64xf32>
    %346 = arith.addf %341, %345 : vector<16x64xf32>
    %c18_342 = arith.constant 18 : index
    %c0_343 = arith.constant 0 : index
    %347 = vector.load %arg18[%c18_342, %c0_343] : memref<40x32xf32, #tpu.memory_space<vmem>>, vector<16x32xf32>
    %c8_344 = arith.constant 8 : index
    %c0_345 = arith.constant 0 : index
    %c0_346 = arith.constant 0 : index
    %348 = vector.load %arg10[%c8_344, %c0_345, %c0_346] : memref<9x32x64xf32, #tpu.memory_space<vmem>>, vector<1x32x64xf32>
    %349 = vector.shape_cast %348 : vector<1x32x64xf32> to vector<32x64xf32>
    %cst_347 = arith.constant dense<0.000000e+00> : vector<16x64xf32>
    %350 = tpu.matmul %347, %349, %cst_347 {dimension_numbers = #tpu.dot_dimension_numbers<[1], [0], [0], [1], [0, 0, 1, 1], [], []>} : vector<16x32xf32>, vector<32x64xf32>, vector<16x64xf32> -> vector<16x64xf32>
    %351 = arith.addf %346, %350 : vector<16x64xf32>
    %c0_348 = arith.constant 0 : index
    %c0_349 = arith.constant 0 : index
    %352 = vector.load %arg11[%c0_348, %c0_349] : memref<1x64xf32, #tpu.memory_space<vmem>>, vector<1x64xf32>
    %353 = vector.broadcast %352 : vector<1x64xf32> to vector<16x64xf32>
    %354 = arith.addf %351, %353 : vector<16x64xf32>
    %cst_350 = arith.constant 0.000000e+00 : f32
    %355 = vector.broadcast %cst_350 : f32 to vector<16x64xf32>
    %356 = arith.maximumf %354, %355 : vector<16x64xf32>
    %357 = vector.extract_strided_slice %356 {offsets = [0, 0], sizes = [2, 64], strides = [1, 1]} : vector<16x64xf32> to vector<2x64xf32>
    %358 = vector.extract_strided_slice %356 {offsets = [8, 0], sizes = [2, 64], strides = [1, 1]} : vector<16x64xf32> to vector<2x64xf32>
    %cst_351 = arith.constant dense<0.000000e+00> : vector<64xf32>
    %359 = vector.multi_reduction <add>, %357, %cst_351 [0] : vector<2x64xf32> to vector<64xf32>
    %360 = vector.shape_cast %359 : vector<64xf32> to vector<1x64xf32>
    %cst_352 = arith.constant 0.000000e+00 : f32
    %361 = vector.broadcast %cst_352 : f32 to vector<1x64xf32>
    %362 = arith.addf %361, %360 : vector<1x64xf32>
    %cst_353 = arith.constant dense<0.000000e+00> : vector<64xf32>
    %363 = vector.multi_reduction <add>, %358, %cst_353 [0] : vector<2x64xf32> to vector<64xf32>
    %364 = vector.shape_cast %363 : vector<64xf32> to vector<1x64xf32>
    %365 = arith.addf %362, %364 : vector<1x64xf32>
    %cst_354 = arith.constant 2.500000e-01 : f32
    %366 = vector.broadcast %cst_354 : f32 to vector<1x64xf32>
    %367 = arith.mulf %365, %366 : vector<1x64xf32>
    %c0_355 = arith.constant 0 : index
    %c0_356 = arith.constant 0 : index
    %368 = vector.load %arg12[%c0_355, %c0_356] : memref<64x128xf32, #tpu.memory_space<vmem>>, vector<64x128xf32>
    %cst_357 = arith.constant dense<0.000000e+00> : vector<1x128xf32>
    %369 = tpu.matmul %367, %368, %cst_357 {dimension_numbers = #tpu.dot_dimension_numbers<[1], [0], [0], [1], [0, 0, 1, 1], [], []>} : vector<1x64xf32>, vector<64x128xf32>, vector<1x128xf32> -> vector<1x128xf32>
    %c0_358 = arith.constant 0 : index
    %c0_359 = arith.constant 0 : index
    %370 = vector.load %arg13[%c0_358, %c0_359] : memref<1x128xf32, #tpu.memory_space<vmem>>, vector<1x128xf32>
    %371 = arith.addf %369, %370 : vector<1x128xf32>
    %c0_360 = arith.constant 0 : index
    %c0_361 = arith.constant 0 : index
    %c0_362 = arith.constant 0 : index
    %372 = vector.load %arg14[%c0_360, %c0_361, %c0_362] : memref<1x1x128xf32, #tpu.memory_space<vmem>>, vector<1x1x128xf32>
    %373 = vector.shape_cast %372 : vector<1x1x128xf32> to vector<1x128xf32>
    %374 = vector.shape_cast %371 : vector<1x128xf32> to vector<1x1x128xf32>
    tpu.vector_store %arg14[%c0_360, %c0_361, %c0_362], %374 {strides = array<i32>} : memref<1x1x128xf32, #tpu.memory_space<vmem>>, vector<1x1x128xf32>,
    return
  }
  func.func @transform_0(%arg0: i32) -> (i32, i32, i32) {
    %c0_i32 = arith.constant 0 : i32
    %c0_i32_0 = arith.constant 0 : i32
    %c0_i32_1 = arith.constant 0 : i32
    return %arg0, %c0_i32, %c0_i32_0 : i32, i32, i32
  }
  func.func @transform_1(%arg0: i32) -> (i32, i32) {
    %c0_i32 = arith.constant 0 : i32
    %c0_i32_0 = arith.constant 0 : i32
    %c0_i32_1 = arith.constant 0 : i32
    return %c0_i32, %c0_i32_0 : i32, i32
  }
  func.func @transform_2(%arg0: i32) -> (i32, i32) {
    %c0_i32 = arith.constant 0 : i32
    %c0_i32_0 = arith.constant 0 : i32
    %c0_i32_1 = arith.constant 0 : i32
    return %c0_i32, %c0_i32_0 : i32, i32
  }
  func.func @transform_3(%arg0: i32) -> (i32, i32, i32) {
    %c0_i32 = arith.constant 0 : i32
    %c0_i32_0 = arith.constant 0 : i32
    %c0_i32_1 = arith.constant 0 : i32
    %c0_i32_2 = arith.constant 0 : i32
    return %c0_i32, %c0_i32_0, %c0_i32_1 : i32, i32, i32
  }
  func.func @transform_4(%arg0: i32) -> (i32, i32) {
    %c0_i32 = arith.constant 0 : i32
    %c0_i32_0 = arith.constant 0 : i32
    %c0_i32_1 = arith.constant 0 : i32
    return %c0_i32, %c0_i32_0 : i32, i32
  }
  func.func @transform_5(%arg0: i32) -> (i32, i32, i32) {
    %c0_i32 = arith.constant 0 : i32
    %c0_i32_0 = arith.constant 0 : i32
    %c0_i32_1 = arith.constant 0 : i32
    %c0_i32_2 = arith.constant 0 : i32
    return %c0_i32, %c0_i32_0, %c0_i32_1 : i32, i32, i32
  }
  func.func @transform_6(%arg0: i32) -> (i32, i32) {
    %c0_i32 = arith.constant 0 : i32
    %c0_i32_0 = arith.constant 0 : i32
    %c0_i32_1 = arith.constant 0 : i32
    return %c0_i32, %c0_i32_0 : i32, i32
  }
  func.func @transform_7(%arg0: i32) -> (i32, i32, i32) {
    %c0_i32 = arith.constant 0 : i32
    %c0_i32_0 = arith.constant 0 : i32
    %c0_i32_1 = arith.constant 0 : i32
    %c0_i32_2 = arith.constant 0 : i32
    return %c0_i32, %c0_i32_0, %c0_i32_1 : i32, i32, i32
  }
  func.func @transform_8(%arg0: i32) -> (i32, i32) {
    %c0_i32 = arith.constant 0 : i32
    %c0_i32_0 = arith.constant 0 : i32
    %c0_i32_1 = arith.constant 0 : i32
    return %c0_i32, %c0_i32_0 : i32, i32
  }
  func.func @transform_9(%arg0: i32) -> (i32, i32, i32) {
    %c0_i32 = arith.constant 0 : i32
    %c0_i32_0 = arith.constant 0 : i32
    %c0_i32_1 = arith.constant 0 : i32
    %c0_i32_2 = arith.constant 0 : i32
    return %c0_i32, %c0_i32_0, %c0_i32_1 : i32, i32, i32
  }
  func.func @transform_10(%arg0: i32) -> (i32, i32) {
    %c0_i32 = arith.constant 0 : i32
    %c0_i32_0 = arith.constant 0 : i32
    %c0_i32_1 = arith.constant 0 : i32
    return %c0_i32, %c0_i32_0 : i32, i32
  }
  func.func @transform_11(%arg0: i32) -> (i32, i32) {
    %c0_i32 = arith.constant 0 : i32
    %c0_i32_0 = arith.constant 0 : i32
    %c0_i32_1 = arith.constant 0 : i32
    return %c0_i32, %c0_i32_0 : i32, i32
  }
  func.func @transform_12(%arg0: i32) -> (i32, i32) {
    %c0_i32 = arith.constant 0 : i32
    %c0_i32_0 = arith.constant 0 : i32
    %c0_i32_1 = arith.constant 0 : i32
    return %c0_i32, %c0_i32_0 : i32, i32
  }
  func.func @transform_13(%arg0: i32) -> (i32, i32, i32) {
    %c0_i32 = arith.constant 0 : i32
    %c0_i32_0 = arith.constant 0 : i32
    %c0_i32_1 = arith.constant 0 : i32
    return %arg0, %c0_i32, %c0_i32_0 : i32, i32, i32
  }
}

</mosaic_0001>

<llo_original>
// kernel: _lambda_.1
$region0: #{_lambda_.1}
  #allocation0 [shape = 'u32[]', space=smem, size = 0x4, offset = 0x4, fixed_abs, tag = 'smem constant byte address 0x4 - core index']
  #allocation1 [shape = 'u32[72,128]{1,0:T(1,128)}', space=vmem, size = 0x9000, scoped, tag = 'internal scratch']
  #allocation2 [shape = 'f32[456,8]{1,0:T(8,128)}', space=vmem, size = 0x39000, scoped, tag = 'scratch operand']
  #allocation3 [shape = 'f32[176,8]{1,0:T(8,128)}', space=vmem, size = 0x16000, scoped, tag = 'scratch operand']
  #allocation4 [shape = 'f32[56,16]{1,0:T(8,128)}', space=vmem, size = 0x7000, scoped, tag = 'scratch operand']
  #allocation5 [shape = 'f32[40,32]{1,0:T(8,128)}', space=vmem, size = 0x5000, scoped, tag = 'scratch operand']
  #allocation6 [shape = 'f32[24,8]{1,0:T(8,128)}', space=vmem, size = 0x3000, scoped, tag = 'scratch operand']
  #allocation7 [shape = 'f32[16,16]{1,0:T(8,128)}', space=vmem, size = 0x2000, scoped, tag = 'scratch operand']
  #allocation8 [shape = 'f32[8,32]{1,0:T(8,128)}', space=vmem, size = 0x1000, scoped, tag = 'scratch operand']
  %s0 = inlined_call_operand.vmem [shape: f32[2,256,27], index: 0, kind: input, shape index: {}]
  %s1 = inlined_call_operand.vmem [shape: f32[27,8], index: 1, kind: input, shape index: {}]
  %s2 = inlined_call_operand.vmem [shape: f32[1,8], index: 2, kind: input, shape index: {}, may-alias: {2,4}]
  %s3 = inlined_call_operand.vmem [shape: f32[9,8,8], index: 3, kind: input, shape index: {}]
  %s4 = inlined_call_operand.vmem [shape: f32[1,8], index: 4, kind: input, shape index: {}, may-alias: {2,4}]
  %s5 = inlined_call_operand.vmem [shape: f32[9,8,16], index: 5, kind: input, shape index: {}]
  %s6 = inlined_call_operand.vmem [shape: f32[1,16], index: 6, kind: input, shape index: {}]
  %s7 = inlined_call_operand.vmem [shape: f32[9,16,32], index: 7, kind: input, shape index: {}]
  %s8 = inlined_call_operand.vmem [shape: f32[1,32], index: 8, kind: input, shape index: {}]
  %s9 = inlined_call_operand.vmem [shape: f32[9,32,64], index: 9, kind: input, shape index: {}]
  %s10 = inlined_call_operand.vmem [shape: f32[1,64], index: 10, kind: input, shape index: {}]
  %s11 = inlined_call_operand.vmem [shape: f32[64,128], index: 11, kind: input, shape index: {}]
  %s12 = inlined_call_operand.vmem [shape: f32[1,128], index: 12, kind: input, shape index: {}]
  %s13 = inlined_call_operand.hbm [shape: f32[2,1,128], index: 13, kind: output, shape index: {}]
  %s14 = sld [smem:[#allocation0]]
  $region85: #{_lambda_.1} parent=0
    _
  %s16 = ssub.s32 1, %s14
  %s17 = scalar_select 0, %s16, %s14
  $region1: #{_lambda_.1} parent=0
    #allocation9 [shape = 'u8[1024]{0}', space=vmem, size = 0x400, scoped, tag = 'output window, operand 0']
    #allocation10 [shape = 's32[2]{0}', space=sflag, size = 0x8, scoped, tag = 'scoped memory for _lambda_.1']
    %18 = vsyncpa [#allocation10], 0
    %s19 = scalar_lea.sflag [#allocation10], 1
    %20 = vsyncpa %s19, 0
    loop: start=0, step=1, limit=4
    $region2: #{_lambda_.1} parent=1 // loop_pre_header
      _
    $region3: #{_lambda_.1} parent=1 // loop_header
      %s22 = sphi 0, %s26
      %p23 = scmp.ge.s32.totalorder %s22, 4
      %s32 = sphi 0, %s34
      %s35 = sphi 0, %s32
      %s36 = sphi 0, %s35
      %s52 = sphi 0, %s36
      %s56 = sphi 0, %s56
      %s58 = sphi 0, %s56
      %s59 = sphi 0, %s58
      %s73 = sphi 0, %s59
      %s77 = sphi 0, %s77
      %s79 = sphi 0, %s77
      %s80 = sphi 0, %s79
      %s94 = sphi 0, %s80
      %s98 = sphi 0, %s98
      %s100 = sphi 0, %s98
      %s101 = sphi 0, %s100
      %s115 = sphi 0, %s101
      %s119 = sphi 0, %s119
      %s121 = sphi 0, %s119
      %s122 = sphi 0, %s121
      %s136 = sphi 0, %s122
      %s140 = sphi 0, %s140
      %s142 = sphi 0, %s140
      %s143 = sphi 0, %s142
      %s157 = sphi 0, %s143
      %s161 = sphi 0, %s161
      %s163 = sphi 0, %s161
      %s164 = sphi 0, %s163
      %s178 = sphi 0, %s164
      %s182 = sphi 0, %s182
      %s184 = sphi 0, %s182
      %s185 = sphi 0, %s184
      %s199 = sphi 0, %s185
      %s203 = sphi 0, %s203
      %s205 = sphi 0, %s203
      %s206 = sphi 0, %s205
      %s220 = sphi 0, %s206
      %s224 = sphi 0, %s224
      %s226 = sphi 0, %s224
      %s227 = sphi 0, %s226
      %s241 = sphi 0, %s227
      %s245 = sphi 0, %s245
      %s247 = sphi 0, %s245
      %s248 = sphi 0, %s247
      %s262 = sphi 0, %s248
      %s266 = sphi 0, %s266
      %s268 = sphi 0, %s266
      %s269 = sphi 0, %s268
      %s283 = sphi 0, %s269
      %s287 = sphi 0, %s287
      %s289 = sphi 0, %s287
      %s290 = sphi 0, %s289
      %s304 = sphi 0, %s290
      %s310 = sphi 0, %s312
      %s313 = sphi 0, %s310
      %s314 = sphi 0, %s313
      %s330 = sphi 0, %s314
    $region4: #{_lambda_.1} parent=1 // loop_header_branch
      %25 = sbr.rel (%p23) target = $region8
    $region5: #{_lambda_.1} parent=1 // loop_body
      %s27 = ssub.s32 %s22, 1
      %s28 = ssub.s32 %s22, 2
      %s29 = sadd.s32 %s22, 1
      %s30 = ssub.s32 %s22, %s29
      %p31 = scmp.eq.s32.totalorder %s30, 0
      %s33 = sadd.s32 %s32, 1
      %s34 = scalar_select %p31, %s32, %s33
      %p37 = pneg %p31
      %p38 = scmp.eq.s32.totalorder %s22, 1
      %p39 = por %p37, %p38
      %p40 = scmp.ne.s32.totalorder %s32, %s35
      %p41 = scmp.eq.s32.totalorder %s22, 0
      %p42 = por %p40, %p41
      %p43 = scmp.ne.s32.totalorder %s32, %s35
      %p44 = scmp.eq.s32.totalorder %s27, 1
      %p45 = por %p43, %p44
      %p46 = scmp.ne.s32.totalorder %s35, %s36
      %p47 = scmp.eq.s32.totalorder %s27, 0
      %p48 = por %p46, %p47
      %p49 = scmp.ne.s32.totalorder %s35, %s36
      %p50 = scmp.eq.s32.totalorder %s28, 1
      %p51 = por %p49, %p50
      %p53 = scmp.ne.s32.totalorder %s36, %s52
      %p54 = scmp.eq.s32.totalorder %s28, 0
      %p55 = por %p53, %p54
      %s57 = sadd.s32 %s56, 1
      %p60 = scmp.eq.s32.totalorder %s22, 1
      %p61 = scmp.ne.s32.totalorder %s56, %s58
      %p62 = scmp.eq.s32.totalorder %s22, 0
      %p63 = por %p61, %p62
      %p64 = scmp.ne.s32.totalorder %s56, %s58
      %p65 = scmp.eq.s32.totalorder %s27, 1
      %p66 = por %p64, %p65
      %p67 = scmp.ne.s32.totalorder %s58, %s59
      %p68 = scmp.eq.s32.totalorder %s27, 0
      %p69 = por %p67, %p68
      %p70 = scmp.ne.s32.totalorder %s58, %s59
      %p71 = scmp.eq.s32.totalorder %s28, 1
      %p72 = por %p70, %p71
      %p74 = scmp.ne.s32.totalorder %s59, %s73
      %p75 = scmp.eq.s32.totalorder %s28, 0
      %p76 = por %p74, %p75
      %s78 = sadd.s32 %s77, 1
      %p81 = scmp.eq.s32.totalorder %s22, 1
      %p82 = scmp.ne.s32.totalorder %s77, %s79
      %p83 = scmp.eq.s32.totalorder %s22, 0
      %p84 = por %p82, %p83
      %p85 = scmp.ne.s32.totalorder %s77, %s79
      %p86 = scmp.eq.s32.totalorder %s27, 1
      %p87 = por %p85, %p86
      %p88 = scmp.ne.s32.totalorder %s79, %s80
      %p89 = scmp.eq.s32.totalorder %s27, 0
      %p90 = por %p88, %p89
      %p91 = scmp.ne.s32.totalorder %s79, %s80
      %p92 = scmp.eq.s32.totalorder %s28, 1
      %p93 = por %p91, %p92
      %p95 = scmp.ne.s32.totalorder %s80, %s94
      %p96 = scmp.eq.s32.totalorder %s28, 0
      %p97 = por %p95, %p96
      %s99 = sadd.s32 %s98, 1
      %p102 = scmp.eq.s32.totalorder %s22, 1
      %p103 = scmp.ne.s32.totalorder %s98, %s100
      %p104 = scmp.eq.s32.totalorder %s22, 0
      %p105 = por %p103, %p104
      %p106 = scmp.ne.s32.totalorder %s98, %s100
      %p107 = scmp.eq.s32.totalorder %s27, 1
      %p108 = por %p106, %p107
      %p109 = scmp.ne.s32.totalorder %s100, %s101
      %p110 = scmp.eq.s32.totalorder %s27, 0
      %p111 = por %p109, %p110
      %p112 = scmp.ne.s32.totalorder %s100, %s101
      %p113 = scmp.eq.s32.totalorder %s28, 1
      %p114 = por %p112, %p113
      %p116 = scmp.ne.s32.totalorder %s101, %s115
      %p117 = scmp.eq.s32.totalorder %s28, 0
      %p118 = por %p116, %p117
      %s120 = sadd.s32 %s119, 1
      %p123 = scmp.eq.s32.totalorder %s22, 1
      %p124 = scmp.ne.s32.totalorder %s119, %s121
      %p125 = scmp.eq.s32.totalorder %s22, 0
      %p126 = por %p124, %p125
      %p127 = scmp.ne.s32.totalorder %s119, %s121
      %p128 = scmp.eq.s32.totalorder %s27, 1
      %p129 = por %p127, %p128
      %p130 = scmp.ne.s32.totalorder %s121, %s122
      %p131 = scmp.eq.s32.totalorder %s27, 0
      %p132 = por %p130, %p131
      %p133 = scmp.ne.s32.totalorder %s121, %s122
      %p134 = scmp.eq.s32.totalorder %s28, 1
      %p135 = por %p133, %p134
      %p137 = scmp.ne.s32.totalorder %s122, %s136
      %p138 = scmp.eq.s32.totalorder %s28, 0
      %p139 = por %p137, %p138
      %s141 = sadd.s32 %s140, 1
      %p144 = scmp.eq.s32.totalorder %s22, 1
      %p145 = scmp.ne.s32.totalorder %s140, %s142
      %p146 = scmp.eq.s32.totalorder %s22, 0
      %p147 = por %p145, %p146
      %p148 = scmp.ne.s32.totalorder %s140, %s142
      %p149 = scmp.eq.s32.totalorder %s27, 1
      %p150 = por %p148, %p149
      %p151 = scmp.ne.s32.totalorder %s142, %s143
      %p152 = scmp.eq.s32.totalorder %s27, 0
      %p153 = por %p151, %p152
      %p154 = scmp.ne.s32.totalorder %s142, %s143
      %p155 = scmp.eq.s32.totalorder %s28, 1
      %p156 = por %p154, %p155
      %p158 = scmp.ne.s32.totalorder %s143, %s157
      %p159 = scmp.eq.s32.totalorder %s28, 0
      %p160 = por %p158, %p159
      %s162 = sadd.s32 %s161, 1
      %p165 = scmp.eq.s32.totalorder %s22, 1
      %p166 = scmp.ne.s32.totalorder %s161, %s163
      %p167 = scmp.eq.s32.totalorder %s22, 0
      %p168 = por %p166, %p167
      %p169 = scmp.ne.s32.totalorder %s161, %s163
      %p170 = scmp.eq.s32.totalorder %s27, 1
      %p171 = por %p169, %p170
      %p172 = scmp.ne.s32.totalorder %s163, %s164
      %p173 = scmp.eq.s32.totalorder %s27, 0
      %p174 = por %p172, %p173
      %p175 = scmp.ne.s32.totalorder %s163, %s164
      %p176 = scmp.eq.s32.totalorder %s28, 1
      %p177 = por %p175, %p176
      %p179 = scmp.ne.s32.totalorder %s164, %s178
      %p180 = scmp.eq.s32.totalorder %s28, 0
      %p181 = por %p179, %p180
      %s183 = sadd.s32 %s182, 1
      %p186 = scmp.eq.s32.totalorder %s22, 1
      %p187 = scmp.ne.s32.totalorder %s182, %s184
      %p188 = scmp.eq.s32.totalorder %s22, 0
      %p189 = por %p187, %p188
      %p190 = scmp.ne.s32.totalorder %s182, %s184
      %p191 = scmp.eq.s32.totalorder %s27, 1
      %p192 = por %p190, %p191
      %p193 = scmp.ne.s32.totalorder %s184, %s185
      %p194 = scmp.eq.s32.totalorder %s27, 0
      %p195 = por %p193, %p194
      %p196 = scmp.ne.s32.totalorder %s184, %s185
      %p197 = scmp.eq.s32.totalorder %s28, 1
      %p198 = por %p196, %p197
      %p200 = scmp.ne.s32.totalorder %s185, %s199
      %p201 = scmp.eq.s32.totalorder %s28, 0
      %p202 = por %p200, %p201
      %s204 = sadd.s32 %s203, 1
      %p207 = scmp.eq.s32.totalorder %s22, 1
      %p208 = scmp.ne.s32.totalorder %s203, %s205
      %p209 = scmp.eq.s32.totalorder %s22, 0
      %p210 = por %p208, %p209
      %p211 = scmp.ne.s32.totalorder %s203, %s205
      %p212 = scmp.eq.s32.totalorder %s27, 1
      %p213 = por %p211, %p212
      %p214 = scmp.ne.s32.totalorder %s205, %s206
      %p215 = scmp.eq.s32.totalorder %s27, 0
      %p216 = por %p214, %p215
      %p217 = scmp.ne.s32.totalorder %s205, %s206
      %p218 = scmp.eq.s32.totalorder %s28, 1
      %p219 = por %p217, %p218
      %p221 = scmp.ne.s32.totalorder %s206, %s220
      %p222 = scmp.eq.s32.totalorder %s28, 0
      %p223 = por %p221, %p222
      %s225 = sadd.s32 %s224, 1
      %p228 = scmp.eq.s32.totalorder %s22, 1
      %p229 = scmp.ne.s32.totalorder %s224, %s226
      %p230 = scmp.eq.s32.totalorder %s22, 0
      %p231 = por %p229, %p230
      %p232 = scmp.ne.s32.totalorder %s224, %s226
      %p233 = scmp.eq.s32.totalorder %s27, 1
      %p234 = por %p232, %p233
      %p235 = scmp.ne.s32.totalorder %s226, %s227
      %p236 = scmp.eq.s32.totalorder %s27, 0
      %p237 = por %p235, %p236
      %p238 = scmp.ne.s32.totalorder %s226, %s227
      %p239 = scmp.eq.s32.totalorder %s28, 1
      %p240 = por %p238, %p239
      %p242 = scmp.ne.s32.totalorder %s227, %s241
      %p243 = scmp.eq.s32.totalorder %s28, 0
      %p244 = por %p242, %p243
      %s246 = sadd.s32 %s245, 1
      %p249 = scmp.eq.s32.totalorder %s22, 1
      %p250 = scmp.ne.s32.totalorder %s245, %s247
      %p251 = scmp.eq.s32.totalorder %s22, 0
      %p252 = por %p250, %p251
      %p253 = scmp.ne.s32.totalorder %s245, %s247
      %p254 = scmp.eq.s32.totalorder %s27, 1
      %p255 = por %p253, %p254
      %p256 = scmp.ne.s32.totalorder %s247, %s248
      %p257 = scmp.eq.s32.totalorder %s27, 0
      %p258 = por %p256, %p257
      %p259 = scmp.ne.s32.totalorder %s247, %s248
      %p260 = scmp.eq.s32.totalorder %s28, 1
      %p261 = por %p259, %p260
      %p263 = scmp.ne.s32.totalorder %s248, %s262
      %p264 = scmp.eq.s32.totalorder %s28, 0
      %p265 = por %p263, %p264
      %s267 = sadd.s32 %s266, 1
      %p270 = scmp.eq.s32.totalorder %s22, 1
      %p271 = scmp.ne.s32.totalorder %s266, %s268
      %p272 = scmp.eq.s32.totalorder %s22, 0
      %p273 = por %p271, %p272
      %p274 = scmp.ne.s32.totalorder %s266, %s268
      %p275 = scmp.eq.s32.totalorder %s27, 1
      %p276 = por %p274, %p275
      %p277 = scmp.ne.s32.totalorder %s268, %s269
      %p278 = scmp.eq.s32.totalorder %s27, 0
      %p279 = por %p277, %p278
      %p280 = scmp.ne.s32.totalorder %s268, %s269
      %p281 = scmp.eq.s32.totalorder %s28, 1
      %p282 = por %p280, %p281
      %p284 = scmp.ne.s32.totalorder %s269, %s283
      %p285 = scmp.eq.s32.totalorder %s28, 0
      %p286 = por %p284, %p285
      %s288 = sadd.s32 %s287, 1
      %p291 = scmp.eq.s32.totalorder %s22, 1
      %p292 = scmp.ne.s32.totalorder %s287, %s289
      %p293 = scmp.eq.s32.totalorder %s22, 0
      %p294 = por %p292, %p293
      %p295 = scmp.ne.s32.totalorder %s287, %s289
      %p296 = scmp.eq.s32.totalorder %s27, 1
      %p297 = por %p295, %p296
      %p298 = scmp.ne.s32.totalorder %s289, %s290
      %p299 = scmp.eq.s32.totalorder %s27, 0
      %p300 = por %p298, %p299
      %p301 = scmp.ne.s32.totalorder %s289, %s290
      %p302 = scmp.eq.s32.totalorder %s28, 1
      %p303 = por %p301, %p302
      %p305 = scmp.ne.s32.totalorder %s290, %s304
      %p306 = scmp.eq.s32.totalorder %s28, 0
      %p307 = por %p305, %p306
      %s308 = ssub.s32 %s22, %s29
      %p309 = scmp.eq.s32.totalorder %s308, 0
      %s311 = sadd.s32 %s310, 1
      %s312 = scalar_select %p309, %s310, %s311
      %p315 = pneg %p309
      %p316 = scmp.eq.s32.totalorder %s22, 1
      %p317 = por %p315, %p316
      %p318 = scmp.ne.s32.totalorder %s310, %s313
      %p319 = scmp.eq.s32.totalorder %s22, 0
      %p320 = por %p318, %p319
      %p321 = scmp.ne.s32.totalorder %s310, %s313
      %p322 = scmp.eq.s32.totalorder %s27, 1
      %p323 = por %p321, %p322
      %p324 = scmp.ne.s32.totalorder %s313, %s314
      %p325 = scmp.eq.s32.totalorder %s27, 0
      %p326 = por %p324, %p325
      %p327 = scmp.ne.s32.totalorder %s313, %s314
      %p328 = scmp.eq.s32.totalorder %s28, 1
      %p329 = por %p327, %p328
      %p331 = scmp.ne.s32.totalorder %s314, %s330
      %p332 = scmp.eq.s32.totalorder %s28, 0
      %p333 = por %p331, %p332
      %p334 = scmp.le.s32.totalorder 1, %s22
      %p335 = scmp.lt.s32.totalorder %s22, 3
      %p336 = pnand %p334, %p335
      %p337 = pneg %p336
      // Predicated region
      $region9: #{_lambda_.1} parent=5 // pred_check
        _
      $region10: #{_lambda_.1} parent=5 // pred_check_branch
        %339 = sbr.rel (%p336) target = $region12
      $region11: #{_lambda_.1} parent=5 // pred_region
        %s340 = ssub.s32 %s22, 1
        // Predicated region
        $region13: #{_lambda_.1} parent=11 // pred_check
          %p341 = pneg %p69
        $region14: #{_lambda_.1} parent=11 // pred_check_branch
          %343 = sbr.rel (%p341) target = $region16
        $region15: #{_lambda_.1} parent=11 // pred_region
          _
        $region16: #{_lambda_.1} parent=11 // pred_fallthru
          _
        // Predicated region
        $region17: #{_lambda_.1} parent=11 // pred_check
          %p344 = pneg %p90
        $region18: #{_lambda_.1} parent=11 // pred_check_branch
          %346 = sbr.rel (%p344) target = $region20
        $region19: #{_lambda_.1} parent=11 // pred_region
          _
        $region20: #{_lambda_.1} parent=11 // pred_fallthru
          _
        // Predicated region
        $region21: #{_lambda_.1} parent=11 // pred_check
          %p347 = pneg %p111
        $region22: #{_lambda_.1} parent=11 // pred_check_branch
          %349 = sbr.rel (%p347) target = $region24
        $region23: #{_lambda_.1} parent=11 // pred_region
          _
        $region24: #{_lambda_.1} parent=11 // pred_fallthru
          _
        // Predicated region
        $region25: #{_lambda_.1} parent=11 // pred_check
          %p350 = pneg %p132
        $region26: #{_lambda_.1} parent=11 // pred_check_branch
          %352 = sbr.rel (%p350) target = $region28
        $region27: #{_lambda_.1} parent=11 // pred_region
          _
        $region28: #{_lambda_.1} parent=11 // pred_fallthru
          _
        // Predicated region
        $region29: #{_lambda_.1} parent=11 // pred_check
          %p353 = pneg %p153
        $region30: #{_lambda_.1} parent=11 // pred_check_branch
          %355 = sbr.rel (%p353) target = $region32
        $region31: #{_lambda_.1} parent=11 // pred_region
          _
        $region32: #{_lambda_.1} parent=11 // pred_fallthru
          _
        // Predicated region
        $region33: #{_lambda_.1} parent=11 // pred_check
          %p356 = pneg %p174
        $region34: #{_lambda_.1} parent=11 // pred_check_branch
          %358 = sbr.rel (%p356) target = $region36
        $region35: #{_lambda_.1} parent=11 // pred_region
          _
        $region36: #{_lambda_.1} parent=11 // pred_fallthru
          _
        // Predicated region
        $region37: #{_lambda_.1} parent=11 // pred_check
          %p359 = pneg %p195
        $region38: #{_lambda_.1} parent=11 // pred_check_branch
          %361 = sbr.rel (%p359) target = $region40
        $region39: #{_lambda_.1} parent=11 // pred_region
          _
        $region40: #{_lambda_.1} parent=11 // pred_fallthru
          _
        // Predicated region
        $region41: #{_lambda_.1} parent=11 // pred_check
          %p362 = pneg %p216
        $region42: #{_lambda_.1} parent=11 // pred_check_branch
          %364 = sbr.rel (%p362) target = $region44
        $region43: #{_lambda_.1} parent=11 // pred_region
          _
        $region44: #{_lambda_.1} parent=11 // pred_fallthru
          _
        // Predicated region
        $region45: #{_lambda_.1} parent=11 // pred_check
          %p365 = pneg %p237
        $region46: #{_lambda_.1} parent=11 // pred_check_branch
          %367 = sbr.rel (%p365) target = $region48
        $region47: #{_lambda_.1} parent=11 // pred_region
          _
        $region48: #{_lambda_.1} parent=11 // pred_fallthru
          _
        // Predicated region
        $region49: #{_lambda_.1} parent=11 // pred_check
          %p368 = pneg %p258
        $region50: #{_lambda_.1} parent=11 // pred_check_branch
          %370 = sbr.rel (%p368) target = $region52
        $region51: #{_lambda_.1} parent=11 // pred_region
          _
        $region52: #{_lambda_.1} parent=11 // pred_fallthru
          _
        // Predicated region
        $region53: #{_lambda_.1} parent=11 // pred_check
          %p371 = pneg %p279
        $region54: #{_lambda_.1} parent=11 // pred_check_branch
          %373 = sbr.rel (%p371) target = $region56
        $region55: #{_lambda_.1} parent=11 // pred_region
          _
        $region56: #{_lambda_.1} parent=11 // pred_fallthru
          _
        // Predicated region
        $region57: #{_lambda_.1} parent=11 // pred_check
          %p374 = pneg %p300
        $region58: #{_lambda_.1} parent=11 // pred_check_branch
          %376 = sbr.rel (%p374) target = $region60
        $region59: #{_lambda_.1} parent=11 // pred_region
          _
        $region60: #{_lambda_.1} parent=11 // pred_fallthru
          _
      $region12: #{_lambda_.1} parent=5 // pred_fallthru
        _
      %p377 = scmp.lt.s32.totalorder %s22, 2
      // Predicated region
      $region61: #{_lambda_.1} parent=5 // pred_check
        %p378 = pneg %p377
      $region62: #{_lambda_.1} parent=5 // pred_check_branch
        %380 = sbr.rel (%p378) target = $region64
      $region63: #{_lambda_.1} parent=5 // pred_region
        // Predicated region
        $region65: #{_lambda_.1} parent=63 // pred_check
          %p381 = pneg %p42
        $region66: #{_lambda_.1} parent=63 // pred_check_branch
          %383 = sbr.rel (%p381) target = $region68
        $region67: #{_lambda_.1} parent=63 // pred_region
          %p384 = scmp.lt.s32.totalorder %s22, 1
          %s385 = scalar_select %p384, %s22, 1
          %s386 = smul.addr %s385, 32
          %s387 = smul.addr %s386, 8
          %s388 = scalar_lea.vmem %s0, %s387
        $region68: #{_lambda_.1} parent=63 // pred_fallthru
          _
      $region64: #{_lambda_.1} parent=5 // pred_fallthru
        _
      %p389 = scmp.le.s32.totalorder 1, %s22
      %p390 = scmp.lt.s32.totalorder %s22, 3
      %p391 = pnand %p389, %p390
      %p392 = pneg %p391
      // Predicated region
      $region69: #{_lambda_.1} parent=5 // pred_check
        _
      $region70: #{_lambda_.1} parent=5 // pred_check_branch
        %394 = sbr.rel (%p391) target = $region72
      $region71: #{_lambda_.1} parent=5 // pred_region
        %s395 = ssub.s32 %s22, 1
        %p396 = scmp.lt.s32.totalorder %s27, 1
        %s397 = scalar_select %p396, %s27, 1
        %s398 = smul.addr %s397, 32
        %s399 = smul.addr %s398, 8
        %s400 = scalar_lea.vmem %s0, %s399
        %p401 = pneg %p48
        %p402 = pneg %p45
        %p403 = pneg %p69
        %p404 = pneg %p66
        %p405 = pneg %p90
        %p406 = pneg %p87
        %p407 = pneg %p111
        %p408 = pneg %p108
        %p409 = pneg %p132
        %p410 = pneg %p129
        %p411 = pneg %p153
        %p412 = pneg %p150
        %p413 = pneg %p174
        %p414 = pneg %p171
        %p415 = pneg %p195
        %p416 = pneg %p192
        %p417 = pneg %p216
        %p418 = pneg %p213
        %p419 = pneg %p237
        %p420 = pneg %p234
        %p421 = pneg %p258
        %p422 = pneg %p255
        %p423 = pneg %p279
        %p424 = pneg %p276
        %p425 = pneg %p300
        %p426 = pneg %p297
        %p427 = pneg %p326
        %p428 = pneg %p323
        %s429 = sand.u32 %s313, 1
        %s430 = scalar_lea.sflag [#allocation10], %s429
        %s431 = sand.u32 %s313, 1
        %s432 = scalar_lea.vmem [#allocation9], %s431
        %p433 = scmp.lt.s32.totalorder %s27, 1
        %s434 = scalar_select %p433, %s27, 1
        %s435 = smul.addr %s434, 32
        %s436 = smul.addr %s435, 8
        %s437 = scalar_lea.vmem %s0, %s436
        %vm438 = vcmask 64512
        %439 = vst.msk [vmem:[#allocation2] sm:$0xff] %vm438, 0.0
        %440 = vst.msk [vmem:[#allocation2 + $0x8] sm:$0xff] %vm438, 0.0
        %441 = vst.msk [vmem:[#allocation2 + $0x10] sm:$0xff] %vm438, 0.0
        %442 = vst.msk [vmem:[#allocation2 + $0x18] sm:$0xff] %vm438, 0.0
        %443 = vst.msk [vmem:[#allocation2 + $0x20] sm:$0xff] %vm438, 0.0
        %444 = vst.msk [vmem:[#allocation2 + $0x28] sm:$0xff] %vm438, 0.0
        %445 = vst.msk [vmem:[#allocation2 + $0x30] sm:$0xff] %vm438, 0.0
        %446 = vst.msk [vmem:[#allocation2 + $0x38] sm:$0xff] %vm438, 0.0
        %447 = vst.msk [vmem:[#allocation2 + $0x40] sm:$0xff] %vm438, 0.0
        %448 = vst.msk [vmem:[#allocation2 + $0x48] sm:$0xff] %vm438, 0.0
        %449 = vst.msk [vmem:[#allocation2 + $0x50] sm:$0xff] %vm438, 0.0
        %450 = vst.msk [vmem:[#allocation2 + $0x58] sm:$0xff] %vm438, 0.0
        %451 = vst.msk [vmem:[#allocation2 + $0x60] sm:$0xff] %vm438, 0.0
        %452 = vst.msk [vmem:[#allocation2 + $0x68] sm:$0xff] %vm438, 0.0
        %453 = vst.msk [vmem:[#allocation2 + $0x70] sm:$0xff] %vm438, 0.0
        %454 = vst.msk [vmem:[#allocation2 + $0x78] sm:$0xff] %vm438, 0.0
        %455 = vst.msk [vmem:[#allocation2 + $0x80] sm:$0xff] %vm438, 0.0
        %456 = vst.msk [vmem:[#allocation2 + $0x88] sm:$0xff] %vm438, 0.0
        %457 = vst.msk [vmem:[#allocation2 + $0x90] sm:$0xff] %vm438, 0.0
        %458 = vst.msk [vmem:[#allocation2 + $0x98] sm:$0xff] %vm438, 0.0
        %459 = vst.msk [vmem:[#allocation2 + $0xa0] sm:$0xff] %vm438, 0.0
        %460 = vst.msk [vmem:[#allocation2 + $0xa8] sm:$0xff] %vm438, 0.0
        %461 = vst.msk [vmem:[#allocation2 + $0xb0] sm:$0xff] %vm438, 0.0
        %462 = vst.msk [vmem:[#allocation2 + $0xb8] sm:$0xff] %vm438, 0.0
        %463 = vst.msk [vmem:[#allocation2 + $0xc0] sm:$0xff] %vm438, 0.0
        %464 = vst.msk [vmem:[#allocation2 + $0xc8] sm:$0xff] %vm438, 0.0
        %465 = vst.msk [vmem:[#allocation2 + $0xd0] sm:$0xff] %vm438, 0.0
        %466 = vst.msk [vmem:[#allocation2 + $0xd8] sm:$0xff] %vm438, 0.0
        %467 = vst.msk [vmem:[#allocation2 + $0xe0] sm:$0xff] %vm438, 0.0
        %468 = vst.msk [vmem:[#allocation2 + $0xe8] sm:$0xff] %vm438, 0.0
        %469 = vst.msk [vmem:[#allocation2 + $0xf0] sm:$0xff] %vm438, 0.0
        %470 = vst.msk [vmem:[#allocation2 + $0xf8] sm:$0xff] %vm438, 0.0
        %471 = vst.msk [vmem:[#allocation2 + $0x100] sm:$0xff] %vm438, 0.0
        %472 = vst.msk [vmem:[#allocation2 + $0x108] sm:$0xff] %vm438, 0.0
        %473 = vst.msk [vmem:[#allocation2 + $0x110] sm:$0xff] %vm438, 0.0
        %474 = vst.msk [vmem:[#allocation2 + $0x118] sm:$0xff] %vm438, 0.0
        %475 = vst.msk [vmem:[#allocation2 + $0x120] sm:$0xff] %vm438, 0.0
        %476 = vst.msk [vmem:[#allocation2 + $0x128] sm:$0xff] %vm438, 0.0
        %477 = vst.msk [vmem:[#allocation2 + $0x130] sm:$0xff] %vm438, 0.0
        %478 = vst.msk [vmem:[#allocation2 + $0x138] sm:$0xff] %vm438, 0.0
        %479 = vst.msk [vmem:[#allocation2 + $0x140] sm:$0xff] %vm438, 0.0
        %480 = vst.msk [vmem:[#allocation2 + $0x148] sm:$0xff] %vm438, 0.0
        %481 = vst.msk [vmem:[#allocation2 + $0x150] sm:$0xff] %vm438, 0.0
        %482 = vst.msk [vmem:[#allocation2 + $0x158] sm:$0xff] %vm438, 0.0
        %483 = vst.msk [vmem:[#allocation2 + $0x160] sm:$0xff] %vm438, 0.0
        %484 = vst.msk [vmem:[#allocation2 + $0x168] sm:$0xff] %vm438, 0.0
        %485 = vst.msk [vmem:[#allocation2 + $0x170] sm:$0xff] %vm438, 0.0
        %486 = vst.msk [vmem:[#allocation2 + $0x178] sm:$0xff] %vm438, 0.0
        %487 = vst.msk [vmem:[#allocation2 + $0x180] sm:$0xff] %vm438, 0.0
        %488 = vst.msk [vmem:[#allocation2 + $0x188] sm:$0xff] %vm438, 0.0
        %489 = vst.msk [vmem:[#allocation2 + $0x190] sm:$0xff] %vm438, 0.0
        %490 = vst.msk [vmem:[#allocation2 + $0x198] sm:$0xff] %vm438, 0.0
        %491 = vst.msk [vmem:[#allocation2 + $0x1a0] sm:$0xff] %vm438, 0.0
        %492 = vst.msk [vmem:[#allocation2 + $0x1a8] sm:$0xff] %vm438, 0.0
        %493 = vst.msk [vmem:[#allocation2 + $0x1b0] sm:$0xff] %vm438, 0.0
        %494 = vst.msk [vmem:[#allocation2 + $0x1b8] sm:$0xff] %vm438, 0.0
        %495 = vst.msk [vmem:[#allocation2 + $0x1c0] sm:$0xff] %vm438, 0.0
        %496 = vst.msk [vmem:[#allocation3] sm:$0xff] %vm438, 0.0
        %497 = vst.msk [vmem:[#allocation3 + $0x8] sm:$0xff] %vm438, 0.0
        %498 = vst.msk [vmem:[#allocation3 + $0x10] sm:$0xff] %vm438, 0.0
        %499 = vst.msk [vmem:[#allocation3 + $0x18] sm:$0xff] %vm438, 0.0
        %500 = vst.msk [vmem:[#allocation3 + $0x20] sm:$0xff] %vm438, 0.0
        %501 = vst.msk [vmem:[#allocation3 + $0x28] sm:$0xff] %vm438, 0.0
        %502 = vst.msk [vmem:[#allocation3 + $0x30] sm:$0xff] %vm438, 0.0
        %503 = vst.msk [vmem:[#allocation3 + $0x38] sm:$0xff] %vm438, 0.0
        %504 = vst.msk [vmem:[#allocation3 + $0x40] sm:$0xff] %vm438, 0.0
        %505 = vst.msk [vmem:[#allocation3 + $0x48] sm:$0xff] %vm438, 0.0
        %506 = vst.msk [vmem:[#allocation3 + $0x50] sm:$0xff] %vm438, 0.0
        %507 = vst.msk [vmem:[#allocation3 + $0x58] sm:$0xff] %vm438, 0.0
        %508 = vst.msk [vmem:[#allocation3 + $0x60] sm:$0xff] %vm438, 0.0
        %509 = vst.msk [vmem:[#allocation3 + $0x68] sm:$0xff] %vm438, 0.0
        %510 = vst.msk [vmem:[#allocation3 + $0x70] sm:$0xff] %vm438, 0.0
        %511 = vst.msk [vmem:[#allocation3 + $0x78] sm:$0xff] %vm438, 0.0
        %512 = vst.msk [vmem:[#allocation3 + $0x80] sm:$0xff] %vm438, 0.0
        %513 = vst.msk [vmem:[#allocation3 + $0x88] sm:$0xff] %vm438, 0.0
        %514 = vst.msk [vmem:[#allocation3 + $0x90] sm:$0xff] %vm438, 0.0
        %515 = vst.msk [vmem:[#allocation3 + $0x98] sm:$0xff] %vm438, 0.0
        %516 = vst.msk [vmem:[#allocation3 + $0xa0] sm:$0xff] %vm438, 0.0
        %517 = vst.msk [vmem:[#allocation3 + $0xa8] sm:$0xff] %vm438, 0.0
        %vm518 = vcmask 130048
        %519 = vst.msk [vmem:[#allocation4] sm:$0xff] %vm518, 0.0
        %520 = vst.msk [vmem:[#allocation4 + $0x8] sm:$0xff] %vm518, 0.0
        %521 = vst.msk [vmem:[#allocation4 + $0x10] sm:$0xff] %vm518, 0.0
        %522 = vst.msk [vmem:[#allocation4 + $0x18] sm:$0xff] %vm518, 0.0
        %523 = vst.msk [vmem:[#allocation4 + $0x20] sm:$0xff] %vm518, 0.0
        %524 = vst.msk [vmem:[#allocation4 + $0x28] sm:$0xff] %vm518, 0.0
        %525 = vst.msk [vmem:[#allocation4 + $0x30] sm:$0xff] %vm518, 0.0
        %vm526 = vcmask 261120
        %527 = vst.msk [vmem:[#allocation5] sm:$0xff] %vm526, 0.0
        %528 = vst.msk [vmem:[#allocation5 + $0x8] sm:$0xff] %vm526, 0.0
        %529 = vst.msk [vmem:[#allocation5 + $0x10] sm:$0xff] %vm526, 0.0
        %530 = vst.msk [vmem:[#allocation5 + $0x18] sm:$0xff] %vm526, 0.0
        %531 = vst.msk [vmem:[#allocation5 + $0x20] sm:$0xff] %vm526, 0.0
        %v532 = vld [vmem:[%s437] sm:$0xff]
        %v533 = vld [vmem:[%s437 + $0x8] sm:$0xff]
        %v534 = vld [vmem:[%s437 + $0x10] sm:$0xff]
        %v535 = vld [vmem:[%s437 + $0x18] sm:$0xff]
        %v536 = vld [vmem:[%s437 + $0x20] sm:$0xff]
        %v537 = vld [vmem:[%s437 + $0x28] sm:$0xff]
        %v538 = vld [vmem:[%s437 + $0x30] sm:$0xff]
        %v539 = vld [vmem:[%s437 + $0x38] sm:$0xff]
        %v540 = vld [vmem:[%s437 + $0x40] sm:$0xff]
        %v541 = vld [vmem:[%s437 + $0x48] sm:$0xff]
        %v542 = vld [vmem:[%s437 + $0x50] sm:$0xff]
        %v543 = vld [vmem:[%s437 + $0x58] sm:$0xff]
        %v544 = vld [vmem:[%s437 + $0x60] sm:$0xff]
        %v545 = vld [vmem:[%s437 + $0x68] sm:$0xff]
        %v546 = vld [vmem:[%s437 + $0x70] sm:$0xff]
        %v547 = vld [vmem:[%s437 + $0x78] sm:$0xff]
        %v548 = vld [vmem:[%s437 + $0x80] sm:$0xff]
        %v549 = vld [vmem:[%s437 + $0x88] sm:$0xff]
        %v550 = vld [vmem:[%s437 + $0x90] sm:$0xff]
        %v551 = vld [vmem:[%s437 + $0x98] sm:$0xff]
        %v552 = vld [vmem:[%s437 + $0xa0] sm:$0xff]
        %v553 = vld [vmem:[%s437 + $0xa8] sm:$0xff]
        %v554 = vld [vmem:[%s437 + $0xb0] sm:$0xff]
        %v555 = vld [vmem:[%s437 + $0xb8] sm:$0xff]
        %v556 = vld [vmem:[%s437 + $0xc0] sm:$0xff]
        %v557 = vld [vmem:[%s437 + $0xc8] sm:$0xff]
        %v558 = vld [vmem:[%s437 + $0xd0] sm:$0xff]
        %v559 = vld [vmem:[%s437 + $0xd8] sm:$0xff]
        %v560 = vld [vmem:[%s437 + $0xe0] sm:$0xff]
        %v561 = vld [vmem:[%s437 + $0xe8] sm:$0xff]
        %v562 = vld [vmem:[%s437 + $0xf0] sm:$0xff]
        %v563 = vld [vmem:[%s437 + $0xf8] sm:$0xff]
        %v564 = vld [vmem:[%s1] sm:$0xff]
        %v565 = vld [vmem:[%s1 + $0x8] sm:$0xff]
        %v566 = vld [vmem:[%s1 + $0x10] sm:$0xff]
        %v567 = vld [vmem:[%s1 + $0x18] sm:$0x7]
        %v568 = vld [vmem:[%s2] sm:$0x1]
        %v570 = vperm.slane %v568, 0
        %vm572 = vcmask 220160
        %v574 = vsel %vm572, %v532, 0
        %v577 = vsel %vm572, %v533, 0
        %v580 = vsel %vm572, %v534, 0
        %v583 = vsel %vm572, %v535, 0
        %v586 = vsel %vm572, %v536, 0
        %v589 = vsel %vm572, %v537, 0
        %v592 = vsel %vm572, %v538, 0
        %v595 = vsel %vm572, %v539, 0
        %v598 = vsel %vm572, %v540, 0
        %v601 = vsel %vm572, %v541, 0
        %v604 = vsel %vm572, %v542, 0
        %v607 = vsel %vm572, %v543, 0
        %v610 = vsel %vm572, %v544, 0
        %v613 = vsel %vm572, %v545, 0
        %v616 = vsel %vm572, %v546, 0
        %v619 = vsel %vm572, %v547, 0
        %v622 = vsel %vm572, %v548, 0
        %v625 = vsel %vm572, %v549, 0
        %v628 = vsel %vm572, %v550, 0
        %v631 = vsel %vm572, %v551, 0
        %v634 = vsel %vm572, %v552, 0
        %v637 = vsel %vm572, %v553, 0
        %v640 = vsel %vm572, %v554, 0
        %v643 = vsel %vm572, %v555, 0
        %v646 = vsel %vm572, %v556, 0
        %v649 = vsel %vm572, %v557, 0
        %v652 = vsel %vm572, %v558, 0
        %v655 = vsel %vm572, %v559, 0
        %v658 = vsel %vm572, %v560, 0
        %v661 = vsel %vm572, %v561, 0
        %v664 = vsel %vm572, %v562, 0
        %v667 = vsel %vm572, %v563, 0
        %vm669 = vcmask 1042432
        %v671 = vsel %vm669, %v567, 0
        %673 = vmatpush.msra.mxu0 0.0
        %674 = vmatpush.msra.mxu0 0.0
        %675 = vmatpush.msra.mxu0 0.0
        %676 = vmatpush.msra.mxu0 0.0
        %677 = vmatpush.msra.mxu0 0.0
        %678 = vmatpush.msra.mxu0 0.0
        %679 = vmatpush.msra.mxu0 0.0
        %680 = vmatpush.msra.mxu0 0.0
        %681 = vmatpush.msra.mxu0 0.0
        %682 = vmatpush.msra.mxu0 0.0
        %683 = vmatpush.msra.mxu0 0.0
        %684 = vmatpush.msra.mxu0 0.0
        %685 = vmatpush.msra.mxu0 %v671
        %686 = vmatpush.msra.mxu0 %v566
        %687 = vmatpush.msra.mxu0 %v565
        %688 = vmatpush.msra.mxu0 %v564
        %689 = vmatmul.f32.gmra.mxu0 %v574
        %v690 = vpop.f32.mrf.mxu0
        %v691 = vadd.f32 %v570, %v690
        %692 = vmatmul.f32.gmra.mxu0 %v577
        %v693 = vpop.f32.mrf.mxu0
        %v694 = vadd.f32 %v570, %v693
        %695 = vmatmul.f32.gmra.mxu0 %v580
        %v696 = vpop.f32.mrf.mxu0
        %v697 = vadd.f32 %v570, %v696
        %698 = vmatmul.f32.gmra.mxu0 %v583
        %v699 = vpop.f32.mrf.mxu0
        %v700 = vadd.f32 %v570, %v699
        %701 = vmatmul.f32.gmra.mxu0 %v586
        %v702 = vpop.f32.mrf.mxu0
        %v703 = vadd.f32 %v570, %v702
        %704 = vmatmul.f32.gmra.mxu0 %v589
        %v705 = vpop.f32.mrf.mxu0
        %v706 = vadd.f32 %v570, %v705
        %707 = vmatmul.f32.gmra.mxu0 %v592
        %v708 = vpop.f32.mrf.mxu0
        %v709 = vadd.f32 %v570, %v708
        %710 = vmatmul.f32.gmra.mxu0 %v595
        %v711 = vpop.f32.mrf.mxu0
        %v712 = vadd.f32 %v570, %v711
        %713 = vmatmul.f32.gmra.mxu0 %v598
        %v714 = vpop.f32.mrf.mxu0
        %v715 = vadd.f32 %v570, %v714
        %716 = vmatmul.f32.gmra.mxu0 %v601
        %v717 = vpop.f32.mrf.mxu0
        %v718 = vadd.f32 %v570, %v717
        %719 = vmatmul.f32.gmra.mxu0 %v604
        %v720 = vpop.f32.mrf.mxu0
        %v721 = vadd.f32 %v570, %v720
        %722 = vmatmul.f32.gmra.mxu0 %v607
        %v723 = vpop.f32.mrf.mxu0
        %v724 = vadd.f32 %v570, %v723
        %725 = vmatmul.f32.gmra.mxu0 %v610
        %v726 = vpop.f32.mrf.mxu0
        %v727 = vadd.f32 %v570, %v726
        %728 = vmatmul.f32.gmra.mxu0 %v613
        %v729 = vpop.f32.mrf.mxu0
        %v730 = vadd.f32 %v570, %v729
        %731 = vmatmul.f32.gmra.mxu0 %v616
        %v732 = vpop.f32.mrf.mxu0
        %v733 = vadd.f32 %v570, %v732
        %734 = vmatmul.f32.gmra.mxu0 %v619
        %v735 = vpop.f32.mrf.mxu0
        %v736 = vadd.f32 %v570, %v735
        %737 = vmatmul.f32.gmra.mxu0 %v622
        %v738 = vpop.f32.mrf.mxu0
        %v739 = vadd.f32 %v570, %v738
        %740 = vmatmul.f32.gmra.mxu0 %v625
        %v741 = vpop.f32.mrf.mxu0
        %v742 = vadd.f32 %v570, %v741
        %743 = vmatmul.f32.gmra.mxu0 %v628
        %v744 = vpop.f32.mrf.mxu0
        %v745 = vadd.f32 %v570, %v744
        %746 = vmatmul.f32.gmra.mxu0 %v631
        %v747 = vpop.f32.mrf.mxu0
        %v748 = vadd.f32 %v570, %v747
        %749 = vmatmul.f32.gmra.mxu0 %v634
        %v750 = vpop.f32.mrf.mxu0
        %v751 = vadd.f32 %v570, %v750
        %752 = vmatmul.f32.gmra.mxu0 %v637
        %v753 = vpop.f32.mrf.mxu0
        %v754 = vadd.f32 %v570, %v753
        %755 = vmatmul.f32.gmra.mxu0 %v640
        %v756 = vpop.f32.mrf.mxu0
        %v757 = vadd.f32 %v570, %v756
        %758 = vmatmul.f32.gmra.mxu0 %v643
        %v759 = vpop.f32.mrf.mxu0
        %v760 = vadd.f32 %v570, %v759
        %761 = vmatmul.f32.gmra.mxu0 %v646
        %v762 = vpop.f32.mrf.mxu0
        %v763 = vadd.f32 %v570, %v762
        %764 = vmatmul.f32.gmra.mxu0 %v649
        %v765 = vpop.f32.mrf.mxu0
        %v766 = vadd.f32 %v570, %v765
        %767 = vmatmul.f32.gmra.mxu0 %v652
        %v768 = vpop.f32.mrf.mxu0
        %v769 = vadd.f32 %v570, %v768
        %770 = vmatmul.f32.gmra.mxu0 %v655
        %v771 = vpop.f32.mrf.mxu0
        %v772 = vadd.f32 %v570, %v771
        %773 = vmatmul.f32.gmra.mxu0 %v658
        %v774 = vpop.f32.mrf.mxu0
        %v775 = vadd.f32 %v570, %v774
        %776 = vmatmul.f32.gmra.mxu0 %v661
        %v777 = vpop.f32.mrf.mxu0
        %v778 = vadd.f32 %v570, %v777
        %779 = vmatmul.f32.gmra.mxu0 %v664
        %v780 = vpop.f32.mrf.mxu0
        %v781 = vadd.f32 %v570, %v780
        %782 = vmatmul.f32.gmra.mxu0 %v667
        %v783 = vpop.f32.mrf.mxu0
        %v784 = vadd.f32 %v570, %v783
        %785 = vdwg.mxu0
        %v786 = vmax.f32 %v691, 0.0
        %v787 = vmax.f32 %v694, 0.0
        %v788 = vmax.f32 %v697, 0.0
        %v789 = vmax.f32 %v700, 0.0
        %v790 = vmax.f32 %v703, 0.0
        %v791 = vmax.f32 %v706, 0.0
        %v792 = vmax.f32 %v709, 0.0
        %v793 = vmax.f32 %v712, 0.0
        %v794 = vmax.f32 %v715, 0.0
        %v795 = vmax.f32 %v718, 0.0
        %v796 = vmax.f32 %v721, 0.0
        %v797 = vmax.f32 %v724, 0.0
        %v798 = vmax.f32 %v727, 0.0
        %v799 = vmax.f32 %v730, 0.0
        %v800 = vmax.f32 %v733, 0.0
        %v801 = vmax.f32 %v736, 0.0
        %v802 = vmax.f32 %v739, 0.0
        %v803 = vmax.f32 %v742, 0.0
        %v804 = vmax.f32 %v745, 0.0
        %v805 = vmax.f32 %v748, 0.0
        %v806 = vmax.f32 %v751, 0.0
        %v807 = vmax.f32 %v754, 0.0
        %v808 = vmax.f32 %v757, 0.0
        %v809 = vmax.f32 %v760, 0.0
        %v810 = vmax.f32 %v763, 0.0
        %v811 = vmax.f32 %v766, 0.0
        %v812 = vmax.f32 %v769, 0.0
        %v813 = vmax.f32 %v772, 0.0
        %v814 = vmax.f32 %v775, 0.0
        %v815 = vmax.f32 %v778, 0.0
        %v816 = vmax.f32 %v781, 0.0
        %v817 = vmax.f32 %v784, 0.0
        %818 = vst.msk [vmem:[#allocation2 + $0x19] sm:$0xff] %vm438, %v786
        %819 = vst.msk [vmem:[#allocation2 + $0x21] sm:$0xff] %vm438, %v787
        %820 = vst.msk [vmem:[#allocation2 + $0x31] sm:$0xff] %vm438, %v788
        %821 = vst.msk [vmem:[#allocation2 + $0x39] sm:$0xff] %vm438, %v789
        %822 = vst.msk [vmem:[#allocation2 + $0x49] sm:$0xff] %vm438, %v790
        %823 = vst.msk [vmem:[#allocation2 + $0x51] sm:$0xff] %vm438, %v791
        %824 = vst.msk [vmem:[#allocation2 + $0x61] sm:$0xff] %vm438, %v792
        %825 = vst.msk [vmem:[#allocation2 + $0x69] sm:$0xff] %vm438, %v793
        %826 = vst.msk [vmem:[#allocation2 + $0x79] sm:$0xff] %vm438, %v794
        %827 = vst.msk [vmem:[#allocation2 + $0x81] sm:$0xff] %vm438, %v795
        %828 = vst.msk [vmem:[#allocation2 + $0x91] sm:$0xff] %vm438, %v796
        %829 = vst.msk [vmem:[#allocation2 + $0x99] sm:$0xff] %vm438, %v797
        %830 = vst.msk [vmem:[#allocation2 + $0xa9] sm:$0xff] %vm438, %v798
        %831 = vst.msk [vmem:[#allocation2 + $0xb1] sm:$0xff] %vm438, %v799
        %832 = vst.msk [vmem:[#allocation2 + $0xc1] sm:$0xff] %vm438, %v800
        %833 = vst.msk [vmem:[#allocation2 + $0xc9] sm:$0xff] %vm438, %v801
        %834 = vst.msk [vmem:[#allocation2 + $0xd9] sm:$0xff] %vm438, %v802
        %835 = vst.msk [vmem:[#allocation2 + $0xe1] sm:$0xff] %vm438, %v803
        %836 = vst.msk [vmem:[#allocation2 + $0xf1] sm:$0xff] %vm438, %v804
        %837 = vst.msk [vmem:[#allocation2 + $0xf9] sm:$0xff] %vm438, %v805
        %838 = vst.msk [vmem:[#allocation2 + $0x109] sm:$0xff] %vm438, %v806
        %839 = vst.msk [vmem:[#allocation2 + $0x111] sm:$0xff] %vm438, %v807
        %840 = vst.msk [vmem:[#allocation2 + $0x121] sm:$0xff] %vm438, %v808
        %841 = vst.msk [vmem:[#allocation2 + $0x129] sm:$0xff] %vm438, %v809
        %842 = vst.msk [vmem:[#allocation2 + $0x139] sm:$0xff] %vm438, %v810
        %843 = vst.msk [vmem:[#allocation2 + $0x141] sm:$0xff] %vm438, %v811
        %844 = vst.msk [vmem:[#allocation2 + $0x151] sm:$0xff] %vm438, %v812
        %845 = vst.msk [vmem:[#allocation2 + $0x159] sm:$0xff] %vm438, %v813
        %846 = vst.msk [vmem:[#allocation2 + $0x169] sm:$0xff] %vm438, %v814
        %847 = vst.msk [vmem:[#allocation2 + $0x171] sm:$0xff] %vm438, %v815
        %848 = vst.msk [vmem:[#allocation2 + $0x181] sm:$0xff] %vm438, %v816
        %849 = vst.msk [vmem:[#allocation2 + $0x189] sm:$0xff] %vm438, %v817
        %v850 = vld [vmem:[#allocation2] sm:$0xff]
        %v851 = vld [vmem:[#allocation2 + $0x8] sm:$0xff]
        %v852 = vld [vmem:[#allocation2 + $0x10] sm:$0xff]
        %v853 = vld [vmem:[#allocation2 + $0x18] sm:$0xff]
        %v854 = vld [vmem:[#allocation2 + $0x20] sm:$0xff]
        %v855 = vld [vmem:[#allocation2 + $0x28] sm:$0xff]
        %v856 = vld [vmem:[#allocation2 + $0x30] sm:$0xff]
        %v857 = vld [vmem:[#allocation2 + $0x38] sm:$0xff]
        %v858 = vld [vmem:[#allocation2 + $0x40] sm:$0xff]
        %v859 = vld [vmem:[#allocation2 + $0x48] sm:$0xff]
        %v860 = vld [vmem:[#allocation2 + $0x50] sm:$0xff]
        %v861 = vld [vmem:[#allocation2 + $0x58] sm:$0xff]
        %v862 = vld [vmem:[#allocation2 + $0x60] sm:$0xff]
        %v863 = vld [vmem:[#allocation2 + $0x68] sm:$0xff]
        %v864 = vld [vmem:[#allocation2 + $0x70] sm:$0xff]
        %v865 = vld [vmem:[#allocation2 + $0x78] sm:$0xff]
        %v866 = vld [vmem:[#allocation2 + $0x80] sm:$0xff]
        %v867 = vld [vmem:[#allocation2 + $0x88] sm:$0xff]
        %v868 = vld [vmem:[#allocation2 + $0x90] sm:$0xff]
        %v869 = vld [vmem:[#allocation2 + $0x98] sm:$0xff]
        %v870 = vld [vmem:[#allocation2 + $0xa0] sm:$0xff]
        %v871 = vld [vmem:[#allocation2 + $0xa8] sm:$0xff]
        %v872 = vld [vmem:[#allocation2 + $0xb0] sm:$0xff]
        %v873 = vld [vmem:[#allocation2 + $0xb8] sm:$0xff]
        %v874 = vld [vmem:[#allocation2 + $0xc0] sm:$0xff]
        %v875 = vld [vmem:[#allocation2 + $0xc8] sm:$0xff]
        %v876 = vld [vmem:[#allocation2 + $0xd0] sm:$0xff]
        %v877 = vld [vmem:[#allocation2 + $0xd8] sm:$0xff]
        %v878 = vld [vmem:[#allocation2 + $0xe0] sm:$0xff]
        %v879 = vld [vmem:[#allocation2 + $0xe8] sm:$0xff]
        %v880 = vld [vmem:[#allocation2 + $0xf0] sm:$0xff]
        %v881 = vld [vmem:[#allocation2 + $0xf8] sm:$0xff]
        %v882 = vld [vmem:[#allocation2 + $0x100] sm:$0xff]
        %v883 = vld [vmem:[#allocation2 + $0x108] sm:$0xff]
        %v884 = vld [vmem:[#allocation2 + $0x110] sm:$0xff]
        %v885 = vld [vmem:[#allocation2 + $0x118] sm:$0xff]
        %v886 = vld [vmem:[#allocation2 + $0x120] sm:$0xff]
        %v887 = vld [vmem:[#allocation2 + $0x128] sm:$0xff]
        %v888 = vld [vmem:[#allocation2 + $0x130] sm:$0xff]
        %v889 = vld [vmem:[#allocation2 + $0x138] sm:$0xff]
        %v890 = vld [vmem:[#allocation2 + $0x140] sm:$0xff]
        %v891 = vld [vmem:[#allocation2 + $0x148] sm:$0xff]
        %v892 = vld [vmem:[#allocation2 + $0x150] sm:$0xff]
        %v893 = vld [vmem:[#allocation2 + $0x158] sm:$0xff]
        %v894 = vld [vmem:[#allocation2 + $0x160] sm:$0xff]
        %v895 = vld [vmem:[#allocation2 + $0x168] sm:$0xff]
        %v896 = vld [vmem:[#allocation2 + $0x170] sm:$0xff]
        %v897 = vld [vmem:[#allocation2 + $0x178] sm:$0xff]
        %v898 = vld [vmem:[%s3] sm:$0xff]
        %v899 = vld [vmem:[#allocation2 + $0x1] sm:$0xff]
        %v900 = vld [vmem:[#allocation2 + $0x9] sm:$0xff]
        %v901 = vld [vmem:[#allocation2 + $0x11] sm:$0xff]
        %v902 = vld [vmem:[#allocation2 + $0x19] sm:$0xff]
        %v903 = vld [vmem:[#allocation2 + $0x21] sm:$0xff]
        %v904 = vld [vmem:[#allocation2 + $0x29] sm:$0xff]
        %v905 = vld [vmem:[#allocation2 + $0x31] sm:$0xff]
        %v906 = vld [vmem:[#allocation2 + $0x39] sm:$0xff]
        %v907 = vld [vmem:[#allocation2 + $0x41] sm:$0xff]
        %v908 = vld [vmem:[#allocation2 + $0x49] sm:$0xff]
        %v909 = vld [vmem:[#allocation2 + $0x51] sm:$0xff]
        %v910 = vld [vmem:[#allocation2 + $0x59] sm:$0xff]
        %v911 = vld [vmem:[#allocation2 + $0x61] sm:$0xff]
        %v912 = vld [vmem:[#allocation2 + $0x69] sm:$0xff]
        %v913 = vld [vmem:[#allocation2 + $0x71] sm:$0xff]
        %v914 = vld [vmem:[#allocation2 + $0x79] sm:$0xff]
        %v915 = vld [vmem:[#allocation2 + $0x81] sm:$0xff]
        %v916 = vld [vmem:[#allocation2 + $0x89] sm:$0xff]
        %v917 = vld [vmem:[#allocation2 + $0x91] sm:$0xff]
        %v918 = vld [vmem:[#allocation2 + $0x99] sm:$0xff]
        %v919 = vld [vmem:[#allocation2 + $0xa1] sm:$0xff]
        %v920 = vld [vmem:[#allocation2 + $0xa9] sm:$0xff]
        %v921 = vld [vmem:[#allocation2 + $0xb1] sm:$0xff]
        %v922 = vld [vmem:[#allocation2 + $0xb9] sm:$0xff]
        %v923 = vld [vmem:[#allocation2 + $0xc1] sm:$0xff]
        %v924 = vld [vmem:[#allocation2 + $0xc9] sm:$0xff]
        %v925 = vld [vmem:[#allocation2 + $0xd1] sm:$0xff]
        %v926 = vld [vmem:[#allocation2 + $0xd9] sm:$0xff]
        %v927 = vld [vmem:[#allocation2 + $0xe1] sm:$0xff]
        %v928 = vld [vmem:[#allocation2 + $0xe9] sm:$0xff]
        %v929 = vld [vmem:[#allocation2 + $0xf1] sm:$0xff]
        %v930 = vld [vmem:[#allocation2 + $0xf9] sm:$0xff]
        %v931 = vld [vmem:[#allocation2 + $0x101] sm:$0xff]
        %v932 = vld [vmem:[#allocation2 + $0x109] sm:$0xff]
        %v933 = vld [vmem:[#allocation2 + $0x111] sm:$0xff]
        %v934 = vld [vmem:[#allocation2 + $0x119] sm:$0xff]
        %v935 = vld [vmem:[#allocation2 + $0x121] sm:$0xff]
        %v936 = vld [vmem:[#allocation2 + $0x129] sm:$0xff]
        %v937 = vld [vmem:[#allocation2 + $0x131] sm:$0xff]
        %v938 = vld [vmem:[#allocation2 + $0x139] sm:$0xff]
        %v939 = vld [vmem:[#allocation2 + $0x141] sm:$0xff]
        %v940 = vld [vmem:[#allocation2 + $0x149] sm:$0xff]
        %v941 = vld [vmem:[#allocation2 + $0x151] sm:$0xff]
        %v942 = vld [vmem:[#allocation2 + $0x159] sm:$0xff]
        %v943 = vld [vmem:[#allocation2 + $0x161] sm:$0xff]
        %v944 = vld [vmem:[#allocation2 + $0x169] sm:$0xff]
        %v945 = vld [vmem:[#allocation2 + $0x171] sm:$0xff]
        %v946 = vld [vmem:[#allocation2 + $0x179] sm:$0xff]
        %s947 = scalar_lea.vmem %s3, 8
        %v948 = vld [vmem:[%s947] sm:$0xff]
        %v950 = vsel %vm438, %v899, 0
        %v953 = vsel %vm438, %v900, 0
        %v956 = vsel %vm438, %v901, 0
        %v959 = vsel %vm438, %v902, 0
        %v962 = vsel %vm438, %v903, 0
        %v965 = vsel %vm438, %v904, 0
        %v968 = vsel %vm438, %v905, 0
        %v971 = vsel %vm438, %v906, 0
        %v974 = vsel %vm438, %v907, 0
        %v977 = vsel %vm438, %v908, 0
        %v980 = vsel %vm438, %v909, 0
        %v983 = vsel %vm438, %v910, 0
        %v986 = vsel %vm438, %v911, 0
        %v989 = vsel %vm438, %v912, 0
        %v992 = vsel %vm438, %v913, 0
        %v995 = vsel %vm438, %v914, 0
        %v998 = vsel %vm438, %v915, 0
        %v1001 = vsel %vm438, %v916, 0
        %v1004 = vsel %vm438, %v917, 0
        %v1007 = vsel %vm438, %v918, 0
        %v1010 = vsel %vm438, %v919, 0
        %v1013 = vsel %vm438, %v920, 0
        %v1016 = vsel %vm438, %v921, 0
        %v1019 = vsel %vm438, %v922, 0
        %v1022 = vsel %vm438, %v923, 0
        %v1025 = vsel %vm438, %v924, 0
        %v1028 = vsel %vm438, %v925, 0
        %v1031 = vsel %vm438, %v926, 0
        %v1034 = vsel %vm438, %v927, 0
        %v1037 = vsel %vm438, %v928, 0
        %v1040 = vsel %vm438, %v929, 0
        %v1043 = vsel %vm438, %v930, 0
        %v1046 = vsel %vm438, %v931, 0
        %v1049 = vsel %vm438, %v932, 0
        %v1052 = vsel %vm438, %v933, 0
        %v1055 = vsel %vm438, %v934, 0
        %v1058 = vsel %vm438, %v935, 0
        %v1061 = vsel %vm438, %v936, 0
        %v1064 = vsel %vm438, %v937, 0
        %v1067 = vsel %vm438, %v938, 0
        %v1070 = vsel %vm438, %v939, 0
        %v1073 = vsel %vm438, %v940, 0
        %v1076 = vsel %vm438, %v941, 0
        %v1079 = vsel %vm438, %v942, 0
        %v1082 = vsel %vm438, %v943, 0
        %v1085 = vsel %vm438, %v944, 0
        %v1088 = vsel %vm438, %v945, 0
        %v1091 = vsel %vm438, %v946, 0
        %1093 = vmatpush.msra.mxu0 0.0
        %1094 = vmatpush.msra.mxu0 0.0
        %1095 = vmatpush.msra.mxu0 0.0
        %1096 = vmatpush.msra.mxu0 0.0
        %1097 = vmatpush.msra.mxu0 0.0
        %1098 = vmatpush.msra.mxu0 0.0
        %1099 = vmatpush.msra.mxu0 0.0
        %1100 = vmatpush.msra.mxu0 0.0
        %1101 = vmatpush.msra.mxu0 0.0
        %1102 = vmatpush.msra.mxu0 0.0
        %1103 = vmatpush.msra.mxu0 0.0
        %1104 = vmatpush.msra.mxu0 0.0
        %1105 = vmatpush.msra.mxu0 0.0
        %1106 = vmatpush.msra.mxu0 0.0
        %1107 = vmatpush.msra.mxu0 0.0
        %1108 = vmatpush.msra.mxu0 %v948
        %1109 = vmatmul.f32.gmra.mxu0 %v950
        %v1110 = vpop.f32.mrf.mxu0
        %v1111 = vadd.f32 0.0, %v1110
        %1112 = vmatmul.f32.gmra.mxu0 %v953
        %v1113 = vpop.f32.mrf.mxu0
        %v1114 = vadd.f32 0.0, %v1113
        %1115 = vmatmul.f32.gmra.mxu0 %v956
        %v1116 = vpop.f32.mrf.mxu0
        %v1117 = vadd.f32 0.0, %v1116
        %1118 = vmatmul.f32.gmra.mxu0 %v959
        %v1119 = vpop.f32.mrf.mxu0
        %v1120 = vadd.f32 0.0, %v1119
        %1121 = vmatmul.f32.gmra.mxu0 %v962
        %v1122 = vpop.f32.mrf.mxu0
        %v1123 = vadd.f32 0.0, %v1122
        %1124 = vmatmul.f32.gmra.mxu0 %v965
        %v1125 = vpop.f32.mrf.mxu0
        %v1126 = vadd.f32 0.0, %v1125
        %1127 = vmatmul.f32.gmra.mxu0 %v968
        %v1128 = vpop.f32.mrf.mxu0
        %v1129 = vadd.f32 0.0, %v1128
        %1130 = vmatmul.f32.gmra.mxu0 %v971
        %v1131 = vpop.f32.mrf.mxu0
        %v1132 = vadd.f32 0.0, %v1131
        %1133 = vmatmul.f32.gmra.mxu0 %v974
        %v1134 = vpop.f32.mrf.mxu0
        %v1135 = vadd.f32 0.0, %v1134
        %1136 = vmatmul.f32.gmra.mxu0 %v977
        %v1137 = vpop.f32.mrf.mxu0
        %v1138 = vadd.f32 0.0, %v1137
        %1139 = vmatmul.f32.gmra.mxu0 %v980
        %v1140 = vpop.f32.mrf.mxu0
        %v1141 = vadd.f32 0.0, %v1140
        %1142 = vmatmul.f32.gmra.mxu0 %v983
        %v1143 = vpop.f32.mrf.mxu0
        %v1144 = vadd.f32 0.0, %v1143
        %1145 = vmatmul.f32.gmra.mxu0 %v986
        %v1146 = vpop.f32.mrf.mxu0
        %v1147 = vadd.f32 0.0, %v1146
        %1148 = vmatmul.f32.gmra.mxu0 %v989
        %v1149 = vpop.f32.mrf.mxu0
        %v1150 = vadd.f32 0.0, %v1149
        %1151 = vmatmul.f32.gmra.mxu0 %v992
        %v1152 = vpop.f32.mrf.mxu0
        %v1153 = vadd.f32 0.0, %v1152
        %1154 = vmatmul.f32.gmra.mxu0 %v995
        %v1155 = vpop.f32.mrf.mxu0
        %v1156 = vadd.f32 0.0, %v1155
        %1157 = vmatmul.f32.gmra.mxu0 %v998
        %v1158 = vpop.f32.mrf.mxu0
        %v1159 = vadd.f32 0.0, %v1158
        %1160 = vmatmul.f32.gmra.mxu0 %v1001
        %v1161 = vpop.f32.mrf.mxu0
        %v1162 = vadd.f32 0.0, %v1161
        %1163 = vmatmul.f32.gmra.mxu0 %v1004
        %v1164 = vpop.f32.mrf.mxu0
        %v1165 = vadd.f32 0.0, %v1164
        %1166 = vmatmul.f32.gmra.mxu0 %v1007
        %v1167 = vpop.f32.mrf.mxu0
        %v1168 = vadd.f32 0.0, %v1167
        %1169 = vmatmul.f32.gmra.mxu0 %v1010
        %v1170 = vpop.f32.mrf.mxu0
        %v1171 = vadd.f32 0.0, %v1170
        %1172 = vmatmul.f32.gmra.mxu0 %v1013
        %v1173 = vpop.f32.mrf.mxu0
        %v1174 = vadd.f32 0.0, %v1173
        %1175 = vmatmul.f32.gmra.mxu0 %v1016
        %v1176 = vpop.f32.mrf.mxu0
        %v1177 = vadd.f32 0.0, %v1176
        %1178 = vmatmul.f32.gmra.mxu0 %v1019
        %v1179 = vpop.f32.mrf.mxu0
        %v1180 = vadd.f32 0.0, %v1179
        %1181 = vmatmul.f32.gmra.mxu0 %v1022
        %v1182 = vpop.f32.mrf.mxu0
        %v1183 = vadd.f32 0.0, %v1182
        %1184 = vmatmul.f32.gmra.mxu0 %v1025
        %v1185 = vpop.f32.mrf.mxu0
        %v1186 = vadd.f32 0.0, %v1185
        %1187 = vmatmul.f32.gmra.mxu0 %v1028
        %v1188 = vpop.f32.mrf.mxu0
        %v1189 = vadd.f32 0.0, %v1188
        %1190 = vmatmul.f32.gmra.mxu0 %v1031
        %v1191 = vpop.f32.mrf.mxu0
        %v1192 = vadd.f32 0.0, %v1191
        %1193 = vmatmul.f32.gmra.mxu0 %v1034
        %v1194 = vpop.f32.mrf.mxu0
        %v1195 = vadd.f32 0.0, %v1194
        %1196 = vmatmul.f32.gmra.mxu0 %v1037
        %v1197 = vpop.f32.mrf.mxu0
        %v1198 = vadd.f32 0.0, %v1197
        %1199 = vmatmul.f32.gmra.mxu0 %v1040
        %v1200 = vpop.f32.mrf.mxu0
        %v1201 = vadd.f32 0.0, %v1200
        %1202 = vmatmul.f32.gmra.mxu0 %v1043
        %v1203 = vpop.f32.mrf.mxu0
        %v1204 = vadd.f32 0.0, %v1203
        %1205 = vmatmul.f32.gmra.mxu0 %v1046
        %v1206 = vpop.f32.mrf.mxu0
        %v1207 = vadd.f32 0.0, %v1206
        %1208 = vmatmul.f32.gmra.mxu0 %v1049
        %v1209 = vpop.f32.mrf.mxu0
        %v1210 = vadd.f32 0.0, %v1209
        %1211 = vmatmul.f32.gmra.mxu0 %v1052
        %v1212 = vpop.f32.mrf.mxu0
        %v1213 = vadd.f32 0.0, %v1212
        %1214 = vmatmul.f32.gmra.mxu0 %v1055
        %v1215 = vpop.f32.mrf.mxu0
        %v1216 = vadd.f32 0.0, %v1215
        %1217 = vmatmul.f32.gmra.mxu0 %v1058
        %v1218 = vpop.f32.mrf.mxu0
        %v1219 = vadd.f32 0.0, %v1218
        %1220 = vmatmul.f32.gmra.mxu0 %v1061
        %v1221 = vpop.f32.mrf.mxu0
        %v1222 = vadd.f32 0.0, %v1221
        %1223 = vmatmul.f32.gmra.mxu0 %v1064
        %v1224 = vpop.f32.mrf.mxu0
        %v1225 = vadd.f32 0.0, %v1224
        %1226 = vmatmul.f32.gmra.mxu0 %v1067
        %v1227 = vpop.f32.mrf.mxu0
        %v1228 = vadd.f32 0.0, %v1227
        %1229 = vmatmul.f32.gmra.mxu0 %v1070
        %v1230 = vpop.f32.mrf.mxu0
        %v1231 = vadd.f32 0.0, %v1230
        %1232 = vmatmul.f32.gmra.mxu0 %v1073
        %v1233 = vpop.f32.mrf.mxu0
        %v1234 = vadd.f32 0.0, %v1233
        %1235 = vmatmul.f32.gmra.mxu0 %v1076
        %v1236 = vpop.f32.mrf.mxu0
        %v1237 = vadd.f32 0.0, %v1236
        %1238 = vmatmul.f32.gmra.mxu0 %v1079
        %v1239 = vpop.f32.mrf.mxu0
        %v1240 = vadd.f32 0.0, %v1239
        %1241 = vmatmul.f32.gmra.mxu0 %v1082
        %v1242 = vpop.f32.mrf.mxu0
        %v1243 = vadd.f32 0.0, %v1242
        %1244 = vmatmul.f32.gmra.mxu0 %v1085
        %v1245 = vpop.f32.mrf.mxu0
        %v1246 = vadd.f32 0.0, %v1245
        %1247 = vmatmul.f32.gmra.mxu0 %v1088
        %v1248 = vpop.f32.mrf.mxu0
        %v1249 = vadd.f32 0.0, %v1248
        %1250 = vmatmul.f32.gmra.mxu0 %v1091
        %v1251 = vpop.f32.mrf.mxu0
        %v1252 = vadd.f32 0.0, %v1251
        %1253 = vdwg.mxu0
        %v1255 = vsel %vm438, %v850, 0
        %v1258 = vsel %vm438, %v851, 0
        %v1261 = vsel %vm438, %v852, 0
        %v1264 = vsel %vm438, %v853, 0
        %v1267 = vsel %vm438, %v854, 0
        %v1270 = vsel %vm438, %v855, 0
        %v1273 = vsel %vm438, %v856, 0
        %v1276 = vsel %vm438, %v857, 0
        %v1279 = vsel %vm438, %v858, 0
        %v1282 = vsel %vm438, %v859, 0
        %v1285 = vsel %vm438, %v860, 0
        %v1288 = vsel %vm438, %v861, 0
        %v1291 = vsel %vm438, %v862, 0
        %v1294 = vsel %vm438, %v863, 0
        %v1297 = vsel %vm438, %v864, 0
        %v1300 = vsel %vm438, %v865, 0
        %v1303 = vsel %vm438, %v866, 0
        %v1306 = vsel %vm438, %v867, 0
        %v1309 = vsel %vm438, %v868, 0
        %v1312 = vsel %vm438, %v869, 0
        %v1315 = vsel %vm438, %v870, 0
        %v1318 = vsel %vm438, %v871, 0
        %v1321 = vsel %vm438, %v872, 0
        %v1324 = vsel %vm438, %v873, 0
        %v1327 = vsel %vm438, %v874, 0
        %v1330 = vsel %vm438, %v875, 0
        %v1333 = vsel %vm438, %v876, 0
        %v1336 = vsel %vm438, %v877, 0
        %v1339 = vsel %vm438, %v878, 0
        %v1342 = vsel %vm438, %v879, 0
        %v1345 = vsel %vm438, %v880, 0
        %v1348 = vsel %vm438, %v881, 0
        %v1351 = vsel %vm438, %v882, 0
        %v1354 = vsel %vm438, %v883, 0
        %v1357 = vsel %vm438, %v884, 0
        %v1360 = vsel %vm438, %v885, 0
        %v1363 = vsel %vm438, %v886, 0
        %v1366 = vsel %vm438, %v887, 0
        %v1369 = vsel %vm438, %v888, 0
        %v1372 = vsel %vm438, %v889, 0
        %v1375 = vsel %vm438, %v890, 0
        %v1378 = vsel %vm438, %v891, 0
        %v1381 = vsel %vm438, %v892, 0
        %v1384 = vsel %vm438, %v893, 0
        %v1387 = vsel %vm438, %v894, 0
        %v1390 = vsel %vm438, %v895, 0
        %v1393 = vsel %vm438, %v896, 0
        %v1396 = vsel %vm438, %v897, 0
        %1398 = vmatpush.msra.mxu0 0.0
        %1399 = vmatpush.msra.mxu0 0.0
        %1400 = vmatpush.msra.mxu0 0.0
        %1401 = vmatpush.msra.mxu0 0.0
        %1402 = vmatpush.msra.mxu0 0.0
        %1403 = vmatpush.msra.mxu0 0.0
        %1404 = vmatpush.msra.mxu0 0.0
        %1405 = vmatpush.msra.mxu0 0.0
        %1406 = vmatpush.msra.mxu0 0.0
        %1407 = vmatpush.msra.mxu0 0.0
        %1408 = vmatpush.msra.mxu0 0.0
        %1409 = vmatpush.msra.mxu0 0.0
        %1410 = vmatpush.msra.mxu0 0.0
        %1411 = vmatpush.msra.mxu0 0.0
        %1412 = vmatpush.msra.mxu0 0.0
        %1413 = vmatpush.msra.mxu0 %v898
        %1414 = vmatmul.f32.gmra.mxu0 %v1255
        %v1415 = vpop.f32.mrf.mxu0
        %v1416 = vadd.f32 %v1111, %v1415
        %1417 = vmatmul.f32.gmra.mxu0 %v1258
        %v1418 = vpop.f32.mrf.mxu0
        %v1419 = vadd.f32 %v1114, %v1418
        %1420 = vmatmul.f32.gmra.mxu0 %v1261
        %v1421 = vpop.f32.mrf.mxu0
        %v1422 = vadd.f32 %v1117, %v1421
        %1423 = vmatmul.f32.gmra.mxu0 %v1264
        %v1424 = vpop.f32.mrf.mxu0
        %v1425 = vadd.f32 %v1120, %v1424
        %1426 = vmatmul.f32.gmra.mxu0 %v1267
        %v1427 = vpop.f32.mrf.mxu0
        %v1428 = vadd.f32 %v1123, %v1427
        %1429 = vmatmul.f32.gmra.mxu0 %v1270
        %v1430 = vpop.f32.mrf.mxu0
        %v1431 = vadd.f32 %v1126, %v1430
        %1432 = vmatmul.f32.gmra.mxu0 %v1273
        %v1433 = vpop.f32.mrf.mxu0
        %v1434 = vadd.f32 %v1129, %v1433
        %1435 = vmatmul.f32.gmra.mxu0 %v1276
        %v1436 = vpop.f32.mrf.mxu0
        %v1437 = vadd.f32 %v1132, %v1436
        %1438 = vmatmul.f32.gmra.mxu0 %v1279
        %v1439 = vpop.f32.mrf.mxu0
        %v1440 = vadd.f32 %v1135, %v1439
        %1441 = vmatmul.f32.gmra.mxu0 %v1282
        %v1442 = vpop.f32.mrf.mxu0
        %v1443 = vadd.f32 %v1138, %v1442
        %1444 = vmatmul.f32.gmra.mxu0 %v1285
        %v1445 = vpop.f32.mrf.mxu0
        %v1446 = vadd.f32 %v1141, %v1445
        %1447 = vmatmul.f32.gmra.mxu0 %v1288
        %v1448 = vpop.f32.mrf.mxu0
        %v1449 = vadd.f32 %v1144, %v1448
        %1450 = vmatmul.f32.gmra.mxu0 %v1291
        %v1451 = vpop.f32.mrf.mxu0
        %v1452 = vadd.f32 %v1147, %v1451
        %1453 = vmatmul.f32.gmra.mxu0 %v1294
        %v1454 = vpop.f32.mrf.mxu0
        %v1455 = vadd.f32 %v1150, %v1454
        %1456 = vmatmul.f32.gmra.mxu0 %v1297
        %v1457 = vpop.f32.mrf.mxu0
        %v1458 = vadd.f32 %v1153, %v1457
        %1459 = vmatmul.f32.gmra.mxu0 %v1300
        %v1460 = vpop.f32.mrf.mxu0
        %v1461 = vadd.f32 %v1156, %v1460
        %1462 = vmatmul.f32.gmra.mxu0 %v1303
        %v1463 = vpop.f32.mrf.mxu0
        %v1464 = vadd.f32 %v1159, %v1463
        %1465 = vmatmul.f32.gmra.mxu0 %v1306
        %v1466 = vpop.f32.mrf.mxu0
        %v1467 = vadd.f32 %v1162, %v1466
        %1468 = vmatmul.f32.gmra.mxu0 %v1309
        %v1469 = vpop.f32.mrf.mxu0
        %v1470 = vadd.f32 %v1165, %v1469
        %1471 = vmatmul.f32.gmra.mxu0 %v1312
        %v1472 = vpop.f32.mrf.mxu0
        %v1473 = vadd.f32 %v1168, %v1472
        %1474 = vmatmul.f32.gmra.mxu0 %v1315
        %v1475 = vpop.f32.mrf.mxu0
        %v1476 = vadd.f32 %v1171, %v1475
        %1477 = vmatmul.f32.gmra.mxu0 %v1318
        %v1478 = vpop.f32.mrf.mxu0
        %v1479 = vadd.f32 %v1174, %v1478
        %1480 = vmatmul.f32.gmra.mxu0 %v1321
        %v1481 = vpop.f32.mrf.mxu0
        %v1482 = vadd.f32 %v1177, %v1481
        %1483 = vmatmul.f32.gmra.mxu0 %v1324
        %v1484 = vpop.f32.mrf.mxu0
        %v1485 = vadd.f32 %v1180, %v1484
        %1486 = vmatmul.f32.gmra.mxu0 %v1327
        %v1487 = vpop.f32.mrf.mxu0
        %v1488 = vadd.f32 %v1183, %v1487
        %1489 = vmatmul.f32.gmra.mxu0 %v1330
        %v1490 = vpop.f32.mrf.mxu0
        %v1491 = vadd.f32 %v1186, %v1490
        %1492 = vmatmul.f32.gmra.mxu0 %v1333
        %v1493 = vpop.f32.mrf.mxu0
        %v1494 = vadd.f32 %v1189, %v1493
        %1495 = vmatmul.f32.gmra.mxu0 %v1336
        %v1496 = vpop.f32.mrf.mxu0
        %v1497 = vadd.f32 %v1192, %v1496
        %1498 = vmatmul.f32.gmra.mxu0 %v1339
        %v1499 = vpop.f32.mrf.mxu0
        %v1500 = vadd.f32 %v1195, %v1499
        %1501 = vmatmul.f32.gmra.mxu0 %v1342
        %v1502 = vpop.f32.mrf.mxu0
        %v1503 = vadd.f32 %v1198, %v1502
        %1504 = vmatmul.f32.gmra.mxu0 %v1345
        %v1505 = vpop.f32.mrf.mxu0
        %v1506 = vadd.f32 %v1201, %v1505
        %1507 = vmatmul.f32.gmra.mxu0 %v1348
        %v1508 = vpop.f32.mrf.mxu0
        %v1509 = vadd.f32 %v1204, %v1508
        %1510 = vmatmul.f32.gmra.mxu0 %v1351
        %v1511 = vpop.f32.mrf.mxu0
        %v1512 = vadd.f32 %v1207, %v1511
        %1513 = vmatmul.f32.gmra.mxu0 %v1354
        %v1514 = vpop.f32.mrf.mxu0
        %v1515 = vadd.f32 %v1210, %v1514
        %1516 = vmatmul.f32.gmra.mxu0 %v1357
        %v1517 = vpop.f32.mrf.mxu0
        %v1518 = vadd.f32 %v1213, %v1517
        %1519 = vmatmul.f32.gmra.mxu0 %v1360
        %v1520 = vpop.f32.mrf.mxu0
        %v1521 = vadd.f32 %v1216, %v1520
        %1522 = vmatmul.f32.gmra.mxu0 %v1363
        %v1523 = vpop.f32.mrf.mxu0
        %v1524 = vadd.f32 %v1219, %v1523
        %1525 = vmatmul.f32.gmra.mxu0 %v1366
        %v1526 = vpop.f32.mrf.mxu0
        %v1527 = vadd.f32 %v1222, %v1526
        %1528 = vmatmul.f32.gmra.mxu0 %v1369
        %v1529 = vpop.f32.mrf.mxu0
        %v1530 = vadd.f32 %v1225, %v1529
        %1531 = vmatmul.f32.gmra.mxu0 %v1372
        %v1532 = vpop.f32.mrf.mxu0
        %v1533 = vadd.f32 %v1228, %v1532
        %1534 = vmatmul.f32.gmra.mxu0 %v1375
        %v1535 = vpop.f32.mrf.mxu0
        %v1536 = vadd.f32 %v1231, %v1535
        %1537 = vmatmul.f32.gmra.mxu0 %v1378
        %v1538 = vpop.f32.mrf.mxu0
        %v1539 = vadd.f32 %v1234, %v1538
        %1540 = vmatmul.f32.gmra.mxu0 %v1381
        %v1541 = vpop.f32.mrf.mxu0
        %v1542 = vadd.f32 %v1237, %v1541
        %1543 = vmatmul.f32.gmra.mxu0 %v1384
        %v1544 = vpop.f32.mrf.mxu0
        %v1545 = vadd.f32 %v1240, %v1544
        %1546 = vmatmul.f32.gmra.mxu0 %v1387
        %v1547 = vpop.f32.mrf.mxu0
        %v1548 = vadd.f32 %v1243, %v1547
        %1549 = vmatmul.f32.gmra.mxu0 %v1390
        %v1550 = vpop.f32.mrf.mxu0
        %v1551 = vadd.f32 %v1246, %v1550
        %1552 = vmatmul.f32.gmra.mxu0 %v1393
        %v1553 = vpop.f32.mrf.mxu0
        %v1554 = vadd.f32 %v1249, %v1553
        %1555 = vmatmul.f32.gmra.mxu0 %v1396
        %v1556 = vpop.f32.mrf.mxu0
        %v1557 = vadd.f32 %v1252, %v1556
        %1558 = vdwg.mxu0
        %v1559 = vld [vmem:[#allocation2 + $0x2] sm:$0xff]
        %v1560 = vld [vmem:[#allocation2 + $0xa] sm:$0xff]
        %v1561 = vld [vmem:[#allocation2 + $0x12] sm:$0xff]
        %v1562 = vld [vmem:[#allocation2 + $0x1a] sm:$0xff]
        %v1563 = vld [vmem:[#allocation2 + $0x22] sm:$0xff]
        %v1564 = vld [vmem:[#allocation2 + $0x2a] sm:$0xff]
        %v1565 = vld [vmem:[#allocation2 + $0x32] sm:$0xff]
        %v1566 = vld [vmem:[#allocation2 + $0x3a] sm:$0xff]
        %v1567 = vld [vmem:[#allocation2 + $0x42] sm:$0xff]
        %v1568 = vld [vmem:[#allocation2 + $0x4a] sm:$0xff]
        %v1569 = vld [vmem:[#allocation2 + $0x52] sm:$0xff]
        %v1570 = vld [vmem:[#allocation2 + $0x5a] sm:$0xff]
        %v1571 = vld [vmem:[#allocation2 + $0x62] sm:$0xff]
        %v1572 = vld [vmem:[#allocation2 + $0x6a] sm:$0xff]
        %v1573 = vld [vmem:[#allocation2 + $0x72] sm:$0xff]
        %v1574 = vld [vmem:[#allocation2 + $0x7a] sm:$0xff]
        %v1575 = vld [vmem:[#allocation2 + $0x82] sm:$0xff]
        %v1576 = vld [vmem:[#allocation2 + $0x8a] sm:$0xff]
        %v1577 = vld [vmem:[#allocation2 + $0x92] sm:$0xff]
        %v1578 = vld [vmem:[#allocation2 + $0x9a] sm:$0xff]
        %v1579 = vld [vmem:[#allocation2 + $0xa2] sm:$0xff]
        %v1580 = vld [vmem:[#allocation2 + $0xaa] sm:$0xff]
        %v1581 = vld [vmem:[#allocation2 + $0xb2] sm:$0xff]
        %v1582 = vld [vmem:[#allocation2 + $0xba] sm:$0xff]
        %v1583 = vld [vmem:[#allocation2 + $0xc2] sm:$0xff]
        %v1584 = vld [vmem:[#allocation2 + $0xca] sm:$0xff]
        %v1585 = vld [vmem:[#allocation2 + $0xd2] sm:$0xff]
        %v1586 = vld [vmem:[#allocation2 + $0xda] sm:$0xff]
        %v1587 = vld [vmem:[#allocation2 + $0xe2] sm:$0xff]
        %v1588 = vld [vmem:[#allocation2 + $0xea] sm:$0xff]
        %v1589 = vld [vmem:[#allocation2 + $0xf2] sm:$0xff]
        %v1590 = vld [vmem:[#allocation2 + $0xfa] sm:$0xff]
        %v1591 = vld [vmem:[#allocation2 + $0x102] sm:$0xff]
        %v1592 = vld [vmem:[#allocation2 + $0x10a] sm:$0xff]
        %v1593 = vld [vmem:[#allocation2 + $0x112] sm:$0xff]
        %v1594 = vld [vmem:[#allocation2 + $0x11a] sm:$0xff]
        %v1595 = vld [vmem:[#allocation2 + $0x122] sm:$0xff]
        %v1596 = vld [vmem:[#allocation2 + $0x12a] sm:$0xff]
        %v1597 = vld [vmem:[#allocation2 + $0x132] sm:$0xff]
        %v1598 = vld [vmem:[#allocation2 + $0x13a] sm:$0xff]
        %v1599 = vld [vmem:[#allocation2 + $0x142] sm:$0xff]
        %v1600 = vld [vmem:[#allocation2 + $0x14a] sm:$0xff]
        %v1601 = vld [vmem:[#allocation2 + $0x152] sm:$0xff]
        %v1602 = vld [vmem:[#allocation2 + $0x15a] sm:$0xff]
        %v1603 = vld [vmem:[#allocation2 + $0x162] sm:$0xff]
        %v1604 = vld [vmem:[#allocation2 + $0x16a] sm:$0xff]
        %v1605 = vld [vmem:[#allocation2 + $0x172] sm:$0xff]
        %v1606 = vld [vmem:[#allocation2 + $0x17a] sm:$0xff]
        %s1607 = scalar_lea.vmem %s3, 16
        %v1608 = vld [vmem:[%s1607] sm:$0xff]
        %v1610 = vsel %vm438, %v1559, 0
        %v1613 = vsel %vm438, %v1560, 0
        %v1616 = vsel %vm438, %v1561, 0
        %v1619 = vsel %vm438, %v1562, 0
        %v1622 = vsel %vm438, %v1563, 0
        %v1625 = vsel %vm438, %v1564, 0
        %v1628 = vsel %vm438, %v1565, 0
        %v1631 = vsel %vm438, %v1566, 0
        %v1634 = vsel %vm438, %v1567, 0
        %v1637 = vsel %vm438, %v1568, 0
        %v1640 = vsel %vm438, %v1569, 0
        %v1643 = vsel %vm438, %v1570, 0
        %v1646 = vsel %vm438, %v1571, 0
        %v1649 = vsel %vm438, %v1572, 0
        %v1652 = vsel %vm438, %v1573, 0
        %v1655 = vsel %vm438, %v1574, 0
        %v1658 = vsel %vm438, %v1575, 0
        %v1661 = vsel %vm438, %v1576, 0
        %v1664 = vsel %vm438, %v1577, 0
        %v1667 = vsel %vm438, %v1578, 0
        %v1670 = vsel %vm438, %v1579, 0
        %v1673 = vsel %vm438, %v1580, 0
        %v1676 = vsel %vm438, %v1581, 0
        %v1679 = vsel %vm438, %v1582, 0
        %v1682 = vsel %vm438, %v1583, 0
        %v1685 = vsel %vm438, %v1584, 0
        %v1688 = vsel %vm438, %v1585, 0
        %v1691 = vsel %vm438, %v1586, 0
        %v1694 = vsel %vm438, %v1587, 0
        %v1697 = vsel %vm438, %v1588, 0
        %v1700 = vsel %vm438, %v1589, 0
        %v1703 = vsel %vm438, %v1590, 0
        %v1706 = vsel %vm438, %v1591, 0
        %v1709 = vsel %vm438, %v1592, 0
        %v1712 = vsel %vm438, %v1593, 0
        %v1715 = vsel %vm438, %v1594, 0
        %v1718 = vsel %vm438, %v1595, 0
        %v1721 = vsel %vm438, %v1596, 0
        %v1724 = vsel %vm438, %v1597, 0
        %v1727 = vsel %vm438, %v1598, 0
        %v1730 = vsel %vm438, %v1599, 0
        %v1733 = vsel %vm438, %v1600, 0
        %v1736 = vsel %vm438, %v1601, 0
        %v1739 = vsel %vm438, %v1602, 0
        %v1742 = vsel %vm438, %v1603, 0
        %v1745 = vsel %vm438, %v1604, 0
        %v1748 = vsel %vm438, %v1605, 0
        %v1751 = vsel %vm438, %v1606, 0
        %1753 = vmatpush.msra.mxu0 0.0
        %1754 = vmatpush.msra.mxu0 0.0
        %1755 = vmatpush.msra.mxu0 0.0
        %1756 = vmatpush.msra.mxu0 0.0
        %1757 = vmatpush.msra.mxu0 0.0
        %1758 = vmatpush.msra.mxu0 0.0
        %1759 = vmatpush.msra.mxu0 0.0
        %1760 = vmatpush.msra.mxu0 0.0
        %1761 = vmatpush.msra.mxu0 0.0
        %1762 = vmatpush.msra.mxu0 0.0
        %1763 = vmatpush.msra.mxu0 0.0
        %1764 = vmatpush.msra.mxu0 0.0
        %1765 = vmatpush.msra.mxu0 0.0
        %1766 = vmatpush.msra.mxu0 0.0
        %1767 = vmatpush.msra.mxu0 0.0
        %1768 = vmatpush.msra.mxu0 %v1608
        %1769 = vmatmul.f32.gmra.mxu0 %v1610
        %v1770 = vpop.f32.mrf.mxu0
        %v1771 = vadd.f32 0.0, %v1770
        %1772 = vmatmul.f32.gmra.mxu0 %v1613
        %v1773 = vpop.f32.mrf.mxu0
        %v1774 = vadd.f32 0.0, %v1773
        %1775 = vmatmul.f32.gmra.mxu0 %v1616
        %v1776 = vpop.f32.mrf.mxu0
        %v1777 = vadd.f32 0.0, %v1776
        %1778 = vmatmul.f32.gmra.mxu0 %v1619
        %v1779 = vpop.f32.mrf.mxu0
        %v1780 = vadd.f32 0.0, %v1779
        %1781 = vmatmul.f32.gmra.mxu0 %v1622
        %v1782 = vpop.f32.mrf.mxu0
        %v1783 = vadd.f32 0.0, %v1782
        %1784 = vmatmul.f32.gmra.mxu0 %v1625
        %v1785 = vpop.f32.mrf.mxu0
        %v1786 = vadd.f32 0.0, %v1785
        %1787 = vmatmul.f32.gmra.mxu0 %v1628
        %v1788 = vpop.f32.mrf.mxu0
        %v1789 = vadd.f32 0.0, %v1788
        %1790 = vmatmul.f32.gmra.mxu0 %v1631
        %v1791 = vpop.f32.mrf.mxu0
        %v1792 = vadd.f32 0.0, %v1791
        %1793 = vmatmul.f32.gmra.mxu0 %v1634
        %v1794 = vpop.f32.mrf.mxu0
        %v1795 = vadd.f32 0.0, %v1794
        %1796 = vmatmul.f32.gmra.mxu0 %v1637
        %v1797 = vpop.f32.mrf.mxu0
        %v1798 = vadd.f32 0.0, %v1797
        %1799 = vmatmul.f32.gmra.mxu0 %v1640
        %v1800 = vpop.f32.mrf.mxu0
        %v1801 = vadd.f32 0.0, %v1800
        %1802 = vmatmul.f32.gmra.mxu0 %v1643
        %v1803 = vpop.f32.mrf.mxu0
        %v1804 = vadd.f32 0.0, %v1803
        %1805 = vmatmul.f32.gmra.mxu0 %v1646
        %v1806 = vpop.f32.mrf.mxu0
        %v1807 = vadd.f32 0.0, %v1806
        %1808 = vmatmul.f32.gmra.mxu0 %v1649
        %v1809 = vpop.f32.mrf.mxu0
        %v1810 = vadd.f32 0.0, %v1809
        %1811 = vmatmul.f32.gmra.mxu0 %v1652
        %v1812 = vpop.f32.mrf.mxu0
        %v1813 = vadd.f32 0.0, %v1812
        %1814 = vmatmul.f32.gmra.mxu0 %v1655
        %v1815 = vpop.f32.mrf.mxu0
        %v1816 = vadd.f32 0.0, %v1815
        %1817 = vmatmul.f32.gmra.mxu0 %v1658
        %v1818 = vpop.f32.mrf.mxu0
        %v1819 = vadd.f32 0.0, %v1818
        %1820 = vmatmul.f32.gmra.mxu0 %v1661
        %v1821 = vpop.f32.mrf.mxu0
        %v1822 = vadd.f32 0.0, %v1821
        %1823 = vmatmul.f32.gmra.mxu0 %v1664
        %v1824 = vpop.f32.mrf.mxu0
        %v1825 = vadd.f32 0.0, %v1824
        %1826 = vmatmul.f32.gmra.mxu0 %v1667
        %v1827 = vpop.f32.mrf.mxu0
        %v1828 = vadd.f32 0.0, %v1827
        %1829 = vmatmul.f32.gmra.mxu0 %v1670
        %v1830 = vpop.f32.mrf.mxu0
        %v1831 = vadd.f32 0.0, %v1830
        %1832 = vmatmul.f32.gmra.mxu0 %v1673
        %v1833 = vpop.f32.mrf.mxu0
        %v1834 = vadd.f32 0.0, %v1833
        %1835 = vmatmul.f32.gmra.mxu0 %v1676
        %v1836 = vpop.f32.mrf.mxu0
        %v1837 = vadd.f32 0.0, %v1836
        %1838 = vmatmul.f32.gmra.mxu0 %v1679
        %v1839 = vpop.f32.mrf.mxu0
        %v1840 = vadd.f32 0.0, %v1839
        %1841 = vmatmul.f32.gmra.mxu0 %v1682
        %v1842 = vpop.f32.mrf.mxu0
        %v1843 = vadd.f32 0.0, %v1842
        %1844 = vmatmul.f32.gmra.mxu0 %v1685
        %v1845 = vpop.f32.mrf.mxu0
        %v1846 = vadd.f32 0.0, %v1845
        %1847 = vmatmul.f32.gmra.mxu0 %v1688
        %v1848 = vpop.f32.mrf.mxu0
        %v1849 = vadd.f32 0.0, %v1848
        %1850 = vmatmul.f32.gmra.mxu0 %v1691
        %v1851 = vpop.f32.mrf.mxu0
        %v1852 = vadd.f32 0.0, %v1851
        %1853 = vmatmul.f32.gmra.mxu0 %v1694
        %v1854 = vpop.f32.mrf.mxu0
        %v1855 = vadd.f32 0.0, %v1854
        %1856 = vmatmul.f32.gmra.mxu0 %v1697
        %v1857 = vpop.f32.mrf.mxu0
        %v1858 = vadd.f32 0.0, %v1857
        %1859 = vmatmul.f32.gmra.mxu0 %v1700
        %v1860 = vpop.f32.mrf.mxu0
        %v1861 = vadd.f32 0.0, %v1860
        %1862 = vmatmul.f32.gmra.mxu0 %v1703
        %v1863 = vpop.f32.mrf.mxu0
        %v1864 = vadd.f32 0.0, %v1863
        %1865 = vmatmul.f32.gmra.mxu0 %v1706
        %v1866 = vpop.f32.mrf.mxu0
        %v1867 = vadd.f32 0.0, %v1866
        %1868 = vmatmul.f32.gmra.mxu0 %v1709
        %v1869 = vpop.f32.mrf.mxu0
        %v1870 = vadd.f32 0.0, %v1869
        %1871 = vmatmul.f32.gmra.mxu0 %v1712
        %v1872 = vpop.f32.mrf.mxu0
        %v1873 = vadd.f32 0.0, %v1872
        %1874 = vmatmul.f32.gmra.mxu0 %v1715
        %v1875 = vpop.f32.mrf.mxu0
        %v1876 = vadd.f32 0.0, %v1875
        %1877 = vmatmul.f32.gmra.mxu0 %v1718
        %v1878 = vpop.f32.mrf.mxu0
        %v1879 = vadd.f32 0.0, %v1878
        %1880 = vmatmul.f32.gmra.mxu0 %v1721
        %v1881 = vpop.f32.mrf.mxu0
        %v1882 = vadd.f32 0.0, %v1881
        %1883 = vmatmul.f32.gmra.mxu0 %v1724
        %v1884 = vpop.f32.mrf.mxu0
        %v1885 = vadd.f32 0.0, %v1884
        %1886 = vmatmul.f32.gmra.mxu0 %v1727
        %v1887 = vpop.f32.mrf.mxu0
        %v1888 = vadd.f32 0.0, %v1887
        %1889 = vmatmul.f32.gmra.mxu0 %v1730
        %v1890 = vpop.f32.mrf.mxu0
        %v1891 = vadd.f32 0.0, %v1890
        %1892 = vmatmul.f32.gmra.mxu0 %v1733
        %v1893 = vpop.f32.mrf.mxu0
        %v1894 = vadd.f32 0.0, %v1893
        %1895 = vmatmul.f32.gmra.mxu0 %v1736
        %v1896 = vpop.f32.mrf.mxu0
        %v1897 = vadd.f32 0.0, %v1896
        %1898 = vmatmul.f32.gmra.mxu0 %v1739
        %v1899 = vpop.f32.mrf.mxu0
        %v1900 = vadd.f32 0.0, %v1899
        %1901 = vmatmul.f32.gmra.mxu0 %v1742
        %v1902 = vpop.f32.mrf.mxu0
        %v1903 = vadd.f32 0.0, %v1902
        %1904 = vmatmul.f32.gmra.mxu0 %v1745
        %v1905 = vpop.f32.mrf.mxu0
        %v1906 = vadd.f32 0.0, %v1905
        %1907 = vmatmul.f32.gmra.mxu0 %v1748
        %v1908 = vpop.f32.mrf.mxu0
        %v1909 = vadd.f32 0.0, %v1908
        %1910 = vmatmul.f32.gmra.mxu0 %v1751
        %v1911 = vpop.f32.mrf.mxu0
        %v1912 = vadd.f32 0.0, %v1911
        %1913 = vdwg.mxu0
        %v1914 = vadd.f32 %v1416, %v1771
        %v1915 = vadd.f32 %v1419, %v1774
        %v1916 = vadd.f32 %v1422, %v1777
        %v1917 = vadd.f32 %v1425, %v1780
        %v1918 = vadd.f32 %v1428, %v1783
        %v1919 = vadd.f32 %v1431, %v1786
        %v1920 = vadd.f32 %v1434, %v1789
        %v1921 = vadd.f32 %v1437, %v1792
        %v1922 = vadd.f32 %v1440, %v1795
        %v1923 = vadd.f32 %v1443, %v1798
        %v1924 = vadd.f32 %v1446, %v1801
        %v1925 = vadd.f32 %v1449, %v1804
        %v1926 = vadd.f32 %v1452, %v1807
        %v1927 = vadd.f32 %v1455, %v1810
        %v1928 = vadd.f32 %v1458, %v1813
        %v1929 = vadd.f32 %v1461, %v1816
        %v1930 = vadd.f32 %v1464, %v1819
        %v1931 = vadd.f32 %v1467, %v1822
        %v1932 = vadd.f32 %v1470, %v1825
        %v1933 = vadd.f32 %v1473, %v1828
        %v1934 = vadd.f32 %v1476, %v1831
        %v1935 = vadd.f32 %v1479, %v1834
        %v1936 = vadd.f32 %v1482, %v1837
        %v1937 = vadd.f32 %v1485, %v1840
        %v1938 = vadd.f32 %v1488, %v1843
        %v1939 = vadd.f32 %v1491, %v1846
        %v1940 = vadd.f32 %v1494, %v1849
        %v1941 = vadd.f32 %v1497, %v1852
        %v1942 = vadd.f32 %v1500, %v1855
        %v1943 = vadd.f32 %v1503, %v1858
        %v1944 = vadd.f32 %v1506, %v1861
        %v1945 = vadd.f32 %v1509, %v1864
        %v1946 = vadd.f32 %v1512, %v1867
        %v1947 = vadd.f32 %v1515, %v1870
        %v1948 = vadd.f32 %v1518, %v1873
        %v1949 = vadd.f32 %v1521, %v1876
        %v1950 = vadd.f32 %v1524, %v1879
        %v1951 = vadd.f32 %v1527, %v1882
        %v1952 = vadd.f32 %v1530, %v1885
        %v1953 = vadd.f32 %v1533, %v1888
        %v1954 = vadd.f32 %v1536, %v1891
        %v1955 = vadd.f32 %v1539, %v1894
        %v1956 = vadd.f32 %v1542, %v1897
        %v1957 = vadd.f32 %v1545, %v1900
        %v1958 = vadd.f32 %v1548, %v1903
        %v1959 = vadd.f32 %v1551, %v1906
        %v1960 = vadd.f32 %v1554, %v1909
        %v1961 = vadd.f32 %v1557, %v1912
        %v1962 = vld [vmem:[#allocation2 + $0x18] sm:$0xff]
        %v1963 = vld [vmem:[#allocation2 + $0x20] sm:$0xff]
        %v1964 = vld [vmem:[#allocation2 + $0x28] sm:$0xff]
        %v1965 = vld [vmem:[#allocation2 + $0x30] sm:$0xff]
        %v1966 = vld [vmem:[#allocation2 + $0x38] sm:$0xff]
        %v1967 = vld [vmem:[#allocation2 + $0x40] sm:$0xff]
        %v1968 = vld [vmem:[#allocation2 + $0x48] sm:$0xff]
        %v1969 = vld [vmem:[#allocation2 + $0x50] sm:$0xff]
        %v1970 = vld [vmem:[#allocation2 + $0x58] sm:$0xff]
        %v1971 = vld [vmem:[#allocation2 + $0x60] sm:$0xff]
        %v1972 = vld [vmem:[#allocation2 + $0x68] sm:$0xff]
        %v1973 = vld [vmem:[#allocation2 + $0x70] sm:$0xff]
        %v1974 = vld [vmem:[#allocation2 + $0x78] sm:$0xff]
        %v1975 = vld [vmem:[#allocation2 + $0x80] sm:$0xff]
        %v1976 = vld [vmem:[#allocation2 + $0x88] sm:$0xff]
        %v1977 = vld [vmem:[#allocation2 + $0x90] sm:$0xff]
        %v1978 = vld [vmem:[#allocation2 + $0x98] sm:$0xff]
        %v1979 = vld [vmem:[#allocation2 + $0xa0] sm:$0xff]
        %v1980 = vld [vmem:[#allocation2 + $0xa8] sm:$0xff]
        %v1981 = vld [vmem:[#allocation2 + $0xb0] sm:$0xff]
        %v1982 = vld [vmem:[#allocation2 + $0xb8] sm:$0xff]
        %v1983 = vld [vmem:[#allocation2 + $0xc0] sm:$0xff]
        %v1984 = vld [vmem:[#allocation2 + $0xc8] sm:$0xff]
        %v1985 = vld [vmem:[#allocation2 + $0xd0] sm:$0xff]
        %v1986 = vld [vmem:[#allocation2 + $0xd8] sm:$0xff]
        %v1987 = vld [vmem:[#allocation2 + $0xe0] sm:$0xff]
        %v1988 = vld [vmem:[#allocation2 + $0xe8] sm:$0xff]
        %v1989 = vld [vmem:[#allocation2 + $0xf0] sm:$0xff]
        %v1990 = vld [vmem:[#allocation2 + $0xf8] sm:$0xff]
        %v1991 = vld [vmem:[#allocation2 + $0x100] sm:$0xff]
        %v1992 = vld [vmem:[#allocation2 + $0x108] sm:$0xff]
        %v1993 = vld [vmem:[#allocation2 + $0x110] sm:$0xff]
        %v1994 = vld [vmem:[#allocation2 + $0x118] sm:$0xff]
        %v1995 = vld [vmem:[#allocation2 + $0x120] sm:$0xff]
        %v1996 = vld [vmem:[#allocation2 + $0x128] sm:$0xff]
        %v1997 = vld [vmem:[#allocation2 + $0x130] sm:$0xff]
        %v1998 = vld [vmem:[#allocation2 + $0x138] sm:$0xff]
        %v1999 = vld [vmem:[#allocation2 + $0x140] sm:$0xff]
        %v2000 = vld [vmem:[#allocation2 + $0x148] sm:$0xff]
        %v2001 = vld [vmem:[#allocation2 + $0x150] sm:$0xff]
        %v2002 = vld [vmem:[#allocation2 + $0x158] sm:$0xff]
        %v2003 = vld [vmem:[#allocation2 + $0x160] sm:$0xff]
        %v2004 = vld [vmem:[#allocation2 + $0x168] sm:$0xff]
        %v2005 = vld [vmem:[#allocation2 + $0x170] sm:$0xff]
        %v2006 = vld [vmem:[#allocation2 + $0x178] sm:$0xff]
        %v2007 = vld [vmem:[#allocation2 + $0x180] sm:$0xff]
        %v2008 = vld [vmem:[#allocation2 + $0x188] sm:$0xff]
        %v2009 = vld [vmem:[#allocation2 + $0x190] sm:$0xff]
        %s2010 = scalar_lea.vmem %s3, 24
        %v2011 = vld [vmem:[%s2010] sm:$0xff]
        %v2013 = vsel %vm438, %v1962, 0
        %v2016 = vsel %vm438, %v1963, 0
        %v2019 = vsel %vm438, %v1964, 0
        %v2022 = vsel %vm438, %v1965, 0
        %v2025 = vsel %vm438, %v1966, 0
        %v2028 = vsel %vm438, %v1967, 0
        %v2031 = vsel %vm438, %v1968, 0
        %v2034 = vsel %vm438, %v1969, 0
        %v2037 = vsel %vm438, %v1970, 0
        %v2040 = vsel %vm438, %v1971, 0
        %v2043 = vsel %vm438, %v1972, 0
        %v2046 = vsel %vm438, %v1973, 0
        %v2049 = vsel %vm438, %v1974, 0
        %v2052 = vsel %vm438, %v1975, 0
        %v2055 = vsel %vm438, %v1976, 0
        %v2058 = vsel %vm438, %v1977, 0
        %v2061 = vsel %vm438, %v1978, 0
        %v2064 = vsel %vm438, %v1979, 0
        %v2067 = vsel %vm438, %v1980, 0
        %v2070 = vsel %vm438, %v1981, 0
        %v2073 = vsel %vm438, %v1982, 0
        %v2076 = vsel %vm438, %v1983, 0
        %v2079 = vsel %vm438, %v1984, 0
        %v2082 = vsel %vm438, %v1985, 0
        %v2085 = vsel %vm438, %v1986, 0
        %v2088 = vsel %vm438, %v1987, 0
        %v2091 = vsel %vm438, %v1988, 0
        %v2094 = vsel %vm438, %v1989, 0
        %v2097 = vsel %vm438, %v1990, 0
        %v2100 = vsel %vm438, %v1991, 0
        %v2103 = vsel %vm438, %v1992, 0
        %v2106 = vsel %vm438, %v1993, 0
        %v2109 = vsel %vm438, %v1994, 0
        %v2112 = vsel %vm438, %v1995, 0
        %v2115 = vsel %vm438, %v1996, 0
        %v2118 = vsel %vm438, %v1997, 0
        %v2121 = vsel %vm438, %v1998, 0
        %v2124 = vsel %vm438, %v1999, 0
        %v2127 = vsel %vm438, %v2000, 0
        %v2130 = vsel %vm438, %v2001, 0
        %v2133 = vsel %vm438, %v2002, 0
        %v2136 = vsel %vm438, %v2003, 0
        %v2139 = vsel %vm438, %v2004, 0
        %v2142 = vsel %vm438, %v2005, 0
        %v2145 = vsel %vm438, %v2006, 0
        %v2148 = vsel %vm438, %v2007, 0
        %v2151 = vsel %vm438, %v2008, 0
        %v2154 = vsel %vm438, %v2009, 0
        %2156 = vmatpush.msra.mxu0 0.0
        %2157 = vmatpush.msra.mxu0 0.0
        %2158 = vmatpush.msra.mxu0 0.0
        %2159 = vmatpush.msra.mxu0 0.0
        %2160 = vmatpush.msra.mxu0 0.0
        %2161 = vmatpush.msra.mxu0 0.0
        %2162 = vmatpush.msra.mxu0 0.0
        %2163 = vmatpush.msra.mxu0 0.0
        %2164 = vmatpush.msra.mxu0 0.0
        %2165 = vmatpush.msra.mxu0 0.0
        %2166 = vmatpush.msra.mxu0 0.0
        %2167 = vmatpush.msra.mxu0 0.0
        %2168 = vmatpush.msra.mxu0 0.0
        %2169 = vmatpush.msra.mxu0 0.0
        %2170 = vmatpush.msra.mxu0 0.0
        %2171 = vmatpush.msra.mxu0 %v2011
        %2172 = vmatmul.f32.gmra.mxu0 %v2013
        %v2173 = vpop.f32.mrf.mxu0
        %v2174 = vadd.f32 0.0, %v2173
        %2175 = vmatmul.f32.gmra.mxu0 %v2016
        %v2176 = vpop.f32.mrf.mxu0
        %v2177 = vadd.f32 0.0, %v2176
        %2178 = vmatmul.f32.gmra.mxu0 %v2019
        %v2179 = vpop.f32.mrf.mxu0
        %v2180 = vadd.f32 0.0, %v2179
        %2181 = vmatmul.f32.gmra.mxu0 %v2022
        %v2182 = vpop.f32.mrf.mxu0
        %v2183 = vadd.f32 0.0, %v2182
        %2184 = vmatmul.f32.gmra.mxu0 %v2025
        %v2185 = vpop.f32.mrf.mxu0
        %v2186 = vadd.f32 0.0, %v2185
        %2187 = vmatmul.f32.gmra.mxu0 %v2028
        %v2188 = vpop.f32.mrf.mxu0
        %v2189 = vadd.f32 0.0, %v2188
        %2190 = vmatmul.f32.gmra.mxu0 %v2031
        %v2191 = vpop.f32.mrf.mxu0
        %v2192 = vadd.f32 0.0, %v2191
        %2193 = vmatmul.f32.gmra.mxu0 %v2034
        %v2194 = vpop.f32.mrf.mxu0
        %v2195 = vadd.f32 0.0, %v2194
        %2196 = vmatmul.f32.gmra.mxu0 %v2037
        %v2197 = vpop.f32.mrf.mxu0
        %v2198 = vadd.f32 0.0, %v2197
        %2199 = vmatmul.f32.gmra.mxu0 %v2040
        %v2200 = vpop.f32.mrf.mxu0
        %v2201 = vadd.f32 0.0, %v2200
        %2202 = vmatmul.f32.gmra.mxu0 %v2043
        %v2203 = vpop.f32.mrf.mxu0
        %v2204 = vadd.f32 0.0, %v2203
        %2205 = vmatmul.f32.gmra.mxu0 %v2046
        %v2206 = vpop.f32.mrf.mxu0
        %v2207 = vadd.f32 0.0, %v2206
        %2208 = vmatmul.f32.gmra.mxu0 %v2049
        %v2209 = vpop.f32.mrf.mxu0
        %v2210 = vadd.f32 0.0, %v2209
        %2211 = vmatmul.f32.gmra.mxu0 %v2052
        %v2212 = vpop.f32.mrf.mxu0
        %v2213 = vadd.f32 0.0, %v2212
        %2214 = vmatmul.f32.gmra.mxu0 %v2055
        %v2215 = vpop.f32.mrf.mxu0
        %v2216 = vadd.f32 0.0, %v2215
        %2217 = vmatmul.f32.gmra.mxu0 %v2058
        %v2218 = vpop.f32.mrf.mxu0
        %v2219 = vadd.f32 0.0, %v2218
        %2220 = vmatmul.f32.gmra.mxu0 %v2061
        %v2221 = vpop.f32.mrf.mxu0
        %v2222 = vadd.f32 0.0, %v2221
        %2223 = vmatmul.f32.gmra.mxu0 %v2064
        %v2224 = vpop.f32.mrf.mxu0
        %v2225 = vadd.f32 0.0, %v2224
        %2226 = vmatmul.f32.gmra.mxu0 %v2067
        %v2227 = vpop.f32.mrf.mxu0
        %v2228 = vadd.f32 0.0, %v2227
        %2229 = vmatmul.f32.gmra.mxu0 %v2070
        %v2230 = vpop.f32.mrf.mxu0
        %v2231 = vadd.f32 0.0, %v2230
        %2232 = vmatmul.f32.gmra.mxu0 %v2073
        %v2233 = vpop.f32.mrf.mxu0
        %v2234 = vadd.f32 0.0, %v2233
        %2235 = vmatmul.f32.gmra.mxu0 %v2076
        %v2236 = vpop.f32.mrf.mxu0
        %v2237 = vadd.f32 0.0, %v2236
        %2238 = vmatmul.f32.gmra.mxu0 %v2079
        %v2239 = vpop.f32.mrf.mxu0
        %v2240 = vadd.f32 0.0, %v2239
        %2241 = vmatmul.f32.gmra.mxu0 %v2082
        %v2242 = vpop.f32.mrf.mxu0
        %v2243 = vadd.f32 0.0, %v2242
        %2244 = vmatmul.f32.gmra.mxu0 %v2085
        %v2245 = vpop.f32.mrf.mxu0
        %v2246 = vadd.f32 0.0, %v2245
        %2247 = vmatmul.f32.gmra.mxu0 %v2088
        %v2248 = vpop.f32.mrf.mxu0
        %v2249 = vadd.f32 0.0, %v2248
        %2250 = vmatmul.f32.gmra.mxu0 %v2091
        %v2251 = vpop.f32.mrf.mxu0
        %v2252 = vadd.f32 0.0, %v2251
        %2253 = vmatmul.f32.gmra.mxu0 %v2094
        %v2254 = vpop.f32.mrf.mxu0
        %v2255 = vadd.f32 0.0, %v2254
        %2256 = vmatmul.f32.gmra.mxu0 %v2097
        %v2257 = vpop.f32.mrf.mxu0
        %v2258 = vadd.f32 0.0, %v2257
        %2259 = vmatmul.f32.gmra.mxu0 %v2100
        %v2260 = vpop.f32.mrf.mxu0
        %v2261 = vadd.f32 0.0, %v2260
        %2262 = vmatmul.f32.gmra.mxu0 %v2103
        %v2263 = vpop.f32.mrf.mxu0
        %v2264 = vadd.f32 0.0, %v2263
        %2265 = vmatmul.f32.gmra.mxu0 %v2106
        %v2266 = vpop.f32.mrf.mxu0
        %v2267 = vadd.f32 0.0, %v2266
        %2268 = vmatmul.f32.gmra.mxu0 %v2109
        %v2269 = vpop.f32.mrf.mxu0
        %v2270 = vadd.f32 0.0, %v2269
        %2271 = vmatmul.f32.gmra.mxu0 %v2112
        %v2272 = vpop.f32.mrf.mxu0
        %v2273 = vadd.f32 0.0, %v2272
        %2274 = vmatmul.f32.gmra.mxu0 %v2115
        %v2275 = vpop.f32.mrf.mxu0
        %v2276 = vadd.f32 0.0, %v2275
        %2277 = vmatmul.f32.gmra.mxu0 %v2118
        %v2278 = vpop.f32.mrf.mxu0
        %v2279 = vadd.f32 0.0, %v2278
        %2280 = vmatmul.f32.gmra.mxu0 %v2121
        %v2281 = vpop.f32.mrf.mxu0
        %v2282 = vadd.f32 0.0, %v2281
        %2283 = vmatmul.f32.gmra.mxu0 %v2124
        %v2284 = vpop.f32.mrf.mxu0
        %v2285 = vadd.f32 0.0, %v2284
        %2286 = vmatmul.f32.gmra.mxu0 %v2127
        %v2287 = vpop.f32.mrf.mxu0
        %v2288 = vadd.f32 0.0, %v2287
        %2289 = vmatmul.f32.gmra.mxu0 %v2130
        %v2290 = vpop.f32.mrf.mxu0
        %v2291 = vadd.f32 0.0, %v2290
        %2292 = vmatmul.f32.gmra.mxu0 %v2133
        %v2293 = vpop.f32.mrf.mxu0
        %v2294 = vadd.f32 0.0, %v2293
        %2295 = vmatmul.f32.gmra.mxu0 %v2136
        %v2296 = vpop.f32.mrf.mxu0
        %v2297 = vadd.f32 0.0, %v2296
        %2298 = vmatmul.f32.gmra.mxu0 %v2139
        %v2299 = vpop.f32.mrf.mxu0
        %v2300 = vadd.f32 0.0, %v2299
        %2301 = vmatmul.f32.gmra.mxu0 %v2142
        %v2302 = vpop.f32.mrf.mxu0
        %v2303 = vadd.f32 0.0, %v2302
        %2304 = vmatmul.f32.gmra.mxu0 %v2145
        %v2305 = vpop.f32.mrf.mxu0
        %v2306 = vadd.f32 0.0, %v2305
        %2307 = vmatmul.f32.gmra.mxu0 %v2148
        %v2308 = vpop.f32.mrf.mxu0
        %v2309 = vadd.f32 0.0, %v2308
        %2310 = vmatmul.f32.gmra.mxu0 %v2151
        %v2311 = vpop.f32.mrf.mxu0
        %v2312 = vadd.f32 0.0, %v2311
        %2313 = vmatmul.f32.gmra.mxu0 %v2154
        %v2314 = vpop.f32.mrf.mxu0
        %v2315 = vadd.f32 0.0, %v2314
        %2316 = vdwg.mxu0
        %v2317 = vadd.f32 %v1914, %v2174
        %v2318 = vadd.f32 %v1915, %v2177
        %v2319 = vadd.f32 %v1916, %v2180
        %v2320 = vadd.f32 %v1917, %v2183
        %v2321 = vadd.f32 %v1918, %v2186
        %v2322 = vadd.f32 %v1919, %v2189
        %v2323 = vadd.f32 %v1920, %v2192
        %v2324 = vadd.f32 %v1921, %v2195
        %v2325 = vadd.f32 %v1922, %v2198
        %v2326 = vadd.f32 %v1923, %v2201
        %v2327 = vadd.f32 %v1924, %v2204
        %v2328 = vadd.f32 %v1925, %v2207
        %v2329 = vadd.f32 %v1926, %v2210
        %v2330 = vadd.f32 %v1927, %v2213
        %v2331 = vadd.f32 %v1928, %v2216
        %v2332 = vadd.f32 %v1929, %v2219
        %v2333 = vadd.f32 %v1930, %v2222
        %v2334 = vadd.f32 %v1931, %v2225
        %v2335 = vadd.f32 %v1932, %v2228
        %v2336 = vadd.f32 %v1933, %v2231
        %v2337 = vadd.f32 %v1934, %v2234
        %v2338 = vadd.f32 %v1935, %v2237
        %v2339 = vadd.f32 %v1936, %v2240
        %v2340 = vadd.f32 %v1937, %v2243
        %v2341 = vadd.f32 %v1938, %v2246
        %v2342 = vadd.f32 %v1939, %v2249
        %v2343 = vadd.f32 %v1940, %v2252
        %v2344 = vadd.f32 %v1941, %v2255
        %v2345 = vadd.f32 %v1942, %v2258
        %v2346 = vadd.f32 %v1943, %v2261
        %v2347 = vadd.f32 %v1944, %v2264
        %v2348 = vadd.f32 %v1945, %v2267
        %v2349 = vadd.f32 %v1946, %v2270
        %v2350 = vadd.f32 %v1947, %v2273
        %v2351 = vadd.f32 %v1948, %v2276
        %v2352 = vadd.f32 %v1949, %v2279
        %v2353 = vadd.f32 %v1950, %v2282
        %v2354 = vadd.f32 %v1951, %v2285
        %v2355 = vadd.f32 %v1952, %v2288
        %v2356 = vadd.f32 %v1953, %v2291
        %v2357 = vadd.f32 %v1954, %v2294
        %v2358 = vadd.f32 %v1955, %v2297
        %v2359 = vadd.f32 %v1956, %v2300
        %v2360 = vadd.f32 %v1957, %v2303
        %v2361 = vadd.f32 %v1958, %v2306
        %v2362 = vadd.f32 %v1959, %v2309
        %v2363 = vadd.f32 %v1960, %v2312
        %v2364 = vadd.f32 %v1961, %v2315
        %v2365 = vld [vmem:[#allocation2 + $0x19] sm:$0xff]
        %v2366 = vld [vmem:[#allocation2 + $0x21] sm:$0xff]
        %v2367 = vld [vmem:[#allocation2 + $0x29] sm:$0xff]
        %v2368 = vld [vmem:[#allocation2 + $0x31] sm:$0xff]
        %v2369 = vld [vmem:[#allocation2 + $0x39] sm:$0xff]
        %v2370 = vld [vmem:[#allocation2 + $0x41] sm:$0xff]
        %v2371 = vld [vmem:[#allocation2 + $0x49] sm:$0xff]
        %v2372 = vld [vmem:[#allocation2 + $0x51] sm:$0xff]
        %v2373 = vld [vmem:[#allocation2 + $0x59] sm:$0xff]
        %v2374 = vld [vmem:[#allocation2 + $0x61] sm:$0xff]
        %v2375 = vld [vmem:[#allocation2 + $0x69] sm:$0xff]
        %v2376 = vld [vmem:[#allocation2 + $0x71] sm:$0xff]
        %v2377 = vld [vmem:[#allocation2 + $0x79] sm:$0xff]
        %v2378 = vld [vmem:[#allocation2 + $0x81] sm:$0xff]
        %v2379 = vld [vmem:[#allocation2 + $0x89] sm:$0xff]
        %v2380 = vld [vmem:[#allocation2 + $0x91] sm:$0xff]
        %v2381 = vld [vmem:[#allocation2 + $0x99] sm:$0xff]
        %v2382 = vld [vmem:[#allocation2 + $0xa1] sm:$0xff]
        %v2383 = vld [vmem:[#allocation2 + $0xa9] sm:$0xff]
        %v2384 = vld [vmem:[#allocation2 + $0xb1] sm:$0xff]
        %v2385 = vld [vmem:[#allocation2 + $0xb9] sm:$0xff]
        %v2386 = vld [vmem:[#allocation2 + $0xc1] sm:$0xff]
        %v2387 = vld [vmem:[#allocation2 + $0xc9] sm:$0xff]
        %v2388 = vld [vmem:[#allocation2 + $0xd1] sm:$0xff]
        %v2389 = vld [vmem:[#allocation2 + $0xd9] sm:$0xff]
        %v2390 = vld [vmem:[#allocation2 + $0xe1] sm:$0xff]
        %v2391 = vld [vmem:[#allocation2 + $0xe9] sm:$0xff]
        %v2392 = vld [vmem:[#allocation2 + $0xf1] sm:$0xff]
        %v2393 = vld [vmem:[#allocation2 + $0xf9] sm:$0xff]
        %v2394 = vld [vmem:[#allocation2 + $0x101] sm:$0xff]
        %v2395 = vld [vmem:[#allocation2 + $0x109] sm:$0xff]
        %v2396 = vld [vmem:[#allocation2 + $0x111] sm:$0xff]
        %v2397 = vld [vmem:[#allocation2 + $0x119] sm:$0xff]
        %v2398 = vld [vmem:[#allocation2 + $0x121] sm:$0xff]
        %v2399 = vld [vmem:[#allocation2 + $0x129] sm:$0xff]
        %v2400 = vld [vmem:[#allocation2 + $0x131] sm:$0xff]
        %v2401 = vld [vmem:[#allocation2 + $0x139] sm:$0xff]
        %v2402 = vld [vmem:[#allocation2 + $0x141] sm:$0xff]
        %v2403 = vld [vmem:[#allocation2 + $0x149] sm:$0xff]
        %v2404 = vld [vmem:[#allocation2 + $0x151] sm:$0xff]
        %v2405 = vld [vmem:[#allocation2 + $0x159] sm:$0xff]
        %v2406 = vld [vmem:[#allocation2 + $0x161] sm:$0xff]
        %v2407 = vld [vmem:[#allocation2 + $0x169] sm:$0xff]
        %v2408 = vld [vmem:[#allocation2 + $0x171] sm:$0xff]
        %v2409 = vld [vmem:[#allocation2 + $0x179] sm:$0xff]
        %v2410 = vld [vmem:[#allocation2 + $0x181] sm:$0xff]
        %v2411 = vld [vmem:[#allocation2 + $0x189] sm:$0xff]
        %v2412 = vld [vmem:[#allocation2 + $0x191] sm:$0xff]
        %s2413 = scalar_lea.vmem %s3, 32
        %v2414 = vld [vmem:[%s2413] sm:$0xff]
        %v2416 = vsel %vm438, %v2365, 0
        %v2419 = vsel %vm438, %v2366, 0
        %v2422 = vsel %vm438, %v2367, 0
        %v2425 = vsel %vm438, %v2368, 0
        %v2428 = vsel %vm438, %v2369, 0
        %v2431 = vsel %vm438, %v2370, 0
        %v2434 = vsel %vm438, %v2371, 0
        %v2437 = vsel %vm438, %v2372, 0
        %v2440 = vsel %vm438, %v2373, 0
        %v2443 = vsel %vm438, %v2374, 0
        %v2446 = vsel %vm438, %v2375, 0
        %v2449 = vsel %vm438, %v2376, 0
        %v2452 = vsel %vm438, %v2377, 0
        %v2455 = vsel %vm438, %v2378, 0
        %v2458 = vsel %vm438, %v2379, 0
        %v2461 = vsel %vm438, %v2380, 0
        %v2464 = vsel %vm438, %v2381, 0
        %v2467 = vsel %vm438, %v2382, 0
        %v2470 = vsel %vm438, %v2383, 0
        %v2473 = vsel %vm438, %v2384, 0
        %v2476 = vsel %vm438, %v2385, 0
        %v2479 = vsel %vm438, %v2386, 0
        %v2482 = vsel %vm438, %v2387, 0
        %v2485 = vsel %vm438, %v2388, 0
        %v2488 = vsel %vm438, %v2389, 0
        %v2491 = vsel %vm438, %v2390, 0
        %v2494 = vsel %vm438, %v2391, 0
        %v2497 = vsel %vm438, %v2392, 0
        %v2500 = vsel %vm438, %v2393, 0
        %v2503 = vsel %vm438, %v2394, 0
        %v2506 = vsel %vm438, %v2395, 0
        %v2509 = vsel %vm438, %v2396, 0
        %v2512 = vsel %vm438, %v2397, 0
        %v2515 = vsel %vm438, %v2398, 0
        %v2518 = vsel %vm438, %v2399, 0
        %v2521 = vsel %vm438, %v2400, 0
        %v2524 = vsel %vm438, %v2401, 0
        %v2527 = vsel %vm438, %v2402, 0
        %v2530 = vsel %vm438, %v2403, 0
        %v2533 = vsel %vm438, %v2404, 0
        %v2536 = vsel %vm438, %v2405, 0
        %v2539 = vsel %vm438, %v2406, 0
        %v2542 = vsel %vm438, %v2407, 0
        %v2545 = vsel %vm438, %v2408, 0
        %v2548 = vsel %vm438, %v2409, 0
        %v2551 = vsel %vm438, %v2410, 0
        %v2554 = vsel %vm438, %v2411, 0
        %v2557 = vsel %vm438, %v2412, 0
        %2559 = vmatpush.msra.mxu0 0.0
        %2560 = vmatpush.msra.mxu0 0.0
        %2561 = vmatpush.msra.mxu0 0.0
        %2562 = vmatpush.msra.mxu0 0.0
        %2563 = vmatpush.msra.mxu0 0.0
        %2564 = vmatpush.msra.mxu0 0.0
        %2565 = vmatpush.msra.mxu0 0.0
        %2566 = vmatpush.msra.mxu0 0.0
        %2567 = vmatpush.msra.mxu0 0.0
        %2568 = vmatpush.msra.mxu0 0.0
        %2569 = vmatpush.msra.mxu0 0.0
        %2570 = vmatpush.msra.mxu0 0.0
        %2571 = vmatpush.msra.mxu0 0.0
        %2572 = vmatpush.msra.mxu0 0.0
        %2573 = vmatpush.msra.mxu0 0.0
        %2574 = vmatpush.msra.mxu0 %v2414
        %2575 = vmatmul.f32.gmra.mxu0 %v2416
        %v2576 = vpop.f32.mrf.mxu0
        %v2577 = vadd.f32 0.0, %v2576
        %2578 = vmatmul.f32.gmra.mxu0 %v2419
        %v2579 = vpop.f32.mrf.mxu0
        %v2580 = vadd.f32 0.0, %v2579
        %2581 = vmatmul.f32.gmra.mxu0 %v2422
        %v2582 = vpop.f32.mrf.mxu0
        %v2583 = vadd.f32 0.0, %v2582
        %2584 = vmatmul.f32.gmra.mxu0 %v2425
        %v2585 = vpop.f32.mrf.mxu0
        %v2586 = vadd.f32 0.0, %v2585
        %2587 = vmatmul.f32.gmra.mxu0 %v2428
        %v2588 = vpop.f32.mrf.mxu0
        %v2589 = vadd.f32 0.0, %v2588
        %2590 = vmatmul.f32.gmra.mxu0 %v2431
        %v2591 = vpop.f32.mrf.mxu0
        %v2592 = vadd.f32 0.0, %v2591
        %2593 = vmatmul.f32.gmra.mxu0 %v2434
        %v2594 = vpop.f32.mrf.mxu0
        %v2595 = vadd.f32 0.0, %v2594
        %2596 = vmatmul.f32.gmra.mxu0 %v2437
        %v2597 = vpop.f32.mrf.mxu0
        %v2598 = vadd.f32 0.0, %v2597
        %2599 = vmatmul.f32.gmra.mxu0 %v2440
        %v2600 = vpop.f32.mrf.mxu0
        %v2601 = vadd.f32 0.0, %v2600
        %2602 = vmatmul.f32.gmra.mxu0 %v2443
        %v2603 = vpop.f32.mrf.mxu0
        %v2604 = vadd.f32 0.0, %v2603
        %2605 = vmatmul.f32.gmra.mxu0 %v2446
        %v2606 = vpop.f32.mrf.mxu0
        %v2607 = vadd.f32 0.0, %v2606
        %2608 = vmatmul.f32.gmra.mxu0 %v2449
        %v2609 = vpop.f32.mrf.mxu0
        %v2610 = vadd.f32 0.0, %v2609
        %2611 = vmatmul.f32.gmra.mxu0 %v2452
        %v2612 = vpop.f32.mrf.mxu0
        %v2613 = vadd.f32 0.0, %v2612
        %2614 = vmatmul.f32.gmra.mxu0 %v2455
        %v2615 = vpop.f32.mrf.mxu0
        %v2616 = vadd.f32 0.0, %v2615
        %2617 = vmatmul.f32.gmra.mxu0 %v2458
        %v2618 = vpop.f32.mrf.mxu0
        %v2619 = vadd.f32 0.0, %v2618
        %2620 = vmatmul.f32.gmra.mxu0 %v2461
        %v2621 = vpop.f32.mrf.mxu0
        %v2622 = vadd.f32 0.0, %v2621
        %2623 = vmatmul.f32.gmra.mxu0 %v2464
        %v2624 = vpop.f32.mrf.mxu0
        %v2625 = vadd.f32 0.0, %v2624
        %2626 = vmatmul.f32.gmra.mxu0 %v2467
        %v2627 = vpop.f32.mrf.mxu0
        %v2628 = vadd.f32 0.0, %v2627
        %2629 = vmatmul.f32.gmra.mxu0 %v2470
        %v2630 = vpop.f32.mrf.mxu0
        %v2631 = vadd.f32 0.0, %v2630
        %2632 = vmatmul.f32.gmra.mxu0 %v2473
        %v2633 = vpop.f32.mrf.mxu0
        %v2634 = vadd.f32 0.0, %v2633
        %2635 = vmatmul.f32.gmra.mxu0 %v2476
        %v2636 = vpop.f32.mrf.mxu0
        %v2637 = vadd.f32 0.0, %v2636
        %2638 = vmatmul.f32.gmra.mxu0 %v2479
        %v2639 = vpop.f32.mrf.mxu0
        %v2640 = vadd.f32 0.0, %v2639
        %2641 = vmatmul.f32.gmra.mxu0 %v2482
        %v2642 = vpop.f32.mrf.mxu0
        %v2643 = vadd.f32 0.0, %v2642
        %2644 = vmatmul.f32.gmra.mxu0 %v2485
        %v2645 = vpop.f32.mrf.mxu0
        %v2646 = vadd.f32 0.0, %v2645
        %2647 = vmatmul.f32.gmra.mxu0 %v2488
        %v2648 = vpop.f32.mrf.mxu0
        %v2649 = vadd.f32 0.0, %v2648
        %2650 = vmatmul.f32.gmra.mxu0 %v2491
        %v2651 = vpop.f32.mrf.mxu0
        %v2652 = vadd.f32 0.0, %v2651
        %2653 = vmatmul.f32.gmra.mxu0 %v2494
        %v2654 = vpop.f32.mrf.mxu0
        %v2655 = vadd.f32 0.0, %v2654
        %2656 = vmatmul.f32.gmra.mxu0 %v2497
        %v2657 = vpop.f32.mrf.mxu0
        %v2658 = vadd.f32 0.0, %v2657
        %2659 = vmatmul.f32.gmra.mxu0 %v2500
        %v2660 = vpop.f32.mrf.mxu0
        %v2661 = vadd.f32 0.0, %v2660
        %2662 = vmatmul.f32.gmra.mxu0 %v2503
        %v2663 = vpop.f32.mrf.mxu0
        %v2664 = vadd.f32 0.0, %v2663
        %2665 = vmatmul.f32.gmra.mxu0 %v2506
        %v2666 = vpop.f32.mrf.mxu0
        %v2667 = vadd.f32 0.0, %v2666
        %2668 = vmatmul.f32.gmra.mxu0 %v2509
        %v2669 = vpop.f32.mrf.mxu0
        %v2670 = vadd.f32 0.0, %v2669
        %2671 = vmatmul.f32.gmra.mxu0 %v2512
        %v2672 = vpop.f32.mrf.mxu0
        %v2673 = vadd.f32 0.0, %v2672
        %2674 = vmatmul.f32.gmra.mxu0 %v2515
        %v2675 = vpop.f32.mrf.mxu0
        %v2676 = vadd.f32 0.0, %v2675
        %2677 = vmatmul.f32.gmra.mxu0 %v2518
        %v2678 = vpop.f32.mrf.mxu0
        %v2679 = vadd.f32 0.0, %v2678
        %2680 = vmatmul.f32.gmra.mxu0 %v2521
        %v2681 = vpop.f32.mrf.mxu0
        %v2682 = vadd.f32 0.0, %v2681
        %2683 = vmatmul.f32.gmra.mxu0 %v2524
        %v2684 = vpop.f32.mrf.mxu0
        %v2685 = vadd.f32 0.0, %v2684
        %2686 = vmatmul.f32.gmra.mxu0 %v2527
        %v2687 = vpop.f32.mrf.mxu0
        %v2688 = vadd.f32 0.0, %v2687
        %2689 = vmatmul.f32.gmra.mxu0 %v2530
        %v2690 = vpop.f32.mrf.mxu0
        %v2691 = vadd.f32 0.0, %v2690
        %2692 = vmatmul.f32.gmra.mxu0 %v2533
        %v2693 = vpop.f32.mrf.mxu0
        %v2694 = vadd.f32 0.0, %v2693
        %2695 = vmatmul.f32.gmra.mxu0 %v2536
        %v2696 = vpop.f32.mrf.mxu0
        %v2697 = vadd.f32 0.0, %v2696
        %2698 = vmatmul.f32.gmra.mxu0 %v2539
        %v2699 = vpop.f32.mrf.mxu0
        %v2700 = vadd.f32 0.0, %v2699
        %2701 = vmatmul.f32.gmra.mxu0 %v2542
        %v2702 = vpop.f32.mrf.mxu0
        %v2703 = vadd.f32 0.0, %v2702
        %2704 = vmatmul.f32.gmra.mxu0 %v2545
        %v2705 = vpop.f32.mrf.mxu0
        %v2706 = vadd.f32 0.0, %v2705
        %2707 = vmatmul.f32.gmra.mxu0 %v2548
        %v2708 = vpop.f32.mrf.mxu0
        %v2709 = vadd.f32 0.0, %v2708
        %2710 = vmatmul.f32.gmra.mxu0 %v2551
        %v2711 = vpop.f32.mrf.mxu0
        %v2712 = vadd.f32 0.0, %v2711
        %2713 = vmatmul.f32.gmra.mxu0 %v2554
        %v2714 = vpop.f32.mrf.mxu0
        %v2715 = vadd.f32 0.0, %v2714
        %2716 = vmatmul.f32.gmra.mxu0 %v2557
        %v2717 = vpop.f32.mrf.mxu0
        %v2718 = vadd.f32 0.0, %v2717
        %2719 = vdwg.mxu0
        %v2720 = vadd.f32 %v2317, %v2577
        %v2721 = vadd.f32 %v2318, %v2580
        %v2722 = vadd.f32 %v2319, %v2583
        %v2723 = vadd.f32 %v2320, %v2586
        %v2724 = vadd.f32 %v2321, %v2589
        %v2725 = vadd.f32 %v2322, %v2592
        %v2726 = vadd.f32 %v2323, %v2595
        %v2727 = vadd.f32 %v2324, %v2598
        %v2728 = vadd.f32 %v2325, %v2601
        %v2729 = vadd.f32 %v2326, %v2604
        %v2730 = vadd.f32 %v2327, %v2607
        %v2731 = vadd.f32 %v2328, %v2610
        %v2732 = vadd.f32 %v2329, %v2613
        %v2733 = vadd.f32 %v2330, %v2616
        %v2734 = vadd.f32 %v2331, %v2619
        %v2735 = vadd.f32 %v2332, %v2622
        %v2736 = vadd.f32 %v2333, %v2625
        %v2737 = vadd.f32 %v2334, %v2628
        %v2738 = vadd.f32 %v2335, %v2631
        %v2739 = vadd.f32 %v2336, %v2634
        %v2740 = vadd.f32 %v2337, %v2637
        %v2741 = vadd.f32 %v2338, %v2640
        %v2742 = vadd.f32 %v2339, %v2643
        %v2743 = vadd.f32 %v2340, %v2646
        %v2744 = vadd.f32 %v2341, %v2649
        %v2745 = vadd.f32 %v2342, %v2652
        %v2746 = vadd.f32 %v2343, %v2655
        %v2747 = vadd.f32 %v2344, %v2658
        %v2748 = vadd.f32 %v2345, %v2661
        %v2749 = vadd.f32 %v2346, %v2664
        %v2750 = vadd.f32 %v2347, %v2667
        %v2751 = vadd.f32 %v2348, %v2670
        %v2752 = vadd.f32 %v2349, %v2673
        %v2753 = vadd.f32 %v2350, %v2676
        %v2754 = vadd.f32 %v2351, %v2679
        %v2755 = vadd.f32 %v2352, %v2682
        %v2756 = vadd.f32 %v2353, %v2685
        %v2757 = vadd.f32 %v2354, %v2688
        %v2758 = vadd.f32 %v2355, %v2691
        %v2759 = vadd.f32 %v2356, %v2694
        %v2760 = vadd.f32 %v2357, %v2697
        %v2761 = vadd.f32 %v2358, %v2700
        %v2762 = vadd.f32 %v2359, %v2703
        %v2763 = vadd.f32 %v2360, %v2706
        %v2764 = vadd.f32 %v2361, %v2709
        %v2765 = vadd.f32 %v2362, %v2712
        %v2766 = vadd.f32 %v2363, %v2715
        %v2767 = vadd.f32 %v2364, %v2718
        %v2768 = vld [vmem:[#allocation2 + $0x1a] sm:$0xff]
        %v2769 = vld [vmem:[#allocation2 + $0x22] sm:$0xff]
        %v2770 = vld [vmem:[#allocation2 + $0x2a] sm:$0xff]
        %v2771 = vld [vmem:[#allocation2 + $0x32] sm:$0xff]
        %v2772 = vld [vmem:[#allocation2 + $0x3a] sm:$0xff]
        %v2773 = vld [vmem:[#allocation2 + $0x42] sm:$0xff]
        %v2774 = vld [vmem:[#allocation2 + $0x4a] sm:$0xff]
        %v2775 = vld [vmem:[#allocation2 + $0x52] sm:$0xff]
        %v2776 = vld [vmem:[#allocation2 + $0x5a] sm:$0xff]
        %v2777 = vld [vmem:[#allocation2 + $0x62] sm:$0xff]
        %v2778 = vld [vmem:[#allocation2 + $0x6a] sm:$0xff]
        %v2779 = vld [vmem:[#allocation2 + $0x72] sm:$0xff]
        %v2780 = vld [vmem:[#allocation2 + $0x7a] sm:$0xff]
        %v2781 = vld [vmem:[#allocation2 + $0x82] sm:$0xff]
        %v2782 = vld [vmem:[#allocation2 + $0x8a] sm:$0xff]
        %v2783 = vld [vmem:[#allocation2 + $0x92] sm:$0xff]
        %v2784 = vld [vmem:[#allocation2 + $0x9a] sm:$0xff]
        %v2785 = vld [vmem:[#allocation2 + $0xa2] sm:$0xff]
        %v2786 = vld [vmem:[#allocation2 + $0xaa] sm:$0xff]
        %v2787 = vld [vmem:[#allocation2 + $0xb2] sm:$0xff]
        %v2788 = vld [vmem:[#allocation2 + $0xba] sm:$0xff]
        %v2789 = vld [vmem:[#allocation2 + $0xc2] sm:$0xff]
        %v2790 = vld [vmem:[#allocation2 + $0xca] sm:$0xff]
        %v2791 = vld [vmem:[#allocation2 + $0xd2] sm:$0xff]
        %v2792 = vld [vmem:[#allocation2 + $0xda] sm:$0xff]
        %v2793 = vld [vmem:[#allocation2 + $0xe2] sm:$0xff]
        %v2794 = vld [vmem:[#allocation2 + $0xea] sm:$0xff]
        %v2795 = vld [vmem:[#allocation2 + $0xf2] sm:$0xff]
        %v2796 = vld [vmem:[#allocation2 + $0xfa] sm:$0xff]
        %v2797 = vld [vmem:[#allocation2 + $0x102] sm:$0xff]
        %v2798 = vld [vmem:[#allocation2 + $0x10a] sm:$0xff]
        %v2799 = vld [vmem:[#allocation2 + $0x112] sm:$0xff]
        %v2800 = vld [vmem:[#allocation2 + $0x11a] sm:$0xff]
        %v2801 = vld [vmem:[#allocation2 + $0x122] sm:$0xff]
        %v2802 = vld [vmem:[#allocation2 + $0x12a] sm:$0xff]
        %v2803 = vld [vmem:[#allocation2 + $0x132] sm:$0xff]
        %v2804 = vld [vmem:[#allocation2 + $0x13a] sm:$0xff]
        %v2805 = vld [vmem:[#allocation2 + $0x142] sm:$0xff]
        %v2806 = vld [vmem:[#allocation2 + $0x14a] sm:$0xff]
        %v2807 = vld [vmem:[#allocation2 + $0x152] sm:$0xff]
        %v2808 = vld [vmem:[#allocation2 + $0x15a] sm:$0xff]
        %v2809 = vld [vmem:[#allocation2 + $0x162] sm:$0xff]
        %v2810 = vld [vmem:[#allocation2 + $0x16a] sm:$0xff]
        %v2811 = vld [vmem:[#allocation2 + $0x172] sm:$0xff]
        %v2812 = vld [vmem:[#allocation2 + $0x17a] sm:$0xff]
        %v2813 = vld [vmem:[#allocation2 + $0x182] sm:$0xff]
        %v2814 = vld [vmem:[#allocation2 + $0x18a] sm:$0xff]
        %v2815 = vld [vmem:[#allocation2 + $0x192] sm:$0xff]
        %s2816 = scalar_lea.vmem %s3, 40
        %v2817 = vld [vmem:[%s2816] sm:$0xff]
        %v2819 = vsel %vm438, %v2768, 0
        %v2822 = vsel %vm438, %v2769, 0
        %v2825 = vsel %vm438, %v2770, 0
        %v2828 = vsel %vm438, %v2771, 0
        %v2831 = vsel %vm438, %v2772, 0
        %v2834 = vsel %vm438, %v2773, 0
        %v2837 = vsel %vm438, %v2774, 0
        %v2840 = vsel %vm438, %v2775, 0
        %v2843 = vsel %vm438, %v2776, 0
        %v2846 = vsel %vm438, %v2777, 0
        %v2849 = vsel %vm438, %v2778, 0
        %v2852 = vsel %vm438, %v2779, 0
        %v2855 = vsel %vm438, %v2780, 0
        %v2858 = vsel %vm438, %v2781, 0
        %v2861 = vsel %vm438, %v2782, 0
        %v2864 = vsel %vm438, %v2783, 0
        %v2867 = vsel %vm438, %v2784, 0
        %v2870 = vsel %vm438, %v2785, 0
        %v2873 = vsel %vm438, %v2786, 0
        %v2876 = vsel %vm438, %v2787, 0
        %v2879 = vsel %vm438, %v2788, 0
        %v2882 = vsel %vm438, %v2789, 0
        %v2885 = vsel %vm438, %v2790, 0
        %v2888 = vsel %vm438, %v2791, 0
        %v2891 = vsel %vm438, %v2792, 0
        %v2894 = vsel %vm438, %v2793, 0
        %v2897 = vsel %vm438, %v2794, 0
        %v2900 = vsel %vm438, %v2795, 0
        %v2903 = vsel %vm438, %v2796, 0
        %v2906 = vsel %vm438, %v2797, 0
        %v2909 = vsel %vm438, %v2798, 0
        %v2912 = vsel %vm438, %v2799, 0
        %v2915 = vsel %vm438, %v2800, 0
        %v2918 = vsel %vm438, %v2801, 0
        %v2921 = vsel %vm438, %v2802, 0
        %v2924 = vsel %vm438, %v2803, 0
        %v2927 = vsel %vm438, %v2804, 0
        %v2930 = vsel %vm438, %v2805, 0
        %v2933 = vsel %vm438, %v2806, 0
        %v2936 = vsel %vm438, %v2807, 0
        %v2939 = vsel %vm438, %v2808, 0
        %v2942 = vsel %vm438, %v2809, 0
        %v2945 = vsel %vm438, %v2810, 0
        %v2948 = vsel %vm438, %v2811, 0
        %v2951 = vsel %vm438, %v2812, 0
        %v2954 = vsel %vm438, %v2813, 0
        %v2957 = vsel %vm438, %v2814, 0
        %v2960 = vsel %vm438, %v2815, 0
        %2962 = vmatpush.msra.mxu0 0.0
        %2963 = vmatpush.msra.mxu0 0.0
        %2964 = vmatpush.msra.mxu0 0.0
        %2965 = vmatpush.msra.mxu0 0.0
        %2966 = vmatpush.msra.mxu0 0.0
        %2967 = vmatpush.msra.mxu0 0.0
        %2968 = vmatpush.msra.mxu0 0.0
        %2969 = vmatpush.msra.mxu0 0.0
        %2970 = vmatpush.msra.mxu0 0.0
        %2971 = vmatpush.msra.mxu0 0.0
        %2972 = vmatpush.msra.mxu0 0.0
        %2973 = vmatpush.msra.mxu0 0.0
        %2974 = vmatpush.msra.mxu0 0.0
        %2975 = vmatpush.msra.mxu0 0.0
        %2976 = vmatpush.msra.mxu0 0.0
        %2977 = vmatpush.msra.mxu0 %v2817
        %2978 = vmatmul.f32.gmra.mxu0 %v2819
        %v2979 = vpop.f32.mrf.mxu0
        %v2980 = vadd.f32 0.0, %v2979
        %2981 = vmatmul.f32.gmra.mxu0 %v2822
        %v2982 = vpop.f32.mrf.mxu0
        %v2983 = vadd.f32 0.0, %v2982
        %2984 = vmatmul.f32.gmra.mxu0 %v2825
        %v2985 = vpop.f32.mrf.mxu0
        %v2986 = vadd.f32 0.0, %v2985
        %2987 = vmatmul.f32.gmra.mxu0 %v2828
        %v2988 = vpop.f32.mrf.mxu0
        %v2989 = vadd.f32 0.0, %v2988
        %2990 = vmatmul.f32.gmra.mxu0 %v2831
        %v2991 = vpop.f32.mrf.mxu0
        %v2992 = vadd.f32 0.0, %v2991
        %2993 = vmatmul.f32.gmra.mxu0 %v2834
        %v2994 = vpop.f32.mrf.mxu0
        %v2995 = vadd.f32 0.0, %v2994
        %2996 = vmatmul.f32.gmra.mxu0 %v2837
        %v2997 = vpop.f32.mrf.mxu0
        %v2998 = vadd.f32 0.0, %v2997
        %2999 = vmatmul.f32.gmra.mxu0 %v2840
        %v3000 = vpop.f32.mrf.mxu0
        %v3001 = vadd.f32 0.0, %v3000
        %3002 = vmatmul.f32.gmra.mxu0 %v2843
        %v3003 = vpop.f32.mrf.mxu0
        %v3004 = vadd.f32 0.0, %v3003
        %3005 = vmatmul.f32.gmra.mxu0 %v2846
        %v3006 = vpop.f32.mrf.mxu0
        %v3007 = vadd.f32 0.0, %v3006
        %3008 = vmatmul.f32.gmra.mxu0 %v2849
        %v3009 = vpop.f32.mrf.mxu0
        %v3010 = vadd.f32 0.0, %v3009
        %3011 = vmatmul.f32.gmra.mxu0 %v2852
        %v3012 = vpop.f32.mrf.mxu0
        %v3013 = vadd.f32 0.0, %v3012
        %3014 = vmatmul.f32.gmra.mxu0 %v2855
        %v3015 = vpop.f32.mrf.mxu0
        %v3016 = vadd.f32 0.0, %v3015
        %3017 = vmatmul.f32.gmra.mxu0 %v2858
        %v3018 = vpop.f32.mrf.mxu0
        %v3019 = vadd.f32 0.0, %v3018
        %3020 = vmatmul.f32.gmra.mxu0 %v2861
        %v3021 = vpop.f32.mrf.mxu0
        %v3022 = vadd.f32 0.0, %v3021
        %3023 = vmatmul.f32.gmra.mxu0 %v2864
        %v3024 = vpop.f32.mrf.mxu0
        %v3025 = vadd.f32 0.0, %v3024
        %3026 = vmatmul.f32.gmra.mxu0 %v2867
        %v3027 = vpop.f32.mrf.mxu0
        %v3028 = vadd.f32 0.0, %v3027
        %3029 = vmatmul.f32.gmra.mxu0 %v2870
        %v3030 = vpop.f32.mrf.mxu0
        %v3031 = vadd.f32 0.0, %v3030
        %3032 = vmatmul.f32.gmra.mxu0 %v2873
        %v3033 = vpop.f32.mrf.mxu0
        %v3034 = vadd.f32 0.0, %v3033
        %3035 = vmatmul.f32.gmra.mxu0 %v2876
        %v3036 = vpop.f32.mrf.mxu0
        %v3037 = vadd.f32 0.0, %v3036
        %3038 = vmatmul.f32.gmra.mxu0 %v2879
        %v3039 = vpop.f32.mrf.mxu0
        %v3040 = vadd.f32 0.0, %v3039
        %3041 = vmatmul.f32.gmra.mxu0 %v2882
        %v3042 = vpop.f32.mrf.mxu0
        %v3043 = vadd.f32 0.0, %v3042
        %3044 = vmatmul.f32.gmra.mxu0 %v2885
        %v3045 = vpop.f32.mrf.mxu0
        %v3046 = vadd.f32 0.0, %v3045
        %3047 = vmatmul.f32.gmra.mxu0 %v2888
        %v3048 = vpop.f32.mrf.mxu0
        %v3049 = vadd.f32 0.0, %v3048
        %3050 = vmatmul.f32.gmra.mxu0 %v2891
        %v3051 = vpop.f32.mrf.mxu0
        %v3052 = vadd.f32 0.0, %v3051
        %3053 = vmatmul.f32.gmra.mxu0 %v2894
        %v3054 = vpop.f32.mrf.mxu0
        %v3055 = vadd.f32 0.0, %v3054
        %3056 = vmatmul.f32.gmra.mxu0 %v2897
        %v3057 = vpop.f32.mrf.mxu0
        %v3058 = vadd.f32 0.0, %v3057
        %3059 = vmatmul.f32.gmra.mxu0 %v2900
        %v3060 = vpop.f32.mrf.mxu0
        %v3061 = vadd.f32 0.0, %v3060
        %3062 = vmatmul.f32.gmra.mxu0 %v2903
        %v3063 = vpop.f32.mrf.mxu0
        %v3064 = vadd.f32 0.0, %v3063
        %3065 = vmatmul.f32.gmra.mxu0 %v2906
        %v3066 = vpop.f32.mrf.mxu0
        %v3067 = vadd.f32 0.0, %v3066
        %3068 = vmatmul.f32.gmra.mxu0 %v2909
        %v3069 = vpop.f32.mrf.mxu0
        %v3070 = vadd.f32 0.0, %v3069
        %3071 = vmatmul.f32.gmra.mxu0 %v2912
        %v3072 = vpop.f32.mrf.mxu0
        %v3073 = vadd.f32 0.0, %v3072
        %3074 = vmatmul.f32.gmra.mxu0 %v2915
        %v3075 = vpop.f32.mrf.mxu0
        %v3076 = vadd.f32 0.0, %v3075
        %3077 = vmatmul.f32.gmra.mxu0 %v2918
        %v3078 = vpop.f32.mrf.mxu0
        %v3079 = vadd.f32 0.0, %v3078
        %3080 = vmatmul.f32.gmra.mxu0 %v2921
        %v3081 = vpop.f32.mrf.mxu0
        %v3082 = vadd.f32 0.0, %v3081
        %3083 = vmatmul.f32.gmra.mxu0 %v2924
        %v3084 = vpop.f32.mrf.mxu0
        %v3085 = vadd.f32 0.0, %v3084
        %3086 = vmatmul.f32.gmra.mxu0 %v2927
        %v3087 = vpop.f32.mrf.mxu0
        %v3088 = vadd.f32 0.0, %v3087
        %3089 = vmatmul.f32.gmra.mxu0 %v2930
        %v3090 = vpop.f32.mrf.mxu0
        %v3091 = vadd.f32 0.0, %v3090
        %3092 = vmatmul.f32.gmra.mxu0 %v2933
        %v3093 = vpop.f32.mrf.mxu0
        %v3094 = vadd.f32 0.0, %v3093
        %3095 = vmatmul.f32.gmra.mxu0 %v2936
        %v3096 = vpop.f32.mrf.mxu0
        %v3097 = vadd.f32 0.0, %v3096
        %3098 = vmatmul.f32.gmra.mxu0 %v2939
        %v3099 = vpop.f32.mrf.mxu0
        %v3100 = vadd.f32 0.0, %v3099
        %3101 = vmatmul.f32.gmra.mxu0 %v2942
        %v3102 = vpop.f32.mrf.mxu0
        %v3103 = vadd.f32 0.0, %v3102
        %3104 = vmatmul.f32.gmra.mxu0 %v2945
        %v3105 = vpop.f32.mrf.mxu0
        %v3106 = vadd.f32 0.0, %v3105
        %3107 = vmatmul.f32.gmra.mxu0 %v2948
        %v3108 = vpop.f32.mrf.mxu0
        %v3109 = vadd.f32 0.0, %v3108
        %3110 = vmatmul.f32.gmra.mxu0 %v2951
        %v3111 = vpop.f32.mrf.mxu0
        %v3112 = vadd.f32 0.0, %v3111
        %3113 = vmatmul.f32.gmra.mxu0 %v2954
        %v3114 = vpop.f32.mrf.mxu0
        %v3115 = vadd.f32 0.0, %v3114
        %3116 = vmatmul.f32.gmra.mxu0 %v2957
        %v3117 = vpop.f32.mrf.mxu0
        %v3118 = vadd.f32 0.0, %v3117
        %3119 = vmatmul.f32.gmra.mxu0 %v2960
        %v3120 = vpop.f32.mrf.mxu0
        %v3121 = vadd.f32 0.0, %v3120
        %3122 = vdwg.mxu0
        %v3123 = vadd.f32 %v2720, %v2980
        %v3124 = vadd.f32 %v2721, %v2983
        %v3125 = vadd.f32 %v2722, %v2986
        %v3126 = vadd.f32 %v2723, %v2989
        %v3127 = vadd.f32 %v2724, %v2992
        %v3128 = vadd.f32 %v2725, %v2995
        %v3129 = vadd.f32 %v2726, %v2998
        %v3130 = vadd.f32 %v2727, %v3001
        %v3131 = vadd.f32 %v2728, %v3004
        %v3132 = vadd.f32 %v2729, %v3007
        %v3133 = vadd.f32 %v2730, %v3010
        %v3134 = vadd.f32 %v2731, %v3013
        %v3135 = vadd.f32 %v2732, %v3016
        %v3136 = vadd.f32 %v2733, %v3019
        %v3137 = vadd.f32 %v2734, %v3022
        %v3138 = vadd.f32 %v2735, %v3025
        %v3139 = vadd.f32 %v2736, %v3028
        %v3140 = vadd.f32 %v2737, %v3031
        %v3141 = vadd.f32 %v2738, %v3034
        %v3142 = vadd.f32 %v2739, %v3037
        %v3143 = vadd.f32 %v2740, %v3040
        %v3144 = vadd.f32 %v2741, %v3043
        %v3145 = vadd.f32 %v2742, %v3046
        %v3146 = vadd.f32 %v2743, %v3049
        %v3147 = vadd.f32 %v2744, %v3052
        %v3148 = vadd.f32 %v2745, %v3055
        %v3149 = vadd.f32 %v2746, %v3058
        %v3150 = vadd.f32 %v2747, %v3061
        %v3151 = vadd.f32 %v2748, %v3064
        %v3152 = vadd.f32 %v2749, %v3067
        %v3153 = vadd.f32 %v2750, %v3070
        %v3154 = vadd.f32 %v2751, %v3073
        %v3155 = vadd.f32 %v2752, %v3076
        %v3156 = vadd.f32 %v2753, %v3079
        %v3157 = vadd.f32 %v2754, %v3082
        %v3158 = vadd.f32 %v2755, %v3085
        %v3159 = vadd.f32 %v2756, %v3088
        %v3160 = vadd.f32 %v2757, %v3091
        %v3161 = vadd.f32 %v2758, %v3094
        %v3162 = vadd.f32 %v2759, %v3097
        %v3163 = vadd.f32 %v2760, %v3100
        %v3164 = vadd.f32 %v2761, %v3103
        %v3165 = vadd.f32 %v2762, %v3106
        %v3166 = vadd.f32 %v2763, %v3109
        %v3167 = vadd.f32 %v2764, %v3112
        %v3168 = vadd.f32 %v2765, %v3115
        %v3169 = vadd.f32 %v2766, %v3118
        %v3170 = vadd.f32 %v2767, %v3121
        %v3171 = vld [vmem:[#allocation2 + $0x30] sm:$0xff]
        %v3172 = vld [vmem:[#allocation2 + $0x38] sm:$0xff]
        %v3173 = vld [vmem:[#allocation2 + $0x40] sm:$0xff]
        %v3174 = vld [vmem:[#allocation2 + $0x48] sm:$0xff]
        %v3175 = vld [vmem:[#allocation2 + $0x50] sm:$0xff]
        %v3176 = vld [vmem:[#allocation2 + $0x58] sm:$0xff]
        %v3177 = vld [vmem:[#allocation2 + $0x60] sm:$0xff]
        %v3178 = vld [vmem:[#allocation2 + $0x68] sm:$0xff]
        %v3179 = vld [vmem:[#allocation2 + $0x70] sm:$0xff]
        %v3180 = vld [vmem:[#allocation2 + $0x78] sm:$0xff]
        %v3181 = vld [vmem:[#allocation2 + $0x80] sm:$0xff]
        %v3182 = vld [vmem:[#allocation2 + $0x88] sm:$0xff]
        %v3183 = vld [vmem:[#allocation2 + $0x90] sm:$0xff]
        %v3184 = vld [vmem:[#allocation2 + $0x98] sm:$0xff]
        %v3185 = vld [vmem:[#allocation2 + $0xa0] sm:$0xff]
        %v3186 = vld [vmem:[#allocation2 + $0xa8] sm:$0xff]
        %v3187 = vld [vmem:[#allocation2 + $0xb0] sm:$0xff]
        %v3188 = vld [vmem:[#allocation2 + $0xb8] sm:$0xff]
        %v3189 = vld [vmem:[#allocation2 + $0xc0] sm:$0xff]
        %v3190 = vld [vmem:[#allocation2 + $0xc8] sm:$0xff]
        %v3191 = vld [vmem:[#allocation2 + $0xd0] sm:$0xff]
        %v3192 = vld [vmem:[#allocation2 + $0xd8] sm:$0xff]
        %v3193 = vld [vmem:[#allocation2 + $0xe0] sm:$0xff]
        %v3194 = vld [vmem:[#allocation2 + $0xe8] sm:$0xff]
        %v3195 = vld [vmem:[#allocation2 + $0xf0] sm:$0xff]
        %v3196 = vld [vmem:[#allocation2 + $0xf8] sm:$0xff]
        %v3197 = vld [vmem:[#allocation2 + $0x100] sm:$0xff]
        %v3198 = vld [vmem:[#allocation2 + $0x108] sm:$0xff]
        %v3199 = vld [vmem:[#allocation2 + $0x110] sm:$0xff]
        %v3200 = vld [vmem:[#allocation2 + $0x118] sm:$0xff]
        %v3201 = vld [vmem:[#allocation2 + $0x120] sm:$0xff]
        %v3202 = vld [vmem:[#allocation2 + $0x128] sm:$0xff]
        %v3203 = vld [vmem:[#allocation2 + $0x130] sm:$0xff]
        %v3204 = vld [vmem:[#allocation2 + $0x138] sm:$0xff]
        %v3205 = vld [vmem:[#allocation2 + $0x140] sm:$0xff]
        %v3206 = vld [vmem:[#allocation2 + $0x148] sm:$0xff]
        %v3207 = vld [vmem:[#allocation2 + $0x150] sm:$0xff]
        %v3208 = vld [vmem:[#allocation2 + $0x158] sm:$0xff]
        %v3209 = vld [vmem:[#allocation2 + $0x160] sm:$0xff]
        %v3210 = vld [vmem:[#allocation2 + $0x168] sm:$0xff]
        %v3211 = vld [vmem:[#allocation2 + $0x170] sm:$0xff]
        %v3212 = vld [vmem:[#allocation2 + $0x178] sm:$0xff]
        %v3213 = vld [vmem:[#allocation2 + $0x180] sm:$0xff]
        %v3214 = vld [vmem:[#allocation2 + $0x188] sm:$0xff]
        %v3215 = vld [vmem:[#allocation2 + $0x190] sm:$0xff]
        %v3216 = vld [vmem:[#allocation2 + $0x198] sm:$0xff]
        %v3217 = vld [vmem:[#allocation2 + $0x1a0] sm:$0xff]
        %v3218 = vld [vmem:[#allocation2 + $0x1a8] sm:$0xff]
        %s3219 = scalar_lea.vmem %s3, 48
        %v3220 = vld [vmem:[%s3219] sm:$0xff]
        %v3222 = vsel %vm438, %v3171, 0
        %v3225 = vsel %vm438, %v3172, 0
        %v3228 = vsel %vm438, %v3173, 0
        %v3231 = vsel %vm438, %v3174, 0
        %v3234 = vsel %vm438, %v3175, 0
        %v3237 = vsel %vm438, %v3176, 0
        %v3240 = vsel %vm438, %v3177, 0
        %v3243 = vsel %vm438, %v3178, 0
        %v3246 = vsel %vm438, %v3179, 0
        %v3249 = vsel %vm438, %v3180, 0
        %v3252 = vsel %vm438, %v3181, 0
        %v3255 = vsel %vm438, %v3182, 0
        %v3258 = vsel %vm438, %v3183, 0
        %v3261 = vsel %vm438, %v3184, 0
        %v3264 = vsel %vm438, %v3185, 0
        %v3267 = vsel %vm438, %v3186, 0
        %v3270 = vsel %vm438, %v3187, 0
        %v3273 = vsel %vm438, %v3188, 0
        %v3276 = vsel %vm438, %v3189, 0
        %v3279 = vsel %vm438, %v3190, 0
        %v3282 = vsel %vm438, %v3191, 0
        %v3285 = vsel %vm438, %v3192, 0
        %v3288 = vsel %vm438, %v3193, 0
        %v3291 = vsel %vm438, %v3194, 0
        %v3294 = vsel %vm438, %v3195, 0
        %v3297 = vsel %vm438, %v3196, 0
        %v3300 = vsel %vm438, %v3197, 0
        %v3303 = vsel %vm438, %v3198, 0
        %v3306 = vsel %vm438, %v3199, 0
        %v3309 = vsel %vm438, %v3200, 0
        %v3312 = vsel %vm438, %v3201, 0
        %v3315 = vsel %vm438, %v3202, 0
        %v3318 = vsel %vm438, %v3203, 0
        %v3321 = vsel %vm438, %v3204, 0
        %v3324 = vsel %vm438, %v3205, 0
        %v3327 = vsel %vm438, %v3206, 0
        %v3330 = vsel %vm438, %v3207, 0
        %v3333 = vsel %vm438, %v3208, 0
        %v3336 = vsel %vm438, %v3209, 0
        %v3339 = vsel %vm438, %v3210, 0
        %v3342 = vsel %vm438, %v3211, 0
        %v3345 = vsel %vm438, %v3212, 0
        %v3348 = vsel %vm438, %v3213, 0
        %v3351 = vsel %vm438, %v3214, 0
        %v3354 = vsel %vm438, %v3215, 0
        %v3357 = vsel %vm438, %v3216, 0
        %v3360 = vsel %vm438, %v3217, 0
        %v3363 = vsel %vm438, %v3218, 0
        %3365 = vmatpush.msra.mxu0 0.0
        %3366 = vmatpush.msra.mxu0 0.0
        %3367 = vmatpush.msra.mxu0 0.0
        %3368 = vmatpush.msra.mxu0 0.0
        %3369 = vmatpush.msra.mxu0 0.0
        %3370 = vmatpush.msra.mxu0 0.0
        %3371 = vmatpush.msra.mxu0 0.0
        %3372 = vmatpush.msra.mxu0 0.0
        %3373 = vmatpush.msra.mxu0 0.0
        %3374 = vmatpush.msra.mxu0 0.0
        %3375 = vmatpush.msra.mxu0 0.0
        %3376 = vmatpush.msra.mxu0 0.0
        %3377 = vmatpush.msra.mxu0 0.0
        %3378 = vmatpush.msra.mxu0 0.0
        %3379 = vmatpush.msra.mxu0 0.0
        %3380 = vmatpush.msra.mxu0 %v3220
        %3381 = vmatmul.f32.gmra.mxu0 %v3222
        %v3382 = vpop.f32.mrf.mxu0
        %v3383 = vadd.f32 0.0, %v3382
        %3384 = vmatmul.f32.gmra.mxu0 %v3225
        %v3385 = vpop.f32.mrf.mxu0
        %v3386 = vadd.f32 0.0, %v3385
        %3387 = vmatmul.f32.gmra.mxu0 %v3228
        %v3388 = vpop.f32.mrf.mxu0
        %v3389 = vadd.f32 0.0, %v3388
        %3390 = vmatmul.f32.gmra.mxu0 %v3231
        %v3391 = vpop.f32.mrf.mxu0
        %v3392 = vadd.f32 0.0, %v3391
        %3393 = vmatmul.f32.gmra.mxu0 %v3234
        %v3394 = vpop.f32.mrf.mxu0
        %v3395 = vadd.f32 0.0, %v3394
        %3396 = vmatmul.f32.gmra.mxu0 %v3237
        %v3397 = vpop.f32.mrf.mxu0
        %v3398 = vadd.f32 0.0, %v3397
        %3399 = vmatmul.f32.gmra.mxu0 %v3240
        %v3400 = vpop.f32.mrf.mxu0
        %v3401 = vadd.f32 0.0, %v3400
        %3402 = vmatmul.f32.gmra.mxu0 %v3243
        %v3403 = vpop.f32.mrf.mxu0
        %v3404 = vadd.f32 0.0, %v3403
        %3405 = vmatmul.f32.gmra.mxu0 %v3246
        %v3406 = vpop.f32.mrf.mxu0
        %v3407 = vadd.f32 0.0, %v3406
        %3408 = vmatmul.f32.gmra.mxu0 %v3249
        %v3409 = vpop.f32.mrf.mxu0
        %v3410 = vadd.f32 0.0, %v3409
        %3411 = vmatmul.f32.gmra.mxu0 %v3252
        %v3412 = vpop.f32.mrf.mxu0
        %v3413 = vadd.f32 0.0, %v3412
        %3414 = vmatmul.f32.gmra.mxu0 %v3255
        %v3415 = vpop.f32.mrf.mxu0
        %v3416 = vadd.f32 0.0, %v3415
        %3417 = vmatmul.f32.gmra.mxu0 %v3258
        %v3418 = vpop.f32.mrf.mxu0
        %v3419 = vadd.f32 0.0, %v3418
        %3420 = vmatmul.f32.gmra.mxu0 %v3261
        %v3421 = vpop.f32.mrf.mxu0
        %v3422 = vadd.f32 0.0, %v3421
        %3423 = vmatmul.f32.gmra.mxu0 %v3264
        %v3424 = vpop.f32.mrf.mxu0
        %v3425 = vadd.f32 0.0, %v3424
        %3426 = vmatmul.f32.gmra.mxu0 %v3267
        %v3427 = vpop.f32.mrf.mxu0
        %v3428 = vadd.f32 0.0, %v3427
        %3429 = vmatmul.f32.gmra.mxu0 %v3270
        %v3430 = vpop.f32.mrf.mxu0
        %v3431 = vadd.f32 0.0, %v3430
        %3432 = vmatmul.f32.gmra.mxu0 %v3273
        %v3433 = vpop.f32.mrf.mxu0
        %v3434 = vadd.f32 0.0, %v3433
        %3435 = vmatmul.f32.gmra.mxu0 %v3276
        %v3436 = vpop.f32.mrf.mxu0
        %v3437 = vadd.f32 0.0, %v3436
        %3438 = vmatmul.f32.gmra.mxu0 %v3279
        %v3439 = vpop.f32.mrf.mxu0
        %v3440 = vadd.f32 0.0, %v3439
        %3441 = vmatmul.f32.gmra.mxu0 %v3282
        %v3442 = vpop.f32.mrf.mxu0
        %v3443 = vadd.f32 0.0, %v3442
        %3444 = vmatmul.f32.gmra.mxu0 %v3285
        %v3445 = vpop.f32.mrf.mxu0
        %v3446 = vadd.f32 0.0, %v3445
        %3447 = vmatmul.f32.gmra.mxu0 %v3288
        %v3448 = vpop.f32.mrf.mxu0
        %v3449 = vadd.f32 0.0, %v3448
        %3450 = vmatmul.f32.gmra.mxu0 %v3291
        %v3451 = vpop.f32.mrf.mxu0
        %v3452 = vadd.f32 0.0, %v3451
        %3453 = vmatmul.f32.gmra.mxu0 %v3294
        %v3454 = vpop.f32.mrf.mxu0
        %v3455 = vadd.f32 0.0, %v3454
        %3456 = vmatmul.f32.gmra.mxu0 %v3297
        %v3457 = vpop.f32.mrf.mxu0
        %v3458 = vadd.f32 0.0, %v3457
        %3459 = vmatmul.f32.gmra.mxu0 %v3300
        %v3460 = vpop.f32.mrf.mxu0
        %v3461 = vadd.f32 0.0, %v3460
        %3462 = vmatmul.f32.gmra.mxu0 %v3303
        %v3463 = vpop.f32.mrf.mxu0
        %v3464 = vadd.f32 0.0, %v3463
        %3465 = vmatmul.f32.gmra.mxu0 %v3306
        %v3466 = vpop.f32.mrf.mxu0
        %v3467 = vadd.f32 0.0, %v3466
        %3468 = vmatmul.f32.gmra.mxu0 %v3309
        %v3469 = vpop.f32.mrf.mxu0
        %v3470 = vadd.f32 0.0, %v3469
        %3471 = vmatmul.f32.gmra.mxu0 %v3312
        %v3472 = vpop.f32.mrf.mxu0
        %v3473 = vadd.f32 0.0, %v3472
        %3474 = vmatmul.f32.gmra.mxu0 %v3315
        %v3475 = vpop.f32.mrf.mxu0
        %v3476 = vadd.f32 0.0, %v3475
        %3477 = vmatmul.f32.gmra.mxu0 %v3318
        %v3478 = vpop.f32.mrf.mxu0
        %v3479 = vadd.f32 0.0, %v3478
        %3480 = vmatmul.f32.gmra.mxu0 %v3321
        %v3481 = vpop.f32.mrf.mxu0
        %v3482 = vadd.f32 0.0, %v3481
        %3483 = vmatmul.f32.gmra.mxu0 %v3324
        %v3484 = vpop.f32.mrf.mxu0
        %v3485 = vadd.f32 0.0, %v3484
        %3486 = vmatmul.f32.gmra.mxu0 %v3327
        %v3487 = vpop.f32.mrf.mxu0
        %v3488 = vadd.f32 0.0, %v3487
        %3489 = vmatmul.f32.gmra.mxu0 %v3330
        %v3490 = vpop.f32.mrf.mxu0
        %v3491 = vadd.f32 0.0, %v3490
        %3492 = vmatmul.f32.gmra.mxu0 %v3333
        %v3493 = vpop.f32.mrf.mxu0
        %v3494 = vadd.f32 0.0, %v3493
        %3495 = vmatmul.f32.gmra.mxu0 %v3336
        %v3496 = vpop.f32.mrf.mxu0
        %v3497 = vadd.f32 0.0, %v3496
        %3498 = vmatmul.f32.gmra.mxu0 %v3339
        %v3499 = vpop.f32.mrf.mxu0
        %v3500 = vadd.f32 0.0, %v3499
        %3501 = vmatmul.f32.gmra.mxu0 %v3342
        %v3502 = vpop.f32.mrf.mxu0
        %v3503 = vadd.f32 0.0, %v3502
        %3504 = vmatmul.f32.gmra.mxu0 %v3345
        %v3505 = vpop.f32.mrf.mxu0
        %v3506 = vadd.f32 0.0, %v3505
        %3507 = vmatmul.f32.gmra.mxu0 %v3348
        %v3508 = vpop.f32.mrf.mxu0
        %v3509 = vadd.f32 0.0, %v3508
        %3510 = vmatmul.f32.gmra.mxu0 %v3351
        %v3511 = vpop.f32.mrf.mxu0
        %v3512 = vadd.f32 0.0, %v3511
        %3513 = vmatmul.f32.gmra.mxu0 %v3354
        %v3514 = vpop.f32.mrf.mxu0
        %v3515 = vadd.f32 0.0, %v3514
        %3516 = vmatmul.f32.gmra.mxu0 %v3357
        %v3517 = vpop.f32.mrf.mxu0
        %v3518 = vadd.f32 0.0, %v3517
        %3519 = vmatmul.f32.gmra.mxu0 %v3360
        %v3520 = vpop.f32.mrf.mxu0
        %v3521 = vadd.f32 0.0, %v3520
        %3522 = vmatmul.f32.gmra.mxu0 %v3363
        %v3523 = vpop.f32.mrf.mxu0
        %v3524 = vadd.f32 0.0, %v3523
        %3525 = vdwg.mxu0
        %v3526 = vadd.f32 %v3123, %v3383
        %v3527 = vadd.f32 %v3124, %v3386
        %v3528 = vadd.f32 %v3125, %v3389
        %v3529 = vadd.f32 %v3126, %v3392
        %v3530 = vadd.f32 %v3127, %v3395
        %v3531 = vadd.f32 %v3128, %v3398
        %v3532 = vadd.f32 %v3129, %v3401
        %v3533 = vadd.f32 %v3130, %v3404
        %v3534 = vadd.f32 %v3131, %v3407
        %v3535 = vadd.f32 %v3132, %v3410
        %v3536 = vadd.f32 %v3133, %v3413
        %v3537 = vadd.f32 %v3134, %v3416
        %v3538 = vadd.f32 %v3135, %v3419
        %v3539 = vadd.f32 %v3136, %v3422
        %v3540 = vadd.f32 %v3137, %v3425
        %v3541 = vadd.f32 %v3138, %v3428
        %v3542 = vadd.f32 %v3139, %v3431
        %v3543 = vadd.f32 %v3140, %v3434
        %v3544 = vadd.f32 %v3141, %v3437
        %v3545 = vadd.f32 %v3142, %v3440
        %v3546 = vadd.f32 %v3143, %v3443
        %v3547 = vadd.f32 %v3144, %v3446
        %v3548 = vadd.f32 %v3145, %v3449
        %v3549 = vadd.f32 %v3146, %v3452
        %v3550 = vadd.f32 %v3147, %v3455
        %v3551 = vadd.f32 %v3148, %v3458
        %v3552 = vadd.f32 %v3149, %v3461
        %v3553 = vadd.f32 %v3150, %v3464
        %v3554 = vadd.f32 %v3151, %v3467
        %v3555 = vadd.f32 %v3152, %v3470
        %v3556 = vadd.f32 %v3153, %v3473
        %v3557 = vadd.f32 %v3154, %v3476
        %v3558 = vadd.f32 %v3155, %v3479
        %v3559 = vadd.f32 %v3156, %v3482
        %v3560 = vadd.f32 %v3157, %v3485
        %v3561 = vadd.f32 %v3158, %v3488
        %v3562 = vadd.f32 %v3159, %v3491
        %v3563 = vadd.f32 %v3160, %v3494
        %v3564 = vadd.f32 %v3161, %v3497
        %v3565 = vadd.f32 %v3162, %v3500
        %v3566 = vadd.f32 %v3163, %v3503
        %v3567 = vadd.f32 %v3164, %v3506
        %v3568 = vadd.f32 %v3165, %v3509
        %v3569 = vadd.f32 %v3166, %v3512
        %v3570 = vadd.f32 %v3167, %v3515
        %v3571 = vadd.f32 %v3168, %v3518
        %v3572 = vadd.f32 %v3169, %v3521
        %v3573 = vadd.f32 %v3170, %v3524
        %v3574 = vld [vmem:[#allocation2 + $0x31] sm:$0xff]
        %v3575 = vld [vmem:[#allocation2 + $0x39] sm:$0xff]
        %v3576 = vld [vmem:[#allocation2 + $0x41] sm:$0xff]
        %v3577 = vld [vmem:[#allocation2 + $0x49] sm:$0xff]
        %v3578 = vld [vmem:[#allocation2 + $0x51] sm:$0xff]
        %v3579 = vld [vmem:[#allocation2 + $0x59] sm:$0xff]
        %v3580 = vld [vmem:[#allocation2 + $0x61] sm:$0xff]
        %v3581 = vld [vmem:[#allocation2 + $0x69] sm:$0xff]
        %v3582 = vld [vmem:[#allocation2 + $0x71] sm:$0xff]
        %v3583 = vld [vmem:[#allocation2 + $0x79] sm:$0xff]
        %v3584 = vld [vmem:[#allocation2 + $0x81] sm:$0xff]
        %v3585 = vld [vmem:[#allocation2 + $0x89] sm:$0xff]
        %v3586 = vld [vmem:[#allocation2 + $0x91] sm:$0xff]
        %v3587 = vld [vmem:[#allocation2 + $0x99] sm:$0xff]
        %v3588 = vld [vmem:[#allocation2 + $0xa1] sm:$0xff]
        %v3589 = vld [vmem:[#allocation2 + $0xa9] sm:$0xff]
        %v3590 = vld [vmem:[#allocation2 + $0xb1] sm:$0xff]
        %v3591 = vld [vmem:[#allocation2 + $0xb9] sm:$0xff]
        %v3592 = vld [vmem:[#allocation2 + $0xc1] sm:$0xff]
        %v3593 = vld [vmem:[#allocation2 + $0xc9] sm:$0xff]
        %v3594 = vld [vmem:[#allocation2 + $0xd1] sm:$0xff]
        %v3595 = vld [vmem:[#allocation2 + $0xd9] sm:$0xff]
        %v3596 = vld [vmem:[#allocation2 + $0xe1] sm:$0xff]
        %v3597 = vld [vmem:[#allocation2 + $0xe9] sm:$0xff]
        %v3598 = vld [vmem:[#allocation2 + $0xf1] sm:$0xff]
        %v3599 = vld [vmem:[#allocation2 + $0xf9] sm:$0xff]
        %v3600 = vld [vmem:[#allocation2 + $0x101] sm:$0xff]
        %v3601 = vld [vmem:[#allocation2 + $0x109] sm:$0xff]
        %v3602 = vld [vmem:[#allocation2 + $0x111] sm:$0xff]
        %v3603 = vld [vmem:[#allocation2 + $0x119] sm:$0xff]
        %v3604 = vld [vmem:[#allocation2 + $0x121] sm:$0xff]
        %v3605 = vld [vmem:[#allocation2 + $0x129] sm:$0xff]
        %v3606 = vld [vmem:[#allocation2 + $0x131] sm:$0xff]
        %v3607 = vld [vmem:[#allocation2 + $0x139] sm:$0xff]
        %v3608 = vld [vmem:[#allocation2 + $0x141] sm:$0xff]
        %v3609 = vld [vmem:[#allocation2 + $0x149] sm:$0xff]
        %v3610 = vld [vmem:[#allocation2 + $0x151] sm:$0xff]
        %v3611 = vld [vmem:[#allocation2 + $0x159] sm:$0xff]
        %v3612 = vld [vmem:[#allocation2 + $0x161] sm:$0xff]
        %v3613 = vld [vmem:[#allocation2 + $0x169] sm:$0xff]
        %v3614 = vld [vmem:[#allocation2 + $0x171] sm:$0xff]
        %v3615 = vld [vmem:[#allocation2 + $0x179] sm:$0xff]
        %v3616 = vld [vmem:[#allocation2 + $0x181] sm:$0xff]
        %v3617 = vld [vmem:[#allocation2 + $0x189] sm:$0xff]
        %v3618 = vld [vmem:[#allocation2 + $0x191] sm:$0xff]
        %v3619 = vld [vmem:[#allocation2 + $0x199] sm:$0xff]
        %v3620 = vld [vmem:[#allocation2 + $0x1a1] sm:$0xff]
        %v3621 = vld [vmem:[#allocation2 + $0x1a9] sm:$0xff]
        %s3622 = scalar_lea.vmem %s3, 56
        %v3623 = vld [vmem:[%s3622] sm:$0xff]
        %v3625 = vsel %vm438, %v3574, 0
        %v3628 = vsel %vm438, %v3575, 0
        %v3631 = vsel %vm438, %v3576, 0
        %v3634 = vsel %vm438, %v3577, 0
        %v3637 = vsel %vm438, %v3578, 0
        %v3640 = vsel %vm438, %v3579, 0
        %v3643 = vsel %vm438, %v3580, 0
        %v3646 = vsel %vm438, %v3581, 0
        %v3649 = vsel %vm438, %v3582, 0
        %v3652 = vsel %vm438, %v3583, 0
        %v3655 = vsel %vm438, %v3584, 0
        %v3658 = vsel %vm438, %v3585, 0
        %v3661 = vsel %vm438, %v3586, 0
        %v3664 = vsel %vm438, %v3587, 0
        %v3667 = vsel %vm438, %v3588, 0
        %v3670 = vsel %vm438, %v3589, 0
        %v3673 = vsel %vm438, %v3590, 0
        %v3676 = vsel %vm438, %v3591, 0
        %v3679 = vsel %vm438, %v3592, 0
        %v3682 = vsel %vm438, %v3593, 0
        %v3685 = vsel %vm438, %v3594, 0
        %v3688 = vsel %vm438, %v3595, 0
        %v3691 = vsel %vm438, %v3596, 0
        %v3694 = vsel %vm438, %v3597, 0
        %v3697 = vsel %vm438, %v3598, 0
        %v3700 = vsel %vm438, %v3599, 0
        %v3703 = vsel %vm438, %v3600, 0
        %v3706 = vsel %vm438, %v3601, 0
        %v3709 = vsel %vm438, %v3602, 0
        %v3712 = vsel %vm438, %v3603, 0
        %v3715 = vsel %vm438, %v3604, 0
        %v3718 = vsel %vm438, %v3605, 0
        %v3721 = vsel %vm438, %v3606, 0
        %v3724 = vsel %vm438, %v3607, 0
        %v3727 = vsel %vm438, %v3608, 0
        %v3730 = vsel %vm438, %v3609, 0
        %v3733 = vsel %vm438, %v3610, 0
        %v3736 = vsel %vm438, %v3611, 0
        %v3739 = vsel %vm438, %v3612, 0
        %v3742 = vsel %vm438, %v3613, 0
        %v3745 = vsel %vm438, %v3614, 0
        %v3748 = vsel %vm438, %v3615, 0
        %v3751 = vsel %vm438, %v3616, 0
        %v3754 = vsel %vm438, %v3617, 0
        %v3757 = vsel %vm438, %v3618, 0
        %v3760 = vsel %vm438, %v3619, 0
        %v3763 = vsel %vm438, %v3620, 0
        %v3766 = vsel %vm438, %v3621, 0
        %3768 = vmatpush.msra.mxu0 0.0
        %3769 = vmatpush.msra.mxu0 0.0
        %3770 = vmatpush.msra.mxu0 0.0
        %3771 = vmatpush.msra.mxu0 0.0
        %3772 = vmatpush.msra.mxu0 0.0
        %3773 = vmatpush.msra.mxu0 0.0
        %3774 = vmatpush.msra.mxu0 0.0
        %3775 = vmatpush.msra.mxu0 0.0
        %3776 = vmatpush.msra.mxu0 0.0
        %3777 = vmatpush.msra.mxu0 0.0
        %3778 = vmatpush.msra.mxu0 0.0
        %3779 = vmatpush.msra.mxu0 0.0
        %3780 = vmatpush.msra.mxu0 0.0
        %3781 = vmatpush.msra.mxu0 0.0
        %3782 = vmatpush.msra.mxu0 0.0
        %3783 = vmatpush.msra.mxu0 %v3623
        %3784 = vmatmul.f32.gmra.mxu0 %v3625
        %v3785 = vpop.f32.mrf.mxu0
        %v3786 = vadd.f32 0.0, %v3785
        %3787 = vmatmul.f32.gmra.mxu0 %v3628
        %v3788 = vpop.f32.mrf.mxu0
        %v3789 = vadd.f32 0.0, %v3788
        %3790 = vmatmul.f32.gmra.mxu0 %v3631
        %v3791 = vpop.f32.mrf.mxu0
        %v3792 = vadd.f32 0.0, %v3791
        %3793 = vmatmul.f32.gmra.mxu0 %v3634
        %v3794 = vpop.f32.mrf.mxu0
        %v3795 = vadd.f32 0.0, %v3794
        %3796 = vmatmul.f32.gmra.mxu0 %v3637
        %v3797 = vpop.f32.mrf.mxu0
        %v3798 = vadd.f32 0.0, %v3797
        %3799 = vmatmul.f32.gmra.mxu0 %v3640
        %v3800 = vpop.f32.mrf.mxu0
        %v3801 = vadd.f32 0.0, %v3800
        %3802 = vmatmul.f32.gmra.mxu0 %v3643
        %v3803 = vpop.f32.mrf.mxu0
        %v3804 = vadd.f32 0.0, %v3803
        %3805 = vmatmul.f32.gmra.mxu0 %v3646
        %v3806 = vpop.f32.mrf.mxu0
        %v3807 = vadd.f32 0.0, %v3806
        %3808 = vmatmul.f32.gmra.mxu0 %v3649
        %v3809 = vpop.f32.mrf.mxu0
        %v3810 = vadd.f32 0.0, %v3809
        %3811 = vmatmul.f32.gmra.mxu0 %v3652
        %v3812 = vpop.f32.mrf.mxu0
        %v3813 = vadd.f32 0.0, %v3812
        %3814 = vmatmul.f32.gmra.mxu0 %v3655
        %v3815 = vpop.f32.mrf.mxu0
        %v3816 = vadd.f32 0.0, %v3815
        %3817 = vmatmul.f32.gmra.mxu0 %v3658
        %v3818 = vpop.f32.mrf.mxu0
        %v3819 = vadd.f32 0.0, %v3818
        %3820 = vmatmul.f32.gmra.mxu0 %v3661
        %v3821 = vpop.f32.mrf.mxu0
        %v3822 = vadd.f32 0.0, %v3821
        %3823 = vmatmul.f32.gmra.mxu0 %v3664
        %v3824 = vpop.f32.mrf.mxu0
        %v3825 = vadd.f32 0.0, %v3824
        %3826 = vmatmul.f32.gmra.mxu0 %v3667
        %v3827 = vpop.f32.mrf.mxu0
        %v3828 = vadd.f32 0.0, %v3827
        %3829 = vmatmul.f32.gmra.mxu0 %v3670
        %v3830 = vpop.f32.mrf.mxu0
        %v3831 = vadd.f32 0.0, %v3830
        %3832 = vmatmul.f32.gmra.mxu0 %v3673
        %v3833 = vpop.f32.mrf.mxu0
        %v3834 = vadd.f32 0.0, %v3833
        %3835 = vmatmul.f32.gmra.mxu0 %v3676
        %v3836 = vpop.f32.mrf.mxu0
        %v3837 = vadd.f32 0.0, %v3836
        %3838 = vmatmul.f32.gmra.mxu0 %v3679
        %v3839 = vpop.f32.mrf.mxu0
        %v3840 = vadd.f32 0.0, %v3839
        %3841 = vmatmul.f32.gmra.mxu0 %v3682
        %v3842 = vpop.f32.mrf.mxu0
        %v3843 = vadd.f32 0.0, %v3842
        %3844 = vmatmul.f32.gmra.mxu0 %v3685
        %v3845 = vpop.f32.mrf.mxu0
        %v3846 = vadd.f32 0.0, %v3845
        %3847 = vmatmul.f32.gmra.mxu0 %v3688
        %v3848 = vpop.f32.mrf.mxu0
        %v3849 = vadd.f32 0.0, %v3848
        %3850 = vmatmul.f32.gmra.mxu0 %v3691
        %v3851 = vpop.f32.mrf.mxu0
        %v3852 = vadd.f32 0.0, %v3851
        %3853 = vmatmul.f32.gmra.mxu0 %v3694
        %v3854 = vpop.f32.mrf.mxu0
        %v3855 = vadd.f32 0.0, %v3854
        %3856 = vmatmul.f32.gmra.mxu0 %v3697
        %v3857 = vpop.f32.mrf.mxu0
        %v3858 = vadd.f32 0.0, %v3857
        %3859 = vmatmul.f32.gmra.mxu0 %v3700
        %v3860 = vpop.f32.mrf.mxu0
        %v3861 = vadd.f32 0.0, %v3860
        %3862 = vmatmul.f32.gmra.mxu0 %v3703
        %v3863 = vpop.f32.mrf.mxu0
        %v3864 = vadd.f32 0.0, %v3863
        %3865 = vmatmul.f32.gmra.mxu0 %v3706
        %v3866 = vpop.f32.mrf.mxu0
        %v3867 = vadd.f32 0.0, %v3866
        %3868 = vmatmul.f32.gmra.mxu0 %v3709
        %v3869 = vpop.f32.mrf.mxu0
        %v3870 = vadd.f32 0.0, %v3869
        %3871 = vmatmul.f32.gmra.mxu0 %v3712
        %v3872 = vpop.f32.mrf.mxu0
        %v3873 = vadd.f32 0.0, %v3872
        %3874 = vmatmul.f32.gmra.mxu0 %v3715
        %v3875 = vpop.f32.mrf.mxu0
        %v3876 = vadd.f32 0.0, %v3875
        %3877 = vmatmul.f32.gmra.mxu0 %v3718
        %v3878 = vpop.f32.mrf.mxu0
        %v3879 = vadd.f32 0.0, %v3878
        %3880 = vmatmul.f32.gmra.mxu0 %v3721
        %v3881 = vpop.f32.mrf.mxu0
        %v3882 = vadd.f32 0.0, %v3881
        %3883 = vmatmul.f32.gmra.mxu0 %v3724
        %v3884 = vpop.f32.mrf.mxu0
        %v3885 = vadd.f32 0.0, %v3884
        %3886 = vmatmul.f32.gmra.mxu0 %v3727
        %v3887 = vpop.f32.mrf.mxu0
        %v3888 = vadd.f32 0.0, %v3887
        %3889 = vmatmul.f32.gmra.mxu0 %v3730
        %v3890 = vpop.f32.mrf.mxu0
        %v3891 = vadd.f32 0.0, %v3890
        %3892 = vmatmul.f32.gmra.mxu0 %v3733
        %v3893 = vpop.f32.mrf.mxu0
        %v3894 = vadd.f32 0.0, %v3893
        %3895 = vmatmul.f32.gmra.mxu0 %v3736
        %v3896 = vpop.f32.mrf.mxu0
        %v3897 = vadd.f32 0.0, %v3896
        %3898 = vmatmul.f32.gmra.mxu0 %v3739
        %v3899 = vpop.f32.mrf.mxu0
        %v3900 = vadd.f32 0.0, %v3899
        %3901 = vmatmul.f32.gmra.mxu0 %v3742
        %v3902 = vpop.f32.mrf.mxu0
        %v3903 = vadd.f32 0.0, %v3902
        %3904 = vmatmul.f32.gmra.mxu0 %v3745
        %v3905 = vpop.f32.mrf.mxu0
        %v3906 = vadd.f32 0.0, %v3905
        %3907 = vmatmul.f32.gmra.mxu0 %v3748
        %v3908 = vpop.f32.mrf.mxu0
        %v3909 = vadd.f32 0.0, %v3908
        %3910 = vmatmul.f32.gmra.mxu0 %v3751
        %v3911 = vpop.f32.mrf.mxu0
        %v3912 = vadd.f32 0.0, %v3911
        %3913 = vmatmul.f32.gmra.mxu0 %v3754
        %v3914 = vpop.f32.mrf.mxu0
        %v3915 = vadd.f32 0.0, %v3914
        %3916 = vmatmul.f32.gmra.mxu0 %v3757
        %v3917 = vpop.f32.mrf.mxu0
        %v3918 = vadd.f32 0.0, %v3917
        %3919 = vmatmul.f32.gmra.mxu0 %v3760
        %v3920 = vpop.f32.mrf.mxu0
        %v3921 = vadd.f32 0.0, %v3920
        %3922 = vmatmul.f32.gmra.mxu0 %v3763
        %v3923 = vpop.f32.mrf.mxu0
        %v3924 = vadd.f32 0.0, %v3923
        %3925 = vmatmul.f32.gmra.mxu0 %v3766
        %v3926 = vpop.f32.mrf.mxu0
        %v3927 = vadd.f32 0.0, %v3926
        %3928 = vdwg.mxu0
        %v3929 = vadd.f32 %v3526, %v3786
        %v3930 = vadd.f32 %v3527, %v3789
        %v3931 = vadd.f32 %v3528, %v3792
        %v3932 = vadd.f32 %v3529, %v3795
        %v3933 = vadd.f32 %v3530, %v3798
        %v3934 = vadd.f32 %v3531, %v3801
        %v3935 = vadd.f32 %v3532, %v3804
        %v3936 = vadd.f32 %v3533, %v3807
        %v3937 = vadd.f32 %v3534, %v3810
        %v3938 = vadd.f32 %v3535, %v3813
        %v3939 = vadd.f32 %v3536, %v3816
        %v3940 = vadd.f32 %v3537, %v3819
        %v3941 = vadd.f32 %v3538, %v3822
        %v3942 = vadd.f32 %v3539, %v3825
        %v3943 = vadd.f32 %v3540, %v3828
        %v3944 = vadd.f32 %v3541, %v3831
        %v3945 = vadd.f32 %v3542, %v3834
        %v3946 = vadd.f32 %v3543, %v3837
        %v3947 = vadd.f32 %v3544, %v3840
        %v3948 = vadd.f32 %v3545, %v3843
        %v3949 = vadd.f32 %v3546, %v3846
        %v3950 = vadd.f32 %v3547, %v3849
        %v3951 = vadd.f32 %v3548, %v3852
        %v3952 = vadd.f32 %v3549, %v3855
        %v3953 = vadd.f32 %v3550, %v3858
        %v3954 = vadd.f32 %v3551, %v3861
        %v3955 = vadd.f32 %v3552, %v3864
        %v3956 = vadd.f32 %v3553, %v3867
        %v3957 = vadd.f32 %v3554, %v3870
        %v3958 = vadd.f32 %v3555, %v3873
        %v3959 = vadd.f32 %v3556, %v3876
        %v3960 = vadd.f32 %v3557, %v3879
        %v3961 = vadd.f32 %v3558, %v3882
        %v3962 = vadd.f32 %v3559, %v3885
        %v3963 = vadd.f32 %v3560, %v3888
        %v3964 = vadd.f32 %v3561, %v3891
        %v3965 = vadd.f32 %v3562, %v3894
        %v3966 = vadd.f32 %v3563, %v3897
        %v3967 = vadd.f32 %v3564, %v3900
        %v3968 = vadd.f32 %v3565, %v3903
        %v3969 = vadd.f32 %v3566, %v3906
        %v3970 = vadd.f32 %v3567, %v3909
        %v3971 = vadd.f32 %v3568, %v3912
        %v3972 = vadd.f32 %v3569, %v3915
        %v3973 = vadd.f32 %v3570, %v3918
        %v3974 = vadd.f32 %v3571, %v3921
        %v3975 = vadd.f32 %v3572, %v3924
        %v3976 = vadd.f32 %v3573, %v3927
        %v3977 = vld [vmem:[#allocation2 + $0x32] sm:$0xff]
        %v3978 = vld [vmem:[#allocation2 + $0x3a] sm:$0xff]
        %v3979 = vld [vmem:[#allocation2 + $0x42] sm:$0xff]
        %v3980 = vld [vmem:[#allocation2 + $0x4a] sm:$0xff]
        %v3981 = vld [vmem:[#allocation2 + $0x52] sm:$0xff]
        %v3982 = vld [vmem:[#allocation2 + $0x5a] sm:$0xff]
        %v3983 = vld [vmem:[#allocation2 + $0x62] sm:$0xff]
        %v3984 = vld [vmem:[#allocation2 + $0x6a] sm:$0xff]
        %v3985 = vld [vmem:[#allocation2 + $0x72] sm:$0xff]
        %v3986 = vld [vmem:[#allocation2 + $0x7a] sm:$0xff]
        %v3987 = vld [vmem:[#allocation2 + $0x82] sm:$0xff]
        %v3988 = vld [vmem:[#allocation2 + $0x8a] sm:$0xff]
        %v3989 = vld [vmem:[#allocation2 + $0x92] sm:$0xff]
        %v3990 = vld [vmem:[#allocation2 + $0x9a] sm:$0xff]
        %v3991 = vld [vmem:[#allocation2 + $0xa2] sm:$0xff]
        %v3992 = vld [vmem:[#allocation2 + $0xaa] sm:$0xff]
        %v3993 = vld [vmem:[#allocation2 + $0xb2] sm:$0xff]
        %v3994 = vld [vmem:[#allocation2 + $0xba] sm:$0xff]
        %v3995 = vld [vmem:[#allocation2 + $0xc2] sm:$0xff]
        %v3996 = vld [vmem:[#allocation2 + $0xca] sm:$0xff]
        %v3997 = vld [vmem:[#allocation2 + $0xd2] sm:$0xff]
        %v3998 = vld [vmem:[#allocation2 + $0xda] sm:$0xff]
        %v3999 = vld [vmem:[#allocation2 + $0xe2] sm:$0xff]
        %v4000 = vld [vmem:[#allocation2 + $0xea] sm:$0xff]
        %v4001 = vld [vmem:[#allocation2 + $0xf2] sm:$0xff]
        %v4002 = vld [vmem:[#allocation2 + $0xfa] sm:$0xff]
        %v4003 = vld [vmem:[#allocation2 + $0x102] sm:$0xff]
        %v4004 = vld [vmem:[#allocation2 + $0x10a] sm:$0xff]
        %v4005 = vld [vmem:[#allocation2 + $0x112] sm:$0xff]
        %v4006 = vld [vmem:[#allocation2 + $0x11a] sm:$0xff]
        %v4007 = vld [vmem:[#allocation2 + $0x122] sm:$0xff]
        %v4008 = vld [vmem:[#allocation2 + $0x12a] sm:$0xff]
        %v4009 = vld [vmem:[#allocation2 + $0x132] sm:$0xff]
        %v4010 = vld [vmem:[#allocation2 + $0x13a] sm:$0xff]
        %v4011 = vld [vmem:[#allocation2 + $0x142] sm:$0xff]
        %v4012 = vld [vmem:[#allocation2 + $0x14a] sm:$0xff]
        %v4013 = vld [vmem:[#allocation2 + $0x152] sm:$0xff]
        %v4014 = vld [vmem:[#allocation2 + $0x15a] sm:$0xff]
        %v4015 = vld [vmem:[#allocation2 + $0x162] sm:$0xff]
        %v4016 = vld [vmem:[#allocation2 + $0x16a] sm:$0xff]
        %v4017 = vld [vmem:[#allocation2 + $0x172] sm:$0xff]
        %v4018 = vld [vmem:[#allocation2 + $0x17a] sm:$0xff]
        %v4019 = vld [vmem:[#allocation2 + $0x182] sm:$0xff]
        %v4020 = vld [vmem:[#allocation2 + $0x18a] sm:$0xff]
        %v4021 = vld [vmem:[#allocation2 + $0x192] sm:$0xff]
        %v4022 = vld [vmem:[#allocation2 + $0x19a] sm:$0xff]
        %v4023 = vld [vmem:[#allocation2 + $0x1a2] sm:$0xff]
        %v4024 = vld [vmem:[#allocation2 + $0x1aa] sm:$0xff]
        %s4025 = scalar_lea.vmem %s3, 64
        %v4026 = vld [vmem:[%s4025] sm:$0xff]
        %v4028 = vsel %vm438, %v3977, 0
        %v4031 = vsel %vm438, %v3978, 0
        %v4034 = vsel %vm438, %v3979, 0
        %v4037 = vsel %vm438, %v3980, 0
        %v4040 = vsel %vm438, %v3981, 0
        %v4043 = vsel %vm438, %v3982, 0
        %v4046 = vsel %vm438, %v3983, 0
        %v4049 = vsel %vm438, %v3984, 0
        %v4052 = vsel %vm438, %v3985, 0
        %v4055 = vsel %vm438, %v3986, 0
        %v4058 = vsel %vm438, %v3987, 0
        %v4061 = vsel %vm438, %v3988, 0
        %v4064 = vsel %vm438, %v3989, 0
        %v4067 = vsel %vm438, %v3990, 0
        %v4070 = vsel %vm438, %v3991, 0
        %v4073 = vsel %vm438, %v3992, 0
        %v4076 = vsel %vm438, %v3993, 0
        %v4079 = vsel %vm438, %v3994, 0
        %v4082 = vsel %vm438, %v3995, 0
        %v4085 = vsel %vm438, %v3996, 0
        %v4088 = vsel %vm438, %v3997, 0
        %v4091 = vsel %vm438, %v3998, 0
        %v4094 = vsel %vm438, %v3999, 0
        %v4097 = vsel %vm438, %v4000, 0
        %v4100 = vsel %vm438, %v4001, 0
        %v4103 = vsel %vm438, %v4002, 0
        %v4106 = vsel %vm438, %v4003, 0
        %v4109 = vsel %vm438, %v4004, 0
        %v4112 = vsel %vm438, %v4005, 0
        %v4115 = vsel %vm438, %v4006, 0
        %v4118 = vsel %vm438, %v4007, 0
        %v4121 = vsel %vm438, %v4008, 0
        %v4124 = vsel %vm438, %v4009, 0
        %v4127 = vsel %vm438, %v4010, 0
        %v4130 = vsel %vm438, %v4011, 0
        %v4133 = vsel %vm438, %v4012, 0
        %v4136 = vsel %vm438, %v4013, 0
        %v4139 = vsel %vm438, %v4014, 0
        %v4142 = vsel %vm438, %v4015, 0
        %v4145 = vsel %vm438, %v4016, 0
        %v4148 = vsel %vm438, %v4017, 0
        %v4151 = vsel %vm438, %v4018, 0
        %v4154 = vsel %vm438, %v4019, 0
        %v4157 = vsel %vm438, %v4020, 0
        %v4160 = vsel %vm438, %v4021, 0
        %v4163 = vsel %vm438, %v4022, 0
        %v4166 = vsel %vm438, %v4023, 0
        %v4169 = vsel %vm438, %v4024, 0
        %4171 = vmatpush.msra.mxu0 0.0
        %4172 = vmatpush.msra.mxu0 0.0
        %4173 = vmatpush.msra.mxu0 0.0
        %4174 = vmatpush.msra.mxu0 0.0
        %4175 = vmatpush.msra.mxu0 0.0
        %4176 = vmatpush.msra.mxu0 0.0
        %4177 = vmatpush.msra.mxu0 0.0
        %4178 = vmatpush.msra.mxu0 0.0
        %4179 = vmatpush.msra.mxu0 0.0
        %4180 = vmatpush.msra.mxu0 0.0
        %4181 = vmatpush.msra.mxu0 0.0
        %4182 = vmatpush.msra.mxu0 0.0
        %4183 = vmatpush.msra.mxu0 0.0
        %4184 = vmatpush.msra.mxu0 0.0
        %4185 = vmatpush.msra.mxu0 0.0
        %4186 = vmatpush.msra.mxu0 %v4026
        %4187 = vmatmul.f32.gmra.mxu0 %v4028
        %v4188 = vpop.f32.mrf.mxu0
        %v4189 = vadd.f32 0.0, %v4188
        %4190 = vmatmul.f32.gmra.mxu0 %v4031
        %v4191 = vpop.f32.mrf.mxu0
        %v4192 = vadd.f32 0.0, %v4191
        %4193 = vmatmul.f32.gmra.mxu0 %v4034
        %v4194 = vpop.f32.mrf.mxu0
        %v4195 = vadd.f32 0.0, %v4194
        %4196 = vmatmul.f32.gmra.mxu0 %v4037
        %v4197 = vpop.f32.mrf.mxu0
        %v4198 = vadd.f32 0.0, %v4197
        %4199 = vmatmul.f32.gmra.mxu0 %v4040
        %v4200 = vpop.f32.mrf.mxu0
        %v4201 = vadd.f32 0.0, %v4200
        %4202 = vmatmul.f32.gmra.mxu0 %v4043
        %v4203 = vpop.f32.mrf.mxu0
        %v4204 = vadd.f32 0.0, %v4203
        %4205 = vmatmul.f32.gmra.mxu0 %v4046
        %v4206 = vpop.f32.mrf.mxu0
        %v4207 = vadd.f32 0.0, %v4206
        %4208 = vmatmul.f32.gmra.mxu0 %v4049
        %v4209 = vpop.f32.mrf.mxu0
        %v4210 = vadd.f32 0.0, %v4209
        %4211 = vmatmul.f32.gmra.mxu0 %v4052
        %v4212 = vpop.f32.mrf.mxu0
        %v4213 = vadd.f32 0.0, %v4212
        %4214 = vmatmul.f32.gmra.mxu0 %v4055
        %v4215 = vpop.f32.mrf.mxu0
        %v4216 = vadd.f32 0.0, %v4215
        %4217 = vmatmul.f32.gmra.mxu0 %v4058
        %v4218 = vpop.f32.mrf.mxu0
        %v4219 = vadd.f32 0.0, %v4218
        %4220 = vmatmul.f32.gmra.mxu0 %v4061
        %v4221 = vpop.f32.mrf.mxu0
        %v4222 = vadd.f32 0.0, %v4221
        %4223 = vmatmul.f32.gmra.mxu0 %v4064
        %v4224 = vpop.f32.mrf.mxu0
        %v4225 = vadd.f32 0.0, %v4224
        %4226 = vmatmul.f32.gmra.mxu0 %v4067
        %v4227 = vpop.f32.mrf.mxu0
        %v4228 = vadd.f32 0.0, %v4227
        %4229 = vmatmul.f32.gmra.mxu0 %v4070
        %v4230 = vpop.f32.mrf.mxu0
        %v4231 = vadd.f32 0.0, %v4230
        %4232 = vmatmul.f32.gmra.mxu0 %v4073
        %v4233 = vpop.f32.mrf.mxu0
        %v4234 = vadd.f32 0.0, %v4233
        %4235 = vmatmul.f32.gmra.mxu0 %v4076
        %v4236 = vpop.f32.mrf.mxu0
        %v4237 = vadd.f32 0.0, %v4236
        %4238 = vmatmul.f32.gmra.mxu0 %v4079
        %v4239 = vpop.f32.mrf.mxu0
        %v4240 = vadd.f32 0.0, %v4239
        %4241 = vmatmul.f32.gmra.mxu0 %v4082
        %v4242 = vpop.f32.mrf.mxu0
        %v4243 = vadd.f32 0.0, %v4242
        %4244 = vmatmul.f32.gmra.mxu0 %v4085
        %v4245 = vpop.f32.mrf.mxu0
        %v4246 = vadd.f32 0.0, %v4245
        %4247 = vmatmul.f32.gmra.mxu0 %v4088
        %v4248 = vpop.f32.mrf.mxu0
        %v4249 = vadd.f32 0.0, %v4248
        %4250 = vmatmul.f32.gmra.mxu0 %v4091
        %v4251 = vpop.f32.mrf.mxu0
        %v4252 = vadd.f32 0.0, %v4251
        %4253 = vmatmul.f32.gmra.mxu0 %v4094
        %v4254 = vpop.f32.mrf.mxu0
        %v4255 = vadd.f32 0.0, %v4254
        %4256 = vmatmul.f32.gmra.mxu0 %v4097
        %v4257 = vpop.f32.mrf.mxu0
        %v4258 = vadd.f32 0.0, %v4257
        %4259 = vmatmul.f32.gmra.mxu0 %v4100
        %v4260 = vpop.f32.mrf.mxu0
        %v4261 = vadd.f32 0.0, %v4260
        %4262 = vmatmul.f32.gmra.mxu0 %v4103
        %v4263 = vpop.f32.mrf.mxu0
        %v4264 = vadd.f32 0.0, %v4263
        %4265 = vmatmul.f32.gmra.mxu0 %v4106
        %v4266 = vpop.f32.mrf.mxu0
        %v4267 = vadd.f32 0.0, %v4266
        %4268 = vmatmul.f32.gmra.mxu0 %v4109
        %v4269 = vpop.f32.mrf.mxu0
        %v4270 = vadd.f32 0.0, %v4269
        %4271 = vmatmul.f32.gmra.mxu0 %v4112
        %v4272 = vpop.f32.mrf.mxu0
        %v4273 = vadd.f32 0.0, %v4272
        %4274 = vmatmul.f32.gmra.mxu0 %v4115
        %v4275 = vpop.f32.mrf.mxu0
        %v4276 = vadd.f32 0.0, %v4275
        %4277 = vmatmul.f32.gmra.mxu0 %v4118
        %v4278 = vpop.f32.mrf.mxu0
        %v4279 = vadd.f32 0.0, %v4278
        %4280 = vmatmul.f32.gmra.mxu0 %v4121
        %v4281 = vpop.f32.mrf.mxu0
        %v4282 = vadd.f32 0.0, %v4281
        %4283 = vmatmul.f32.gmra.mxu0 %v4124
        %v4284 = vpop.f32.mrf.mxu0
        %v4285 = vadd.f32 0.0, %v4284
        %4286 = vmatmul.f32.gmra.mxu0 %v4127
        %v4287 = vpop.f32.mrf.mxu0
        %v4288 = vadd.f32 0.0, %v4287
        %4289 = vmatmul.f32.gmra.mxu0 %v4130
        %v4290 = vpop.f32.mrf.mxu0
        %v4291 = vadd.f32 0.0, %v4290
        %4292 = vmatmul.f32.gmra.mxu0 %v4133
        %v4293 = vpop.f32.mrf.mxu0
        %v4294 = vadd.f32 0.0, %v4293
        %4295 = vmatmul.f32.gmra.mxu0 %v4136
        %v4296 = vpop.f32.mrf.mxu0
        %v4297 = vadd.f32 0.0, %v4296
        %4298 = vmatmul.f32.gmra.mxu0 %v4139
        %v4299 = vpop.f32.mrf.mxu0
        %v4300 = vadd.f32 0.0, %v4299
        %4301 = vmatmul.f32.gmra.mxu0 %v4142
        %v4302 = vpop.f32.mrf.mxu0
        %v4303 = vadd.f32 0.0, %v4302
        %4304 = vmatmul.f32.gmra.mxu0 %v4145
        %v4305 = vpop.f32.mrf.mxu0
        %v4306 = vadd.f32 0.0, %v4305
        %4307 = vmatmul.f32.gmra.mxu0 %v4148
        %v4308 = vpop.f32.mrf.mxu0
        %v4309 = vadd.f32 0.0, %v4308
        %4310 = vmatmul.f32.gmra.mxu0 %v4151
        %v4311 = vpop.f32.mrf.mxu0
        %v4312 = vadd.f32 0.0, %v4311
        %4313 = vmatmul.f32.gmra.mxu0 %v4154
        %v4314 = vpop.f32.mrf.mxu0
        %v4315 = vadd.f32 0.0, %v4314
        %4316 = vmatmul.f32.gmra.mxu0 %v4157
        %v4317 = vpop.f32.mrf.mxu0
        %v4318 = vadd.f32 0.0, %v4317
        %4319 = vmatmul.f32.gmra.mxu0 %v4160
        %v4320 = vpop.f32.mrf.mxu0
        %v4321 = vadd.f32 0.0, %v4320
        %4322 = vmatmul.f32.gmra.mxu0 %v4163
        %v4323 = vpop.f32.mrf.mxu0
        %v4324 = vadd.f32 0.0, %v4323
        %4325 = vmatmul.f32.gmra.mxu0 %v4166
        %v4326 = vpop.f32.mrf.mxu0
        %v4327 = vadd.f32 0.0, %v4326
        %4328 = vmatmul.f32.gmra.mxu0 %v4169
        %v4329 = vpop.f32.mrf.mxu0
        %v4330 = vadd.f32 0.0, %v4329
        %4331 = vdwg.mxu0
        %v4332 = vadd.f32 %v3929, %v4189
        %v4333 = vadd.f32 %v3930, %v4192
        %v4334 = vadd.f32 %v3931, %v4195
        %v4335 = vadd.f32 %v3932, %v4198
        %v4336 = vadd.f32 %v3933, %v4201
        %v4337 = vadd.f32 %v3934, %v4204
        %v4338 = vadd.f32 %v3935, %v4207
        %v4339 = vadd.f32 %v3936, %v4210
        %v4340 = vadd.f32 %v3937, %v4213
        %v4341 = vadd.f32 %v3938, %v4216
        %v4342 = vadd.f32 %v3939, %v4219
        %v4343 = vadd.f32 %v3940, %v4222
        %v4344 = vadd.f32 %v3941, %v4225
        %v4345 = vadd.f32 %v3942, %v4228
        %v4346 = vadd.f32 %v3943, %v4231
        %v4347 = vadd.f32 %v3944, %v4234
        %v4348 = vadd.f32 %v3945, %v4237
        %v4349 = vadd.f32 %v3946, %v4240
        %v4350 = vadd.f32 %v3947, %v4243
        %v4351 = vadd.f32 %v3948, %v4246
        %v4352 = vadd.f32 %v3949, %v4249
        %v4353 = vadd.f32 %v3950, %v4252
        %v4354 = vadd.f32 %v3951, %v4255
        %v4355 = vadd.f32 %v3952, %v4258
        %v4356 = vadd.f32 %v3953, %v4261
        %v4357 = vadd.f32 %v3954, %v4264
        %v4358 = vadd.f32 %v3955, %v4267
        %v4359 = vadd.f32 %v3956, %v4270
        %v4360 = vadd.f32 %v3957, %v4273
        %v4361 = vadd.f32 %v3958, %v4276
        %v4362 = vadd.f32 %v3959, %v4279
        %v4363 = vadd.f32 %v3960, %v4282
        %v4364 = vadd.f32 %v3961, %v4285
        %v4365 = vadd.f32 %v3962, %v4288
        %v4366 = vadd.f32 %v3963, %v4291
        %v4367 = vadd.f32 %v3964, %v4294
        %v4368 = vadd.f32 %v3965, %v4297
        %v4369 = vadd.f32 %v3966, %v4300
        %v4370 = vadd.f32 %v3967, %v4303
        %v4371 = vadd.f32 %v3968, %v4306
        %v4372 = vadd.f32 %v3969, %v4309
        %v4373 = vadd.f32 %v3970, %v4312
        %v4374 = vadd.f32 %v3971, %v4315
        %v4375 = vadd.f32 %v3972, %v4318
        %v4376 = vadd.f32 %v3973, %v4321
        %v4377 = vadd.f32 %v3974, %v4324
        %v4378 = vadd.f32 %v3975, %v4327
        %v4379 = vadd.f32 %v3976, %v4330
        %v4380 = vld [vmem:[%s4] sm:$0x1]
        %v4382 = vperm.slane %v4380, 0
        %v4384 = vadd.f32 %v4332, %v4382
        %v4385 = vadd.f32 %v4333, %v4382
        %v4386 = vadd.f32 %v4334, %v4382
        %v4387 = vadd.f32 %v4335, %v4382
        %v4388 = vadd.f32 %v4336, %v4382
        %v4389 = vadd.f32 %v4337, %v4382
        %v4390 = vadd.f32 %v4338, %v4382
        %v4391 = vadd.f32 %v4339, %v4382
        %v4392 = vadd.f32 %v4340, %v4382
        %v4393 = vadd.f32 %v4341, %v4382
        %v4394 = vadd.f32 %v4342, %v4382
        %v4395 = vadd.f32 %v4343, %v4382
        %v4396 = vadd.f32 %v4344, %v4382
        %v4397 = vadd.f32 %v4345, %v4382
        %v4398 = vadd.f32 %v4346, %v4382
        %v4399 = vadd.f32 %v4347, %v4382
        %v4400 = vadd.f32 %v4348, %v4382
        %v4401 = vadd.f32 %v4349, %v4382
        %v4402 = vadd.f32 %v4350, %v4382
        %v4403 = vadd.f32 %v4351, %v4382
        %v4404 = vadd.f32 %v4352, %v4382
        %v4405 = vadd.f32 %v4353, %v4382
        %v4406 = vadd.f32 %v4354, %v4382
        %v4407 = vadd.f32 %v4355, %v4382
        %v4408 = vadd.f32 %v4356, %v4382
        %v4409 = vadd.f32 %v4357, %v4382
        %v4410 = vadd.f32 %v4358, %v4382
        %v4411 = vadd.f32 %v4359, %v4382
        %v4412 = vadd.f32 %v4360, %v4382
        %v4413 = vadd.f32 %v4361, %v4382
        %v4414 = vadd.f32 %v4362, %v4382
        %v4415 = vadd.f32 %v4363, %v4382
        %v4416 = vadd.f32 %v4364, %v4382
        %v4417 = vadd.f32 %v4365, %v4382
        %v4418 = vadd.f32 %v4366, %v4382
        %v4419 = vadd.f32 %v4367, %v4382
        %v4420 = vadd.f32 %v4368, %v4382
        %v4421 = vadd.f32 %v4369, %v4382
        %v4422 = vadd.f32 %v4370, %v4382
        %v4423 = vadd.f32 %v4371, %v4382
        %v4424 = vadd.f32 %v4372, %v4382
        %v4425 = vadd.f32 %v4373, %v4382
        %v4426 = vadd.f32 %v4374, %v4382
        %v4427 = vadd.f32 %v4375, %v4382
        %v4428 = vadd.f32 %v4376, %v4382
        %v4429 = vadd.f32 %v4377, %v4382
        %v4430 = vadd.f32 %v4378, %v4382
        %v4431 = vadd.f32 %v4379, %v4382
        %v4432 = vmax.f32 %v4384, 0.0
        %v4433 = vmax.f32 %v4385, 0.0
        %v4434 = vmax.f32 %v4386, 0.0
        %v4435 = vmax.f32 %v4387, 0.0
        %v4436 = vmax.f32 %v4388, 0.0
        %v4437 = vmax.f32 %v4389, 0.0
        %v4438 = vmax.f32 %v4390, 0.0
        %v4439 = vmax.f32 %v4391, 0.0
        %v4440 = vmax.f32 %v4392, 0.0
        %v4441 = vmax.f32 %v4393, 0.0
        %v4442 = vmax.f32 %v4394, 0.0
        %v4443 = vmax.f32 %v4395, 0.0
        %v4444 = vmax.f32 %v4396, 0.0
        %v4445 = vmax.f32 %v4397, 0.0
        %v4446 = vmax.f32 %v4398, 0.0
        %v4447 = vmax.f32 %v4399, 0.0
        %v4448 = vmax.f32 %v4400, 0.0
        %v4449 = vmax.f32 %v4401, 0.0
        %v4450 = vmax.f32 %v4402, 0.0
        %v4451 = vmax.f32 %v4403, 0.0
        %v4452 = vmax.f32 %v4404, 0.0
        %v4453 = vmax.f32 %v4405, 0.0
        %v4454 = vmax.f32 %v4406, 0.0
        %v4455 = vmax.f32 %v4407, 0.0
        %v4456 = vmax.f32 %v4408, 0.0
        %v4457 = vmax.f32 %v4409, 0.0
        %v4458 = vmax.f32 %v4410, 0.0
        %v4459 = vmax.f32 %v4411, 0.0
        %v4460 = vmax.f32 %v4412, 0.0
        %v4461 = vmax.f32 %v4413, 0.0
        %v4462 = vmax.f32 %v4414, 0.0
        %v4463 = vmax.f32 %v4415, 0.0
        %v4464 = vmax.f32 %v4416, 0.0
        %v4465 = vmax.f32 %v4417, 0.0
        %v4466 = vmax.f32 %v4418, 0.0
        %v4467 = vmax.f32 %v4419, 0.0
        %v4468 = vmax.f32 %v4420, 0.0
        %v4469 = vmax.f32 %v4421, 0.0
        %v4470 = vmax.f32 %v4422, 0.0
        %v4471 = vmax.f32 %v4423, 0.0
        %v4472 = vmax.f32 %v4424, 0.0
        %v4473 = vmax.f32 %v4425, 0.0
        %v4474 = vmax.f32 %v4426, 0.0
        %v4475 = vmax.f32 %v4427, 0.0
        %v4476 = vmax.f32 %v4428, 0.0
        %v4477 = vmax.f32 %v4429, 0.0
        %v4478 = vmax.f32 %v4430, 0.0
        %v4479 = vmax.f32 %v4431, 0.0
        %v4480 = vmax.f32 %v4432, %v4435
        %v4481 = vmax.f32 %v4433, %v4436
        %v4482 = vmax.f32 %v4434, %v4437
        %4483 = vst.msk [vmem:[#allocation6] sm:$0xff] %vm438, %v4480
        %4484 = vst.msk [vmem:[#allocation6 + $0x8] sm:$0xff] %vm438, %v4481
        %4485 = vst.msk [vmem:[#allocation6 + $0x10] sm:$0xff] %vm438, %v4482
        %v4486 = vld [vmem:[#allocation6] ss:$2 sm:$0xff]
        %s4487 = scalar_lea.vmem [#allocation6], 1
        %v4488 = vld [vmem:[%s4487] ss:$2 sm:$0xff]
        %v4489 = vmax.f32 %v4486, %v4488
        %4490 = vst.msk [vmem:[#allocation3 + $0x11] sm:$0xff] %vm438, %v4489
        %v4491 = vmax.f32 %v4438, %v4441
        %v4492 = vmax.f32 %v4439, %v4442
        %v4493 = vmax.f32 %v4440, %v4443
        %4494 = vst.msk [vmem:[#allocation6] sm:$0xff] %vm438, %v4491
        %4495 = vst.msk [vmem:[#allocation6 + $0x8] sm:$0xff] %vm438, %v4492
        %4496 = vst.msk [vmem:[#allocation6 + $0x10] sm:$0xff] %vm438, %v4493
        %v4497 = vld [vmem:[#allocation6] ss:$2 sm:$0xff]
        %v4498 = vld [vmem:[%s4487] ss:$2 sm:$0xff]
        %v4499 = vmax.f32 %v4497, %v4498
        %4500 = vst.msk [vmem:[#allocation3 + $0x21] sm:$0xff] %vm438, %v4499
        %v4501 = vmax.f32 %v4444, %v4447
        %v4502 = vmax.f32 %v4445, %v4448
        %v4503 = vmax.f32 %v4446, %v4449
        %4504 = vst.msk [vmem:[#allocation6] sm:$0xff] %vm438, %v4501
        %4505 = vst.msk [vmem:[#allocation6 + $0x8] sm:$0xff] %vm438, %v4502
        %4506 = vst.msk [vmem:[#allocation6 + $0x10] sm:$0xff] %vm438, %v4503
        %v4507 = vld [vmem:[#allocation6] ss:$2 sm:$0xff]
        %v4508 = vld [vmem:[%s4487] ss:$2 sm:$0xff]
        %v4509 = vmax.f32 %v4507, %v4508
        %4510 = vst.msk [vmem:[#allocation3 + $0x31] sm:$0xff] %vm438, %v4509
        %v4511 = vmax.f32 %v4450, %v4453
        %v4512 = vmax.f32 %v4451, %v4454
        %v4513 = vmax.f32 %v4452, %v4455
        %4514 = vst.msk [vmem:[#allocation6] sm:$0xff] %vm438, %v4511
        %4515 = vst.msk [vmem:[#allocation6 + $0x8] sm:$0xff] %vm438, %v4512
        %4516 = vst.msk [vmem:[#allocation6 + $0x10] sm:$0xff] %vm438, %v4513
        %v4517 = vld [vmem:[#allocation6] ss:$2 sm:$0xff]
        %v4518 = vld [vmem:[%s4487] ss:$2 sm:$0xff]
        %v4519 = vmax.f32 %v4517, %v4518
        %4520 = vst.msk [vmem:[#allocation3 + $0x41] sm:$0xff] %vm438, %v4519
        %v4521 = vmax.f32 %v4456, %v4459
        %v4522 = vmax.f32 %v4457, %v4460
        %v4523 = vmax.f32 %v4458, %v4461
        %4524 = vst.msk [vmem:[#allocation6] sm:$0xff] %vm438, %v4521
        %4525 = vst.msk [vmem:[#allocation6 + $0x8] sm:$0xff] %vm438, %v4522
        %4526 = vst.msk [vmem:[#allocation6 + $0x10] sm:$0xff] %vm438, %v4523
        %v4527 = vld [vmem:[#allocation6] ss:$2 sm:$0xff]
        %v4528 = vld [vmem:[%s4487] ss:$2 sm:$0xff]
        %v4529 = vmax.f32 %v4527, %v4528
        %4530 = vst.msk [vmem:[#allocation3 + $0x51] sm:$0xff] %vm438, %v4529
        %v4531 = vmax.f32 %v4462, %v4465
        %v4532 = vmax.f32 %v4463, %v4466
        %v4533 = vmax.f32 %v4464, %v4467
        %4534 = vst.msk [vmem:[#allocation6] sm:$0xff] %vm438, %v4531
        %4535 = vst.msk [vmem:[#allocation6 + $0x8] sm:$0xff] %vm438, %v4532
        %4536 = vst.msk [vmem:[#allocation6 + $0x10] sm:$0xff] %vm438, %v4533
        %v4537 = vld [vmem:[#allocation6] ss:$2 sm:$0xff]
        %v4538 = vld [vmem:[%s4487] ss:$2 sm:$0xff]
        %v4539 = vmax.f32 %v4537, %v4538
        %4540 = vst.msk [vmem:[#allocation3 + $0x61] sm:$0xff] %vm438, %v4539
        %v4541 = vmax.f32 %v4468, %v4471
        %v4542 = vmax.f32 %v4469, %v4472
        %v4543 = vmax.f32 %v4470, %v4473
        %4544 = vst.msk [vmem:[#allocation6] sm:$0xff] %vm438, %v4541
        %4545 = vst.msk [vmem:[#allocation6 + $0x8] sm:$0xff] %vm438, %v4542
        %4546 = vst.msk [vmem:[#allocation6 + $0x10] sm:$0xff] %vm438, %v4543
        %v4547 = vld [vmem:[#allocation6] ss:$2 sm:$0xff]
        %v4548 = vld [vmem:[%s4487] ss:$2 sm:$0xff]
        %v4549 = vmax.f32 %v4547, %v4548
        %4550 = vst.msk [vmem:[#allocation3 + $0x71] sm:$0xff] %vm438, %v4549
        %v4551 = vmax.f32 %v4474, %v4477
        %v4552 = vmax.f32 %v4475, %v4478
        %v4553 = vmax.f32 %v4476, %v4479
        %4554 = vst.msk [vmem:[#allocation6] sm:$0xff] %vm438, %v4551
        %4555 = vst.msk [vmem:[#allocation6 + $0x8] sm:$0xff] %vm438, %v4552
        %4556 = vst.msk [vmem:[#allocation6 + $0x10] sm:$0xff] %vm438, %v4553
        %v4557 = vld [vmem:[#allocation6] ss:$2 sm:$0xff]
        %v4558 = vld [vmem:[%s4487] ss:$2 sm:$0xff]
        %v4559 = vmax.f32 %v4557, %v4558
        %4560 = vst.msk [vmem:[#allocation3 + $0x81] sm:$0xff] %vm438, %v4559
        %v4561 = vld [vmem:[#allocation3] sm:$0xff]
        %v4562 = vld [vmem:[#allocation3 + $0x8] sm:$0xff]
        %v4563 = vld [vmem:[#allocation3 + $0x10] sm:$0xff]
        %v4564 = vld [vmem:[#allocation3 + $0x18] sm:$0xff]
        %v4565 = vld [vmem:[#allocation3 + $0x20] sm:$0xff]
        %v4566 = vld [vmem:[#allocation3 + $0x28] sm:$0xff]
        %v4567 = vld [vmem:[#allocation3 + $0x30] sm:$0xff]
        %v4568 = vld [vmem:[#allocation3 + $0x38] sm:$0xff]
        %v4569 = vld [vmem:[#allocation3 + $0x40] sm:$0xff]
        %v4570 = vld [vmem:[#allocation3 + $0x48] sm:$0xff]
        %v4571 = vld [vmem:[#allocation3 + $0x50] sm:$0xff]
        %v4572 = vld [vmem:[#allocation3 + $0x58] sm:$0xff]
        %v4573 = vld [vmem:[#allocation3 + $0x60] sm:$0xff]
        %v4574 = vld [vmem:[#allocation3 + $0x68] sm:$0xff]
        %v4575 = vld [vmem:[#allocation3 + $0x70] sm:$0xff]
        %v4576 = vld [vmem:[#allocation3 + $0x78] sm:$0xff]
        %v4577 = vld [vmem:[%s5] sm:$0xff]
        %v4578 = vld [vmem:[#allocation3 + $0x1] sm:$0xff]
        %v4579 = vld [vmem:[#allocation3 + $0x9] sm:$0xff]
        %v4580 = vld [vmem:[#allocation3 + $0x11] sm:$0xff]
        %v4581 = vld [vmem:[#allocation3 + $0x19] sm:$0xff]
        %v4582 = vld [vmem:[#allocation3 + $0x21] sm:$0xff]
        %v4583 = vld [vmem:[#allocation3 + $0x29] sm:$0xff]
        %v4584 = vld [vmem:[#allocation3 + $0x31] sm:$0xff]
        %v4585 = vld [vmem:[#allocation3 + $0x39] sm:$0xff]
        %v4586 = vld [vmem:[#allocation3 + $0x41] sm:$0xff]
        %v4587 = vld [vmem:[#allocation3 + $0x49] sm:$0xff]
        %v4588 = vld [vmem:[#allocation3 + $0x51] sm:$0xff]
        %v4589 = vld [vmem:[#allocation3 + $0x59] sm:$0xff]
        %v4590 = vld [vmem:[#allocation3 + $0x61] sm:$0xff]
        %v4591 = vld [vmem:[#allocation3 + $0x69] sm:$0xff]
        %v4592 = vld [vmem:[#allocation3 + $0x71] sm:$0xff]
        %v4593 = vld [vmem:[#allocation3 + $0x79] sm:$0xff]
        %s4594 = scalar_lea.vmem %s5, 8
        %v4595 = vld [vmem:[%s4594] sm:$0xff]
        %v4597 = vsel %vm438, %v4578, 0
        %v4600 = vsel %vm438, %v4579, 0
        %v4603 = vsel %vm438, %v4580, 0
        %v4606 = vsel %vm438, %v4581, 0
        %v4609 = vsel %vm438, %v4582, 0
        %v4612 = vsel %vm438, %v4583, 0
        %v4615 = vsel %vm438, %v4584, 0
        %v4618 = vsel %vm438, %v4585, 0
        %v4621 = vsel %vm438, %v4586, 0
        %v4624 = vsel %vm438, %v4587, 0
        %v4627 = vsel %vm438, %v4588, 0
        %v4630 = vsel %vm438, %v4589, 0
        %v4633 = vsel %vm438, %v4590, 0
        %v4636 = vsel %vm438, %v4591, 0
        %v4639 = vsel %vm438, %v4592, 0
        %v4642 = vsel %vm438, %v4593, 0
        %4644 = vmatpush.msra.mxu0 0.0
        %4645 = vmatpush.msra.mxu0 0.0
        %4646 = vmatpush.msra.mxu0 0.0
        %4647 = vmatpush.msra.mxu0 0.0
        %4648 = vmatpush.msra.mxu0 0.0
        %4649 = vmatpush.msra.mxu0 0.0
        %4650 = vmatpush.msra.mxu0 0.0
        %4651 = vmatpush.msra.mxu0 0.0
        %4652 = vmatpush.msra.mxu0 0.0
        %4653 = vmatpush.msra.mxu0 0.0
        %4654 = vmatpush.msra.mxu0 0.0
        %4655 = vmatpush.msra.mxu0 0.0
        %4656 = vmatpush.msra.mxu0 0.0
        %4657 = vmatpush.msra.mxu0 0.0
        %4658 = vmatpush.msra.mxu0 0.0
        %4659 = vmatpush.msra.mxu0 %v4595
        %4660 = vmatmul.f32.gmra.mxu0 %v4597
        %v4661 = vpop.f32.mrf.mxu0
        %v4662 = vadd.f32 0.0, %v4661
        %4663 = vmatmul.f32.gmra.mxu0 %v4600
        %v4664 = vpop.f32.mrf.mxu0
        %v4665 = vadd.f32 0.0, %v4664
        %4666 = vmatmul.f32.gmra.mxu0 %v4603
        %v4667 = vpop.f32.mrf.mxu0
        %v4668 = vadd.f32 0.0, %v4667
        %4669 = vmatmul.f32.gmra.mxu0 %v4606
        %v4670 = vpop.f32.mrf.mxu0
        %v4671 = vadd.f32 0.0, %v4670
        %4672 = vmatmul.f32.gmra.mxu0 %v4609
        %v4673 = vpop.f32.mrf.mxu0
        %v4674 = vadd.f32 0.0, %v4673
        %4675 = vmatmul.f32.gmra.mxu0 %v4612
        %v4676 = vpop.f32.mrf.mxu0
        %v4677 = vadd.f32 0.0, %v4676
        %4678 = vmatmul.f32.gmra.mxu0 %v4615
        %v4679 = vpop.f32.mrf.mxu0
        %v4680 = vadd.f32 0.0, %v4679
        %4681 = vmatmul.f32.gmra.mxu0 %v4618
        %v4682 = vpop.f32.mrf.mxu0
        %v4683 = vadd.f32 0.0, %v4682
        %4684 = vmatmul.f32.gmra.mxu0 %v4621
        %v4685 = vpop.f32.mrf.mxu0
        %v4686 = vadd.f32 0.0, %v4685
        %4687 = vmatmul.f32.gmra.mxu0 %v4624
        %v4688 = vpop.f32.mrf.mxu0
        %v4689 = vadd.f32 0.0, %v4688
        %4690 = vmatmul.f32.gmra.mxu0 %v4627
        %v4691 = vpop.f32.mrf.mxu0
        %v4692 = vadd.f32 0.0, %v4691
        %4693 = vmatmul.f32.gmra.mxu0 %v4630
        %v4694 = vpop.f32.mrf.mxu0
        %v4695 = vadd.f32 0.0, %v4694
        %4696 = vmatmul.f32.gmra.mxu0 %v4633
        %v4697 = vpop.f32.mrf.mxu0
        %v4698 = vadd.f32 0.0, %v4697
        %4699 = vmatmul.f32.gmra.mxu0 %v4636
        %v4700 = vpop.f32.mrf.mxu0
        %v4701 = vadd.f32 0.0, %v4700
        %4702 = vmatmul.f32.gmra.mxu0 %v4639
        %v4703 = vpop.f32.mrf.mxu0
        %v4704 = vadd.f32 0.0, %v4703
        %4705 = vmatmul.f32.gmra.mxu0 %v4642
        %v4706 = vpop.f32.mrf.mxu0
        %v4707 = vadd.f32 0.0, %v4706
        %4708 = vdwg.mxu0
        %v4710 = vsel %vm438, %v4561, 0
        %v4713 = vsel %vm438, %v4562, 0
        %v4716 = vsel %vm438, %v4563, 0
        %v4719 = vsel %vm438, %v4564, 0
        %v4722 = vsel %vm438, %v4565, 0
        %v4725 = vsel %vm438, %v4566, 0
        %v4728 = vsel %vm438, %v4567, 0
        %v4731 = vsel %vm438, %v4568, 0
        %v4734 = vsel %vm438, %v4569, 0
        %v4737 = vsel %vm438, %v4570, 0
        %v4740 = vsel %vm438, %v4571, 0
        %v4743 = vsel %vm438, %v4572, 0
        %v4746 = vsel %vm438, %v4573, 0
        %v4749 = vsel %vm438, %v4574, 0
        %v4752 = vsel %vm438, %v4575, 0
        %v4755 = vsel %vm438, %v4576, 0
        %4757 = vmatpush.msra.mxu0 0.0
        %4758 = vmatpush.msra.mxu0 0.0
        %4759 = vmatpush.msra.mxu0 0.0
        %4760 = vmatpush.msra.mxu0 0.0
        %4761 = vmatpush.msra.mxu0 0.0
        %4762 = vmatpush.msra.mxu0 0.0
        %4763 = vmatpush.msra.mxu0 0.0
        %4764 = vmatpush.msra.mxu0 0.0
        %4765 = vmatpush.msra.mxu0 0.0
        %4766 = vmatpush.msra.mxu0 0.0
        %4767 = vmatpush.msra.mxu0 0.0
        %4768 = vmatpush.msra.mxu0 0.0
        %4769 = vmatpush.msra.mxu0 0.0
        %4770 = vmatpush.msra.mxu0 0.0
        %4771 = vmatpush.msra.mxu0 0.0
        %4772 = vmatpush.msra.mxu0 %v4577
        %4773 = vmatmul.f32.gmra.mxu0 %v4710
        %v4774 = vpop.f32.mrf.mxu0
        %v4775 = vadd.f32 %v4662, %v4774
        %4776 = vmatmul.f32.gmra.mxu0 %v4713
        %v4777 = vpop.f32.mrf.mxu0
        %v4778 = vadd.f32 %v4665, %v4777
        %4779 = vmatmul.f32.gmra.mxu0 %v4716
        %v4780 = vpop.f32.mrf.mxu0
        %v4781 = vadd.f32 %v4668, %v4780
        %4782 = vmatmul.f32.gmra.mxu0 %v4719
        %v4783 = vpop.f32.mrf.mxu0
        %v4784 = vadd.f32 %v4671, %v4783
        %4785 = vmatmul.f32.gmra.mxu0 %v4722
        %v4786 = vpop.f32.mrf.mxu0
        %v4787 = vadd.f32 %v4674, %v4786
        %4788 = vmatmul.f32.gmra.mxu0 %v4725
        %v4789 = vpop.f32.mrf.mxu0
        %v4790 = vadd.f32 %v4677, %v4789
        %4791 = vmatmul.f32.gmra.mxu0 %v4728
        %v4792 = vpop.f32.mrf.mxu0
        %v4793 = vadd.f32 %v4680, %v4792
        %4794 = vmatmul.f32.gmra.mxu0 %v4731
        %v4795 = vpop.f32.mrf.mxu0
        %v4796 = vadd.f32 %v4683, %v4795
        %4797 = vmatmul.f32.gmra.mxu0 %v4734
        %v4798 = vpop.f32.mrf.mxu0
        %v4799 = vadd.f32 %v4686, %v4798
        %4800 = vmatmul.f32.gmra.mxu0 %v4737
        %v4801 = vpop.f32.mrf.mxu0
        %v4802 = vadd.f32 %v4689, %v4801
        %4803 = vmatmul.f32.gmra.mxu0 %v4740
        %v4804 = vpop.f32.mrf.mxu0
        %v4805 = vadd.f32 %v4692, %v4804
        %4806 = vmatmul.f32.gmra.mxu0 %v4743
        %v4807 = vpop.f32.mrf.mxu0
        %v4808 = vadd.f32 %v4695, %v4807
        %4809 = vmatmul.f32.gmra.mxu0 %v4746
        %v4810 = vpop.f32.mrf.mxu0
        %v4811 = vadd.f32 %v4698, %v4810
        %4812 = vmatmul.f32.gmra.mxu0 %v4749
        %v4813 = vpop.f32.mrf.mxu0
        %v4814 = vadd.f32 %v4701, %v4813
        %4815 = vmatmul.f32.gmra.mxu0 %v4752
        %v4816 = vpop.f32.mrf.mxu0
        %v4817 = vadd.f32 %v4704, %v4816
        %4818 = vmatmul.f32.gmra.mxu0 %v4755
        %v4819 = vpop.f32.mrf.mxu0
        %v4820 = vadd.f32 %v4707, %v4819
        %4821 = vdwg.mxu0
        %v4822 = vld [vmem:[#allocation3 + $0x2] sm:$0xff]
        %v4823 = vld [vmem:[#allocation3 + $0xa] sm:$0xff]
        %v4824 = vld [vmem:[#allocation3 + $0x12] sm:$0xff]
        %v4825 = vld [vmem:[#allocation3 + $0x1a] sm:$0xff]
        %v4826 = vld [vmem:[#allocation3 + $0x22] sm:$0xff]
        %v4827 = vld [vmem:[#allocation3 + $0x2a] sm:$0xff]
        %v4828 = vld [vmem:[#allocation3 + $0x32] sm:$0xff]
        %v4829 = vld [vmem:[#allocation3 + $0x3a] sm:$0xff]
        %v4830 = vld [vmem:[#allocation3 + $0x42] sm:$0xff]
        %v4831 = vld [vmem:[#allocation3 + $0x4a] sm:$0xff]
        %v4832 = vld [vmem:[#allocation3 + $0x52] sm:$0xff]
        %v4833 = vld [vmem:[#allocation3 + $0x5a] sm:$0xff]
        %v4834 = vld [vmem:[#allocation3 + $0x62] sm:$0xff]
        %v4835 = vld [vmem:[#allocation3 + $0x6a] sm:$0xff]
        %v4836 = vld [vmem:[#allocation3 + $0x72] sm:$0xff]
        %v4837 = vld [vmem:[#allocation3 + $0x7a] sm:$0xff]
        %s4838 = scalar_lea.vmem %s5, 16
        %v4839 = vld [vmem:[%s4838] sm:$0xff]
        %v4841 = vsel %vm438, %v4822, 0
        %v4844 = vsel %vm438, %v4823, 0
        %v4847 = vsel %vm438, %v4824, 0
        %v4850 = vsel %vm438, %v4825, 0
        %v4853 = vsel %vm438, %v4826, 0
        %v4856 = vsel %vm438, %v4827, 0
        %v4859 = vsel %vm438, %v4828, 0
        %v4862 = vsel %vm438, %v4829, 0
        %v4865 = vsel %vm438, %v4830, 0
        %v4868 = vsel %vm438, %v4831, 0
        %v4871 = vsel %vm438, %v4832, 0
        %v4874 = vsel %vm438, %v4833, 0
        %v4877 = vsel %vm438, %v4834, 0
        %v4880 = vsel %vm438, %v4835, 0
        %v4883 = vsel %vm438, %v4836, 0
        %v4886 = vsel %vm438, %v4837, 0
        %4888 = vmatpush.msra.mxu0 0.0
        %4889 = vmatpush.msra.mxu0 0.0
        %4890 = vmatpush.msra.mxu0 0.0
        %4891 = vmatpush.msra.mxu0 0.0
        %4892 = vmatpush.msra.mxu0 0.0
        %4893 = vmatpush.msra.mxu0 0.0
        %4894 = vmatpush.msra.mxu0 0.0
        %4895 = vmatpush.msra.mxu0 0.0
        %4896 = vmatpush.msra.mxu0 0.0
        %4897 = vmatpush.msra.mxu0 0.0
        %4898 = vmatpush.msra.mxu0 0.0
        %4899 = vmatpush.msra.mxu0 0.0
        %4900 = vmatpush.msra.mxu0 0.0
        %4901 = vmatpush.msra.mxu0 0.0
        %4902 = vmatpush.msra.mxu0 0.0
        %4903 = vmatpush.msra.mxu0 %v4839
        %4904 = vmatmul.f32.gmra.mxu0 %v4841
        %v4905 = vpop.f32.mrf.mxu0
        %v4906 = vadd.f32 0.0, %v4905
        %4907 = vmatmul.f32.gmra.mxu0 %v4844
        %v4908 = vpop.f32.mrf.mxu0
        %v4909 = vadd.f32 0.0, %v4908
        %4910 = vmatmul.f32.gmra.mxu0 %v4847
        %v4911 = vpop.f32.mrf.mxu0
        %v4912 = vadd.f32 0.0, %v4911
        %4913 = vmatmul.f32.gmra.mxu0 %v4850
        %v4914 = vpop.f32.mrf.mxu0
        %v4915 = vadd.f32 0.0, %v4914
        %4916 = vmatmul.f32.gmra.mxu0 %v4853
        %v4917 = vpop.f32.mrf.mxu0
        %v4918 = vadd.f32 0.0, %v4917
        %4919 = vmatmul.f32.gmra.mxu0 %v4856
        %v4920 = vpop.f32.mrf.mxu0
        %v4921 = vadd.f32 0.0, %v4920
        %4922 = vmatmul.f32.gmra.mxu0 %v4859
        %v4923 = vpop.f32.mrf.mxu0
        %v4924 = vadd.f32 0.0, %v4923
        %4925 = vmatmul.f32.gmra.mxu0 %v4862
        %v4926 = vpop.f32.mrf.mxu0
        %v4927 = vadd.f32 0.0, %v4926
        %4928 = vmatmul.f32.gmra.mxu0 %v4865
        %v4929 = vpop.f32.mrf.mxu0
        %v4930 = vadd.f32 0.0, %v4929
        %4931 = vmatmul.f32.gmra.mxu0 %v4868
        %v4932 = vpop.f32.mrf.mxu0
        %v4933 = vadd.f32 0.0, %v4932
        %4934 = vmatmul.f32.gmra.mxu0 %v4871
        %v4935 = vpop.f32.mrf.mxu0
        %v4936 = vadd.f32 0.0, %v4935
        %4937 = vmatmul.f32.gmra.mxu0 %v4874
        %v4938 = vpop.f32.mrf.mxu0
        %v4939 = vadd.f32 0.0, %v4938
        %4940 = vmatmul.f32.gmra.mxu0 %v4877
        %v4941 = vpop.f32.mrf.mxu0
        %v4942 = vadd.f32 0.0, %v4941
        %4943 = vmatmul.f32.gmra.mxu0 %v4880
        %v4944 = vpop.f32.mrf.mxu0
        %v4945 = vadd.f32 0.0, %v4944
        %4946 = vmatmul.f32.gmra.mxu0 %v4883
        %v4947 = vpop.f32.mrf.mxu0
        %v4948 = vadd.f32 0.0, %v4947
        %4949 = vmatmul.f32.gmra.mxu0 %v4886
        %v4950 = vpop.f32.mrf.mxu0
        %v4951 = vadd.f32 0.0, %v4950
        %4952 = vdwg.mxu0
        %v4953 = vadd.f32 %v4775, %v4906
        %v4954 = vadd.f32 %v4778, %v4909
        %v4955 = vadd.f32 %v4781, %v4912
        %v4956 = vadd.f32 %v4784, %v4915
        %v4957 = vadd.f32 %v4787, %v4918
        %v4958 = vadd.f32 %v4790, %v4921
        %v4959 = vadd.f32 %v4793, %v4924
        %v4960 = vadd.f32 %v4796, %v4927
        %v4961 = vadd.f32 %v4799, %v4930
        %v4962 = vadd.f32 %v4802, %v4933
        %v4963 = vadd.f32 %v4805, %v4936
        %v4964 = vadd.f32 %v4808, %v4939
        %v4965 = vadd.f32 %v4811, %v4942
        %v4966 = vadd.f32 %v4814, %v4945
        %v4967 = vadd.f32 %v4817, %v4948
        %v4968 = vadd.f32 %v4820, %v4951
        %v4969 = vld [vmem:[#allocation3 + $0x10] sm:$0xff]
        %v4970 = vld [vmem:[#allocation3 + $0x18] sm:$0xff]
        %v4971 = vld [vmem:[#allocation3 + $0x20] sm:$0xff]
        %v4972 = vld [vmem:[#allocation3 + $0x28] sm:$0xff]
        %v4973 = vld [vmem:[#allocation3 + $0x30] sm:$0xff]
        %v4974 = vld [vmem:[#allocation3 + $0x38] sm:$0xff]
        %v4975 = vld [vmem:[#allocation3 + $0x40] sm:$0xff]
        %v4976 = vld [vmem:[#allocation3 + $0x48] sm:$0xff]
        %v4977 = vld [vmem:[#allocation3 + $0x50] sm:$0xff]
        %v4978 = vld [vmem:[#allocation3 + $0x58] sm:$0xff]
        %v4979 = vld [vmem:[#allocation3 + $0x60] sm:$0xff]
        %v4980 = vld [vmem:[#allocation3 + $0x68] sm:$0xff]
        %v4981 = vld [vmem:[#allocation3 + $0x70] sm:$0xff]
        %v4982 = vld [vmem:[#allocation3 + $0x78] sm:$0xff]
        %v4983 = vld [vmem:[#allocation3 + $0x80] sm:$0xff]
        %v4984 = vld [vmem:[#allocation3 + $0x88] sm:$0xff]
        %s4985 = scalar_lea.vmem %s5, 24
        %v4986 = vld [vmem:[%s4985] sm:$0xff]
        %v4988 = vsel %vm438, %v4969, 0
        %v4991 = vsel %vm438, %v4970, 0
        %v4994 = vsel %vm438, %v4971, 0
        %v4997 = vsel %vm438, %v4972, 0
        %v5000 = vsel %vm438, %v4973, 0
        %v5003 = vsel %vm438, %v4974, 0
        %v5006 = vsel %vm438, %v4975, 0
        %v5009 = vsel %vm438, %v4976, 0
        %v5012 = vsel %vm438, %v4977, 0
        %v5015 = vsel %vm438, %v4978, 0
        %v5018 = vsel %vm438, %v4979, 0
        %v5021 = vsel %vm438, %v4980, 0
        %v5024 = vsel %vm438, %v4981, 0
        %v5027 = vsel %vm438, %v4982, 0
        %v5030 = vsel %vm438, %v4983, 0
        %v5033 = vsel %vm438, %v4984, 0
        %5035 = vmatpush.msra.mxu0 0.0
        %5036 = vmatpush.msra.mxu0 0.0
        %5037 = vmatpush.msra.mxu0 0.0
        %5038 = vmatpush.msra.mxu0 0.0
        %5039 = vmatpush.msra.mxu0 0.0
        %5040 = vmatpush.msra.mxu0 0.0
        %5041 = vmatpush.msra.mxu0 0.0
        %5042 = vmatpush.msra.mxu0 0.0
        %5043 = vmatpush.msra.mxu0 0.0
        %5044 = vmatpush.msra.mxu0 0.0
        %5045 = vmatpush.msra.mxu0 0.0
        %5046 = vmatpush.msra.mxu0 0.0
        %5047 = vmatpush.msra.mxu0 0.0
        %5048 = vmatpush.msra.mxu0 0.0
        %5049 = vmatpush.msra.mxu0 0.0
        %5050 = vmatpush.msra.mxu0 %v4986
        %5051 = vmatmul.f32.gmra.mxu0 %v4988
        %v5052 = vpop.f32.mrf.mxu0
        %v5053 = vadd.f32 0.0, %v5052
        %5054 = vmatmul.f32.gmra.mxu0 %v4991
        %v5055 = vpop.f32.mrf.mxu0
        %v5056 = vadd.f32 0.0, %v5055
        %5057 = vmatmul.f32.gmra.mxu0 %v4994
        %v5058 = vpop.f32.mrf.mxu0
        %v5059 = vadd.f32 0.0, %v5058
        %5060 = vmatmul.f32.gmra.mxu0 %v4997
        %v5061 = vpop.f32.mrf.mxu0
        %v5062 = vadd.f32 0.0, %v5061
        %5063 = vmatmul.f32.gmra.mxu0 %v5000
        %v5064 = vpop.f32.mrf.mxu0
        %v5065 = vadd.f32 0.0, %v5064
        %5066 = vmatmul.f32.gmra.mxu0 %v5003
        %v5067 = vpop.f32.mrf.mxu0
        %v5068 = vadd.f32 0.0, %v5067
        %5069 = vmatmul.f32.gmra.mxu0 %v5006
        %v5070 = vpop.f32.mrf.mxu0
        %v5071 = vadd.f32 0.0, %v5070
        %5072 = vmatmul.f32.gmra.mxu0 %v5009
        %v5073 = vpop.f32.mrf.mxu0
        %v5074 = vadd.f32 0.0, %v5073
        %5075 = vmatmul.f32.gmra.mxu0 %v5012
        %v5076 = vpop.f32.mrf.mxu0
        %v5077 = vadd.f32 0.0, %v5076
        %5078 = vmatmul.f32.gmra.mxu0 %v5015
        %v5079 = vpop.f32.mrf.mxu0
        %v5080 = vadd.f32 0.0, %v5079
        %5081 = vmatmul.f32.gmra.mxu0 %v5018
        %v5082 = vpop.f32.mrf.mxu0
        %v5083 = vadd.f32 0.0, %v5082
        %5084 = vmatmul.f32.gmra.mxu0 %v5021
        %v5085 = vpop.f32.mrf.mxu0
        %v5086 = vadd.f32 0.0, %v5085
        %5087 = vmatmul.f32.gmra.mxu0 %v5024
        %v5088 = vpop.f32.mrf.mxu0
        %v5089 = vadd.f32 0.0, %v5088
        %5090 = vmatmul.f32.gmra.mxu0 %v5027
        %v5091 = vpop.f32.mrf.mxu0
        %v5092 = vadd.f32 0.0, %v5091
        %5093 = vmatmul.f32.gmra.mxu0 %v5030
        %v5094 = vpop.f32.mrf.mxu0
        %v5095 = vadd.f32 0.0, %v5094
        %5096 = vmatmul.f32.gmra.mxu0 %v5033
        %v5097 = vpop.f32.mrf.mxu0
        %v5098 = vadd.f32 0.0, %v5097
        %5099 = vdwg.mxu0
        %v5100 = vadd.f32 %v4953, %v5053
        %v5101 = vadd.f32 %v4954, %v5056
        %v5102 = vadd.f32 %v4955, %v5059
        %v5103 = vadd.f32 %v4956, %v5062
        %v5104 = vadd.f32 %v4957, %v5065
        %v5105 = vadd.f32 %v4958, %v5068
        %v5106 = vadd.f32 %v4959, %v5071
        %v5107 = vadd.f32 %v4960, %v5074
        %v5108 = vadd.f32 %v4961, %v5077
        %v5109 = vadd.f32 %v4962, %v5080
        %v5110 = vadd.f32 %v4963, %v5083
        %v5111 = vadd.f32 %v4964, %v5086
        %v5112 = vadd.f32 %v4965, %v5089
        %v5113 = vadd.f32 %v4966, %v5092
        %v5114 = vadd.f32 %v4967, %v5095
        %v5115 = vadd.f32 %v4968, %v5098
        %v5116 = vld [vmem:[#allocation3 + $0x11] sm:$0xff]
        %v5117 = vld [vmem:[#allocation3 + $0x19] sm:$0xff]
        %v5118 = vld [vmem:[#allocation3 + $0x21] sm:$0xff]
        %v5119 = vld [vmem:[#allocation3 + $0x29] sm:$0xff]
        %v5120 = vld [vmem:[#allocation3 + $0x31] sm:$0xff]
        %v5121 = vld [vmem:[#allocation3 + $0x39] sm:$0xff]
        %v5122 = vld [vmem:[#allocation3 + $0x41] sm:$0xff]
        %v5123 = vld [vmem:[#allocation3 + $0x49] sm:$0xff]
        %v5124 = vld [vmem:[#allocation3 + $0x51] sm:$0xff]
        %v5125 = vld [vmem:[#allocation3 + $0x59] sm:$0xff]
        %v5126 = vld [vmem:[#allocation3 + $0x61] sm:$0xff]
        %v5127 = vld [vmem:[#allocation3 + $0x69] sm:$0xff]
        %v5128 = vld [vmem:[#allocation3 + $0x71] sm:$0xff]
        %v5129 = vld [vmem:[#allocation3 + $0x79] sm:$0xff]
        %v5130 = vld [vmem:[#allocation3 + $0x81] sm:$0xff]
        %v5131 = vld [vmem:[#allocation3 + $0x89] sm:$0xff]
        %s5132 = scalar_lea.vmem %s5, 32
        %v5133 = vld [vmem:[%s5132] sm:$0xff]
        %v5135 = vsel %vm438, %v5116, 0
        %v5138 = vsel %vm438, %v5117, 0
        %v5141 = vsel %vm438, %v5118, 0
        %v5144 = vsel %vm438, %v5119, 0
        %v5147 = vsel %vm438, %v5120, 0
        %v5150 = vsel %vm438, %v5121, 0
        %v5153 = vsel %vm438, %v5122, 0
        %v5156 = vsel %vm438, %v5123, 0
        %v5159 = vsel %vm438, %v5124, 0
        %v5162 = vsel %vm438, %v5125, 0
        %v5165 = vsel %vm438, %v5126, 0
        %v5168 = vsel %vm438, %v5127, 0
        %v5171 = vsel %vm438, %v5128, 0
        %v5174 = vsel %vm438, %v5129, 0
        %v5177 = vsel %vm438, %v5130, 0
        %v5180 = vsel %vm438, %v5131, 0
        %5182 = vmatpush.msra.mxu0 0.0
        %5183 = vmatpush.msra.mxu0 0.0
        %5184 = vmatpush.msra.mxu0 0.0
        %5185 = vmatpush.msra.mxu0 0.0
        %5186 = vmatpush.msra.mxu0 0.0
        %5187 = vmatpush.msra.mxu0 0.0
        %5188 = vmatpush.msra.mxu0 0.0
        %5189 = vmatpush.msra.mxu0 0.0
        %5190 = vmatpush.msra.mxu0 0.0
        %5191 = vmatpush.msra.mxu0 0.0
        %5192 = vmatpush.msra.mxu0 0.0
        %5193 = vmatpush.msra.mxu0 0.0
        %5194 = vmatpush.msra.mxu0 0.0
        %5195 = vmatpush.msra.mxu0 0.0
        %5196 = vmatpush.msra.mxu0 0.0
        %5197 = vmatpush.msra.mxu0 %v5133
        %5198 = vmatmul.f32.gmra.mxu0 %v5135
        %v5199 = vpop.f32.mrf.mxu0
        %v5200 = vadd.f32 0.0, %v5199
        %5201 = vmatmul.f32.gmra.mxu0 %v5138
        %v5202 = vpop.f32.mrf.mxu0
        %v5203 = vadd.f32 0.0, %v5202
        %5204 = vmatmul.f32.gmra.mxu0 %v5141
        %v5205 = vpop.f32.mrf.mxu0
        %v5206 = vadd.f32 0.0, %v5205
        %5207 = vmatmul.f32.gmra.mxu0 %v5144
        %v5208 = vpop.f32.mrf.mxu0
        %v5209 = vadd.f32 0.0, %v5208
        %5210 = vmatmul.f32.gmra.mxu0 %v5147
        %v5211 = vpop.f32.mrf.mxu0
        %v5212 = vadd.f32 0.0, %v5211
        %5213 = vmatmul.f32.gmra.mxu0 %v5150
        %v5214 = vpop.f32.mrf.mxu0
        %v5215 = vadd.f32 0.0, %v5214
        %5216 = vmatmul.f32.gmra.mxu0 %v5153
        %v5217 = vpop.f32.mrf.mxu0
        %v5218 = vadd.f32 0.0, %v5217
        %5219 = vmatmul.f32.gmra.mxu0 %v5156
        %v5220 = vpop.f32.mrf.mxu0
        %v5221 = vadd.f32 0.0, %v5220
        %5222 = vmatmul.f32.gmra.mxu0 %v5159
        %v5223 = vpop.f32.mrf.mxu0
        %v5224 = vadd.f32 0.0, %v5223
        %5225 = vmatmul.f32.gmra.mxu0 %v5162
        %v5226 = vpop.f32.mrf.mxu0
        %v5227 = vadd.f32 0.0, %v5226
        %5228 = vmatmul.f32.gmra.mxu0 %v5165
        %v5229 = vpop.f32.mrf.mxu0
        %v5230 = vadd.f32 0.0, %v5229
        %5231 = vmatmul.f32.gmra.mxu0 %v5168
        %v5232 = vpop.f32.mrf.mxu0
        %v5233 = vadd.f32 0.0, %v5232
        %5234 = vmatmul.f32.gmra.mxu0 %v5171
        %v5235 = vpop.f32.mrf.mxu0
        %v5236 = vadd.f32 0.0, %v5235
        %5237 = vmatmul.f32.gmra.mxu0 %v5174
        %v5238 = vpop.f32.mrf.mxu0
        %v5239 = vadd.f32 0.0, %v5238
        %5240 = vmatmul.f32.gmra.mxu0 %v5177
        %v5241 = vpop.f32.mrf.mxu0
        %v5242 = vadd.f32 0.0, %v5241
        %5243 = vmatmul.f32.gmra.mxu0 %v5180
        %v5244 = vpop.f32.mrf.mxu0
        %v5245 = vadd.f32 0.0, %v5244
        %5246 = vdwg.mxu0
        %v5247 = vadd.f32 %v5100, %v5200
        %v5248 = vadd.f32 %v5101, %v5203
        %v5249 = vadd.f32 %v5102, %v5206
        %v5250 = vadd.f32 %v5103, %v5209
        %v5251 = vadd.f32 %v5104, %v5212
        %v5252 = vadd.f32 %v5105, %v5215
        %v5253 = vadd.f32 %v5106, %v5218
        %v5254 = vadd.f32 %v5107, %v5221
        %v5255 = vadd.f32 %v5108, %v5224
        %v5256 = vadd.f32 %v5109, %v5227
        %v5257 = vadd.f32 %v5110, %v5230
        %v5258 = vadd.f32 %v5111, %v5233
        %v5259 = vadd.f32 %v5112, %v5236
        %v5260 = vadd.f32 %v5113, %v5239
        %v5261 = vadd.f32 %v5114, %v5242
        %v5262 = vadd.f32 %v5115, %v5245
        %v5263 = vld [vmem:[#allocation3 + $0x12] sm:$0xff]
        %v5264 = vld [vmem:[#allocation3 + $0x1a] sm:$0xff]
        %v5265 = vld [vmem:[#allocation3 + $0x22] sm:$0xff]
        %v5266 = vld [vmem:[#allocation3 + $0x2a] sm:$0xff]
        %v5267 = vld [vmem:[#allocation3 + $0x32] sm:$0xff]
        %v5268 = vld [vmem:[#allocation3 + $0x3a] sm:$0xff]
        %v5269 = vld [vmem:[#allocation3 + $0x42] sm:$0xff]
        %v5270 = vld [vmem:[#allocation3 + $0x4a] sm:$0xff]
        %v5271 = vld [vmem:[#allocation3 + $0x52] sm:$0xff]
        %v5272 = vld [vmem:[#allocation3 + $0x5a] sm:$0xff]
        %v5273 = vld [vmem:[#allocation3 + $0x62] sm:$0xff]
        %v5274 = vld [vmem:[#allocation3 + $0x6a] sm:$0xff]
        %v5275 = vld [vmem:[#allocation3 + $0x72] sm:$0xff]
        %v5276 = vld [vmem:[#allocation3 + $0x7a] sm:$0xff]
        %v5277 = vld [vmem:[#allocation3 + $0x82] sm:$0xff]
        %v5278 = vld [vmem:[#allocation3 + $0x8a] sm:$0xff]
        %s5279 = scalar_lea.vmem %s5, 40
        %v5280 = vld [vmem:[%s5279] sm:$0xff]
        %v5282 = vsel %vm438, %v5263, 0
        %v5285 = vsel %vm438, %v5264, 0
        %v5288 = vsel %vm438, %v5265, 0
        %v5291 = vsel %vm438, %v5266, 0
        %v5294 = vsel %vm438, %v5267, 0
        %v5297 = vsel %vm438, %v5268, 0
        %v5300 = vsel %vm438, %v5269, 0
        %v5303 = vsel %vm438, %v5270, 0
        %v5306 = vsel %vm438, %v5271, 0
        %v5309 = vsel %vm438, %v5272, 0
        %v5312 = vsel %vm438, %v5273, 0
        %v5315 = vsel %vm438, %v5274, 0
        %v5318 = vsel %vm438, %v5275, 0
        %v5321 = vsel %vm438, %v5276, 0
        %v5324 = vsel %vm438, %v5277, 0
        %v5327 = vsel %vm438, %v5278, 0
        %5329 = vmatpush.msra.mxu0 0.0
        %5330 = vmatpush.msra.mxu0 0.0
        %5331 = vmatpush.msra.mxu0 0.0
        %5332 = vmatpush.msra.mxu0 0.0
        %5333 = vmatpush.msra.mxu0 0.0
        %5334 = vmatpush.msra.mxu0 0.0
        %5335 = vmatpush.msra.mxu0 0.0
        %5336 = vmatpush.msra.mxu0 0.0
        %5337 = vmatpush.msra.mxu0 0.0
        %5338 = vmatpush.msra.mxu0 0.0
        %5339 = vmatpush.msra.mxu0 0.0
        %5340 = vmatpush.msra.mxu0 0.0
        %5341 = vmatpush.msra.mxu0 0.0
        %5342 = vmatpush.msra.mxu0 0.0
        %5343 = vmatpush.msra.mxu0 0.0
        %5344 = vmatpush.msra.mxu0 %v5280
        %5345 = vmatmul.f32.gmra.mxu0 %v5282
        %v5346 = vpop.f32.mrf.mxu0
        %v5347 = vadd.f32 0.0, %v5346
        %5348 = vmatmul.f32.gmra.mxu0 %v5285
        %v5349 = vpop.f32.mrf.mxu0
        %v5350 = vadd.f32 0.0, %v5349
        %5351 = vmatmul.f32.gmra.mxu0 %v5288
        %v5352 = vpop.f32.mrf.mxu0
        %v5353 = vadd.f32 0.0, %v5352
        %5354 = vmatmul.f32.gmra.mxu0 %v5291
        %v5355 = vpop.f32.mrf.mxu0
        %v5356 = vadd.f32 0.0, %v5355
        %5357 = vmatmul.f32.gmra.mxu0 %v5294
        %v5358 = vpop.f32.mrf.mxu0
        %v5359 = vadd.f32 0.0, %v5358
        %5360 = vmatmul.f32.gmra.mxu0 %v5297
        %v5361 = vpop.f32.mrf.mxu0
        %v5362 = vadd.f32 0.0, %v5361
        %5363 = vmatmul.f32.gmra.mxu0 %v5300
        %v5364 = vpop.f32.mrf.mxu0
        %v5365 = vadd.f32 0.0, %v5364
        %5366 = vmatmul.f32.gmra.mxu0 %v5303
        %v5367 = vpop.f32.mrf.mxu0
        %v5368 = vadd.f32 0.0, %v5367
        %5369 = vmatmul.f32.gmra.mxu0 %v5306
        %v5370 = vpop.f32.mrf.mxu0
        %v5371 = vadd.f32 0.0, %v5370
        %5372 = vmatmul.f32.gmra.mxu0 %v5309
        %v5373 = vpop.f32.mrf.mxu0
        %v5374 = vadd.f32 0.0, %v5373
        %5375 = vmatmul.f32.gmra.mxu0 %v5312
        %v5376 = vpop.f32.mrf.mxu0
        %v5377 = vadd.f32 0.0, %v5376
        %5378 = vmatmul.f32.gmra.mxu0 %v5315
        %v5379 = vpop.f32.mrf.mxu0
        %v5380 = vadd.f32 0.0, %v5379
        %5381 = vmatmul.f32.gmra.mxu0 %v5318
        %v5382 = vpop.f32.mrf.mxu0
        %v5383 = vadd.f32 0.0, %v5382
        %5384 = vmatmul.f32.gmra.mxu0 %v5321
        %v5385 = vpop.f32.mrf.mxu0
        %v5386 = vadd.f32 0.0, %v5385
        %5387 = vmatmul.f32.gmra.mxu0 %v5324
        %v5388 = vpop.f32.mrf.mxu0
        %v5389 = vadd.f32 0.0, %v5388
        %5390 = vmatmul.f32.gmra.mxu0 %v5327
        %v5391 = vpop.f32.mrf.mxu0
        %v5392 = vadd.f32 0.0, %v5391
        %5393 = vdwg.mxu0
        %v5394 = vadd.f32 %v5247, %v5347
        %v5395 = vadd.f32 %v5248, %v5350
        %v5396 = vadd.f32 %v5249, %v5353
        %v5397 = vadd.f32 %v5250, %v5356
        %v5398 = vadd.f32 %v5251, %v5359
        %v5399 = vadd.f32 %v5252, %v5362
        %v5400 = vadd.f32 %v5253, %v5365
        %v5401 = vadd.f32 %v5254, %v5368
        %v5402 = vadd.f32 %v5255, %v5371
        %v5403 = vadd.f32 %v5256, %v5374
        %v5404 = vadd.f32 %v5257, %v5377
        %v5405 = vadd.f32 %v5258, %v5380
        %v5406 = vadd.f32 %v5259, %v5383
        %v5407 = vadd.f32 %v5260, %v5386
        %v5408 = vadd.f32 %v5261, %v5389
        %v5409 = vadd.f32 %v5262, %v5392
        %v5410 = vld [vmem:[#allocation3 + $0x20] sm:$0xff]
        %v5411 = vld [vmem:[#allocation3 + $0x28] sm:$0xff]
        %v5412 = vld [vmem:[#allocation3 + $0x30] sm:$0xff]
        %v5413 = vld [vmem:[#allocation3 + $0x38] sm:$0xff]
        %v5414 = vld [vmem:[#allocation3 + $0x40] sm:$0xff]
        %v5415 = vld [vmem:[#allocation3 + $0x48] sm:$0xff]
        %v5416 = vld [vmem:[#allocation3 + $0x50] sm:$0xff]
        %v5417 = vld [vmem:[#allocation3 + $0x58] sm:$0xff]
        %v5418 = vld [vmem:[#allocation3 + $0x60] sm:$0xff]
        %v5419 = vld [vmem:[#allocation3 + $0x68] sm:$0xff]
        %v5420 = vld [vmem:[#allocation3 + $0x70] sm:$0xff]
        %v5421 = vld [vmem:[#allocation3 + $0x78] sm:$0xff]
        %v5422 = vld [vmem:[#allocation3 + $0x80] sm:$0xff]
        %v5423 = vld [vmem:[#allocation3 + $0x88] sm:$0xff]
        %v5424 = vld [vmem:[#allocation3 + $0x90] sm:$0xff]
        %v5425 = vld [vmem:[#allocation3 + $0x98] sm:$0xff]
        %s5426 = scalar_lea.vmem %s5, 48
        %v5427 = vld [vmem:[%s5426] sm:$0xff]
        %v5429 = vsel %vm438, %v5410, 0
        %v5432 = vsel %vm438, %v5411, 0
        %v5435 = vsel %vm438, %v5412, 0
        %v5438 = vsel %vm438, %v5413, 0
        %v5441 = vsel %vm438, %v5414, 0
        %v5444 = vsel %vm438, %v5415, 0
        %v5447 = vsel %vm438, %v5416, 0
        %v5450 = vsel %vm438, %v5417, 0
        %v5453 = vsel %vm438, %v5418, 0
        %v5456 = vsel %vm438, %v5419, 0
        %v5459 = vsel %vm438, %v5420, 0
        %v5462 = vsel %vm438, %v5421, 0
        %v5465 = vsel %vm438, %v5422, 0
        %v5468 = vsel %vm438, %v5423, 0
        %v5471 = vsel %vm438, %v5424, 0
        %v5474 = vsel %vm438, %v5425, 0
        %5476 = vmatpush.msra.mxu0 0.0
        %5477 = vmatpush.msra.mxu0 0.0
        %5478 = vmatpush.msra.mxu0 0.0
        %5479 = vmatpush.msra.mxu0 0.0
        %5480 = vmatpush.msra.mxu0 0.0
        %5481 = vmatpush.msra.mxu0 0.0
        %5482 = vmatpush.msra.mxu0 0.0
        %5483 = vmatpush.msra.mxu0 0.0
        %5484 = vmatpush.msra.mxu0 0.0
        %5485 = vmatpush.msra.mxu0 0.0
        %5486 = vmatpush.msra.mxu0 0.0
        %5487 = vmatpush.msra.mxu0 0.0
        %5488 = vmatpush.msra.mxu0 0.0
        %5489 = vmatpush.msra.mxu0 0.0
        %5490 = vmatpush.msra.mxu0 0.0
        %5491 = vmatpush.msra.mxu0 %v5427
        %5492 = vmatmul.f32.gmra.mxu0 %v5429
        %v5493 = vpop.f32.mrf.mxu0
        %v5494 = vadd.f32 0.0, %v5493
        %5495 = vmatmul.f32.gmra.mxu0 %v5432
        %v5496 = vpop.f32.mrf.mxu0
        %v5497 = vadd.f32 0.0, %v5496
        %5498 = vmatmul.f32.gmra.mxu0 %v5435
        %v5499 = vpop.f32.mrf.mxu0
        %v5500 = vadd.f32 0.0, %v5499
        %5501 = vmatmul.f32.gmra.mxu0 %v5438
        %v5502 = vpop.f32.mrf.mxu0
        %v5503 = vadd.f32 0.0, %v5502
        %5504 = vmatmul.f32.gmra.mxu0 %v5441
        %v5505 = vpop.f32.mrf.mxu0
        %v5506 = vadd.f32 0.0, %v5505
        %5507 = vmatmul.f32.gmra.mxu0 %v5444
        %v5508 = vpop.f32.mrf.mxu0
        %v5509 = vadd.f32 0.0, %v5508
        %5510 = vmatmul.f32.gmra.mxu0 %v5447
        %v5511 = vpop.f32.mrf.mxu0
        %v5512 = vadd.f32 0.0, %v5511
        %5513 = vmatmul.f32.gmra.mxu0 %v5450
        %v5514 = vpop.f32.mrf.mxu0
        %v5515 = vadd.f32 0.0, %v5514
        %5516 = vmatmul.f32.gmra.mxu0 %v5453
        %v5517 = vpop.f32.mrf.mxu0
        %v5518 = vadd.f32 0.0, %v5517
        %5519 = vmatmul.f32.gmra.mxu0 %v5456
        %v5520 = vpop.f32.mrf.mxu0
        %v5521 = vadd.f32 0.0, %v5520
        %5522 = vmatmul.f32.gmra.mxu0 %v5459
        %v5523 = vpop.f32.mrf.mxu0
        %v5524 = vadd.f32 0.0, %v5523
        %5525 = vmatmul.f32.gmra.mxu0 %v5462
        %v5526 = vpop.f32.mrf.mxu0
        %v5527 = vadd.f32 0.0, %v5526
        %5528 = vmatmul.f32.gmra.mxu0 %v5465
        %v5529 = vpop.f32.mrf.mxu0
        %v5530 = vadd.f32 0.0, %v5529
        %5531 = vmatmul.f32.gmra.mxu0 %v5468
        %v5532 = vpop.f32.mrf.mxu0
        %v5533 = vadd.f32 0.0, %v5532
        %5534 = vmatmul.f32.gmra.mxu0 %v5471
        %v5535 = vpop.f32.mrf.mxu0
        %v5536 = vadd.f32 0.0, %v5535
        %5537 = vmatmul.f32.gmra.mxu0 %v5474
        %v5538 = vpop.f32.mrf.mxu0
        %v5539 = vadd.f32 0.0, %v5538
        %5540 = vdwg.mxu0
        %v5541 = vadd.f32 %v5394, %v5494
        %v5542 = vadd.f32 %v5395, %v5497
        %v5543 = vadd.f32 %v5396, %v5500
        %v5544 = vadd.f32 %v5397, %v5503
        %v5545 = vadd.f32 %v5398, %v5506
        %v5546 = vadd.f32 %v5399, %v5509
        %v5547 = vadd.f32 %v5400, %v5512
        %v5548 = vadd.f32 %v5401, %v5515
        %v5549 = vadd.f32 %v5402, %v5518
        %v5550 = vadd.f32 %v5403, %v5521
        %v5551 = vadd.f32 %v5404, %v5524
        %v5552 = vadd.f32 %v5405, %v5527
        %v5553 = vadd.f32 %v5406, %v5530
        %v5554 = vadd.f32 %v5407, %v5533
        %v5555 = vadd.f32 %v5408, %v5536
        %v5556 = vadd.f32 %v5409, %v5539
        %v5557 = vld [vmem:[#allocation3 + $0x21] sm:$0xff]
        %v5558 = vld [vmem:[#allocation3 + $0x29] sm:$0xff]
        %v5559 = vld [vmem:[#allocation3 + $0x31] sm:$0xff]
        %v5560 = vld [vmem:[#allocation3 + $0x39] sm:$0xff]
        %v5561 = vld [vmem:[#allocation3 + $0x41] sm:$0xff]
        %v5562 = vld [vmem:[#allocation3 + $0x49] sm:$0xff]
        %v5563 = vld [vmem:[#allocation3 + $0x51] sm:$0xff]
        %v5564 = vld [vmem:[#allocation3 + $0x59] sm:$0xff]
        %v5565 = vld [vmem:[#allocation3 + $0x61] sm:$0xff]
        %v5566 = vld [vmem:[#allocation3 + $0x69] sm:$0xff]
        %v5567 = vld [vmem:[#allocation3 + $0x71] sm:$0xff]
        %v5568 = vld [vmem:[#allocation3 + $0x79] sm:$0xff]
        %v5569 = vld [vmem:[#allocation3 + $0x81] sm:$0xff]
        %v5570 = vld [vmem:[#allocation3 + $0x89] sm:$0xff]
        %v5571 = vld [vmem:[#allocation3 + $0x91] sm:$0xff]
        %v5572 = vld [vmem:[#allocation3 + $0x99] sm:$0xff]
        %s5573 = scalar_lea.vmem %s5, 56
        %v5574 = vld [vmem:[%s5573] sm:$0xff]
        %v5576 = vsel %vm438, %v5557, 0
        %v5579 = vsel %vm438, %v5558, 0
        %v5582 = vsel %vm438, %v5559, 0
        %v5585 = vsel %vm438, %v5560, 0
        %v5588 = vsel %vm438, %v5561, 0
        %v5591 = vsel %vm438, %v5562, 0
        %v5594 = vsel %vm438, %v5563, 0
        %v5597 = vsel %vm438, %v5564, 0
        %v5600 = vsel %vm438, %v5565, 0
        %v5603 = vsel %vm438, %v5566, 0
        %v5606 = vsel %vm438, %v5567, 0
        %v5609 = vsel %vm438, %v5568, 0
        %v5612 = vsel %vm438, %v5569, 0
        %v5615 = vsel %vm438, %v5570, 0
        %v5618 = vsel %vm438, %v5571, 0
        %v5621 = vsel %vm438, %v5572, 0
        %5623 = vmatpush.msra.mxu0 0.0
        %5624 = vmatpush.msra.mxu0 0.0
        %5625 = vmatpush.msra.mxu0 0.0
        %5626 = vmatpush.msra.mxu0 0.0
        %5627 = vmatpush.msra.mxu0 0.0
        %5628 = vmatpush.msra.mxu0 0.0
        %5629 = vmatpush.msra.mxu0 0.0
        %5630 = vmatpush.msra.mxu0 0.0
        %5631 = vmatpush.msra.mxu0 0.0
        %5632 = vmatpush.msra.mxu0 0.0
        %5633 = vmatpush.msra.mxu0 0.0
        %5634 = vmatpush.msra.mxu0 0.0
        %5635 = vmatpush.msra.mxu0 0.0
        %5636 = vmatpush.msra.mxu0 0.0
        %5637 = vmatpush.msra.mxu0 0.0
        %5638 = vmatpush.msra.mxu0 %v5574
        %5639 = vmatmul.f32.gmra.mxu0 %v5576
        %v5640 = vpop.f32.mrf.mxu0
        %v5641 = vadd.f32 0.0, %v5640
        %5642 = vmatmul.f32.gmra.mxu0 %v5579
        %v5643 = vpop.f32.mrf.mxu0
        %v5644 = vadd.f32 0.0, %v5643
        %5645 = vmatmul.f32.gmra.mxu0 %v5582
        %v5646 = vpop.f32.mrf.mxu0
        %v5647 = vadd.f32 0.0, %v5646
        %5648 = vmatmul.f32.gmra.mxu0 %v5585
        %v5649 = vpop.f32.mrf.mxu0
        %v5650 = vadd.f32 0.0, %v5649
        %5651 = vmatmul.f32.gmra.mxu0 %v5588
        %v5652 = vpop.f32.mrf.mxu0
        %v5653 = vadd.f32 0.0, %v5652
        %5654 = vmatmul.f32.gmra.mxu0 %v5591
        %v5655 = vpop.f32.mrf.mxu0
        %v5656 = vadd.f32 0.0, %v5655
        %5657 = vmatmul.f32.gmra.mxu0 %v5594
        %v5658 = vpop.f32.mrf.mxu0
        %v5659 = vadd.f32 0.0, %v5658
        %5660 = vmatmul.f32.gmra.mxu0 %v5597
        %v5661 = vpop.f32.mrf.mxu0
        %v5662 = vadd.f32 0.0, %v5661
        %5663 = vmatmul.f32.gmra.mxu0 %v5600
        %v5664 = vpop.f32.mrf.mxu0
        %v5665 = vadd.f32 0.0, %v5664
        %5666 = vmatmul.f32.gmra.mxu0 %v5603
        %v5667 = vpop.f32.mrf.mxu0
        %v5668 = vadd.f32 0.0, %v5667
        %5669 = vmatmul.f32.gmra.mxu0 %v5606
        %v5670 = vpop.f32.mrf.mxu0
        %v5671 = vadd.f32 0.0, %v5670
        %5672 = vmatmul.f32.gmra.mxu0 %v5609
        %v5673 = vpop.f32.mrf.mxu0
        %v5674 = vadd.f32 0.0, %v5673
        %5675 = vmatmul.f32.gmra.mxu0 %v5612
        %v5676 = vpop.f32.mrf.mxu0
        %v5677 = vadd.f32 0.0, %v5676
        %5678 = vmatmul.f32.gmra.mxu0 %v5615
        %v5679 = vpop.f32.mrf.mxu0
        %v5680 = vadd.f32 0.0, %v5679
        %5681 = vmatmul.f32.gmra.mxu0 %v5618
        %v5682 = vpop.f32.mrf.mxu0
        %v5683 = vadd.f32 0.0, %v5682
        %5684 = vmatmul.f32.gmra.mxu0 %v5621
        %v5685 = vpop.f32.mrf.mxu0
        %v5686 = vadd.f32 0.0, %v5685
        %5687 = vdwg.mxu0
        %v5688 = vadd.f32 %v5541, %v5641
        %v5689 = vadd.f32 %v5542, %v5644
        %v5690 = vadd.f32 %v5543, %v5647
        %v5691 = vadd.f32 %v5544, %v5650
        %v5692 = vadd.f32 %v5545, %v5653
        %v5693 = vadd.f32 %v5546, %v5656
        %v5694 = vadd.f32 %v5547, %v5659
        %v5695 = vadd.f32 %v5548, %v5662
        %v5696 = vadd.f32 %v5549, %v5665
        %v5697 = vadd.f32 %v5550, %v5668
        %v5698 = vadd.f32 %v5551, %v5671
        %v5699 = vadd.f32 %v5552, %v5674
        %v5700 = vadd.f32 %v5553, %v5677
        %v5701 = vadd.f32 %v5554, %v5680
        %v5702 = vadd.f32 %v5555, %v5683
        %v5703 = vadd.f32 %v5556, %v5686
        %v5704 = vld [vmem:[#allocation3 + $0x22] sm:$0xff]
        %v5705 = vld [vmem:[#allocation3 + $0x2a] sm:$0xff]
        %v5706 = vld [vmem:[#allocation3 + $0x32] sm:$0xff]
        %v5707 = vld [vmem:[#allocation3 + $0x3a] sm:$0xff]
        %v5708 = vld [vmem:[#allocation3 + $0x42] sm:$0xff]
        %v5709 = vld [vmem:[#allocation3 + $0x4a] sm:$0xff]
        %v5710 = vld [vmem:[#allocation3 + $0x52] sm:$0xff]
        %v5711 = vld [vmem:[#allocation3 + $0x5a] sm:$0xff]
        %v5712 = vld [vmem:[#allocation3 + $0x62] sm:$0xff]
        %v5713 = vld [vmem:[#allocation3 + $0x6a] sm:$0xff]
        %v5714 = vld [vmem:[#allocation3 + $0x72] sm:$0xff]
        %v5715 = vld [vmem:[#allocation3 + $0x7a] sm:$0xff]
        %v5716 = vld [vmem:[#allocation3 + $0x82] sm:$0xff]
        %v5717 = vld [vmem:[#allocation3 + $0x8a] sm:$0xff]
        %v5718 = vld [vmem:[#allocation3 + $0x92] sm:$0xff]
        %v5719 = vld [vmem:[#allocation3 + $0x9a] sm:$0xff]
        %s5720 = scalar_lea.vmem %s5, 64
        %v5721 = vld [vmem:[%s5720] sm:$0xff]
        %v5723 = vsel %vm438, %v5704, 0
        %v5726 = vsel %vm438, %v5705, 0
        %v5729 = vsel %vm438, %v5706, 0
        %v5732 = vsel %vm438, %v5707, 0
        %v5735 = vsel %vm438, %v5708, 0
        %v5738 = vsel %vm438, %v5709, 0
        %v5741 = vsel %vm438, %v5710, 0
        %v5744 = vsel %vm438, %v5711, 0
        %v5747 = vsel %vm438, %v5712, 0
        %v5750 = vsel %vm438, %v5713, 0
        %v5753 = vsel %vm438, %v5714, 0
        %v5756 = vsel %vm438, %v5715, 0
        %v5759 = vsel %vm438, %v5716, 0
        %v5762 = vsel %vm438, %v5717, 0
        %v5765 = vsel %vm438, %v5718, 0
        %v5768 = vsel %vm438, %v5719, 0
        %5770 = vmatpush.msra.mxu0 0.0
        %5771 = vmatpush.msra.mxu0 0.0
        %5772 = vmatpush.msra.mxu0 0.0
        %5773 = vmatpush.msra.mxu0 0.0
        %5774 = vmatpush.msra.mxu0 0.0
        %5775 = vmatpush.msra.mxu0 0.0
        %5776 = vmatpush.msra.mxu0 0.0
        %5777 = vmatpush.msra.mxu0 0.0
        %5778 = vmatpush.msra.mxu0 0.0
        %5779 = vmatpush.msra.mxu0 0.0
        %5780 = vmatpush.msra.mxu0 0.0
        %5781 = vmatpush.msra.mxu0 0.0
        %5782 = vmatpush.msra.mxu0 0.0
        %5783 = vmatpush.msra.mxu0 0.0
        %5784 = vmatpush.msra.mxu0 0.0
        %5785 = vmatpush.msra.mxu0 %v5721
        %5786 = vmatmul.f32.gmra.mxu0 %v5723
        %v5787 = vpop.f32.mrf.mxu0
        %v5788 = vadd.f32 0.0, %v5787
        %5789 = vmatmul.f32.gmra.mxu0 %v5726
        %v5790 = vpop.f32.mrf.mxu0
        %v5791 = vadd.f32 0.0, %v5790
        %5792 = vmatmul.f32.gmra.mxu0 %v5729
        %v5793 = vpop.f32.mrf.mxu0
        %v5794 = vadd.f32 0.0, %v5793
        %5795 = vmatmul.f32.gmra.mxu0 %v5732
        %v5796 = vpop.f32.mrf.mxu0
        %v5797 = vadd.f32 0.0, %v5796
        %5798 = vmatmul.f32.gmra.mxu0 %v5735
        %v5799 = vpop.f32.mrf.mxu0
        %v5800 = vadd.f32 0.0, %v5799
        %5801 = vmatmul.f32.gmra.mxu0 %v5738
        %v5802 = vpop.f32.mrf.mxu0
        %v5803 = vadd.f32 0.0, %v5802
        %5804 = vmatmul.f32.gmra.mxu0 %v5741
        %v5805 = vpop.f32.mrf.mxu0
        %v5806 = vadd.f32 0.0, %v5805
        %5807 = vmatmul.f32.gmra.mxu0 %v5744
        %v5808 = vpop.f32.mrf.mxu0
        %v5809 = vadd.f32 0.0, %v5808
        %5810 = vmatmul.f32.gmra.mxu0 %v5747
        %v5811 = vpop.f32.mrf.mxu0
        %v5812 = vadd.f32 0.0, %v5811
        %5813 = vmatmul.f32.gmra.mxu0 %v5750
        %v5814 = vpop.f32.mrf.mxu0
        %v5815 = vadd.f32 0.0, %v5814
        %5816 = vmatmul.f32.gmra.mxu0 %v5753
        %v5817 = vpop.f32.mrf.mxu0
        %v5818 = vadd.f32 0.0, %v5817
        %5819 = vmatmul.f32.gmra.mxu0 %v5756
        %v5820 = vpop.f32.mrf.mxu0
        %v5821 = vadd.f32 0.0, %v5820
        %5822 = vmatmul.f32.gmra.mxu0 %v5759
        %v5823 = vpop.f32.mrf.mxu0
        %v5824 = vadd.f32 0.0, %v5823
        %5825 = vmatmul.f32.gmra.mxu0 %v5762
        %v5826 = vpop.f32.mrf.mxu0
        %v5827 = vadd.f32 0.0, %v5826
        %5828 = vmatmul.f32.gmra.mxu0 %v5765
        %v5829 = vpop.f32.mrf.mxu0
        %v5830 = vadd.f32 0.0, %v5829
        %5831 = vmatmul.f32.gmra.mxu0 %v5768
        %v5832 = vpop.f32.mrf.mxu0
        %v5833 = vadd.f32 0.0, %v5832
        %5834 = vdwg.mxu0
        %v5835 = vadd.f32 %v5688, %v5788
        %v5836 = vadd.f32 %v5689, %v5791
        %v5837 = vadd.f32 %v5690, %v5794
        %v5838 = vadd.f32 %v5691, %v5797
        %v5839 = vadd.f32 %v5692, %v5800
        %v5840 = vadd.f32 %v5693, %v5803
        %v5841 = vadd.f32 %v5694, %v5806
        %v5842 = vadd.f32 %v5695, %v5809
        %v5843 = vadd.f32 %v5696, %v5812
        %v5844 = vadd.f32 %v5697, %v5815
        %v5845 = vadd.f32 %v5698, %v5818
        %v5846 = vadd.f32 %v5699, %v5821
        %v5847 = vadd.f32 %v5700, %v5824
        %v5848 = vadd.f32 %v5701, %v5827
        %v5849 = vadd.f32 %v5702, %v5830
        %v5850 = vadd.f32 %v5703, %v5833
        %v5851 = vld [vmem:[%s6] sm:$0x1]
        %v5853 = vperm.slane %v5851, 0
        %v5855 = vadd.f32 %v5835, %v5853
        %v5856 = vadd.f32 %v5836, %v5853
        %v5857 = vadd.f32 %v5837, %v5853
        %v5858 = vadd.f32 %v5838, %v5853
        %v5859 = vadd.f32 %v5839, %v5853
        %v5860 = vadd.f32 %v5840, %v5853
        %v5861 = vadd.f32 %v5841, %v5853
        %v5862 = vadd.f32 %v5842, %v5853
        %v5863 = vadd.f32 %v5843, %v5853
        %v5864 = vadd.f32 %v5844, %v5853
        %v5865 = vadd.f32 %v5845, %v5853
        %v5866 = vadd.f32 %v5846, %v5853
        %v5867 = vadd.f32 %v5847, %v5853
        %v5868 = vadd.f32 %v5848, %v5853
        %v5869 = vadd.f32 %v5849, %v5853
        %v5870 = vadd.f32 %v5850, %v5853
        %v5871 = vmax.f32 %v5855, 0.0
        %v5872 = vmax.f32 %v5856, 0.0
        %v5873 = vmax.f32 %v5857, 0.0
        %v5874 = vmax.f32 %v5858, 0.0
        %v5875 = vmax.f32 %v5859, 0.0
        %v5876 = vmax.f32 %v5860, 0.0
        %v5877 = vmax.f32 %v5861, 0.0
        %v5878 = vmax.f32 %v5862, 0.0
        %v5879 = vmax.f32 %v5863, 0.0
        %v5880 = vmax.f32 %v5864, 0.0
        %v5881 = vmax.f32 %v5865, 0.0
        %v5882 = vmax.f32 %v5866, 0.0
        %v5883 = vmax.f32 %v5867, 0.0
        %v5884 = vmax.f32 %v5868, 0.0
        %v5885 = vmax.f32 %v5869, 0.0
        %v5886 = vmax.f32 %v5870, 0.0
        %v5887 = vmax.f32 %v5871, %v5873
        %v5888 = vmax.f32 %v5872, %v5874
        %5889 = vst.msk [vmem:[#allocation7] sm:$0xff] %vm518, %v5887
        %5890 = vst.msk [vmem:[#allocation7 + $0x8] sm:$0xff] %vm518, %v5888
        %v5891 = vld [vmem:[#allocation7] ss:$2 sm:$0xf]
        %s5892 = scalar_lea.vmem [#allocation7], 1
        %v5893 = vld [vmem:[%s5892] ss:$2 sm:$0xf]
        %v5894 = vmax.f32 %v5891, %v5893
        %vm5895 = vcmask 125952
        %5896 = vst.msk [vmem:[#allocation4 + $0x9] sm:$0xf] %vm5895, %v5894
        %v5897 = vmax.f32 %v5875, %v5877
        %v5898 = vmax.f32 %v5876, %v5878
        %5899 = vst.msk [vmem:[#allocation7] sm:$0xff] %vm518, %v5897
        %5900 = vst.msk [vmem:[#allocation7 + $0x8] sm:$0xff] %vm518, %v5898
        %v5901 = vld [vmem:[#allocation7] ss:$2 sm:$0xf]
        %v5902 = vld [vmem:[%s5892] ss:$2 sm:$0xf]
        %v5903 = vmax.f32 %v5901, %v5902
        %5904 = vst.msk [vmem:[#allocation4 + $0x11] sm:$0xf] %vm5895, %v5903
        %v5905 = vmax.f32 %v5879, %v5881
        %v5906 = vmax.f32 %v5880, %v5882
        %5907 = vst.msk [vmem:[#allocation7] sm:$0xff] %vm518, %v5905
        %5908 = vst.msk [vmem:[#allocation7 + $0x8] sm:$0xff] %vm518, %v5906
        %v5909 = vld [vmem:[#allocation7] ss:$2 sm:$0xf]
        %v5910 = vld [vmem:[%s5892] ss:$2 sm:$0xf]
        %v5911 = vmax.f32 %v5909, %v5910
        %5912 = vst.msk [vmem:[#allocation4 + $0x19] sm:$0xf] %vm5895, %v5911
        %v5913 = vmax.f32 %v5883, %v5885
        %v5914 = vmax.f32 %v5884, %v5886
        %5915 = vst.msk [vmem:[#allocation7] sm:$0xff] %vm518, %v5913
        %5916 = vst.msk [vmem:[#allocation7 + $0x8] sm:$0xff] %vm518, %v5914
        %v5917 = vld [vmem:[#allocation7] ss:$2 sm:$0xf]
        %v5918 = vld [vmem:[%s5892] ss:$2 sm:$0xf]
        %v5919 = vmax.f32 %v5917, %v5918
        %5920 = vst.msk [vmem:[#allocation4 + $0x21] sm:$0xf] %vm5895, %v5919
        %v5921 = vld [vmem:[#allocation4] sm:$0xff]
        %v5922 = vld [vmem:[#allocation4 + $0x8] sm:$0xff]
        %v5923 = vld [vmem:[#allocation4 + $0x10] sm:$0xff]
        %v5924 = vld [vmem:[#allocation4 + $0x18] sm:$0xff]
        %v5925 = vld [vmem:[%s7] sm:$0xff]
        %v5926 = vld [vmem:[%s7 + $0x8] sm:$0xff]
        %v5927 = vld [vmem:[#allocation4 + $0x1] sm:$0xff]
        %v5928 = vld [vmem:[#allocation4 + $0x9] sm:$0xff]
        %v5929 = vld [vmem:[#allocation4 + $0x11] sm:$0xff]
        %v5930 = vld [vmem:[#allocation4 + $0x19] sm:$0xff]
        %s5931 = scalar_lea.vmem %s7, 16
        %v5932 = vld [vmem:[%s5931] sm:$0xff]
        %v5933 = vld [vmem:[%s5931 + $0x8] sm:$0xff]
        %v5935 = vsel %vm518, %v5927, 0
        %v5938 = vsel %vm518, %v5928, 0
        %v5941 = vsel %vm518, %v5929, 0
        %v5944 = vsel %vm518, %v5930, 0
        %5946 = vmatpush.msra.mxu0 0.0
        %5947 = vmatpush.msra.mxu0 0.0
        %5948 = vmatpush.msra.mxu0 0.0
        %5949 = vmatpush.msra.mxu0 0.0
        %5950 = vmatpush.msra.mxu0 0.0
        %5951 = vmatpush.msra.mxu0 0.0
        %5952 = vmatpush.msra.mxu0 0.0
        %5953 = vmatpush.msra.mxu0 0.0
        %5954 = vmatpush.msra.mxu0 0.0
        %5955 = vmatpush.msra.mxu0 0.0
        %5956 = vmatpush.msra.mxu0 0.0
        %5957 = vmatpush.msra.mxu0 0.0
        %5958 = vmatpush.msra.mxu0 0.0
        %5959 = vmatpush.msra.mxu0 0.0
        %5960 = vmatpush.msra.mxu0 %v5933
        %5961 = vmatpush.msra.mxu0 %v5932
        %5962 = vmatmul.f32.gmra.mxu0 %v5935
        %v5963 = vpop.f32.mrf.mxu0
        %v5964 = vadd.f32 0.0, %v5963
        %5965 = vmatmul.f32.gmra.mxu0 %v5938
        %v5966 = vpop.f32.mrf.mxu0
        %v5967 = vadd.f32 0.0, %v5966
        %5968 = vmatmul.f32.gmra.mxu0 %v5941
        %v5969 = vpop.f32.mrf.mxu0
        %v5970 = vadd.f32 0.0, %v5969
        %5971 = vmatmul.f32.gmra.mxu0 %v5944
        %v5972 = vpop.f32.mrf.mxu0
        %v5973 = vadd.f32 0.0, %v5972
        %5974 = vdwg.mxu0
        %v5976 = vsel %vm518, %v5921, 0
        %v5979 = vsel %vm518, %v5922, 0
        %v5982 = vsel %vm518, %v5923, 0
        %v5985 = vsel %vm518, %v5924, 0
        %5987 = vmatpush.msra.mxu0 0.0
        %5988 = vmatpush.msra.mxu0 0.0
        %5989 = vmatpush.msra.mxu0 0.0
        %5990 = vmatpush.msra.mxu0 0.0
        %5991 = vmatpush.msra.mxu0 0.0
        %5992 = vmatpush.msra.mxu0 0.0
        %5993 = vmatpush.msra.mxu0 0.0
        %5994 = vmatpush.msra.mxu0 0.0
        %5995 = vmatpush.msra.mxu0 0.0
        %5996 = vmatpush.msra.mxu0 0.0
        %5997 = vmatpush.msra.mxu0 0.0
        %5998 = vmatpush.msra.mxu0 0.0
        %5999 = vmatpush.msra.mxu0 0.0
        %6000 = vmatpush.msra.mxu0 0.0
        %6001 = vmatpush.msra.mxu0 %v5926
        %6002 = vmatpush.msra.mxu0 %v5925
        %6003 = vmatmul.f32.gmra.mxu0 %v5976
        %v6004 = vpop.f32.mrf.mxu0
        %v6005 = vadd.f32 %v5964, %v6004
        %6006 = vmatmul.f32.gmra.mxu0 %v5979
        %v6007 = vpop.f32.mrf.mxu0
        %v6008 = vadd.f32 %v5967, %v6007
        %6009 = vmatmul.f32.gmra.mxu0 %v5982
        %v6010 = vpop.f32.mrf.mxu0
        %v6011 = vadd.f32 %v5970, %v6010
        %6012 = vmatmul.f32.gmra.mxu0 %v5985
        %v6013 = vpop.f32.mrf.mxu0
        %v6014 = vadd.f32 %v5973, %v6013
        %6015 = vdwg.mxu0
        %v6016 = vld [vmem:[#allocation4 + $0x2] sm:$0xff]
        %v6017 = vld [vmem:[#allocation4 + $0xa] sm:$0xff]
        %v6018 = vld [vmem:[#allocation4 + $0x12] sm:$0xff]
        %v6019 = vld [vmem:[#allocation4 + $0x1a] sm:$0xff]
        %s6020 = scalar_lea.vmem %s7, 32
        %v6021 = vld [vmem:[%s6020] sm:$0xff]
        %v6022 = vld [vmem:[%s6020 + $0x8] sm:$0xff]
        %v6024 = vsel %vm518, %v6016, 0
        %v6027 = vsel %vm518, %v6017, 0
        %v6030 = vsel %vm518, %v6018, 0
        %v6033 = vsel %vm518, %v6019, 0
        %6035 = vmatpush.msra.mxu0 0.0
        %6036 = vmatpush.msra.mxu0 0.0
        %6037 = vmatpush.msra.mxu0 0.0
        %6038 = vmatpush.msra.mxu0 0.0
        %6039 = vmatpush.msra.mxu0 0.0
        %6040 = vmatpush.msra.mxu0 0.0
        %6041 = vmatpush.msra.mxu0 0.0
        %6042 = vmatpush.msra.mxu0 0.0
        %6043 = vmatpush.msra.mxu0 0.0
        %6044 = vmatpush.msra.mxu0 0.0
        %6045 = vmatpush.msra.mxu0 0.0
        %6046 = vmatpush.msra.mxu0 0.0
        %6047 = vmatpush.msra.mxu0 0.0
        %6048 = vmatpush.msra.mxu0 0.0
        %6049 = vmatpush.msra.mxu0 %v6022
        %6050 = vmatpush.msra.mxu0 %v6021
        %6051 = vmatmul.f32.gmra.mxu0 %v6024
        %v6052 = vpop.f32.mrf.mxu0
        %v6053 = vadd.f32 0.0, %v6052
        %6054 = vmatmul.f32.gmra.mxu0 %v6027
        %v6055 = vpop.f32.mrf.mxu0
        %v6056 = vadd.f32 0.0, %v6055
        %6057 = vmatmul.f32.gmra.mxu0 %v6030
        %v6058 = vpop.f32.mrf.mxu0
        %v6059 = vadd.f32 0.0, %v6058
        %6060 = vmatmul.f32.gmra.mxu0 %v6033
        %v6061 = vpop.f32.mrf.mxu0
        %v6062 = vadd.f32 0.0, %v6061
        %6063 = vdwg.mxu0
        %v6064 = vadd.f32 %v6005, %v6053
        %v6065 = vadd.f32 %v6008, %v6056
        %v6066 = vadd.f32 %v6011, %v6059
        %v6067 = vadd.f32 %v6014, %v6062
        %v6068 = vld [vmem:[#allocation4 + $0x8] sm:$0xff]
        %v6069 = vld [vmem:[#allocation4 + $0x10] sm:$0xff]
        %v6070 = vld [vmem:[#allocation4 + $0x18] sm:$0xff]
        %v6071 = vld [vmem:[#allocation4 + $0x20] sm:$0xff]
        %s6072 = scalar_lea.vmem %s7, 48
        %v6073 = vld [vmem:[%s6072] sm:$0xff]
        %v6074 = vld [vmem:[%s6072 + $0x8] sm:$0xff]
        %v6076 = vsel %vm518, %v6068, 0
        %v6079 = vsel %vm518, %v6069, 0
        %v6082 = vsel %vm518, %v6070, 0
        %v6085 = vsel %vm518, %v6071, 0
        %6087 = vmatpush.msra.mxu0 0.0
        %6088 = vmatpush.msra.mxu0 0.0
        %6089 = vmatpush.msra.mxu0 0.0
        %6090 = vmatpush.msra.mxu0 0.0
        %6091 = vmatpush.msra.mxu0 0.0
        %6092 = vmatpush.msra.mxu0 0.0
        %6093 = vmatpush.msra.mxu0 0.0
        %6094 = vmatpush.msra.mxu0 0.0
        %6095 = vmatpush.msra.mxu0 0.0
        %6096 = vmatpush.msra.mxu0 0.0
        %6097 = vmatpush.msra.mxu0 0.0
        %6098 = vmatpush.msra.mxu0 0.0
        %6099 = vmatpush.msra.mxu0 0.0
        %6100 = vmatpush.msra.mxu0 0.0
        %6101 = vmatpush.msra.mxu0 %v6074
        %6102 = vmatpush.msra.mxu0 %v6073
        %6103 = vmatmul.f32.gmra.mxu0 %v6076
        %v6104 = vpop.f32.mrf.mxu0
        %v6105 = vadd.f32 0.0, %v6104
        %6106 = vmatmul.f32.gmra.mxu0 %v6079
        %v6107 = vpop.f32.mrf.mxu0
        %v6108 = vadd.f32 0.0, %v6107
        %6109 = vmatmul.f32.gmra.mxu0 %v6082
        %v6110 = vpop.f32.mrf.mxu0
        %v6111 = vadd.f32 0.0, %v6110
        %6112 = vmatmul.f32.gmra.mxu0 %v6085
        %v6113 = vpop.f32.mrf.mxu0
        %v6114 = vadd.f32 0.0, %v6113
        %6115 = vdwg.mxu0
        %v6116 = vadd.f32 %v6064, %v6105
        %v6117 = vadd.f32 %v6065, %v6108
        %v6118 = vadd.f32 %v6066, %v6111
        %v6119 = vadd.f32 %v6067, %v6114
        %v6120 = vld [vmem:[#allocation4 + $0x9] sm:$0xff]
        %v6121 = vld [vmem:[#allocation4 + $0x11] sm:$0xff]
        %v6122 = vld [vmem:[#allocation4 + $0x19] sm:$0xff]
        %v6123 = vld [vmem:[#allocation4 + $0x21] sm:$0xff]
        %s6124 = scalar_lea.vmem %s7, 64
        %v6125 = vld [vmem:[%s6124] sm:$0xff]
        %v6126 = vld [vmem:[%s6124 + $0x8] sm:$0xff]
        %v6128 = vsel %vm518, %v6120, 0
        %v6131 = vsel %vm518, %v6121, 0
        %v6134 = vsel %vm518, %v6122, 0
        %v6137 = vsel %vm518, %v6123, 0
        %6139 = vmatpush.msra.mxu0 0.0
        %6140 = vmatpush.msra.mxu0 0.0
        %6141 = vmatpush.msra.mxu0 0.0
        %6142 = vmatpush.msra.mxu0 0.0
        %6143 = vmatpush.msra.mxu0 0.0
        %6144 = vmatpush.msra.mxu0 0.0
        %6145 = vmatpush.msra.mxu0 0.0
        %6146 = vmatpush.msra.mxu0 0.0
        %6147 = vmatpush.msra.mxu0 0.0
        %6148 = vmatpush.msra.mxu0 0.0
        %6149 = vmatpush.msra.mxu0 0.0
        %6150 = vmatpush.msra.mxu0 0.0
        %6151 = vmatpush.msra.mxu0 0.0
        %6152 = vmatpush.msra.mxu0 0.0
        %6153 = vmatpush.msra.mxu0 %v6126
        %6154 = vmatpush.msra.mxu0 %v6125
        %6155 = vmatmul.f32.gmra.mxu0 %v6128
        %v6156 = vpop.f32.mrf.mxu0
        %v6157 = vadd.f32 0.0, %v6156
        %6158 = vmatmul.f32.gmra.mxu0 %v6131
        %v6159 = vpop.f32.mrf.mxu0
        %v6160 = vadd.f32 0.0, %v6159
        %6161 = vmatmul.f32.gmra.mxu0 %v6134
        %v6162 = vpop.f32.mrf.mxu0
        %v6163 = vadd.f32 0.0, %v6162
        %6164 = vmatmul.f32.gmra.mxu0 %v6137
        %v6165 = vpop.f32.mrf.mxu0
        %v6166 = vadd.f32 0.0, %v6165
        %6167 = vdwg.mxu0
        %v6168 = vadd.f32 %v6116, %v6157
        %v6169 = vadd.f32 %v6117, %v6160
        %v6170 = vadd.f32 %v6118, %v6163
        %v6171 = vadd.f32 %v6119, %v6166
        %v6172 = vld [vmem:[#allocation4 + $0xa] sm:$0xff]
        %v6173 = vld [vmem:[#allocation4 + $0x12] sm:$0xff]
        %v6174 = vld [vmem:[#allocation4 + $0x1a] sm:$0xff]
        %v6175 = vld [vmem:[#allocation4 + $0x22] sm:$0xff]
        %s6176 = scalar_lea.vmem %s7, 80
        %v6177 = vld [vmem:[%s6176] sm:$0xff]
        %v6178 = vld [vmem:[%s6176 + $0x8] sm:$0xff]
        %v6180 = vsel %vm518, %v6172, 0
        %v6183 = vsel %vm518, %v6173, 0
        %v6186 = vsel %vm518, %v6174, 0
        %v6189 = vsel %vm518, %v6175, 0
        %6191 = vmatpush.msra.mxu0 0.0
        %6192 = vmatpush.msra.mxu0 0.0
        %6193 = vmatpush.msra.mxu0 0.0
        %6194 = vmatpush.msra.mxu0 0.0
        %6195 = vmatpush.msra.mxu0 0.0
        %6196 = vmatpush.msra.mxu0 0.0
        %6197 = vmatpush.msra.mxu0 0.0
        %6198 = vmatpush.msra.mxu0 0.0
        %6199 = vmatpush.msra.mxu0 0.0
        %6200 = vmatpush.msra.mxu0 0.0
        %6201 = vmatpush.msra.mxu0 0.0
        %6202 = vmatpush.msra.mxu0 0.0
        %6203 = vmatpush.msra.mxu0 0.0
        %6204 = vmatpush.msra.mxu0 0.0
        %6205 = vmatpush.msra.mxu0 %v6178
        %6206 = vmatpush.msra.mxu0 %v6177
        %6207 = vmatmul.f32.gmra.mxu0 %v6180
        %v6208 = vpop.f32.mrf.mxu0
        %v6209 = vadd.f32 0.0, %v6208
        %6210 = vmatmul.f32.gmra.mxu0 %v6183
        %v6211 = vpop.f32.mrf.mxu0
        %v6212 = vadd.f32 0.0, %v6211
        %6213 = vmatmul.f32.gmra.mxu0 %v6186
        %v6214 = vpop.f32.mrf.mxu0
        %v6215 = vadd.f32 0.0, %v6214
        %6216 = vmatmul.f32.gmra.mxu0 %v6189
        %v6217 = vpop.f32.mrf.mxu0
        %v6218 = vadd.f32 0.0, %v6217
        %6219 = vdwg.mxu0
        %v6220 = vadd.f32 %v6168, %v6209
        %v6221 = vadd.f32 %v6169, %v6212
        %v6222 = vadd.f32 %v6170, %v6215
        %v6223 = vadd.f32 %v6171, %v6218
        %v6224 = vld [vmem:[#allocation4 + $0x10] sm:$0xff]
        %v6225 = vld [vmem:[#allocation4 + $0x18] sm:$0xff]
        %v6226 = vld [vmem:[#allocation4 + $0x20] sm:$0xff]
        %v6227 = vld [vmem:[#allocation4 + $0x28] sm:$0xff]
        %s6228 = scalar_lea.vmem %s7, 96
        %v6229 = vld [vmem:[%s6228] sm:$0xff]
        %v6230 = vld [vmem:[%s6228 + $0x8] sm:$0xff]
        %v6232 = vsel %vm518, %v6224, 0
        %v6235 = vsel %vm518, %v6225, 0
        %v6238 = vsel %vm518, %v6226, 0
        %v6241 = vsel %vm518, %v6227, 0
        %6243 = vmatpush.msra.mxu0 0.0
        %6244 = vmatpush.msra.mxu0 0.0
        %6245 = vmatpush.msra.mxu0 0.0
        %6246 = vmatpush.msra.mxu0 0.0
        %6247 = vmatpush.msra.mxu0 0.0
        %6248 = vmatpush.msra.mxu0 0.0
        %6249 = vmatpush.msra.mxu0 0.0
        %6250 = vmatpush.msra.mxu0 0.0
        %6251 = vmatpush.msra.mxu0 0.0
        %6252 = vmatpush.msra.mxu0 0.0
        %6253 = vmatpush.msra.mxu0 0.0
        %6254 = vmatpush.msra.mxu0 0.0
        %6255 = vmatpush.msra.mxu0 0.0
        %6256 = vmatpush.msra.mxu0 0.0
        %6257 = vmatpush.msra.mxu0 %v6230
        %6258 = vmatpush.msra.mxu0 %v6229
        %6259 = vmatmul.f32.gmra.mxu0 %v6232
        %v6260 = vpop.f32.mrf.mxu0
        %v6261 = vadd.f32 0.0, %v6260
        %6262 = vmatmul.f32.gmra.mxu0 %v6235
        %v6263 = vpop.f32.mrf.mxu0
        %v6264 = vadd.f32 0.0, %v6263
        %6265 = vmatmul.f32.gmra.mxu0 %v6238
        %v6266 = vpop.f32.mrf.mxu0
        %v6267 = vadd.f32 0.0, %v6266
        %6268 = vmatmul.f32.gmra.mxu0 %v6241
        %v6269 = vpop.f32.mrf.mxu0
        %v6270 = vadd.f32 0.0, %v6269
        %6271 = vdwg.mxu0
        %v6272 = vadd.f32 %v6220, %v6261
        %v6273 = vadd.f32 %v6221, %v6264
        %v6274 = vadd.f32 %v6222, %v6267
        %v6275 = vadd.f32 %v6223, %v6270
        %v6276 = vld [vmem:[#allocation4 + $0x11] sm:$0xff]
        %v6277 = vld [vmem:[#allocation4 + $0x19] sm:$0xff]
        %v6278 = vld [vmem:[#allocation4 + $0x21] sm:$0xff]
        %v6279 = vld [vmem:[#allocation4 + $0x29] sm:$0xff]
        %s6280 = scalar_lea.vmem %s7, 112
        %v6281 = vld [vmem:[%s6280] sm:$0xff]
        %v6282 = vld [vmem:[%s6280 + $0x8] sm:$0xff]
        %v6284 = vsel %vm518, %v6276, 0
        %v6287 = vsel %vm518, %v6277, 0
        %v6290 = vsel %vm518, %v6278, 0
        %v6293 = vsel %vm518, %v6279, 0
        %6295 = vmatpush.msra.mxu0 0.0
        %6296 = vmatpush.msra.mxu0 0.0
        %6297 = vmatpush.msra.mxu0 0.0
        %6298 = vmatpush.msra.mxu0 0.0
        %6299 = vmatpush.msra.mxu0 0.0
        %6300 = vmatpush.msra.mxu0 0.0
        %6301 = vmatpush.msra.mxu0 0.0
        %6302 = vmatpush.msra.mxu0 0.0
        %6303 = vmatpush.msra.mxu0 0.0
        %6304 = vmatpush.msra.mxu0 0.0
        %6305 = vmatpush.msra.mxu0 0.0
        %6306 = vmatpush.msra.mxu0 0.0
        %6307 = vmatpush.msra.mxu0 0.0
        %6308 = vmatpush.msra.mxu0 0.0
        %6309 = vmatpush.msra.mxu0 %v6282
        %6310 = vmatpush.msra.mxu0 %v6281
        %6311 = vmatmul.f32.gmra.mxu0 %v6284
        %v6312 = vpop.f32.mrf.mxu0
        %v6313 = vadd.f32 0.0, %v6312
        %6314 = vmatmul.f32.gmra.mxu0 %v6287
        %v6315 = vpop.f32.mrf.mxu0
        %v6316 = vadd.f32 0.0, %v6315
        %6317 = vmatmul.f32.gmra.mxu0 %v6290
        %v6318 = vpop.f32.mrf.mxu0
        %v6319 = vadd.f32 0.0, %v6318
        %6320 = vmatmul.f32.gmra.mxu0 %v6293
        %v6321 = vpop.f32.mrf.mxu0
        %v6322 = vadd.f32 0.0, %v6321
        %6323 = vdwg.mxu0
        %v6324 = vadd.f32 %v6272, %v6313
        %v6325 = vadd.f32 %v6273, %v6316
        %v6326 = vadd.f32 %v6274, %v6319
        %v6327 = vadd.f32 %v6275, %v6322
        %v6328 = vld [vmem:[#allocation4 + $0x12] sm:$0xff]
        %v6329 = vld [vmem:[#allocation4 + $0x1a] sm:$0xff]
        %v6330 = vld [vmem:[#allocation4 + $0x22] sm:$0xff]
        %v6331 = vld [vmem:[#allocation4 + $0x2a] sm:$0xff]
        %s6332 = scalar_lea.vmem %s7, 128
        %v6333 = vld [vmem:[%s6332] sm:$0xff]
        %v6334 = vld [vmem:[%s6332 + $0x8] sm:$0xff]
        %v6336 = vsel %vm518, %v6328, 0
        %v6339 = vsel %vm518, %v6329, 0
        %v6342 = vsel %vm518, %v6330, 0
        %v6345 = vsel %vm518, %v6331, 0
        %6347 = vmatpush.msra.mxu0 0.0
        %6348 = vmatpush.msra.mxu0 0.0
        %6349 = vmatpush.msra.mxu0 0.0
        %6350 = vmatpush.msra.mxu0 0.0
        %6351 = vmatpush.msra.mxu0 0.0
        %6352 = vmatpush.msra.mxu0 0.0
        %6353 = vmatpush.msra.mxu0 0.0
        %6354 = vmatpush.msra.mxu0 0.0
        %6355 = vmatpush.msra.mxu0 0.0
        %6356 = vmatpush.msra.mxu0 0.0
        %6357 = vmatpush.msra.mxu0 0.0
        %6358 = vmatpush.msra.mxu0 0.0
        %6359 = vmatpush.msra.mxu0 0.0
        %6360 = vmatpush.msra.mxu0 0.0
        %6361 = vmatpush.msra.mxu0 %v6334
        %6362 = vmatpush.msra.mxu0 %v6333
        %6363 = vmatmul.f32.gmra.mxu0 %v6336
        %v6364 = vpop.f32.mrf.mxu0
        %v6365 = vadd.f32 0.0, %v6364
        %6366 = vmatmul.f32.gmra.mxu0 %v6339
        %v6367 = vpop.f32.mrf.mxu0
        %v6368 = vadd.f32 0.0, %v6367
        %6369 = vmatmul.f32.gmra.mxu0 %v6342
        %v6370 = vpop.f32.mrf.mxu0
        %v6371 = vadd.f32 0.0, %v6370
        %6372 = vmatmul.f32.gmra.mxu0 %v6345
        %v6373 = vpop.f32.mrf.mxu0
        %v6374 = vadd.f32 0.0, %v6373
        %6375 = vdwg.mxu0
        %v6376 = vadd.f32 %v6324, %v6365
        %v6377 = vadd.f32 %v6325, %v6368
        %v6378 = vadd.f32 %v6326, %v6371
        %v6379 = vadd.f32 %v6327, %v6374
        %v6380 = vld [vmem:[%s8] sm:$0x1]
        %v6382 = vperm.slane %v6380, 0
        %v6384 = vadd.f32 %v6376, %v6382
        %v6385 = vadd.f32 %v6377, %v6382
        %v6386 = vadd.f32 %v6378, %v6382
        %v6387 = vadd.f32 %v6379, %v6382
        %v6388 = vmax.f32 %v6384, 0.0
        %v6389 = vmax.f32 %v6385, 0.0
        %v6390 = vmax.f32 %v6386, 0.0
        %v6391 = vmax.f32 %v6387, 0.0
        %v6392 = vmax.f32 %v6388, %v6389
        %6393 = vst.msk [vmem:[#allocation8] sm:$0xff] %vm526, %v6392
        %v6394 = vld [vmem:[#allocation8] ss:$2 sm:$0x3]
        %s6395 = scalar_lea.vmem [#allocation8], 1
        %v6396 = vld [vmem:[%s6395] ss:$2 sm:$0x3]
        %v6397 = vmax.f32 %v6394, %v6396
        %vm6398 = vcmask 254976
        %6399 = vst.msk [vmem:[#allocation5 + $0x9] sm:$0x3] %vm6398, %v6397
        %v6400 = vmax.f32 %v6390, %v6391
        %6401 = vst.msk [vmem:[#allocation8] sm:$0xff] %vm526, %v6400
        %v6402 = vld [vmem:[#allocation8] ss:$2 sm:$0x3]
        %v6403 = vld [vmem:[%s6395] ss:$2 sm:$0x3]
        %v6404 = vmax.f32 %v6402, %v6403
        %6405 = vst.msk [vmem:[#allocation5 + $0x11] sm:$0x3] %vm6398, %v6404
        %v6406 = vld [vmem:[#allocation5] sm:$0xff]
        %v6407 = vld [vmem:[#allocation5 + $0x8] sm:$0xff]
        %v6408 = vld [vmem:[%s9] sm:$0xff]
        %v6409 = vld [vmem:[%s9 + $0x8] sm:$0xff]
        %v6410 = vld [vmem:[%s9 + $0x10] sm:$0xff]
        %v6411 = vld [vmem:[%s9 + $0x18] sm:$0xff]
        %v6412 = vld [vmem:[#allocation5 + $0x1] sm:$0xff]
        %v6413 = vld [vmem:[#allocation5 + $0x9] sm:$0xff]
        %s6414 = scalar_lea.vmem %s9, 32
        %v6415 = vld [vmem:[%s6414] sm:$0xff]
        %v6416 = vld [vmem:[%s6414 + $0x8] sm:$0xff]
        %v6417 = vld [vmem:[%s6414 + $0x10] sm:$0xff]
        %v6418 = vld [vmem:[%s6414 + $0x18] sm:$0xff]
        %v6420 = vsel %vm526, %v6412, 0
        %v6423 = vsel %vm526, %v6413, 0
        %6425 = vmatpush.msra.mxu0 0.0
        %6426 = vmatpush.msra.mxu0 0.0
        %6427 = vmatpush.msra.mxu0 0.0
        %6428 = vmatpush.msra.mxu0 0.0
        %6429 = vmatpush.msra.mxu0 0.0
        %6430 = vmatpush.msra.mxu0 0.0
        %6431 = vmatpush.msra.mxu0 0.0
        %6432 = vmatpush.msra.mxu0 0.0
        %6433 = vmatpush.msra.mxu0 0.0
        %6434 = vmatpush.msra.mxu0 0.0
        %6435 = vmatpush.msra.mxu0 0.0
        %6436 = vmatpush.msra.mxu0 0.0
        %6437 = vmatpush.msra.mxu0 %v6418
        %6438 = vmatpush.msra.mxu0 %v6417
        %6439 = vmatpush.msra.mxu0 %v6416
        %6440 = vmatpush.msra.mxu0 %v6415
        %6441 = vmatmul.f32.gmra.mxu0 %v6420
        %v6442 = vpop.f32.mrf.mxu0
        %v6443 = vadd.f32 0.0, %v6442
        %6444 = vmatmul.f32.gmra.mxu0 %v6423
        %v6445 = vpop.f32.mrf.mxu0
        %v6446 = vadd.f32 0.0, %v6445
        %6447 = vdwg.mxu0
        %v6449 = vsel %vm526, %v6406, 0
        %v6452 = vsel %vm526, %v6407, 0
        %6454 = vmatpush.msra.mxu0 0.0
        %6455 = vmatpush.msra.mxu0 0.0
        %6456 = vmatpush.msra.mxu0 0.0
        %6457 = vmatpush.msra.mxu0 0.0
        %6458 = vmatpush.msra.mxu0 0.0
        %6459 = vmatpush.msra.mxu0 0.0
        %6460 = vmatpush.msra.mxu0 0.0
        %6461 = vmatpush.msra.mxu0 0.0
        %6462 = vmatpush.msra.mxu0 0.0
        %6463 = vmatpush.msra.mxu0 0.0
        %6464 = vmatpush.msra.mxu0 0.0
        %6465 = vmatpush.msra.mxu0 0.0
        %6466 = vmatpush.msra.mxu0 %v6411
        %6467 = vmatpush.msra.mxu0 %v6410
        %6468 = vmatpush.msra.mxu0 %v6409
        %6469 = vmatpush.msra.mxu0 %v6408
        %6470 = vmatmul.f32.gmra.mxu0 %v6449
        %v6471 = vpop.f32.mrf.mxu0
        %v6472 = vadd.f32 %v6443, %v6471
        %6473 = vmatmul.f32.gmra.mxu0 %v6452
        %v6474 = vpop.f32.mrf.mxu0
        %v6475 = vadd.f32 %v6446, %v6474
        %6476 = vdwg.mxu0
        %v6477 = vld [vmem:[#allocation5 + $0x2] sm:$0xff]
        %v6478 = vld [vmem:[#allocation5 + $0xa] sm:$0xff]
        %s6479 = scalar_lea.vmem %s9, 64
        %v6480 = vld [vmem:[%s6479] sm:$0xff]
        %v6481 = vld [vmem:[%s6479 + $0x8] sm:$0xff]
        %v6482 = vld [vmem:[%s6479 + $0x10] sm:$0xff]
        %v6483 = vld [vmem:[%s6479 + $0x18] sm:$0xff]
        %v6485 = vsel %vm526, %v6477, 0
        %v6488 = vsel %vm526, %v6478, 0
        %6490 = vmatpush.msra.mxu0 0.0
        %6491 = vmatpush.msra.mxu0 0.0
        %6492 = vmatpush.msra.mxu0 0.0
        %6493 = vmatpush.msra.mxu0 0.0
        %6494 = vmatpush.msra.mxu0 0.0
        %6495 = vmatpush.msra.mxu0 0.0
        %6496 = vmatpush.msra.mxu0 0.0
        %6497 = vmatpush.msra.mxu0 0.0
        %6498 = vmatpush.msra.mxu0 0.0
        %6499 = vmatpush.msra.mxu0 0.0
        %6500 = vmatpush.msra.mxu0 0.0
        %6501 = vmatpush.msra.mxu0 0.0
        %6502 = vmatpush.msra.mxu0 %v6483
        %6503 = vmatpush.msra.mxu0 %v6482
        %6504 = vmatpush.msra.mxu0 %v6481
        %6505 = vmatpush.msra.mxu0 %v6480
        %6506 = vmatmul.f32.gmra.mxu0 %v6485
        %v6507 = vpop.f32.mrf.mxu0
        %v6508 = vadd.f32 0.0, %v6507
        %6509 = vmatmul.f32.gmra.mxu0 %v6488
        %v6510 = vpop.f32.mrf.mxu0
        %v6511 = vadd.f32 0.0, %v6510
        %6512 = vdwg.mxu0
        %v6513 = vadd.f32 %v6472, %v6508
        %v6514 = vadd.f32 %v6475, %v6511
        %v6515 = vld [vmem:[#allocation5 + $0x8] sm:$0xff]
        %v6516 = vld [vmem:[#allocation5 + $0x10] sm:$0xff]
        %s6517 = scalar_lea.vmem %s9, 96
        %v6518 = vld [vmem:[%s6517] sm:$0xff]
        %v6519 = vld [vmem:[%s6517 + $0x8] sm:$0xff]
        %v6520 = vld [vmem:[%s6517 + $0x10] sm:$0xff]
        %v6521 = vld [vmem:[%s6517 + $0x18] sm:$0xff]
        %v6523 = vsel %vm526, %v6515, 0
        %v6526 = vsel %vm526, %v6516, 0
        %6528 = vmatpush.msra.mxu0 0.0
        %6529 = vmatpush.msra.mxu0 0.0
        %6530 = vmatpush.msra.mxu0 0.0
        %6531 = vmatpush.msra.mxu0 0.0
        %6532 = vmatpush.msra.mxu0 0.0
        %6533 = vmatpush.msra.mxu0 0.0
        %6534 = vmatpush.msra.mxu0 0.0
        %6535 = vmatpush.msra.mxu0 0.0
        %6536 = vmatpush.msra.mxu0 0.0
        %6537 = vmatpush.msra.mxu0 0.0
        %6538 = vmatpush.msra.mxu0 0.0
        %6539 = vmatpush.msra.mxu0 0.0
        %6540 = vmatpush.msra.mxu0 %v6521
        %6541 = vmatpush.msra.mxu0 %v6520
        %6542 = vmatpush.msra.mxu0 %v6519
        %6543 = vmatpush.msra.mxu0 %v6518
        %6544 = vmatmul.f32.gmra.mxu0 %v6523
        %v6545 = vpop.f32.mrf.mxu0
        %v6546 = vadd.f32 0.0, %v6545
        %6547 = vmatmul.f32.gmra.mxu0 %v6526
        %v6548 = vpop.f32.mrf.mxu0
        %v6549 = vadd.f32 0.0, %v6548
        %6550 = vdwg.mxu0
        %v6551 = vadd.f32 %v6513, %v6546
        %v6552 = vadd.f32 %v6514, %v6549
        %v6553 = vld [vmem:[#allocation5 + $0x9] sm:$0xff]
        %v6554 = vld [vmem:[#allocation5 + $0x11] sm:$0xff]
        %s6555 = scalar_lea.vmem %s9, 128
        %v6556 = vld [vmem:[%s6555] sm:$0xff]
        %v6557 = vld [vmem:[%s6555 + $0x8] sm:$0xff]
        %v6558 = vld [vmem:[%s6555 + $0x10] sm:$0xff]
        %v6559 = vld [vmem:[%s6555 + $0x18] sm:$0xff]
        %v6561 = vsel %vm526, %v6553, 0
        %v6564 = vsel %vm526, %v6554, 0
        %6566 = vmatpush.msra.mxu0 0.0
        %6567 = vmatpush.msra.mxu0 0.0
        %6568 = vmatpush.msra.mxu0 0.0
        %6569 = vmatpush.msra.mxu0 0.0
        %6570 = vmatpush.msra.mxu0 0.0
        %6571 = vmatpush.msra.mxu0 0.0
        %6572 = vmatpush.msra.mxu0 0.0
        %6573 = vmatpush.msra.mxu0 0.0
        %6574 = vmatpush.msra.mxu0 0.0
        %6575 = vmatpush.msra.mxu0 0.0
        %6576 = vmatpush.msra.mxu0 0.0
        %6577 = vmatpush.msra.mxu0 0.0
        %6578 = vmatpush.msra.mxu0 %v6559
        %6579 = vmatpush.msra.mxu0 %v6558
        %6580 = vmatpush.msra.mxu0 %v6557
        %6581 = vmatpush.msra.mxu0 %v6556
        %6582 = vmatmul.f32.gmra.mxu0 %v6561
        %v6583 = vpop.f32.mrf.mxu0
        %v6584 = vadd.f32 0.0, %v6583
        %6585 = vmatmul.f32.gmra.mxu0 %v6564
        %v6586 = vpop.f32.mrf.mxu0
        %v6587 = vadd.f32 0.0, %v6586
        %6588 = vdwg.mxu0
        %v6589 = vadd.f32 %v6551, %v6584
        %v6590 = vadd.f32 %v6552, %v6587
        %v6591 = vld [vmem:[#allocation5 + $0xa] sm:$0xff]
        %v6592 = vld [vmem:[#allocation5 + $0x12] sm:$0xff]
        %s6593 = scalar_lea.vmem %s9, 160
        %v6594 = vld [vmem:[%s6593] sm:$0xff]
        %v6595 = vld [vmem:[%s6593 + $0x8] sm:$0xff]
        %v6596 = vld [vmem:[%s6593 + $0x10] sm:$0xff]
        %v6597 = vld [vmem:[%s6593 + $0x18] sm:$0xff]
        %v6599 = vsel %vm526, %v6591, 0
        %v6602 = vsel %vm526, %v6592, 0
        %6604 = vmatpush.msra.mxu0 0.0
        %6605 = vmatpush.msra.mxu0 0.0
        %6606 = vmatpush.msra.mxu0 0.0
        %6607 = vmatpush.msra.mxu0 0.0
        %6608 = vmatpush.msra.mxu0 0.0
        %6609 = vmatpush.msra.mxu0 0.0
        %6610 = vmatpush.msra.mxu0 0.0
        %6611 = vmatpush.msra.mxu0 0.0
        %6612 = vmatpush.msra.mxu0 0.0
        %6613 = vmatpush.msra.mxu0 0.0
        %6614 = vmatpush.msra.mxu0 0.0
        %6615 = vmatpush.msra.mxu0 0.0
        %6616 = vmatpush.msra.mxu0 %v6597
        %6617 = vmatpush.msra.mxu0 %v6596
        %6618 = vmatpush.msra.mxu0 %v6595
        %6619 = vmatpush.msra.mxu0 %v6594
        %6620 = vmatmul.f32.gmra.mxu0 %v6599
        %v6621 = vpop.f32.mrf.mxu0
        %v6622 = vadd.f32 0.0, %v6621
        %6623 = vmatmul.f32.gmra.mxu0 %v6602
        %v6624 = vpop.f32.mrf.mxu0
        %v6625 = vadd.f32 0.0, %v6624
        %6626 = vdwg.mxu0
        %v6627 = vadd.f32 %v6589, %v6622
        %v6628 = vadd.f32 %v6590, %v6625
        %v6629 = vld [vmem:[#allocation5 + $0x10] sm:$0xff]
        %v6630 = vld [vmem:[#allocation5 + $0x18] sm:$0xff]
        %s6631 = scalar_lea.vmem %s9, 192
        %v6632 = vld [vmem:[%s6631] sm:$0xff]
        %v6633 = vld [vmem:[%s6631 + $0x8] sm:$0xff]
        %v6634 = vld [vmem:[%s6631 + $0x10] sm:$0xff]
        %v6635 = vld [vmem:[%s6631 + $0x18] sm:$0xff]
        %v6637 = vsel %vm526, %v6629, 0
        %v6640 = vsel %vm526, %v6630, 0
        %6642 = vmatpush.msra.mxu0 0.0
        %6643 = vmatpush.msra.mxu0 0.0
        %6644 = vmatpush.msra.mxu0 0.0
        %6645 = vmatpush.msra.mxu0 0.0
        %6646 = vmatpush.msra.mxu0 0.0
        %6647 = vmatpush.msra.mxu0 0.0
        %6648 = vmatpush.msra.mxu0 0.0
        %6649 = vmatpush.msra.mxu0 0.0
        %6650 = vmatpush.msra.mxu0 0.0
        %6651 = vmatpush.msra.mxu0 0.0
        %6652 = vmatpush.msra.mxu0 0.0
        %6653 = vmatpush.msra.mxu0 0.0
        %6654 = vmatpush.msra.mxu0 %v6635
        %6655 = vmatpush.msra.mxu0 %v6634
        %6656 = vmatpush.msra.mxu0 %v6633
        %6657 = vmatpush.msra.mxu0 %v6632
        %6658 = vmatmul.f32.gmra.mxu0 %v6637
        %v6659 = vpop.f32.mrf.mxu0
        %v6660 = vadd.f32 0.0, %v6659
        %6661 = vmatmul.f32.gmra.mxu0 %v6640
        %v6662 = vpop.f32.mrf.mxu0
        %v6663 = vadd.f32 0.0, %v6662
        %6664 = vdwg.mxu0
        %v6665 = vadd.f32 %v6627, %v6660
        %v6666 = vadd.f32 %v6628, %v6663
        %v6667 = vld [vmem:[#allocation5 + $0x11] sm:$0xff]
        %v6668 = vld [vmem:[#allocation5 + $0x19] sm:$0xff]
        %s6669 = scalar_lea.vmem %s9, 224
        %v6670 = vld [vmem:[%s6669] sm:$0xff]
        %v6671 = vld [vmem:[%s6669 + $0x8] sm:$0xff]
        %v6672 = vld [vmem:[%s6669 + $0x10] sm:$0xff]
        %v6673 = vld [vmem:[%s6669 + $0x18] sm:$0xff]
        %v6675 = vsel %vm526, %v6667, 0
        %v6678 = vsel %vm526, %v6668, 0
        %6680 = vmatpush.msra.mxu0 0.0
        %6681 = vmatpush.msra.mxu0 0.0
        %6682 = vmatpush.msra.mxu0 0.0
        %6683 = vmatpush.msra.mxu0 0.0
        %6684 = vmatpush.msra.mxu0 0.0
        %6685 = vmatpush.msra.mxu0 0.0
        %6686 = vmatpush.msra.mxu0 0.0
        %6687 = vmatpush.msra.mxu0 0.0
        %6688 = vmatpush.msra.mxu0 0.0
        %6689 = vmatpush.msra.mxu0 0.0
        %6690 = vmatpush.msra.mxu0 0.0
        %6691 = vmatpush.msra.mxu0 0.0
        %6692 = vmatpush.msra.mxu0 %v6673
        %6693 = vmatpush.msra.mxu0 %v6672
        %6694 = vmatpush.msra.mxu0 %v6671
        %6695 = vmatpush.msra.mxu0 %v6670
        %6696 = vmatmul.f32.gmra.mxu0 %v6675
        %v6697 = vpop.f32.mrf.mxu0
        %v6698 = vadd.f32 0.0, %v6697
        %6699 = vmatmul.f32.gmra.mxu0 %v6678
        %v6700 = vpop.f32.mrf.mxu0
        %v6701 = vadd.f32 0.0, %v6700
        %6702 = vdwg.mxu0
        %v6703 = vadd.f32 %v6665, %v6698
        %v6704 = vadd.f32 %v6666, %v6701
        %v6705 = vld [vmem:[#allocation5 + $0x12] sm:$0xff]
        %v6706 = vld [vmem:[#allocation5 + $0x1a] sm:$0xff]
        %s6707 = scalar_lea.vmem %s9, 256
        %v6708 = vld [vmem:[%s6707] sm:$0xff]
        %v6709 = vld [vmem:[%s6707 + $0x8] sm:$0xff]
        %v6710 = vld [vmem:[%s6707 + $0x10] sm:$0xff]
        %v6711 = vld [vmem:[%s6707 + $0x18] sm:$0xff]
        %v6713 = vsel %vm526, %v6705, 0
        %v6716 = vsel %vm526, %v6706, 0
        %6718 = vmatpush.msra.mxu0 0.0
        %6719 = vmatpush.msra.mxu0 0.0
        %6720 = vmatpush.msra.mxu0 0.0
        %6721 = vmatpush.msra.mxu0 0.0
        %6722 = vmatpush.msra.mxu0 0.0
        %6723 = vmatpush.msra.mxu0 0.0
        %6724 = vmatpush.msra.mxu0 0.0
        %6725 = vmatpush.msra.mxu0 0.0
        %6726 = vmatpush.msra.mxu0 0.0
        %6727 = vmatpush.msra.mxu0 0.0
        %6728 = vmatpush.msra.mxu0 0.0
        %6729 = vmatpush.msra.mxu0 0.0
        %6730 = vmatpush.msra.mxu0 %v6711
        %6731 = vmatpush.msra.mxu0 %v6710
        %6732 = vmatpush.msra.mxu0 %v6709
        %6733 = vmatpush.msra.mxu0 %v6708
        %6734 = vmatmul.f32.gmra.mxu0 %v6713
        %v6735 = vpop.f32.mrf.mxu0
        %v6736 = vadd.f32 0.0, %v6735
        %6737 = vmatmul.f32.gmra.mxu0 %v6716
        %v6738 = vpop.f32.mrf.mxu0
        %v6739 = vadd.f32 0.0, %v6738
        %6740 = vdwg.mxu0
        %v6741 = vadd.f32 %v6703, %v6736
        %v6742 = vadd.f32 %v6704, %v6739
        %v6743 = vld [vmem:[%s10] sm:$0x1]
        %v6745 = vperm.slane %v6743, 0
        %v6747 = vadd.f32 %v6741, %v6745
        %v6748 = vadd.f32 %v6742, %v6745
        %v6749 = vmax.f32 %v6747, 0.0
        %v6750 = vmax.f32 %v6748, 0.0
        %vm6751 = vcmask 517120
        %v6752 = vsel %vm6751, %v6749, 0.0
        %v6753 = vrot.slane %v6752, 4
        %v6754 = vadd.f32 %v6752, %v6753
        %v6755 = vrot.slane %v6754, 2
        %v6756 = vadd.f32 %v6754, %v6755
        %v6757 = vrot.slane %v6756, 1
        %v6758 = vadd.f32 %v6756, %v6757
        %v6759 = vadd.f32 %v6758, 0.0
        %v6760 = vsel %vm6751, %v6750, 0.0
        %v6761 = vrot.slane %v6760, 4
        %v6762 = vadd.f32 %v6760, %v6761
        %v6763 = vrot.slane %v6762, 2
        %v6764 = vadd.f32 %v6762, %v6763
        %v6765 = vrot.slane %v6764, 1
        %v6766 = vadd.f32 %v6764, %v6765
        %v6767 = vadd.f32 %v6759, %v6766
        %v6768 = vmul.f32 %v6767, 0.25
        %v6769 = vld [vmem:[%s11] sm:$0xff]
        %v6770 = vld [vmem:[%s11 + $0x8] sm:$0xff]
        %v6771 = vld [vmem:[%s11 + $0x10] sm:$0xff]
        %v6772 = vld [vmem:[%s11 + $0x18] sm:$0xff]
        %v6773 = vld [vmem:[%s11 + $0x20] sm:$0xff]
        %v6774 = vld [vmem:[%s11 + $0x28] sm:$0xff]
        %v6775 = vld [vmem:[%s11 + $0x30] sm:$0xff]
        %v6776 = vld [vmem:[%s11 + $0x38] sm:$0xff]
        %v6777 = vld [vmem:[%s12] sm:$0x1]
        %vm6778 = vcmask 523264
        %v6780 = vsel %vm6778, %v6768, 0
        %6782 = vmatpush.msra.mxu0 0.0
        %6783 = vmatpush.msra.mxu0 0.0
        %6784 = vmatpush.msra.mxu0 0.0
        %6785 = vmatpush.msra.mxu0 0.0
        %6786 = vmatpush.msra.mxu0 0.0
        %6787 = vmatpush.msra.mxu0 0.0
        %6788 = vmatpush.msra.mxu0 0.0
        %6789 = vmatpush.msra.mxu0 0.0
        %6790 = vmatpush.msra.mxu0 %v6776
        %6791 = vmatpush.msra.mxu0 %v6775
        %6792 = vmatpush.msra.mxu0 %v6774
        %6793 = vmatpush.msra.mxu0 %v6773
        %6794 = vmatpush.msra.mxu0 %v6772
        %6795 = vmatpush.msra.mxu0 %v6771
        %6796 = vmatpush.msra.mxu0 %v6770
        %6797 = vmatpush.msra.mxu0 %v6769
        %6798 = vmatmul.f32.gmra.mxu0 %v6780
        %v6799 = vpop.f32.mrf.mxu0
        %v6800 = vadd.f32 %v6777, %v6799
        %6801 = vdwg.mxu0
        %6802 = vst [vmem:[%s432] sm:$0x1] %v6800
        %s6803 = sand.u32 %s313, 1
        %s6804 = scalar_lea.sflag [#allocation10], %s6803
        %s6805 = sand.u32 %s313, 1
        %s6806 = scalar_lea.vmem [#allocation9], %s6805
        // Predicated region
        $region73: #{_lambda_.1} parent=71 // pred_check
          %p6807 = pneg %p323
        $region74: #{_lambda_.1} parent=71 // pred_check_branch
          %6809 = sbr.rel (%p6807) target = $region76
        $region75: #{_lambda_.1} parent=71 // pred_region
          %6811 = vsyncadd %s6804, 0
          %s6812 = scalar_lea.hbm %s13, %s27
          %s6814 = sshll.u32 %s6806, 4
          %s6815 = int_to_ptr.vmem [resolvable:$true] %s6814
          %s6816 = sshll.u32 %s6812, 4
          %s6817 = int_to_ptr.hbm [resolvable:$true] %s6816
          %6819 = dma.vmem_to_hbm [thread:$0]  %s6815, 16, %s6817, %s6804
        $region76: #{_lambda_.1} parent=71 // pred_fallthru
          _
      $region72: #{_lambda_.1} parent=5 // pred_fallthru
        _
      %p6820 = scmp.le.s32.totalorder 2, %s22
      // Predicated region
      $region77: #{_lambda_.1} parent=5 // pred_check
        %p6821 = pneg %p6820
      $region78: #{_lambda_.1} parent=5 // pred_check_branch
        %6823 = sbr.rel (%p6821) target = $region80
      $region79: #{_lambda_.1} parent=5 // pred_region
        %s6824 = ssub.s32 %s22, 2
        // Predicated region
        $region81: #{_lambda_.1} parent=79 // pred_check
          %p6825 = pneg %p329
        $region82: #{_lambda_.1} parent=79 // pred_check_branch
          %6827 = sbr.rel (%p6825) target = $region84
        $region83: #{_lambda_.1} parent=79 // pred_region
          %s6828 = sand.u32 %s314, 1
          %s6829 = scalar_lea.sflag [#allocation10], %s6828
          %s6830 = sand.u32 %s314, 1
          %s6831 = scalar_lea.vmem [#allocation9], %s6830
          %6833 = dma.done %s6829, 16
        $region84: #{_lambda_.1} parent=79 // pred_fallthru
          _
      $region80: #{_lambda_.1} parent=5 // pred_fallthru
        _
    $region6: #{_lambda_.1} parent=1 // loop_footer
      %s26 = sadd.s32 1, %s22
    $region7: #{_lambda_.1} parent=1 // loop_footer_branch
      %21 = sbr.rel target = $region3
    $region8: #{_lambda_.1} parent=1 // loop_exit
      _
    %6834 = vsyncpa [#allocation10], 1
    %s6835 = scalar_lea.sflag [#allocation10], 1
    %6836 = vsyncpa %s6835, 1

</llo_original>
